<compile_context>
chip_gen: v7x
topology: tpu7x:2x2x1
jax: 0.10.0
libtpu: 0.0.40
codegen_flags: <defaults>
</compile_context>

<pallas_src>
import functools
import numpy as np
import jax
import jax.numpy as jnp
from jax import lax
from jax.experimental import pallas as pl
from jax.experimental.pallas import tpu as pltpu


# ----------------------------------------------------------------------------
# Helpers
# ----------------------------------------------------------------------------

def _round_up(x, m):
    return ((x + m - 1) // m) * m


def _make_pool_matrix(T, H, W, kT, kH, kW, pad_rows_to=8):
    """AvgPool3d(kernel=(kT,kH,kW), stride=1, padding=0) as a dense linear map.

    Returns (pmat, Pout, (To,Ho,Wo)) where pmat has shape
    (round_up(Pout, pad_rows_to), T*H*W); padded rows are zero (exact: they
    produce zero pooled vectors which stay zero through conv2+ReLU and are
    excluded by the reduction matrix).
    """
    To, Ho, Wo = T - kT + 1, H - kH + 1, W - kW + 1
    pout = To * Ho * Wo
    pout_pad = _round_up(pout, pad_rows_to)
    m = np.zeros((pout_pad, T * H * W), np.float32)
    inv = 1.0 / float(kT * kH * kW)
    for to in range(To):
        for ho in range(Ho):
            for wo in range(Wo):
                r = (to * Ho + ho) * Wo + wo
                for dt in range(kT):
                    for dh in range(kH):
                        for dw in range(kW):
                            c = ((to + dt) * H + (ho + dh)) * W + (wo + dw)
                            m[r, c] = inv
    return m, pout, (To, Ho, Wo)


def _choose_batch_block(n, max_bs=8):
    """Samples per grid step: amortize step overhead but keep >=2 grid steps
    (v7x has 2 TensorCores; dimension_semantics=('parallel',) shards them)."""
    if n <= 1:
        return 1
    return max(1, min(max_bs, -(-n // 2)))


# ----------------------------------------------------------------------------
# Fused Pallas kernel (one grid step = Bs samples)
# ----------------------------------------------------------------------------

def _fused_projection_head_kernel(x_ref, w1_ref, b1_ref, pmat_ref, w2_ref,
                                  rmat_ref, wh_ref, bh_ref, o_ref,
                                  pooled_scr, *, inv_pout):
    bs = x_ref.shape[1]
    pout8 = pmat_ref.shape[0]

    w1 = w1_ref[...]        # (Cin, C1)  bf16, BN folded
    b1 = b1_ref[...]        # (1, C1)    f32
    pmat = pmat_ref[...]    # (Pout8, THW) bf16

    # conv1 (1x1x1)+BN+ReLU and AvgPool3d, per sample (M = THW rows per dot).
    for b in range(bs):
        xb = x_ref[0, b].astype(jnp.bfloat16)                       # (Cin, THW)
        # Contract over Cin: transposed-LHS matmul, handled natively by MXU.
        y1 = lax.dot_general(xb, w1,
                             dimension_numbers=(((0,), (0,)), ((), ())),
                             preferred_element_type=jnp.float32)     # (THW, C1)
        y1 = jnp.maximum(y1 + b1, 0.0)
        # AvgPool3d((kT,kH,kW), stride=1) as one small bf16 MXU matmul.
        pooled_scr[b * pout8:(b + 1) * pout8, :] = jnp.dot(
            pmat, y1.astype(jnp.bfloat16),
            preferred_element_type=jnp.float32)                      # (Pout8, C1)

    # conv2 (1x1x1) + ReLU over ALL samples at once (M = Bs*Pout8 rows).
    # Dropout(p=0.5) is identity in eval mode.
    y2 = jnp.dot(pooled_scr[...].astype(jnp.bfloat16), w2_ref[...],
                 preferred_element_type=jnp.float32)                 # (Bs*Pout8, C2)
    y2 = jnp.maximum(y2, 0.0)

    # AdaptiveAvgPool3d(1): per-sample mean via a 0/1 reduction matrix (bf16
    # MXU, exact 1.0 weights, f32 accumulation) then an f32 scale.
    g = jnp.dot(rmat_ref[...], y2.astype(jnp.bfloat16),
                preferred_element_type=jnp.float32) * inv_pout       # (Bs, C2)

    # Head: Linear(C2 -> lane-dense padded classes), bf16 MXU + f32 bias.
    out = jnp.dot(g.astype(jnp.bfloat16), wh_ref[...],
                  preferred_element_type=jnp.float32) + bh_ref[...]  # (Bs, NHp)
    o_ref[...] = out[None]                                           # (1, Bs, NHp)


# ----------------------------------------------------------------------------
# Forward wrapper
# ----------------------------------------------------------------------------

def x3d_forward(feat_ncthw, params, pool_kernel=(16, 3, 3), max_block=8):
    """feat_ncthw: (N, 192, T, H, W) feature map feeding self.projection."""
    eps = 1e-5
    N, Cin, T, H, W = feat_ncthw.shape
    kT, kH, kW = pool_kernel
    THW = T * H * W

    C1 = params["w1"].shape[1]                 # 432 (kept unpadded: saves DMA)
    C2 = params["w2"].shape[1]                 # 2048
    NH = params["wh"].shape[1]                 # num_actor_class
    NHp = _round_up(max(NH, 128), 128)         # lane-dense head output

    # Fold BatchNorm3d (eval) into conv1: w1' = w1*scale, b1 = beta - mean*scale.
    scale = params["bn_gamma"] / jnp.sqrt(params["bn_var"] + eps)
    bias = params["bn_beta"] - params["bn_mean"] * scale

    w1f = (params["w1"] * scale[None, :]).astype(jnp.bfloat16)       # (Cin, C1)
    b1 = bias[None, :].astype(jnp.float32)                           # (1, C1)
    w2b = params["w2"].astype(jnp.bfloat16)                          # (C1, C2)
    whp = (jnp.zeros((C2, NHp), jnp.float32).at[:, :NH]
           .set(params["wh"])).astype(jnp.bfloat16)                  # (C2, NHp)
    bhp = jnp.zeros((1, NHp), jnp.float32).at[:, :NH].set(params["bh"][None, :])

    # AvgPool3d as a dense operator, rows padded to a sublane multiple of 8.
    pmat_np, Pout, _ = _make_pool_matrix(T, H, W, kT, kH, kW, pad_rows_to=8)
    Pout8 = pmat_np.shape[0]
    pmat = jnp.asarray(pmat_np, jnp.bfloat16)

    # Samples per grid step / grid length.
    Bs = _choose_batch_block(N, max_block)
    G = -(-N // Bs)
    Np = G * Bs

    # Per-sample mean as a 0/1 reduction matrix over the (Bs*Pout8) pooled rows.
    rmat_np = np.zeros((Bs, Bs * Pout8), np.float32)
    for b in range(Bs):
        rmat_np[b, b * Pout8: b * Pout8 + Pout] = 1.0
    rmat = jnp.asarray(rmat_np, jnp.bfloat16)

    # NCTHW -> (N, Cin, THW) is a free reshape (no transpose, no HBM round-trip);
    # the bf16 cast happens inside the kernel.
    x = feat_ncthw.reshape(N, Cin, THW)
    if Np != N:
        x = jnp.pad(x, ((0, Np - N), (0, 0), (0, 0)))
    x = x.reshape(G, Bs, Cin, THW)

    kernel = functools.partial(_fused_projection_head_kernel,
                               inv_pout=float(1.0 / Pout))

    out = pl.pallas_call(
        kernel,
        out_shape=jax.ShapeDtypeStruct((G, Bs, NHp), jnp.float32),
        grid=(G,),
        in_specs=[
            pl.BlockSpec((1, Bs, Cin, THW), lambda g: (g, 0, 0, 0)),  # activations
            pl.BlockSpec((Cin, C1), lambda g: (0, 0)),                # conv1 w (bf16)
            pl.BlockSpec((1, C1), lambda g: (0, 0)),                  # folded BN bias
            pl.BlockSpec((Pout8, THW), lambda g: (0, 0)),             # pool operator
            pl.BlockSpec((C1, C2), lambda g: (0, 0)),                 # conv2 w (bf16)
            pl.BlockSpec((Bs, Bs * Pout8), lambda g: (0, 0)),         # per-sample mean
            pl.BlockSpec((C2, NHp), lambda g: (0, 0)),                # head w (bf16)
            pl.BlockSpec((1, NHp), lambda g: (0, 0)),                 # head bias
        ],
        out_specs=pl.BlockSpec((1, Bs, NHp), lambda g: (g, 0, 0)),
        scratch_shapes=[pltpu.VMEM((Bs * Pout8, C1), jnp.float32)],
        compiler_params=pltpu.CompilerParams(
            dimension_semantics=("parallel",),
            vmem_limit_bytes=48 * 1024 * 1024,
        ),
    )(x, w1f, b1, pmat, w2b, rmat, whp, bhp)

    return out.reshape(Np, NHp)[:N, :NH]


# ----------------------------------------------------------------------------
# Pure-JAX references
# ----------------------------------------------------------------------------

def x3d_reference_f32(feat_ncthw, params, pool_kernel=(16, 3, 3)):
    """Exact f32 module math (conv+BN+relu, avgpool, conv+relu, gap, head)."""
    eps = 1e-5
    kT, kH, kW = pool_kernel
    x = jnp.transpose(feat_ncthw, (0, 2, 3, 4, 1))               # NTHWC
    scale = params["bn_gamma"] / jnp.sqrt(params["bn_var"] + eps)
    bias = params["bn_beta"] - params["bn_mean"] * scale
    x = jnp.maximum(jnp.einsum("nthwc,cd->nthwd", x, params["w1"]) * scale + bias, 0.0)
    x = lax.reduce_window(x, 0.0, lax.add, (1, kT, kH, kW, 1), (1, 1, 1, 1, 1), "VALID")
    x = x / float(kT * kH * kW)
    x = jnp.maximum(jnp.einsum("nthwc,cd->nthwd", x, params["w2"]), 0.0)
    x = jnp.mean(x, axis=(1, 2, 3))
    return x @ params["wh"] + params["bh"]


def x3d_reference_bf16(feat_ncthw, params, pool_kernel=(16, 3, 3)):
    """Same path using the kernel's arithmetic: bf16 MXU inputs, f32 accumulate."""
    eps = 1e-5
    N, Cin, T, H, W = feat_ncthw.shape
    kT, kH, kW = pool_kernel
    scale = params["bn_gamma"] / jnp.sqrt(params["bn_var"] + eps)
    bias = params["bn_beta"] - params["bn_mean"] * scale
    w1f = (params["w1"] * scale[None, :]).astype(jnp.bfloat16)
    x = jnp.transpose(feat_ncthw, (0, 2, 3, 4, 1)).astype(jnp.bfloat16)
    y1 = jnp.einsum("nthwc,cd->nthwd", x, w1f,
                    preferred_element_type=jnp.float32) + bias
    y1 = jnp.maximum(y1, 0.0)
    pmat_np, Pout, _ = _make_pool_matrix(T, H, W, kT, kH, kW, pad_rows_to=1)
    pmat = jnp.asarray(pmat_np, jnp.bfloat16)
    C1 = params["w1"].shape[1]
    y1_tok = y1.reshape(N, T * H * W, C1).astype(jnp.bfloat16)
    pooled = jnp.einsum("pt,ntc->npc", pmat, y1_tok,
                        preferred_element_type=jnp.float32)
    y2 = jnp.einsum("npc,cd->npd", pooled.astype(jnp.bfloat16),
                    params["w2"].astype(jnp.bfloat16),
                    preferred_element_type=jnp.float32)
    y2 = jnp.maximum(y2, 0.0)
    g = jnp.sum(y2.astype(jnp.bfloat16).astype(jnp.float32), axis=1) / float(Pout)
    return (jnp.dot(g.astype(jnp.bfloat16), params["wh"].astype(jnp.bfloat16),
                    preferred_element_type=jnp.float32) + params["bh"])


# ----------------------------------------------------------------------------
# Main
# ----------------------------------------------------------------------------

if __name__ == "__main__":
    key = jax.random.PRNGKey(0)
    ks = jax.random.split(key, 9)

    num_actor_class = 8
    # Small shapes consistent with the projection input: 192 channels, T >= 16
    # and H, W >= 3 so AvgPool3d((16,3,3), stride=1) is valid.  N=5 exercises
    # the multi-sample-per-step path AND the batch-padding path (Bs=3, grid=2).
    N, Cin, T, H, W = 5, 192, 16, 4, 4

    params = {
        "w1": jax.random.normal(ks[0], (192, 432), jnp.float32) * 0.05,
        "bn_gamma": 1.0 + 0.1 * jax.random.normal(ks[1], (432,), jnp.float32),
        "bn_beta": 0.1 * jax.random.normal(ks[2], (432,), jnp.float32),
        "bn_mean": 0.1 * jax.random.normal(ks[3], (432,), jnp.float32),
        "bn_var": 1.0 + 0.1 * jax.random.uniform(ks[4], (432,), jnp.float32),
        "w2": jax.random.normal(ks[5], (432, 2048), jnp.float32) * 0.02,
        "wh": jax.random.normal(ks[6], (2048, num_actor_class), jnp.float32) * 0.02,
        "bh": 0.01 * jax.random.normal(ks[7], (num_actor_class,), jnp.float32),
    }

    feat = jax.random.normal(ks[8], (N, Cin, T, H, W), jnp.float32)

    out = jax.block_until_ready(x3d_forward(feat, params))
    assert out.shape == (N, num_actor_class), out.shape
    assert bool(jnp.all(jnp.isfinite(out)))

    # Tight check against a reference using the same bf16/f32 arithmetic.
    ref_bf16 = jax.block_until_ready(x3d_reference_bf16(feat, params))
    assert bool(jnp.allclose(out, ref_bf16, rtol=3e-3, atol=3e-3)), (out, ref_bf16)

    # End-to-end check against exact f32 module math (tolerance covers the
    # deliberate bf16 casts of MXU inputs).
    ref_f32 = jax.block_until_ready(x3d_reference_f32(feat, params))
    assert bool(jnp.allclose(out, ref_f32, rtol=2e-2, atol=2e-2)), (out, ref_f32)

    print("KERNEL_OK")
</pallas_src>

<mosaic_0001>
module attributes {stable_mosaic.version = 11 : i64} {
  func.func @_fused_projection_head_kernel(%arg0: i32, %arg1: memref<1x3x192x256xf32, #tpu.memory_space<vmem>>, %arg2: memref<192x432xbf16, #tpu.memory_space<vmem>>, %arg3: memref<1x432xf32, #tpu.memory_space<vmem>>, %arg4: memref<8x256xbf16, #tpu.memory_space<vmem>>, %arg5: memref<432x2048xbf16, #tpu.memory_space<vmem>>, %arg6: memref<3x24xbf16, #tpu.memory_space<vmem>>, %arg7: memref<2048x128xbf16, #tpu.memory_space<vmem>>, %arg8: memref<1x128xf32, #tpu.memory_space<vmem>>, %arg9: memref<1x3x128xf32, #tpu.memory_space<vmem>>, %arg10: memref<24x432xf32, #tpu.memory_space<vmem>>) attributes {dimension_semantics = [#tpu.dimension_semantics<parallel>], iteration_bounds = array<i64: 2>, scalar_prefetch = 0 : i64, scratch_operands = 1 : i64, tpu.core_type = #tpu.core_type<tc>, window_params = [{transform_indices = @transform_0, window_bounds = array<i64: 1, 3, 192, 256>}, {pipeline_mode = #tpu.pipeline_mode<synchronous>, transform_indices = @transform_1, window_bounds = array<i64: 192, 432>}, {pipeline_mode = #tpu.pipeline_mode<synchronous>, transform_indices = @transform_2, window_bounds = array<i64: 1, 432>}, {pipeline_mode = #tpu.pipeline_mode<synchronous>, transform_indices = @transform_3, window_bounds = array<i64: 8, 256>}, {pipeline_mode = #tpu.pipeline_mode<synchronous>, transform_indices = @transform_4, window_bounds = array<i64: 432, 2048>}, {pipeline_mode = #tpu.pipeline_mode<synchronous>, transform_indices = @transform_5, window_bounds = array<i64: 3, 24>}, {pipeline_mode = #tpu.pipeline_mode<synchronous>, transform_indices = @transform_6, window_bounds = array<i64: 2048, 128>}, {pipeline_mode = #tpu.pipeline_mode<synchronous>, transform_indices = @transform_7, window_bounds = array<i64: 1, 128>}, {transform_indices = @transform_8, window_bounds = array<i64: 1, 3, 128>}]} {
    %c0 = arith.constant 0 : index
    %c0_0 = arith.constant 0 : index
    %0 = vector.load %arg2[%c0, %c0_0] : memref<192x432xbf16, #tpu.memory_space<vmem>>, vector<192x432xbf16>
    %c0_1 = arith.constant 0 : index
    %c0_2 = arith.constant 0 : index
    %1 = vector.load %arg3[%c0_1, %c0_2] : memref<1x432xf32, #tpu.memory_space<vmem>>, vector<1x432xf32>
    %c0_3 = arith.constant 0 : index
    %c0_4 = arith.constant 0 : index
    %2 = vector.load %arg4[%c0_3, %c0_4] : memref<8x256xbf16, #tpu.memory_space<vmem>>, vector<8x256xbf16>
    %c0_5 = arith.constant 0 : index
    %c0_6 = arith.constant 0 : index
    %c0_7 = arith.constant 0 : index
    %c0_8 = arith.constant 0 : index
    %3 = vector.load %arg1[%c0_5, %c0_6, %c0_7, %c0_8] : memref<1x3x192x256xf32, #tpu.memory_space<vmem>>, vector<1x1x192x256xf32>
    %4 = vector.shape_cast %3 : vector<1x1x192x256xf32> to vector<192x256xf32>
    %5 = arith.truncf %4 : vector<192x256xf32> to vector<192x256xbf16>
    %cst = arith.constant dense<0.000000e+00> : vector<256x432xf32>
    %6 = tpu.matmul %5, %0, %cst {dimension_numbers = #tpu.dot_dimension_numbers<[0], [0], [1], [1], [0, 1, 1, 1], [], []>} : vector<192x256xbf16>, vector<192x432xbf16>, vector<256x432xf32> -> vector<256x432xf32>
    %7 = vector.broadcast %1 : vector<1x432xf32> to vector<256x432xf32>
    %8 = arith.addf %6, %7 : vector<256x432xf32>
    %cst_9 = arith.constant 0.000000e+00 : f32
    %9 = vector.broadcast %cst_9 : f32 to vector<256x432xf32>
    %10 = arith.maximumf %8, %9 : vector<256x432xf32>
    %11 = arith.truncf %10 : vector<256x432xf32> to vector<256x432xbf16>
    %cst_10 = arith.constant dense<0.000000e+00> : vector<8x432xf32>
    %12 = tpu.matmul %2, %11, %cst_10 {dimension_numbers = #tpu.dot_dimension_numbers<[1], [0], [0], [1], [0, 0, 1, 1], [], []>} : vector<8x256xbf16>, vector<256x432xbf16>, vector<8x432xf32> -> vector<8x432xf32>
    %c0_11 = arith.constant 0 : index
    %c0_12 = arith.constant 0 : index
    %13 = vector.load %arg10[%c0_11, %c0_12] : memref<24x432xf32, #tpu.memory_space<vmem>>, vector<8x432xf32>
    tpu.vector_store %arg10[%c0_11, %c0_12], %12 {strides = array<i32>} : memref<24x432xf32, #tpu.memory_space<vmem>>, vector<8x432xf32>,
    %c0_13 = arith.constant 0 : index
    %c1 = arith.constant 1 : index
    %c0_14 = arith.constant 0 : index
    %c0_15 = arith.constant 0 : index
    %14 = vector.load %arg1[%c0_13, %c1, %c0_14, %c0_15] : memref<1x3x192x256xf32, #tpu.memory_space<vmem>>, vector<1x1x192x256xf32>
    %15 = vector.shape_cast %14 : vector<1x1x192x256xf32> to vector<192x256xf32>
    %16 = arith.truncf %15 : vector<192x256xf32> to vector<192x256xbf16>
    %cst_16 = arith.constant dense<0.000000e+00> : vector<256x432xf32>
    %17 = tpu.matmul %16, %0, %cst_16 {dimension_numbers = #tpu.dot_dimension_numbers<[0], [0], [1], [1], [0, 1, 1, 1], [], []>} : vector<192x256xbf16>, vector<192x432xbf16>, vector<256x432xf32> -> vector<256x432xf32>
    %18 = vector.broadcast %1 : vector<1x432xf32> to vector<256x432xf32>
    %19 = arith.addf %17, %18 : vector<256x432xf32>
    %cst_17 = arith.constant 0.000000e+00 : f32
    %20 = vector.broadcast %cst_17 : f32 to vector<256x432xf32>
    %21 = arith.maximumf %19, %20 : vector<256x432xf32>
    %22 = arith.truncf %21 : vector<256x432xf32> to vector<256x432xbf16>
    %cst_18 = arith.constant dense<0.000000e+00> : vector<8x432xf32>
    %23 = tpu.matmul %2, %22, %cst_18 {dimension_numbers = #tpu.dot_dimension_numbers<[1], [0], [0], [1], [0, 0, 1, 1], [], []>} : vector<8x256xbf16>, vector<256x432xbf16>, vector<8x432xf32> -> vector<8x432xf32>
    %c8 = arith.constant 8 : index
    %c0_19 = arith.constant 0 : index
    %24 = vector.load %arg10[%c8, %c0_19] : memref<24x432xf32, #tpu.memory_space<vmem>>, vector<8x432xf32>
    tpu.vector_store %arg10[%c8, %c0_19], %23 {strides = array<i32>} : memref<24x432xf32, #tpu.memory_space<vmem>>, vector<8x432xf32>,
    %c0_20 = arith.constant 0 : index
    %c2 = arith.constant 2 : index
    %c0_21 = arith.constant 0 : index
    %c0_22 = arith.constant 0 : index
    %25 = vector.load %arg1[%c0_20, %c2, %c0_21, %c0_22] : memref<1x3x192x256xf32, #tpu.memory_space<vmem>>, vector<1x1x192x256xf32>
    %26 = vector.shape_cast %25 : vector<1x1x192x256xf32> to vector<192x256xf32>
    %27 = arith.truncf %26 : vector<192x256xf32> to vector<192x256xbf16>
    %cst_23 = arith.constant dense<0.000000e+00> : vector<256x432xf32>
    %28 = tpu.matmul %27, %0, %cst_23 {dimension_numbers = #tpu.dot_dimension_numbers<[0], [0], [1], [1], [0, 1, 1, 1], [], []>} : vector<192x256xbf16>, vector<192x432xbf16>, vector<256x432xf32> -> vector<256x432xf32>
    %29 = vector.broadcast %1 : vector<1x432xf32> to vector<256x432xf32>
    %30 = arith.addf %28, %29 : vector<256x432xf32>
    %cst_24 = arith.constant 0.000000e+00 : f32
    %31 = vector.broadcast %cst_24 : f32 to vector<256x432xf32>
    %32 = arith.maximumf %30, %31 : vector<256x432xf32>
    %33 = arith.truncf %32 : vector<256x432xf32> to vector<256x432xbf16>
    %cst_25 = arith.constant dense<0.000000e+00> : vector<8x432xf32>
    %34 = tpu.matmul %2, %33, %cst_25 {dimension_numbers = #tpu.dot_dimension_numbers<[1], [0], [0], [1], [0, 0, 1, 1], [], []>} : vector<8x256xbf16>, vector<256x432xbf16>, vector<8x432xf32> -> vector<8x432xf32>
    %c16 = arith.constant 16 : index
    %c0_26 = arith.constant 0 : index
    %35 = vector.load %arg10[%c16, %c0_26] : memref<24x432xf32, #tpu.memory_space<vmem>>, vector<8x432xf32>
    tpu.vector_store %arg10[%c16, %c0_26], %34 {strides = array<i32>} : memref<24x432xf32, #tpu.memory_space<vmem>>, vector<8x432xf32>,
    %c0_27 = arith.constant 0 : index
    %c0_28 = arith.constant 0 : index
    %36 = vector.load %arg10[%c0_27, %c0_28] : memref<24x432xf32, #tpu.memory_space<vmem>>, vector<24x432xf32>
    %37 = arith.truncf %36 : vector<24x432xf32> to vector<24x432xbf16>
    %c0_29 = arith.constant 0 : index
    %c0_30 = arith.constant 0 : index
    %38 = vector.load %arg5[%c0_29, %c0_30] : memref<432x2048xbf16, #tpu.memory_space<vmem>>, vector<432x2048xbf16>
    %cst_31 = arith.constant dense<0.000000e+00> : vector<24x2048xf32>
    %39 = tpu.matmul %37, %38, %cst_31 {dimension_numbers = #tpu.dot_dimension_numbers<[1], [0], [0], [1], [0, 0, 1, 1], [], []>} : vector<24x432xbf16>, vector<432x2048xbf16>, vector<24x2048xf32> -> vector<24x2048xf32>
    %cst_32 = arith.constant 0.000000e+00 : f32
    %40 = vector.broadcast %cst_32 : f32 to vector<24x2048xf32>
    %41 = arith.maximumf %39, %40 : vector<24x2048xf32>
    %c0_33 = arith.constant 0 : index
    %c0_34 = arith.constant 0 : index
    %42 = vector.load %arg6[%c0_33, %c0_34] : memref<3x24xbf16, #tpu.memory_space<vmem>>, vector<3x24xbf16>
    %43 = arith.truncf %41 : vector<24x2048xf32> to vector<24x2048xbf16>
    %cst_35 = arith.constant dense<0.000000e+00> : vector<3x2048xf32>
    %44 = tpu.matmul %42, %43, %cst_35 {dimension_numbers = #tpu.dot_dimension_numbers<[1], [0], [0], [1], [0, 0, 1, 1], [], []>} : vector<3x24xbf16>, vector<24x2048xbf16>, vector<3x2048xf32> -> vector<3x2048xf32>
    %cst_36 = arith.constant 2.500000e-01 : f32
    %45 = vector.broadcast %cst_36 : f32 to vector<3x2048xf32>
    %46 = arith.mulf %44, %45 : vector<3x2048xf32>
    %47 = arith.truncf %46 : vector<3x2048xf32> to vector<3x2048xbf16>
    %c0_37 = arith.constant 0 : index
    %c0_38 = arith.constant 0 : index
    %48 = vector.load %arg7[%c0_37, %c0_38] : memref<2048x128xbf16, #tpu.memory_space<vmem>>, vector<2048x128xbf16>
    %cst_39 = arith.constant dense<0.000000e+00> : vector<3x128xf32>
    %49 = tpu.matmul %47, %48, %cst_39 {dimension_numbers = #tpu.dot_dimension_numbers<[1], [0], [0], [1], [0, 0, 1, 1], [], []>} : vector<3x2048xbf16>, vector<2048x128xbf16>, vector<3x128xf32> -> vector<3x128xf32>
    %c0_40 = arith.constant 0 : index
    %c0_41 = arith.constant 0 : index
    %50 = vector.load %arg8[%c0_40, %c0_41] : memref<1x128xf32, #tpu.memory_space<vmem>>, vector<1x128xf32>
    %51 = vector.broadcast %50 : vector<1x128xf32> to vector<3x128xf32>
    %52 = arith.addf %49, %51 : vector<3x128xf32>
    %53 = vector.shape_cast %52 : vector<3x128xf32> to vector<1x3x128xf32>
    %c0_42 = arith.constant 0 : index
    %c0_43 = arith.constant 0 : index
    %c0_44 = arith.constant 0 : index
    %54 = vector.load %arg9[%c0_42, %c0_43, %c0_44] : memref<1x3x128xf32, #tpu.memory_space<vmem>>, vector<1x3x128xf32>
    tpu.vector_store %arg9[%c0_42, %c0_43, %c0_44], %53 {strides = array<i32>} : memref<1x3x128xf32, #tpu.memory_space<vmem>>, vector<1x3x128xf32>,
    return
  }
  func.func @transform_0(%arg0: i32) -> (i32, i32, i32, i32) {
    %c0_i32 = arith.constant 0 : i32
    %c0_i32_0 = arith.constant 0 : i32
    %c0_i32_1 = arith.constant 0 : i32
    %c0_i32_2 = arith.constant 0 : i32
    return %arg0, %c0_i32, %c0_i32_0, %c0_i32_1 : i32, i32, i32, i32
  }
  func.func @transform_1(%arg0: i32) -> (i32, i32) {
    %c0_i32 = arith.constant 0 : i32
    %c0_i32_0 = arith.constant 0 : i32
    %c0_i32_1 = arith.constant 0 : i32
    return %c0_i32, %c0_i32_0 : i32, i32
  }
  func.func @transform_2(%arg0: i32) -> (i32, i32) {
    %c0_i32 = arith.constant 0 : i32
    %c0_i32_0 = arith.constant 0 : i32
    %c0_i32_1 = arith.constant 0 : i32
    return %c0_i32, %c0_i32_0 : i32, i32
  }
  func.func @transform_3(%arg0: i32) -> (i32, i32) {
    %c0_i32 = arith.constant 0 : i32
    %c0_i32_0 = arith.constant 0 : i32
    %c0_i32_1 = arith.constant 0 : i32
    return %c0_i32, %c0_i32_0 : i32, i32
  }
  func.func @transform_4(%arg0: i32) -> (i32, i32) {
    %c0_i32 = arith.constant 0 : i32
    %c0_i32_0 = arith.constant 0 : i32
    %c0_i32_1 = arith.constant 0 : i32
    return %c0_i32, %c0_i32_0 : i32, i32
  }
  func.func @transform_5(%arg0: i32) -> (i32, i32) {
    %c0_i32 = arith.constant 0 : i32
    %c0_i32_0 = arith.constant 0 : i32
    %c0_i32_1 = arith.constant 0 : i32
    return %c0_i32, %c0_i32_0 : i32, i32
  }
  func.func @transform_6(%arg0: i32) -> (i32, i32) {
    %c0_i32 = arith.constant 0 : i32
    %c0_i32_0 = arith.constant 0 : i32
    %c0_i32_1 = arith.constant 0 : i32
    return %c0_i32, %c0_i32_0 : i32, i32
  }
  func.func @transform_7(%arg0: i32) -> (i32, i32) {
    %c0_i32 = arith.constant 0 : i32
    %c0_i32_0 = arith.constant 0 : i32
    %c0_i32_1 = arith.constant 0 : i32
    return %c0_i32, %c0_i32_0 : i32, i32
  }
  func.func @transform_8(%arg0: i32) -> (i32, i32, i32) {
    %c0_i32 = arith.constant 0 : i32
    %c0_i32_0 = arith.constant 0 : i32
    %c0_i32_1 = arith.constant 0 : i32
    return %arg0, %c0_i32, %c0_i32_0 : i32, i32, i32
  }
}

</mosaic_0001>

<llo_original>
// kernel: tpu_custom_call.1
$region0: #{tpu_custom_call.1}
  #allocation0 [shape = 'u32[]', space=smem, size = 0x4, offset = 0x4, fixed_abs, tag = 'smem constant byte address 0x4 - core index']
  #allocation1 [shape = 'u32[144,128]{1,0:T(1,128)}', space=vmem, size = 0x12000, scoped, tag = 'internal scratch']
  #allocation2 [shape = 'f32[24,432]{1,0:T(8,128)}', space=vmem, size = 0xc000, scoped, tag = 'scratch operand']
  %s0 = inlined_call_operand.hbm [shape: f32[2,3,192,256], index: 0, kind: input, shape index: {}]
  %s1 = inlined_call_operand.hbm [shape: bf16[192,432], index: 1, kind: input, shape index: {}]
  %s2 = inlined_call_operand.hbm [shape: f32[1,432], index: 2, kind: input, shape index: {}]
  %s3 = inlined_call_operand.hbm [shape: bf16[8,256], index: 3, kind: input, shape index: {}]
  %s4 = inlined_call_operand.hbm [shape: bf16[432,2048], index: 4, kind: input, shape index: {}]
  %s5 = inlined_call_operand.hbm [shape: bf16[3,24], index: 5, kind: input, shape index: {}]
  %s6 = inlined_call_operand.hbm [shape: bf16[2048,128], index: 6, kind: input, shape index: {}]
  %s7 = inlined_call_operand.hbm [shape: f32[1,128], index: 7, kind: input, shape index: {}]
  %s8 = inlined_call_operand.vmem [shape: f32[2,3,128], index: 8, kind: output, shape index: {}]
  %s9 = sld [smem:[#allocation0]]
  $region97: #{tpu_custom_call.1} parent=0
    _
  %s11 = ssub.s32 1, %s9
  %s12 = scalar_select 0, %s11, %s9
  $region1: #{tpu_custom_call.1} parent=0
    #allocation3 [shape = 'u8[1179648]{0}', space=vmem, size = 0x120000, scoped, tag = 'input window, operand 0']
    #allocation4 [shape = 's32[2]{0}', space=sflag, size = 0x8, scoped, tag = 'scoped memory for tpu_custom_call.1']
    #allocation5 [shape = 'u8[196608]{0}', space=vmem, size = 0x30000, scoped, tag = 'input window, operand 1, single buffered']
    #allocation6 [shape = 's32[1]{0}', space=sflag, size = 0x4, scoped, tag = 'scoped memory for tpu_custom_call.1']
    #allocation7 [shape = 'u8[2048]{0}', space=vmem, size = 0x800, scoped, tag = 'input window, operand 2, single buffered']
    #allocation8 [shape = 'u8[4096]{0}', space=vmem, size = 0x1000, scoped, tag = 'input window, operand 3, single buffered']
    #allocation9 [shape = 's32[1]{0}', space=sflag, size = 0x4, scoped, tag = 'scoped memory for tpu_custom_call.1']
    #allocation10 [shape = 'u8[1769472]{0}', space=vmem, size = 0x1b0000, scoped, tag = 'input window, operand 4, single buffered']
    #allocation11 [shape = 'u8[1024]{0}', space=vmem, size = 0x400, scoped, tag = 'input window, operand 5, single buffered']
    #allocation12 [shape = 's32[1]{0}', space=sflag, size = 0x4, scoped, tag = 'scoped memory for tpu_custom_call.1']
    #allocation13 [shape = 'u8[524288]{0}', space=vmem, size = 0x80000, scoped, tag = 'input window, operand 6, single buffered']
    #allocation14 [shape = 'u8[512]{0}', space=vmem, size = 0x400, scoped, tag = 'input window, operand 7, single buffered']
    #allocation15 [shape = 's32[1]{0}', space=sflag, size = 0x4, scoped, tag = 'scoped memory for tpu_custom_call.1']
    %13 = vsyncpa [#allocation4], 0
    %s14 = scalar_lea.sflag [#allocation4], 1
    %15 = vsyncpa %s14, 0
    %16 = vsyncpa [#allocation6], 0
    %17 = vsyncpa [#allocation9], 0
    %18 = vsyncpa [#allocation12], 0
    %19 = vsyncpa [#allocation15], 0
    loop: start=0, step=1, limit=4
    $region2: #{tpu_custom_call.1} parent=1 // loop_pre_header
      _
    $region3: #{tpu_custom_call.1} parent=1 // loop_header
      %s21 = sphi 0, %s25
      %p22 = scmp.ge.s32.totalorder %s21, 4
      %s31 = sphi 0, %s33
      %s34 = sphi 0, %s31
      %s35 = sphi 0, %s34
      %s51 = sphi 0, %s35
      %s55 = sphi 0, %s55
      %s57 = sphi 0, %s55
      %s58 = sphi 0, %s57
      %s72 = sphi 0, %s58
      %s76 = sphi 0, %s76
      %s78 = sphi 0, %s76
      %s79 = sphi 0, %s78
      %s93 = sphi 0, %s79
      %s97 = sphi 0, %s97
      %s99 = sphi 0, %s97
      %s100 = sphi 0, %s99
      %s114 = sphi 0, %s100
      %s118 = sphi 0, %s118
      %s120 = sphi 0, %s118
      %s121 = sphi 0, %s120
      %s135 = sphi 0, %s121
      %s139 = sphi 0, %s139
      %s141 = sphi 0, %s139
      %s142 = sphi 0, %s141
      %s156 = sphi 0, %s142
      %s160 = sphi 0, %s160
      %s162 = sphi 0, %s160
      %s163 = sphi 0, %s162
      %s177 = sphi 0, %s163
      %s181 = sphi 0, %s181
      %s183 = sphi 0, %s181
      %s184 = sphi 0, %s183
      %s198 = sphi 0, %s184
      %s204 = sphi 0, %s206
      %s207 = sphi 0, %s204
      %s208 = sphi 0, %s207
      %s224 = sphi 0, %s208
    $region4: #{tpu_custom_call.1} parent=1 // loop_header_branch
      %24 = sbr.rel (%p22) target = $region8
    $region5: #{tpu_custom_call.1} parent=1 // loop_body
      %s26 = ssub.s32 %s21, 1
      %s27 = ssub.s32 %s21, 2
      %s28 = sadd.s32 %s21, 1
      %s29 = ssub.s32 %s21, %s28
      %p30 = scmp.eq.s32.totalorder %s29, 0
      %s32 = sadd.s32 %s31, 1
      %s33 = scalar_select %p30, %s31, %s32
      %p36 = pneg %p30
      %p37 = scmp.eq.s32.totalorder %s21, 1
      %p38 = por %p36, %p37
      %p39 = scmp.ne.s32.totalorder %s31, %s34
      %p40 = scmp.eq.s32.totalorder %s21, 0
      %p41 = por %p39, %p40
      %p42 = scmp.ne.s32.totalorder %s31, %s34
      %p43 = scmp.eq.s32.totalorder %s26, 1
      %p44 = por %p42, %p43
      %p45 = scmp.ne.s32.totalorder %s34, %s35
      %p46 = scmp.eq.s32.totalorder %s26, 0
      %p47 = por %p45, %p46
      %p48 = scmp.ne.s32.totalorder %s34, %s35
      %p49 = scmp.eq.s32.totalorder %s27, 1
      %p50 = por %p48, %p49
      %p52 = scmp.ne.s32.totalorder %s35, %s51
      %p53 = scmp.eq.s32.totalorder %s27, 0
      %p54 = por %p52, %p53
      %s56 = sadd.s32 %s55, 1
      %p59 = scmp.eq.s32.totalorder %s21, 1
      %p60 = scmp.ne.s32.totalorder %s55, %s57
      %p61 = scmp.eq.s32.totalorder %s21, 0
      %p62 = por %p60, %p61
      %p63 = scmp.ne.s32.totalorder %s55, %s57
      %p64 = scmp.eq.s32.totalorder %s26, 1
      %p65 = por %p63, %p64
      %p66 = scmp.ne.s32.totalorder %s57, %s58
      %p67 = scmp.eq.s32.totalorder %s26, 0
      %p68 = por %p66, %p67
      %p69 = scmp.ne.s32.totalorder %s57, %s58
      %p70 = scmp.eq.s32.totalorder %s27, 1
      %p71 = por %p69, %p70
      %p73 = scmp.ne.s32.totalorder %s58, %s72
      %p74 = scmp.eq.s32.totalorder %s27, 0
      %p75 = por %p73, %p74
      %s77 = sadd.s32 %s76, 1
      %p80 = scmp.eq.s32.totalorder %s21, 1
      %p81 = scmp.ne.s32.totalorder %s76, %s78
      %p82 = scmp.eq.s32.totalorder %s21, 0
      %p83 = por %p81, %p82
      %p84 = scmp.ne.s32.totalorder %s76, %s78
      %p85 = scmp.eq.s32.totalorder %s26, 1
      %p86 = por %p84, %p85
      %p87 = scmp.ne.s32.totalorder %s78, %s79
      %p88 = scmp.eq.s32.totalorder %s26, 0
      %p89 = por %p87, %p88
      %p90 = scmp.ne.s32.totalorder %s78, %s79
      %p91 = scmp.eq.s32.totalorder %s27, 1
      %p92 = por %p90, %p91
      %p94 = scmp.ne.s32.totalorder %s79, %s93
      %p95 = scmp.eq.s32.totalorder %s27, 0
      %p96 = por %p94, %p95
      %s98 = sadd.s32 %s97, 1
      %p101 = scmp.eq.s32.totalorder %s21, 1
      %p102 = scmp.ne.s32.totalorder %s97, %s99
      %p103 = scmp.eq.s32.totalorder %s21, 0
      %p104 = por %p102, %p103
      %p105 = scmp.ne.s32.totalorder %s97, %s99
      %p106 = scmp.eq.s32.totalorder %s26, 1
      %p107 = por %p105, %p106
      %p108 = scmp.ne.s32.totalorder %s99, %s100
      %p109 = scmp.eq.s32.totalorder %s26, 0
      %p110 = por %p108, %p109
      %p111 = scmp.ne.s32.totalorder %s99, %s100
      %p112 = scmp.eq.s32.totalorder %s27, 1
      %p113 = por %p111, %p112
      %p115 = scmp.ne.s32.totalorder %s100, %s114
      %p116 = scmp.eq.s32.totalorder %s27, 0
      %p117 = por %p115, %p116
      %s119 = sadd.s32 %s118, 1
      %p122 = scmp.eq.s32.totalorder %s21, 1
      %p123 = scmp.ne.s32.totalorder %s118, %s120
      %p124 = scmp.eq.s32.totalorder %s21, 0
      %p125 = por %p123, %p124
      %p126 = scmp.ne.s32.totalorder %s118, %s120
      %p127 = scmp.eq.s32.totalorder %s26, 1
      %p128 = por %p126, %p127
      %p129 = scmp.ne.s32.totalorder %s120, %s121
      %p130 = scmp.eq.s32.totalorder %s26, 0
      %p131 = por %p129, %p130
      %p132 = scmp.ne.s32.totalorder %s120, %s121
      %p133 = scmp.eq.s32.totalorder %s27, 1
      %p134 = por %p132, %p133
      %p136 = scmp.ne.s32.totalorder %s121, %s135
      %p137 = scmp.eq.s32.totalorder %s27, 0
      %p138 = por %p136, %p137
      %s140 = sadd.s32 %s139, 1
      %p143 = scmp.eq.s32.totalorder %s21, 1
      %p144 = scmp.ne.s32.totalorder %s139, %s141
      %p145 = scmp.eq.s32.totalorder %s21, 0
      %p146 = por %p144, %p145
      %p147 = scmp.ne.s32.totalorder %s139, %s141
      %p148 = scmp.eq.s32.totalorder %s26, 1
      %p149 = por %p147, %p148
      %p150 = scmp.ne.s32.totalorder %s141, %s142
      %p151 = scmp.eq.s32.totalorder %s26, 0
      %p152 = por %p150, %p151
      %p153 = scmp.ne.s32.totalorder %s141, %s142
      %p154 = scmp.eq.s32.totalorder %s27, 1
      %p155 = por %p153, %p154
      %p157 = scmp.ne.s32.totalorder %s142, %s156
      %p158 = scmp.eq.s32.totalorder %s27, 0
      %p159 = por %p157, %p158
      %s161 = sadd.s32 %s160, 1
      %p164 = scmp.eq.s32.totalorder %s21, 1
      %p165 = scmp.ne.s32.totalorder %s160, %s162
      %p166 = scmp.eq.s32.totalorder %s21, 0
      %p167 = por %p165, %p166
      %p168 = scmp.ne.s32.totalorder %s160, %s162
      %p169 = scmp.eq.s32.totalorder %s26, 1
      %p170 = por %p168, %p169
      %p171 = scmp.ne.s32.totalorder %s162, %s163
      %p172 = scmp.eq.s32.totalorder %s26, 0
      %p173 = por %p171, %p172
      %p174 = scmp.ne.s32.totalorder %s162, %s163
      %p175 = scmp.eq.s32.totalorder %s27, 1
      %p176 = por %p174, %p175
      %p178 = scmp.ne.s32.totalorder %s163, %s177
      %p179 = scmp.eq.s32.totalorder %s27, 0
      %p180 = por %p178, %p179
      %s182 = sadd.s32 %s181, 1
      %p185 = scmp.eq.s32.totalorder %s21, 1
      %p186 = scmp.ne.s32.totalorder %s181, %s183
      %p187 = scmp.eq.s32.totalorder %s21, 0
      %p188 = por %p186, %p187
      %p189 = scmp.ne.s32.totalorder %s181, %s183
      %p190 = scmp.eq.s32.totalorder %s26, 1
      %p191 = por %p189, %p190
      %p192 = scmp.ne.s32.totalorder %s183, %s184
      %p193 = scmp.eq.s32.totalorder %s26, 0
      %p194 = por %p192, %p193
      %p195 = scmp.ne.s32.totalorder %s183, %s184
      %p196 = scmp.eq.s32.totalorder %s27, 1
      %p197 = por %p195, %p196
      %p199 = scmp.ne.s32.totalorder %s184, %s198
      %p200 = scmp.eq.s32.totalorder %s27, 0
      %p201 = por %p199, %p200
      %s202 = ssub.s32 %s21, %s28
      %p203 = scmp.eq.s32.totalorder %s202, 0
      %s205 = sadd.s32 %s204, 1
      %s206 = scalar_select %p203, %s204, %s205
      %p209 = pneg %p203
      %p210 = scmp.eq.s32.totalorder %s21, 1
      %p211 = por %p209, %p210
      %p212 = scmp.ne.s32.totalorder %s204, %s207
      %p213 = scmp.eq.s32.totalorder %s21, 0
      %p214 = por %p212, %p213
      %p215 = scmp.ne.s32.totalorder %s204, %s207
      %p216 = scmp.eq.s32.totalorder %s26, 1
      %p217 = por %p215, %p216
      %p218 = scmp.ne.s32.totalorder %s207, %s208
      %p219 = scmp.eq.s32.totalorder %s26, 0
      %p220 = por %p218, %p219
      %p221 = scmp.ne.s32.totalorder %s207, %s208
      %p222 = scmp.eq.s32.totalorder %s27, 1
      %p223 = por %p221, %p222
      %p225 = scmp.ne.s32.totalorder %s208, %s224
      %p226 = scmp.eq.s32.totalorder %s27, 0
      %p227 = por %p225, %p226
      %p228 = scmp.le.s32.totalorder 1, %s21
      %p229 = scmp.lt.s32.totalorder %s21, 3
      %p230 = pnand %p228, %p229
      %p231 = pneg %p230
      // Predicated region
      $region9: #{tpu_custom_call.1} parent=5 // pred_check
        _
      $region10: #{tpu_custom_call.1} parent=5 // pred_check_branch
        %233 = sbr.rel (%p230) target = $region12
      $region11: #{tpu_custom_call.1} parent=5 // pred_region
        %s234 = ssub.s32 %s21, 1
        // Predicated region
        $region13: #{tpu_custom_call.1} parent=11 // pred_check
          %p235 = pneg %p68
        $region14: #{tpu_custom_call.1} parent=11 // pred_check_branch
          %237 = sbr.rel (%p235) target = $region16
        $region15: #{tpu_custom_call.1} parent=11 // pred_region
          %s239 = ssub.s32 6144, 6144
          %240 = vsyncadd [#allocation6], %s239
          %s241 = sshll.u32 [#allocation5], 4
          %s242 = int_to_ptr.vmem [resolvable:$true] %s241
          %247 = dma.hbm_to_vmem [thread:$0]  %s1, 6144, %s242, [#allocation6], 256, 256, 16
        $region16: #{tpu_custom_call.1} parent=11 // pred_fallthru
          _
        // Predicated region
        $region17: #{tpu_custom_call.1} parent=11 // pred_check
          %p248 = pneg %p89
        $region18: #{tpu_custom_call.1} parent=11 // pred_check_branch
          %250 = sbr.rel (%p248) target = $region20
        $region19: #{tpu_custom_call.1} parent=11 // pred_region
          %s252 = ssub.s32 64, 64
          %253 = vsyncadd [#allocation6], %s252
          %s255 = sshll.u32 [#allocation7], 4
          %s256 = int_to_ptr.vmem [resolvable:$true] %s255
          %258 = dma.hbm_to_vmem [thread:$0]  %s2, 64, %s256, [#allocation6]
        $region20: #{tpu_custom_call.1} parent=11 // pred_fallthru
          _
        // Predicated region
        $region21: #{tpu_custom_call.1} parent=11 // pred_check
          %p259 = pneg %p110
        $region22: #{tpu_custom_call.1} parent=11 // pred_check_branch
          %261 = sbr.rel (%p259) target = $region24
        $region23: #{tpu_custom_call.1} parent=11 // pred_region
          %s263 = ssub.s32 128, 128
          %264 = vsyncadd [#allocation9], %s263
          %s266 = sshll.u32 [#allocation8], 4
          %s267 = int_to_ptr.vmem [resolvable:$true] %s266
          %269 = dma.hbm_to_vmem [thread:$0]  %s3, 128, %s267, [#allocation9]
        $region24: #{tpu_custom_call.1} parent=11 // pred_fallthru
          _
        // Predicated region
        $region25: #{tpu_custom_call.1} parent=11 // pred_check
          %p270 = pneg %p131
        $region26: #{tpu_custom_call.1} parent=11 // pred_check_branch
          %272 = sbr.rel (%p270) target = $region28
        $region27: #{tpu_custom_call.1} parent=11 // pred_region
          %s274 = ssub.s32 55296, 55296
          %275 = vsyncadd [#allocation9], %s274
          %s276 = sshll.u32 [#allocation10], 4
          %s277 = int_to_ptr.vmem [resolvable:$true] %s276
          %282 = dma.hbm_to_vmem [thread:$0]  %s4, 55296, %s277, [#allocation9], 1024, 1024, 64
        $region28: #{tpu_custom_call.1} parent=11 // pred_fallthru
          _
        // Predicated region
        $region29: #{tpu_custom_call.1} parent=11 // pred_check
          %p283 = pneg %p152
        $region30: #{tpu_custom_call.1} parent=11 // pred_check_branch
          %285 = sbr.rel (%p283) target = $region32
        $region31: #{tpu_custom_call.1} parent=11 // pred_region
          %s287 = ssub.s32 32, 32
          %288 = vsyncadd [#allocation12], %s287
          %s290 = sshll.u32 [#allocation11], 4
          %s291 = int_to_ptr.vmem [resolvable:$true] %s290
          %293 = dma.hbm_to_vmem [thread:$0]  %s5, 32, %s291, [#allocation12]
        $region32: #{tpu_custom_call.1} parent=11 // pred_fallthru
          _
        // Predicated region
        $region33: #{tpu_custom_call.1} parent=11 // pred_check
          %p294 = pneg %p173
        $region34: #{tpu_custom_call.1} parent=11 // pred_check_branch
          %296 = sbr.rel (%p294) target = $region36
        $region35: #{tpu_custom_call.1} parent=11 // pred_region
          %s298 = ssub.s32 16384, 16384
          %299 = vsyncadd [#allocation12], %s298
          %s300 = sshll.u32 [#allocation13], 4
          %s301 = int_to_ptr.vmem [resolvable:$true] %s300
          %306 = dma.hbm_to_vmem [thread:$0]  %s6, 16384, %s301, [#allocation12], 64, 64, 4
        $region36: #{tpu_custom_call.1} parent=11 // pred_fallthru
          _
        // Predicated region
        $region37: #{tpu_custom_call.1} parent=11 // pred_check
          %p307 = pneg %p194
        $region38: #{tpu_custom_call.1} parent=11 // pred_check_branch
          %309 = sbr.rel (%p307) target = $region40
        $region39: #{tpu_custom_call.1} parent=11 // pred_region
          %s311 = ssub.s32 16, 16
          %312 = vsyncadd [#allocation15], %s311
          %s314 = sshll.u32 [#allocation14], 4
          %s315 = int_to_ptr.vmem [resolvable:$true] %s314
          %317 = dma.hbm_to_vmem [thread:$0]  %s7, 16, %s315, [#allocation15]
        $region40: #{tpu_custom_call.1} parent=11 // pred_fallthru
          _
      $region12: #{tpu_custom_call.1} parent=5 // pred_fallthru
        _
      %p318 = scmp.lt.s32.totalorder %s21, 2
      // Predicated region
      $region41: #{tpu_custom_call.1} parent=5 // pred_check
        %p319 = pneg %p318
      $region42: #{tpu_custom_call.1} parent=5 // pred_check_branch
        %321 = sbr.rel (%p319) target = $region44
      $region43: #{tpu_custom_call.1} parent=5 // pred_region
        // Predicated region
        $region45: #{tpu_custom_call.1} parent=43 // pred_check
          %p322 = pneg %p41
        $region46: #{tpu_custom_call.1} parent=43 // pred_check_branch
          %324 = sbr.rel (%p322) target = $region48
        $region47: #{tpu_custom_call.1} parent=43 // pred_region
          %s325 = sand.u32 %s31, 1
          %s326 = scalar_lea.sflag [#allocation4], %s325
          %s327 = sand.u32 %s31, 1
          %s328 = smul.addr %s327, 1152
          %s329 = scalar_lea.vmem [#allocation3], %s328
          %s331 = ssub.s32 18432, 18432
          %332 = vsyncadd %s326, %s331
          %s333 = smul.addr %s21, 144
          %s334 = smul.addr %s333, 128
          %s335 = scalar_lea.hbm %s0, %s334
          %s336 = sshll.u32 %s329, 4
          %s337 = int_to_ptr.vmem [resolvable:$true] %s336
          %342 = dma.hbm_to_vmem [thread:$0]  %s335, 18432, %s337, %s326, 256, 256, 16
        $region48: #{tpu_custom_call.1} parent=43 // pred_fallthru
          _
      $region44: #{tpu_custom_call.1} parent=5 // pred_fallthru
        _
      %p343 = scmp.le.s32.totalorder 1, %s21
      %p344 = scmp.lt.s32.totalorder %s21, 3
      %p345 = pnand %p343, %p344
      %p346 = pneg %p345
      // Predicated region
      $region49: #{tpu_custom_call.1} parent=5 // pred_check
        _
      $region50: #{tpu_custom_call.1} parent=5 // pred_check_branch
        %348 = sbr.rel (%p345) target = $region52
      $region51: #{tpu_custom_call.1} parent=5 // pred_region
        %s349 = ssub.s32 %s21, 1
        %s350 = sand.u32 %s34, 1
        %s351 = scalar_lea.sflag [#allocation4], %s350
        %s352 = sand.u32 %s34, 1
        %s353 = smul.addr %s352, 1152
        %s354 = scalar_lea.vmem [#allocation3], %s353
        // Predicated region
        $region53: #{tpu_custom_call.1} parent=51 // pred_check
          %p355 = pneg %p47
        $region54: #{tpu_custom_call.1} parent=51 // pred_check_branch
          %357 = sbr.rel (%p355) target = $region56
        $region55: #{tpu_custom_call.1} parent=51 // pred_region
          %358 = dma.done %s351, 18432
        $region56: #{tpu_custom_call.1} parent=51 // pred_fallthru
          _
        // Predicated region
        $region57: #{tpu_custom_call.1} parent=51 // pred_check
          %p359 = pneg %p68
        $region58: #{tpu_custom_call.1} parent=51 // pred_check_branch
          %361 = sbr.rel (%p359) target = $region60
        $region59: #{tpu_custom_call.1} parent=51 // pred_region
          %362 = dma.done [#allocation6], 6144
        $region60: #{tpu_custom_call.1} parent=51 // pred_fallthru
          _
        // Predicated region
        $region61: #{tpu_custom_call.1} parent=51 // pred_check
          %p363 = pneg %p89
        $region62: #{tpu_custom_call.1} parent=51 // pred_check_branch
          %365 = sbr.rel (%p363) target = $region64
        $region63: #{tpu_custom_call.1} parent=51 // pred_region
          %366 = dma.done [#allocation6], 64
        $region64: #{tpu_custom_call.1} parent=51 // pred_fallthru
          _
        // Predicated region
        $region65: #{tpu_custom_call.1} parent=51 // pred_check
          %p367 = pneg %p110
        $region66: #{tpu_custom_call.1} parent=51 // pred_check_branch
          %369 = sbr.rel (%p367) target = $region68
        $region67: #{tpu_custom_call.1} parent=51 // pred_region
          %370 = dma.done [#allocation9], 128
        $region68: #{tpu_custom_call.1} parent=51 // pred_fallthru
          _
        // Predicated region
        $region69: #{tpu_custom_call.1} parent=51 // pred_check
          %p371 = pneg %p131
        $region70: #{tpu_custom_call.1} parent=51 // pred_check_branch
          %373 = sbr.rel (%p371) target = $region72
        $region71: #{tpu_custom_call.1} parent=51 // pred_region
          %374 = dma.done [#allocation9], 55296
        $region72: #{tpu_custom_call.1} parent=51 // pred_fallthru
          _
        // Predicated region
        $region73: #{tpu_custom_call.1} parent=51 // pred_check
          %p375 = pneg %p152
        $region74: #{tpu_custom_call.1} parent=51 // pred_check_branch
          %377 = sbr.rel (%p375) target = $region76
        $region75: #{tpu_custom_call.1} parent=51 // pred_region
          %378 = dma.done [#allocation12], 32
        $region76: #{tpu_custom_call.1} parent=51 // pred_fallthru
          _
        // Predicated region
        $region77: #{tpu_custom_call.1} parent=51 // pred_check
          %p379 = pneg %p173
        $region78: #{tpu_custom_call.1} parent=51 // pred_check_branch
          %381 = sbr.rel (%p379) target = $region80
        $region79: #{tpu_custom_call.1} parent=51 // pred_region
          %382 = dma.done [#allocation12], 16384
        $region80: #{tpu_custom_call.1} parent=51 // pred_fallthru
          _
        // Predicated region
        $region81: #{tpu_custom_call.1} parent=51 // pred_check
          %p383 = pneg %p194
        $region82: #{tpu_custom_call.1} parent=51 // pred_check_branch
          %385 = sbr.rel (%p383) target = $region84
        $region83: #{tpu_custom_call.1} parent=51 // pred_region
          %386 = dma.done [#allocation15], 16
        $region84: #{tpu_custom_call.1} parent=51 // pred_fallthru
          _
        %s387 = sand.u32 %s34, 1
        %s388 = scalar_lea.sflag [#allocation4], %s387
        %s389 = sand.u32 %s34, 1
        %s390 = smul.addr %s389, 1152
        %s391 = scalar_lea.vmem [#allocation3], %s390
        %p392 = pneg %p47
        %p393 = pneg %p44
        %p394 = pneg %p68
        %p395 = pneg %p65
        %p396 = pneg %p89
        %p397 = pneg %p86
        %p398 = pneg %p110
        %p399 = pneg %p107
        %p400 = pneg %p131
        %p401 = pneg %p128
        %p402 = pneg %p152
        %p403 = pneg %p149
        %p404 = pneg %p173
        %p405 = pneg %p170
        %p406 = pneg %p194
        %p407 = pneg %p191
        %p408 = pneg %p220
        %p409 = pneg %p217
        %p410 = scmp.lt.s32.totalorder %s26, 1
        %s411 = scalar_select %p410, %s26, 1
        %s412 = smul.addr %s411, 4
        %s413 = scalar_lea.vmem %s8, %s412
        %p414 = scmp.lt.s32.totalorder %s26, 1
        %s415 = scalar_select %p414, %s26, 1
        %s416 = smul.addr %s415, 4
        %s417 = scalar_lea.vmem %s8, %s416
        %v419 = vld [vmem:[#allocation5] sm:$0xff]
        %v420 = vld [vmem:[#allocation5 + $0x8] sm:$0xff]
        %v421 = vld [vmem:[#allocation5 + $0x10] sm:$0xff]
        %v422 = vld [vmem:[#allocation5 + $0x18] sm:$0xff]
        %v423 = vld [vmem:[#allocation5 + $0x20] sm:$0xff]
        %v424 = vld [vmem:[#allocation5 + $0x28] sm:$0xff]
        %v425 = vld [vmem:[#allocation5 + $0x30] sm:$0xff]
        %v426 = vld [vmem:[#allocation5 + $0x38] sm:$0xff]
        %v427 = vld [vmem:[#allocation5 + $0x40] sm:$0xff]
        %v428 = vld [vmem:[#allocation5 + $0x48] sm:$0xff]
        %v429 = vld [vmem:[#allocation5 + $0x50] sm:$0xff]
        %v430 = vld [vmem:[#allocation5 + $0x58] sm:$0xff]
        %v431 = vld [vmem:[#allocation5 + $0x60] sm:$0xff]
        %v432 = vld [vmem:[#allocation5 + $0x68] sm:$0xff]
        %v433 = vld [vmem:[#allocation5 + $0x70] sm:$0xff]
        %v434 = vld [vmem:[#allocation5 + $0x78] sm:$0xff]
        %v435 = vld [vmem:[#allocation5 + $0x80] sm:$0xff]
        %v436 = vld [vmem:[#allocation5 + $0x88] sm:$0xff]
        %v437 = vld [vmem:[#allocation5 + $0x90] sm:$0xff]
        %v438 = vld [vmem:[#allocation5 + $0x98] sm:$0xff]
        %v439 = vld [vmem:[#allocation5 + $0xa0] sm:$0xff]
        %v440 = vld [vmem:[#allocation5 + $0xa8] sm:$0xff]
        %v441 = vld [vmem:[#allocation5 + $0xb0] sm:$0xff]
        %v442 = vld [vmem:[#allocation5 + $0xb8] sm:$0xff]
        %v443 = vld [vmem:[#allocation5 + $0xc0] sm:$0xff]
        %v444 = vld [vmem:[#allocation5 + $0xc8] sm:$0xff]
        %v445 = vld [vmem:[#allocation5 + $0xd0] sm:$0xff]
        %v446 = vld [vmem:[#allocation5 + $0xd8] sm:$0xff]
        %v447 = vld [vmem:[#allocation5 + $0xe0] sm:$0xff]
        %v448 = vld [vmem:[#allocation5 + $0xe8] sm:$0xff]
        %v449 = vld [vmem:[#allocation5 + $0xf0] sm:$0xff]
        %v450 = vld [vmem:[#allocation5 + $0xf8] sm:$0xff]
        %v451 = vld [vmem:[#allocation5 + $0x100] sm:$0xff]
        %v452 = vld [vmem:[#allocation5 + $0x108] sm:$0xff]
        %v453 = vld [vmem:[#allocation5 + $0x110] sm:$0xff]
        %v454 = vld [vmem:[#allocation5 + $0x118] sm:$0xff]
        %v455 = vld [vmem:[#allocation5 + $0x120] sm:$0xff]
        %v456 = vld [vmem:[#allocation5 + $0x128] sm:$0xff]
        %v457 = vld [vmem:[#allocation5 + $0x130] sm:$0xff]
        %v458 = vld [vmem:[#allocation5 + $0x138] sm:$0xff]
        %v459 = vld [vmem:[#allocation5 + $0x140] sm:$0xff]
        %v460 = vld [vmem:[#allocation5 + $0x148] sm:$0xff]
        %v461 = vld [vmem:[#allocation5 + $0x150] sm:$0xff]
        %v462 = vld [vmem:[#allocation5 + $0x158] sm:$0xff]
        %v463 = vld [vmem:[#allocation5 + $0x160] sm:$0xff]
        %v464 = vld [vmem:[#allocation5 + $0x168] sm:$0xff]
        %v465 = vld [vmem:[#allocation5 + $0x170] sm:$0xff]
        %v466 = vld [vmem:[#allocation5 + $0x178] sm:$0xff]
        %v467 = vld [vmem:[#allocation7] sm:$0xf]
        %v468 = vld [vmem:[#allocation8] sm:$0xff]
        %v469 = vld [vmem:[%s354] sm:$0xff]
        %v470 = vld [vmem:[%s354 + $0x8] sm:$0xff]
        %v471 = vld [vmem:[%s354 + $0x10] sm:$0xff]
        %v472 = vld [vmem:[%s354 + $0x18] sm:$0xff]
        %v473 = vld [vmem:[%s354 + $0x20] sm:$0xff]
        %v474 = vld [vmem:[%s354 + $0x28] sm:$0xff]
        %v475 = vld [vmem:[%s354 + $0x30] sm:$0xff]
        %v476 = vld [vmem:[%s354 + $0x38] sm:$0xff]
        %v477 = vld [vmem:[%s354 + $0x40] sm:$0xff]
        %v478 = vld [vmem:[%s354 + $0x48] sm:$0xff]
        %v479 = vld [vmem:[%s354 + $0x50] sm:$0xff]
        %v480 = vld [vmem:[%s354 + $0x58] sm:$0xff]
        %v481 = vld [vmem:[%s354 + $0x60] sm:$0xff]
        %v482 = vld [vmem:[%s354 + $0x68] sm:$0xff]
        %v483 = vld [vmem:[%s354 + $0x70] sm:$0xff]
        %v484 = vld [vmem:[%s354 + $0x78] sm:$0xff]
        %v485 = vld [vmem:[%s354 + $0x80] sm:$0xff]
        %v486 = vld [vmem:[%s354 + $0x88] sm:$0xff]
        %v487 = vld [vmem:[%s354 + $0x90] sm:$0xff]
        %v488 = vld [vmem:[%s354 + $0x98] sm:$0xff]
        %v489 = vld [vmem:[%s354 + $0xa0] sm:$0xff]
        %v490 = vld [vmem:[%s354 + $0xa8] sm:$0xff]
        %v491 = vld [vmem:[%s354 + $0xb0] sm:$0xff]
        %v492 = vld [vmem:[%s354 + $0xb8] sm:$0xff]
        %v493 = vld [vmem:[%s354 + $0xc0] sm:$0xff]
        %v494 = vld [vmem:[%s354 + $0xc8] sm:$0xff]
        %v495 = vld [vmem:[%s354 + $0xd0] sm:$0xff]
        %v496 = vld [vmem:[%s354 + $0xd8] sm:$0xff]
        %v497 = vld [vmem:[%s354 + $0xe0] sm:$0xff]
        %v498 = vld [vmem:[%s354 + $0xe8] sm:$0xff]
        %v499 = vld [vmem:[%s354 + $0xf0] sm:$0xff]
        %v500 = vld [vmem:[%s354 + $0xf8] sm:$0xff]
        %v501 = vld [vmem:[%s354 + $0x100] sm:$0xff]
        %v502 = vld [vmem:[%s354 + $0x108] sm:$0xff]
        %v503 = vld [vmem:[%s354 + $0x110] sm:$0xff]
        %v504 = vld [vmem:[%s354 + $0x118] sm:$0xff]
        %v505 = vld [vmem:[%s354 + $0x120] sm:$0xff]
        %v506 = vld [vmem:[%s354 + $0x128] sm:$0xff]
        %v507 = vld [vmem:[%s354 + $0x130] sm:$0xff]
        %v508 = vld [vmem:[%s354 + $0x138] sm:$0xff]
        %v509 = vld [vmem:[%s354 + $0x140] sm:$0xff]
        %v510 = vld [vmem:[%s354 + $0x148] sm:$0xff]
        %v511 = vld [vmem:[%s354 + $0x150] sm:$0xff]
        %v512 = vld [vmem:[%s354 + $0x158] sm:$0xff]
        %v513 = vld [vmem:[%s354 + $0x160] sm:$0xff]
        %v514 = vld [vmem:[%s354 + $0x168] sm:$0xff]
        %v515 = vld [vmem:[%s354 + $0x170] sm:$0xff]
        %v516 = vld [vmem:[%s354 + $0x178] sm:$0xff]
        %v517 = vpack.c.bf16 %v471, %v469
        %v518 = vpack.c.bf16 %v472, %v470
        %v519 = vpack.c.bf16 %v475, %v473
        %v520 = vpack.c.bf16 %v476, %v474
        %v521 = vpack.c.bf16 %v479, %v477
        %v522 = vpack.c.bf16 %v480, %v478
        %v523 = vpack.c.bf16 %v483, %v481
        %v524 = vpack.c.bf16 %v484, %v482
        %v525 = vpack.c.bf16 %v487, %v485
        %v526 = vpack.c.bf16 %v488, %v486
        %v527 = vpack.c.bf16 %v491, %v489
        %v528 = vpack.c.bf16 %v492, %v490
        %v529 = vpack.c.bf16 %v495, %v493
        %v530 = vpack.c.bf16 %v496, %v494
        %v531 = vpack.c.bf16 %v499, %v497
        %v532 = vpack.c.bf16 %v500, %v498
        %v533 = vpack.c.bf16 %v503, %v501
        %v534 = vpack.c.bf16 %v504, %v502
        %v535 = vpack.c.bf16 %v507, %v505
        %v536 = vpack.c.bf16 %v508, %v506
        %v537 = vpack.c.bf16 %v511, %v509
        %v538 = vpack.c.bf16 %v512, %v510
        %v539 = vpack.c.bf16 %v515, %v513
        %v540 = vpack.c.bf16 %v516, %v514
        %v542 = vlaneseq
        %v543 = vshrl.u32 %v542, 7
        %v544 = vsub.s32 0, %v543
        %v545 = vrot.slane %v467, %v544
        %v546 = vlaneseq
        %v547 = vshrl.u32 %v546, 7
        %v548 = vsub.s32 1, %v547
        %v549 = vrot.slane %v467, %v548
        %v550 = vlaneseq
        %v551 = vshrl.u32 %v550, 7
        %v552 = vsub.s32 2, %v551
        %v553 = vrot.slane %v467, %v552
        %v554 = vlaneseq
        %v555 = vshrl.u32 %v554, 7
        %v556 = vsub.s32 3, %v555
        %v557 = vrot.slane %v467, %v556
        %562 = vxpose.xlu0.c.b16.start [1/8] %v517, 128
        %563 = vxpose.xlu0.c.b16.cont [2/8] %v519, 128
        %564 = vxpose.xlu0.c.b16.cont [3/8] %v521, 128
        %565 = vxpose.xlu0.c.b16.cont [4/8] %v523, 128
        %566 = vxpose.xlu0.c.b16.cont [5/8] %v525, 128
        %567 = vxpose.xlu0.c.b16.cont [6/8] %v527, 128
        %568 = vxpose.xlu0.c.b16.cont [7/8] %v529, 128
        %569 = vxpose.xlu0.c.b16.end [8/8] %v531, 128
        %v570 = vpop.trf.xlu0
        %v571 = vpop.trf.xlu0
        %v572 = vpop.trf.xlu0
        %v573 = vpop.trf.xlu0
        %v574 = vpop.trf.xlu0
        %v575 = vpop.trf.xlu0
        %v576 = vpop.trf.xlu0
        %v577 = vpop.trf.xlu0
        %578 = vxpose.xlu0.c.b16.start [1/8] %v518, 128
        %579 = vxpose.xlu0.c.b16.cont [2/8] %v520, 128
        %580 = vxpose.xlu0.c.b16.cont [3/8] %v522, 128
        %581 = vxpose.xlu0.c.b16.cont [4/8] %v524, 128
        %582 = vxpose.xlu0.c.b16.cont [5/8] %v526, 128
        %583 = vxpose.xlu0.c.b16.cont [6/8] %v528, 128
        %584 = vxpose.xlu0.c.b16.cont [7/8] %v530, 128
        %585 = vxpose.xlu0.c.b16.end [8/8] %v532, 128
        %v586 = vpop.trf.xlu0
        %v587 = vpop.trf.xlu0
        %v588 = vpop.trf.xlu0
        %v589 = vpop.trf.xlu0
        %v590 = vpop.trf.xlu0
        %v591 = vpop.trf.xlu0
        %v592 = vpop.trf.xlu0
        %v593 = vpop.trf.xlu0
        %594 = vxpose.xlu0.c.b16.start [1/8] %v533, 128
        %595 = vxpose.xlu0.c.b16.cont [2/8] %v535, 128
        %596 = vxpose.xlu0.c.b16.cont [3/8] %v537, 128
        %597 = vxpose.xlu0.c.b16.cont [4/8] %v539, 128
        %598 = vxpose.xlu0.c.b16.cont [5/8] 0, 128
        %599 = vxpose.xlu0.c.b16.cont [6/8] 0, 128
        %600 = vxpose.xlu0.c.b16.cont [7/8] 0, 128
        %601 = vxpose.xlu0.c.b16.end [8/8] 0, 128
        %v602 = vpop.trf.xlu0
        %v603 = vpop.trf.xlu0
        %v604 = vpop.trf.xlu0
        %v605 = vpop.trf.xlu0
        %v606 = vpop.trf.xlu0
        %v607 = vpop.trf.xlu0
        %v608 = vpop.trf.xlu0
        %v609 = vpop.trf.xlu0
        %610 = vxpose.xlu0.c.b16.start [1/8] %v534, 128
        %611 = vxpose.xlu0.c.b16.cont [2/8] %v536, 128
        %612 = vxpose.xlu0.c.b16.cont [3/8] %v538, 128
        %613 = vxpose.xlu0.c.b16.cont [4/8] %v540, 128
        %614 = vxpose.xlu0.c.b16.cont [5/8] 0, 128
        %615 = vxpose.xlu0.c.b16.cont [6/8] 0, 128
        %616 = vxpose.xlu0.c.b16.cont [7/8] 0, 128
        %617 = vxpose.xlu0.c.b16.end [8/8] 0, 128
        %v618 = vpop.trf.xlu0
        %v619 = vpop.trf.xlu0
        %v620 = vpop.trf.xlu0
        %v621 = vpop.trf.xlu0
        %v622 = vpop.trf.xlu0
        %v623 = vpop.trf.xlu0
        %v624 = vpop.trf.xlu0
        %v625 = vpop.trf.xlu0
        %v674 = vunpack.c.l.b16 %v419
        %v675 = vunpack.c.h.b16 %v419
        %v676 = vunpack.c.l.b16 %v420
        %v677 = vunpack.c.h.b16 %v420
        %v678 = vunpack.c.l.b16 %v421
        %v679 = vunpack.c.h.b16 %v421
        %v680 = vunpack.c.l.b16 %v422
        %v681 = vunpack.c.h.b16 %v422
        %v682 = vunpack.c.l.b16 %v423
        %v683 = vunpack.c.h.b16 %v423
        %v684 = vunpack.c.l.b16 %v424
        %v685 = vunpack.c.h.b16 %v424
        %v686 = vunpack.c.l.b16 %v425
        %v687 = vunpack.c.h.b16 %v425
        %v688 = vunpack.c.l.b16 %v426
        %v689 = vunpack.c.h.b16 %v426
        %v690 = vunpack.c.l.b16 %v427
        %v691 = vunpack.c.h.b16 %v427
        %v692 = vunpack.c.l.b16 %v428
        %v693 = vunpack.c.h.b16 %v428
        %v694 = vunpack.c.l.b16 %v429
        %v695 = vunpack.c.h.b16 %v429
        %v696 = vunpack.c.l.b16 %v430
        %v697 = vunpack.c.h.b16 %v430
        %v698 = vunpack.c.l.b16 %v431
        %v699 = vunpack.c.h.b16 %v431
        %v700 = vunpack.c.l.b16 %v432
        %v701 = vunpack.c.h.b16 %v432
        %v702 = vunpack.c.l.b16 %v433
        %v703 = vunpack.c.h.b16 %v433
        %v704 = vunpack.c.l.b16 %v434
        %v705 = vunpack.c.h.b16 %v434
        %v706 = vunpack.c.l.b16 %v435
        %v707 = vunpack.c.h.b16 %v435
        %v708 = vunpack.c.l.b16 %v436
        %v709 = vunpack.c.h.b16 %v436
        %v710 = vunpack.c.l.b16 %v437
        %v711 = vunpack.c.h.b16 %v437
        %v712 = vunpack.c.l.b16 %v438
        %v713 = vunpack.c.h.b16 %v438
        %v714 = vunpack.c.l.b16 %v439
        %v715 = vunpack.c.h.b16 %v439
        %v716 = vunpack.c.l.b16 %v440
        %v717 = vunpack.c.h.b16 %v440
        %v718 = vunpack.c.l.b16 %v441
        %v719 = vunpack.c.h.b16 %v441
        %v720 = vunpack.c.l.b16 %v442
        %v721 = vunpack.c.h.b16 %v442
        %v722 = vunpack.c.l.b16 %v443
        %v723 = vunpack.c.h.b16 %v443
        %v724 = vunpack.c.l.b16 %v444
        %v725 = vunpack.c.h.b16 %v444
        %v726 = vunpack.c.l.b16 %v445
        %v727 = vunpack.c.h.b16 %v445
        %v728 = vunpack.c.l.b16 %v446
        %v729 = vunpack.c.h.b16 %v446
        %v730 = vunpack.c.l.b16 %v447
        %v731 = vunpack.c.h.b16 %v447
        %v732 = vunpack.c.l.b16 %v448
        %v733 = vunpack.c.h.b16 %v448
        %v734 = vunpack.c.l.b16 %v449
        %v735 = vunpack.c.h.b16 %v449
        %v736 = vunpack.c.l.b16 %v450
        %v737 = vunpack.c.h.b16 %v450
        %v738 = vunpack.c.l.b16 %v451
        %v739 = vunpack.c.h.b16 %v451
        %v740 = vunpack.c.l.b16 %v452
        %v741 = vunpack.c.h.b16 %v452
        %v742 = vunpack.c.l.b16 %v453
        %v743 = vunpack.c.h.b16 %v453
        %v744 = vunpack.c.l.b16 %v454
        %v745 = vunpack.c.h.b16 %v454
        %v746 = vunpack.c.l.b16 %v455
        %v747 = vunpack.c.h.b16 %v455
        %v748 = vunpack.c.l.b16 %v456
        %v749 = vunpack.c.h.b16 %v456
        %v750 = vunpack.c.l.b16 %v457
        %v751 = vunpack.c.h.b16 %v457
        %v752 = vunpack.c.l.b16 %v458
        %v753 = vunpack.c.h.b16 %v458
        %v754 = vunpack.c.l.b16 %v459
        %v755 = vunpack.c.h.b16 %v459
        %v756 = vunpack.c.l.b16 %v460
        %v757 = vunpack.c.h.b16 %v460
        %v758 = vunpack.c.l.b16 %v461
        %v759 = vunpack.c.h.b16 %v461
        %v760 = vunpack.c.l.b16 %v462
        %v761 = vunpack.c.h.b16 %v462
        %v762 = vunpack.c.l.b16 %v463
        %v763 = vunpack.c.h.b16 %v463
        %v764 = vunpack.c.l.b16 %v464
        %v765 = vunpack.c.h.b16 %v464
        %v766 = vunpack.c.l.b16 %v465
        %v767 = vunpack.c.h.b16 %v465
        %v768 = vunpack.c.l.b16 %v466
        %v769 = vunpack.c.h.b16 %v466
        %v770 = vpack.c.b16 %v678, %v674
        %v771 = vpack.c.b16 %v679, %v675
        %v772 = vpack.c.b16 %v680, %v676
        %v773 = vpack.c.b16 %v681, %v677
        %v774 = vpack.c.b16 %v686, %v682
        %v775 = vpack.c.b16 %v687, %v683
        %v776 = vpack.c.b16 %v688, %v684
        %v777 = vpack.c.b16 %v689, %v685
        %v778 = vpack.c.b16 %v694, %v690
        %v779 = vpack.c.b16 %v695, %v691
        %v780 = vpack.c.b16 %v696, %v692
        %v781 = vpack.c.b16 %v697, %v693
        %v782 = vpack.c.b16 %v702, %v698
        %v783 = vpack.c.b16 %v703, %v699
        %v784 = vpack.c.b16 %v704, %v700
        %v785 = vpack.c.b16 %v705, %v701
        %v786 = vpack.c.b16 %v710, %v706
        %v787 = vpack.c.b16 %v711, %v707
        %v788 = vpack.c.b16 %v712, %v708
        %v789 = vpack.c.b16 %v713, %v709
        %v790 = vpack.c.b16 %v718, %v714
        %v791 = vpack.c.b16 %v719, %v715
        %v792 = vpack.c.b16 %v720, %v716
        %v793 = vpack.c.b16 %v721, %v717
        %v794 = vpack.c.b16 %v726, %v722
        %v795 = vpack.c.b16 %v727, %v723
        %v796 = vpack.c.b16 %v728, %v724
        %v797 = vpack.c.b16 %v729, %v725
        %v798 = vpack.c.b16 %v734, %v730
        %v799 = vpack.c.b16 %v735, %v731
        %v800 = vpack.c.b16 %v736, %v732
        %v801 = vpack.c.b16 %v737, %v733
        %v802 = vpack.c.b16 %v742, %v738
        %v803 = vpack.c.b16 %v743, %v739
        %v804 = vpack.c.b16 %v744, %v740
        %v805 = vpack.c.b16 %v745, %v741
        %v806 = vpack.c.b16 %v750, %v746
        %v807 = vpack.c.b16 %v751, %v747
        %v808 = vpack.c.b16 %v752, %v748
        %v809 = vpack.c.b16 %v753, %v749
        %v810 = vpack.c.b16 %v758, %v754
        %v811 = vpack.c.b16 %v759, %v755
        %v812 = vpack.c.b16 %v760, %v756
        %v813 = vpack.c.b16 %v761, %v757
        %v814 = vpack.c.b16 %v766, %v762
        %v815 = vpack.c.b16 %v767, %v763
        %v816 = vpack.c.b16 %v768, %v764
        %v817 = vpack.c.b16 %v769, %v765
        %vm866 = vcmask 523264
        %v868 = vsel %vm866, %v602, 0
        %v871 = vsel %vm866, %v603, 0
        %v874 = vsel %vm866, %v604, 0
        %v877 = vsel %vm866, %v605, 0
        %v880 = vsel %vm866, %v606, 0
        %v883 = vsel %vm866, %v607, 0
        %v886 = vsel %vm866, %v608, 0
        %v889 = vsel %vm866, %v609, 0
        %v892 = vsel %vm866, %v618, 0
        %v895 = vsel %vm866, %v619, 0
        %v898 = vsel %vm866, %v620, 0
        %v901 = vsel %vm866, %v621, 0
        %v904 = vsel %vm866, %v622, 0
        %v907 = vsel %vm866, %v623, 0
        %v910 = vsel %vm866, %v624, 0
        %v913 = vsel %vm866, %v625, 0
        %915 = vmatprep.subr.bf16.mxu0 %v771
        %916 = vmatpush1.bf16.msra.mxu0 %v770
        %917 = vmatprep.subr.bf16.mxu0 %v775
        %918 = vmatpush1.bf16.msra.mxu0 %v774
        %919 = vmatprep.subr.bf16.mxu0 %v779
        %920 = vmatpush1.bf16.msra.mxu0 %v778
        %921 = vmatprep.subr.bf16.mxu0 %v783
        %922 = vmatpush1.bf16.msra.mxu0 %v782
        %923 = vmatprep.subr.bf16.mxu0 %v787
        %924 = vmatpush1.bf16.msra.mxu0 %v786
        %925 = vmatprep.subr.bf16.mxu0 %v791
        %926 = vmatpush1.bf16.msra.mxu0 %v790
        %927 = vmatprep.subr.bf16.mxu0 %v795
        %928 = vmatpush1.bf16.msra.mxu0 %v794
        %929 = vmatprep.subr.bf16.mxu0 %v799
        %930 = vmatpush1.bf16.msra.mxu0 %v798
        %931 = vmatprep.subr.bf16.mxu0 %v803
        %932 = vmatpush1.bf16.msra.mxu0 %v802
        %933 = vmatprep.subr.bf16.mxu0 %v807
        %934 = vmatpush1.bf16.msra.mxu0 %v806
        %935 = vmatprep.subr.bf16.mxu0 %v811
        %936 = vmatpush1.bf16.msra.mxu0 %v810
        %937 = vmatprep.subr.bf16.mxu0 %v815
        %938 = vmatpush1.bf16.msra.mxu0 %v814
        %939 = vmatprep.subr.bf16.mxu0 0
        %940 = vmatpush1.bf16.msra.mxu0 0
        %941 = vmatprep.subr.bf16.mxu0 0
        %942 = vmatpush1.bf16.msra.mxu0 0
        %943 = vmatprep.subr.bf16.mxu0 0
        %944 = vmatpush1.bf16.msra.mxu0 0
        %945 = vmatprep.subr.bf16.mxu0 0
        %946 = vmatpush1.bf16.msra.mxu0 0
        %947 = vmatprep.mubr.bf16.mxu0 %v868
        %948 = vmatmul.mubr.bf16.gmra.mrb[0].mxu0 %v570
        %v949 = vpop.f32.mrb[0].mxu0
        %v950 = vadd.f32 %v545, %v949
        %v951 = vpop.f32.mrb[0].mxu0
        %v952 = vadd.f32 %v549, %v951
        %v953 = vpop.f32.mrb[0].mxu0
        %v954 = vadd.f32 %v545, %v953
        %v955 = vpop.f32.mrb[0].mxu0
        %v956 = vadd.f32 %v549, %v955
        %957 = vmatprep.mubr.bf16.mxu0 %v871
        %958 = vmatmul.mubr.bf16.gmra.mrb[0].mxu0 %v571
        %v959 = vpop.f32.mrb[0].mxu0
        %v960 = vadd.f32 %v545, %v959
        %v961 = vpop.f32.mrb[0].mxu0
        %v962 = vadd.f32 %v549, %v961
        %v963 = vpop.f32.mrb[0].mxu0
        %v964 = vadd.f32 %v545, %v963
        %v965 = vpop.f32.mrb[0].mxu0
        %v966 = vadd.f32 %v549, %v965
        %967 = vmatprep.mubr.bf16.mxu0 %v874
        %968 = vmatmul.mubr.bf16.gmra.mrb[0].mxu0 %v572
        %v969 = vpop.f32.mrb[0].mxu0
        %v970 = vadd.f32 %v545, %v969
        %v971 = vpop.f32.mrb[0].mxu0
        %v972 = vadd.f32 %v549, %v971
        %v973 = vpop.f32.mrb[0].mxu0
        %v974 = vadd.f32 %v545, %v973
        %v975 = vpop.f32.mrb[0].mxu0
        %v976 = vadd.f32 %v549, %v975
        %977 = vmatprep.mubr.bf16.mxu0 %v877
        %978 = vmatmul.mubr.bf16.gmra.mrb[0].mxu0 %v573
        %v979 = vpop.f32.mrb[0].mxu0
        %v980 = vadd.f32 %v545, %v979
        %v981 = vpop.f32.mrb[0].mxu0
        %v982 = vadd.f32 %v549, %v981
        %v983 = vpop.f32.mrb[0].mxu0
        %v984 = vadd.f32 %v545, %v983
        %v985 = vpop.f32.mrb[0].mxu0
        %v986 = vadd.f32 %v549, %v985
        %987 = vmatprep.mubr.bf16.mxu0 %v880
        %988 = vmatmul.mubr.bf16.gmra.mrb[0].mxu0 %v574
        %v989 = vpop.f32.mrb[0].mxu0
        %v990 = vadd.f32 %v545, %v989
        %v991 = vpop.f32.mrb[0].mxu0
        %v992 = vadd.f32 %v549, %v991
        %v993 = vpop.f32.mrb[0].mxu0
        %v994 = vadd.f32 %v545, %v993
        %v995 = vpop.f32.mrb[0].mxu0
        %v996 = vadd.f32 %v549, %v995
        %997 = vmatprep.mubr.bf16.mxu0 %v883
        %998 = vmatmul.mubr.bf16.gmra.mrb[0].mxu0 %v575
        %v999 = vpop.f32.mrb[0].mxu0
        %v1000 = vadd.f32 %v545, %v999
        %v1001 = vpop.f32.mrb[0].mxu0
        %v1002 = vadd.f32 %v549, %v1001
        %v1003 = vpop.f32.mrb[0].mxu0
        %v1004 = vadd.f32 %v545, %v1003
        %v1005 = vpop.f32.mrb[0].mxu0
        %v1006 = vadd.f32 %v549, %v1005
        %1007 = vmatprep.mubr.bf16.mxu0 %v886
        %1008 = vmatmul.mubr.bf16.gmra.mrb[0].mxu0 %v576
        %v1009 = vpop.f32.mrb[0].mxu0
        %v1010 = vadd.f32 %v545, %v1009
        %v1011 = vpop.f32.mrb[0].mxu0
        %v1012 = vadd.f32 %v549, %v1011
        %v1013 = vpop.f32.mrb[0].mxu0
        %v1014 = vadd.f32 %v545, %v1013
        %v1015 = vpop.f32.mrb[0].mxu0
        %v1016 = vadd.f32 %v549, %v1015
        %1017 = vmatprep.mubr.bf16.mxu0 %v889
        %1018 = vmatmul.mubr.bf16.gmra.mrb[0].mxu0 %v577
        %v1019 = vpop.f32.mrb[0].mxu0
        %v1020 = vadd.f32 %v545, %v1019
        %v1021 = vpop.f32.mrb[0].mxu0
        %v1022 = vadd.f32 %v549, %v1021
        %v1023 = vpop.f32.mrb[0].mxu0
        %v1024 = vadd.f32 %v545, %v1023
        %v1025 = vpop.f32.mrb[0].mxu0
        %v1026 = vadd.f32 %v549, %v1025
        %1027 = vmatprep.mubr.bf16.mxu0 %v892
        %1028 = vmatmul.mubr.bf16.gmra.mrb[0].mxu0 %v586
        %v1029 = vpop.f32.mrb[0].mxu0
        %v1030 = vadd.f32 %v545, %v1029
        %v1031 = vpop.f32.mrb[0].mxu0
        %v1032 = vadd.f32 %v549, %v1031
        %v1033 = vpop.f32.mrb[0].mxu0
        %v1034 = vadd.f32 %v545, %v1033
        %v1035 = vpop.f32.mrb[0].mxu0
        %v1036 = vadd.f32 %v549, %v1035
        %1037 = vmatprep.mubr.bf16.mxu0 %v895
        %1038 = vmatmul.mubr.bf16.gmra.mrb[0].mxu0 %v587
        %v1039 = vpop.f32.mrb[0].mxu0
        %v1040 = vadd.f32 %v545, %v1039
        %v1041 = vpop.f32.mrb[0].mxu0
        %v1042 = vadd.f32 %v549, %v1041
        %v1043 = vpop.f32.mrb[0].mxu0
        %v1044 = vadd.f32 %v545, %v1043
        %v1045 = vpop.f32.mrb[0].mxu0
        %v1046 = vadd.f32 %v549, %v1045
        %1047 = vmatprep.mubr.bf16.mxu0 %v898
        %1048 = vmatmul.mubr.bf16.gmra.mrb[0].mxu0 %v588
        %v1049 = vpop.f32.mrb[0].mxu0
        %v1050 = vadd.f32 %v545, %v1049
        %v1051 = vpop.f32.mrb[0].mxu0
        %v1052 = vadd.f32 %v549, %v1051
        %v1053 = vpop.f32.mrb[0].mxu0
        %v1054 = vadd.f32 %v545, %v1053
        %v1055 = vpop.f32.mrb[0].mxu0
        %v1056 = vadd.f32 %v549, %v1055
        %1057 = vmatprep.mubr.bf16.mxu0 %v901
        %1058 = vmatmul.mubr.bf16.gmra.mrb[0].mxu0 %v589
        %v1059 = vpop.f32.mrb[0].mxu0
        %v1060 = vadd.f32 %v545, %v1059
        %v1061 = vpop.f32.mrb[0].mxu0
        %v1062 = vadd.f32 %v549, %v1061
        %v1063 = vpop.f32.mrb[0].mxu0
        %v1064 = vadd.f32 %v545, %v1063
        %v1065 = vpop.f32.mrb[0].mxu0
        %v1066 = vadd.f32 %v549, %v1065
        %1067 = vmatprep.mubr.bf16.mxu0 %v904
        %1068 = vmatmul.mubr.bf16.gmra.mrb[0].mxu0 %v590
        %v1069 = vpop.f32.mrb[0].mxu0
        %v1070 = vadd.f32 %v545, %v1069
        %v1071 = vpop.f32.mrb[0].mxu0
        %v1072 = vadd.f32 %v549, %v1071
        %v1073 = vpop.f32.mrb[0].mxu0
        %v1074 = vadd.f32 %v545, %v1073
        %v1075 = vpop.f32.mrb[0].mxu0
        %v1076 = vadd.f32 %v549, %v1075
        %1077 = vmatprep.mubr.bf16.mxu0 %v907
        %1078 = vmatmul.mubr.bf16.gmra.mrb[0].mxu0 %v591
        %v1079 = vpop.f32.mrb[0].mxu0
        %v1080 = vadd.f32 %v545, %v1079
        %v1081 = vpop.f32.mrb[0].mxu0
        %v1082 = vadd.f32 %v549, %v1081
        %v1083 = vpop.f32.mrb[0].mxu0
        %v1084 = vadd.f32 %v545, %v1083
        %v1085 = vpop.f32.mrb[0].mxu0
        %v1086 = vadd.f32 %v549, %v1085
        %1087 = vmatprep.mubr.bf16.mxu0 %v910
        %1088 = vmatmul.mubr.bf16.gmra.mrb[0].mxu0 %v592
        %v1089 = vpop.f32.mrb[0].mxu0
        %v1090 = vadd.f32 %v545, %v1089
        %v1091 = vpop.f32.mrb[0].mxu0
        %v1092 = vadd.f32 %v549, %v1091
        %v1093 = vpop.f32.mrb[0].mxu0
        %v1094 = vadd.f32 %v545, %v1093
        %v1095 = vpop.f32.mrb[0].mxu0
        %v1096 = vadd.f32 %v549, %v1095
        %1097 = vmatprep.mubr.bf16.mxu0 %v913
        %1098 = vmatmul.mubr.bf16.gmra.mrb[0].mxu0 %v593
        %v1099 = vpop.f32.mrb[0].mxu0
        %v1100 = vadd.f32 %v545, %v1099
        %v1101 = vpop.f32.mrb[0].mxu0
        %v1102 = vadd.f32 %v549, %v1101
        %v1103 = vpop.f32.mrb[0].mxu0
        %v1104 = vadd.f32 %v545, %v1103
        %v1105 = vpop.f32.mrb[0].mxu0
        %v1106 = vadd.f32 %v549, %v1105
        %1107 = vdwg.mxu0
        %1108 = vmatprep.subr.bf16.mxu0 %v773
        %1109 = vmatpush1.bf16.msra.mxu0 %v772
        %1110 = vmatprep.subr.bf16.mxu0 %v777
        %1111 = vmatpush1.bf16.msra.mxu0 %v776
        %1112 = vmatprep.subr.bf16.mxu0 %v781
        %1113 = vmatpush1.bf16.msra.mxu0 %v780
        %1114 = vmatprep.subr.bf16.mxu0 %v785
        %1115 = vmatpush1.bf16.msra.mxu0 %v784
        %1116 = vmatprep.subr.bf16.mxu0 %v789
        %1117 = vmatpush1.bf16.msra.mxu0 %v788
        %1118 = vmatprep.subr.bf16.mxu0 %v793
        %1119 = vmatpush1.bf16.msra.mxu0 %v792
        %1120 = vmatprep.subr.bf16.mxu0 %v797
        %1121 = vmatpush1.bf16.msra.mxu0 %v796
        %1122 = vmatprep.subr.bf16.mxu0 %v801
        %1123 = vmatpush1.bf16.msra.mxu0 %v800
        %1124 = vmatprep.subr.bf16.mxu0 %v805
        %1125 = vmatpush1.bf16.msra.mxu0 %v804
        %1126 = vmatprep.subr.bf16.mxu0 %v809
        %1127 = vmatpush1.bf16.msra.mxu0 %v808
        %1128 = vmatprep.subr.bf16.mxu0 %v813
        %1129 = vmatpush1.bf16.msra.mxu0 %v812
        %1130 = vmatprep.subr.bf16.mxu0 %v817
        %1131 = vmatpush1.bf16.msra.mxu0 %v816
        %1132 = vmatprep.subr.bf16.mxu0 0
        %1133 = vmatpush1.bf16.msra.mxu0 0
        %1134 = vmatprep.subr.bf16.mxu0 0
        %1135 = vmatpush1.bf16.msra.mxu0 0
        %1136 = vmatprep.subr.bf16.mxu0 0
        %1137 = vmatpush1.bf16.msra.mxu0 0
        %1138 = vmatprep.subr.bf16.mxu0 0
        %1139 = vmatpush1.bf16.msra.mxu0 0
        %1140 = vmatprep.mubr.bf16.mxu0 %v868
        %1141 = vmatmul.mubr.bf16.gmra.mrb[0].mxu0 %v570
        %v1142 = vpop.f32.mrb[0].mxu0
        %v1143 = vadd.f32 %v553, %v1142
        %v1144 = vpop.f32.mrb[0].mxu0
        %v1145 = vadd.f32 %v557, %v1144
        %v1146 = vpop.f32.mrb[0].mxu0
        %v1147 = vadd.f32 %v553, %v1146
        %v1148 = vpop.f32.mrb[0].mxu0
        %v1149 = vadd.f32 %v557, %v1148
        %1150 = vmatprep.mubr.bf16.mxu0 %v871
        %1151 = vmatmul.mubr.bf16.gmra.mrb[0].mxu0 %v571
        %v1152 = vpop.f32.mrb[0].mxu0
        %v1153 = vadd.f32 %v553, %v1152
        %v1154 = vpop.f32.mrb[0].mxu0
        %v1155 = vadd.f32 %v557, %v1154
        %v1156 = vpop.f32.mrb[0].mxu0
        %v1157 = vadd.f32 %v553, %v1156
        %v1158 = vpop.f32.mrb[0].mxu0
        %v1159 = vadd.f32 %v557, %v1158
        %1160 = vmatprep.mubr.bf16.mxu0 %v874
        %1161 = vmatmul.mubr.bf16.gmra.mrb[0].mxu0 %v572
        %v1162 = vpop.f32.mrb[0].mxu0
        %v1163 = vadd.f32 %v553, %v1162
        %v1164 = vpop.f32.mrb[0].mxu0
        %v1165 = vadd.f32 %v557, %v1164
        %v1166 = vpop.f32.mrb[0].mxu0
        %v1167 = vadd.f32 %v553, %v1166
        %v1168 = vpop.f32.mrb[0].mxu0
        %v1169 = vadd.f32 %v557, %v1168
        %1170 = vmatprep.mubr.bf16.mxu0 %v877
        %1171 = vmatmul.mubr.bf16.gmra.mrb[0].mxu0 %v573
        %v1172 = vpop.f32.mrb[0].mxu0
        %v1173 = vadd.f32 %v553, %v1172
        %v1174 = vpop.f32.mrb[0].mxu0
        %v1175 = vadd.f32 %v557, %v1174
        %v1176 = vpop.f32.mrb[0].mxu0
        %v1177 = vadd.f32 %v553, %v1176
        %v1178 = vpop.f32.mrb[0].mxu0
        %v1179 = vadd.f32 %v557, %v1178
        %1180 = vmatprep.mubr.bf16.mxu0 %v880
        %1181 = vmatmul.mubr.bf16.gmra.mrb[0].mxu0 %v574
        %v1182 = vpop.f32.mrb[0].mxu0
        %v1183 = vadd.f32 %v553, %v1182
        %v1184 = vpop.f32.mrb[0].mxu0
        %v1185 = vadd.f32 %v557, %v1184
        %v1186 = vpop.f32.mrb[0].mxu0
        %v1187 = vadd.f32 %v553, %v1186
        %v1188 = vpop.f32.mrb[0].mxu0
        %v1189 = vadd.f32 %v557, %v1188
        %1190 = vmatprep.mubr.bf16.mxu0 %v883
        %1191 = vmatmul.mubr.bf16.gmra.mrb[0].mxu0 %v575
        %v1192 = vpop.f32.mrb[0].mxu0
        %v1193 = vadd.f32 %v553, %v1192
        %v1194 = vpop.f32.mrb[0].mxu0
        %v1195 = vadd.f32 %v557, %v1194
        %v1196 = vpop.f32.mrb[0].mxu0
        %v1197 = vadd.f32 %v553, %v1196
        %v1198 = vpop.f32.mrb[0].mxu0
        %v1199 = vadd.f32 %v557, %v1198
        %1200 = vmatprep.mubr.bf16.mxu0 %v886
        %1201 = vmatmul.mubr.bf16.gmra.mrb[0].mxu0 %v576
        %v1202 = vpop.f32.mrb[0].mxu0
        %v1203 = vadd.f32 %v553, %v1202
        %v1204 = vpop.f32.mrb[0].mxu0
        %v1205 = vadd.f32 %v557, %v1204
        %v1206 = vpop.f32.mrb[0].mxu0
        %v1207 = vadd.f32 %v553, %v1206
        %v1208 = vpop.f32.mrb[0].mxu0
        %v1209 = vadd.f32 %v557, %v1208
        %1210 = vmatprep.mubr.bf16.mxu0 %v889
        %1211 = vmatmul.mubr.bf16.gmra.mrb[0].mxu0 %v577
        %v1212 = vpop.f32.mrb[0].mxu0
        %v1213 = vadd.f32 %v553, %v1212
        %v1214 = vpop.f32.mrb[0].mxu0
        %v1215 = vadd.f32 %v557, %v1214
        %v1216 = vpop.f32.mrb[0].mxu0
        %v1217 = vadd.f32 %v553, %v1216
        %v1218 = vpop.f32.mrb[0].mxu0
        %v1219 = vadd.f32 %v557, %v1218
        %1220 = vmatprep.mubr.bf16.mxu0 %v892
        %1221 = vmatmul.mubr.bf16.gmra.mrb[0].mxu0 %v586
        %v1222 = vpop.f32.mrb[0].mxu0
        %v1223 = vadd.f32 %v553, %v1222
        %v1224 = vpop.f32.mrb[0].mxu0
        %v1225 = vadd.f32 %v557, %v1224
        %v1226 = vpop.f32.mrb[0].mxu0
        %v1227 = vadd.f32 %v553, %v1226
        %v1228 = vpop.f32.mrb[0].mxu0
        %v1229 = vadd.f32 %v557, %v1228
        %1230 = vmatprep.mubr.bf16.mxu0 %v895
        %1231 = vmatmul.mubr.bf16.gmra.mrb[0].mxu0 %v587
        %v1232 = vpop.f32.mrb[0].mxu0
        %v1233 = vadd.f32 %v553, %v1232
        %v1234 = vpop.f32.mrb[0].mxu0
        %v1235 = vadd.f32 %v557, %v1234
        %v1236 = vpop.f32.mrb[0].mxu0
        %v1237 = vadd.f32 %v553, %v1236
        %v1238 = vpop.f32.mrb[0].mxu0
        %v1239 = vadd.f32 %v557, %v1238
        %1240 = vmatprep.mubr.bf16.mxu0 %v898
        %1241 = vmatmul.mubr.bf16.gmra.mrb[0].mxu0 %v588
        %v1242 = vpop.f32.mrb[0].mxu0
        %v1243 = vadd.f32 %v553, %v1242
        %v1244 = vpop.f32.mrb[0].mxu0
        %v1245 = vadd.f32 %v557, %v1244
        %v1246 = vpop.f32.mrb[0].mxu0
        %v1247 = vadd.f32 %v553, %v1246
        %v1248 = vpop.f32.mrb[0].mxu0
        %v1249 = vadd.f32 %v557, %v1248
        %1250 = vmatprep.mubr.bf16.mxu0 %v901
        %1251 = vmatmul.mubr.bf16.gmra.mrb[0].mxu0 %v589
        %v1252 = vpop.f32.mrb[0].mxu0
        %v1253 = vadd.f32 %v553, %v1252
        %v1254 = vpop.f32.mrb[0].mxu0
        %v1255 = vadd.f32 %v557, %v1254
        %v1256 = vpop.f32.mrb[0].mxu0
        %v1257 = vadd.f32 %v553, %v1256
        %v1258 = vpop.f32.mrb[0].mxu0
        %v1259 = vadd.f32 %v557, %v1258
        %1260 = vmatprep.mubr.bf16.mxu0 %v904
        %1261 = vmatmul.mubr.bf16.gmra.mrb[0].mxu0 %v590
        %v1262 = vpop.f32.mrb[0].mxu0
        %v1263 = vadd.f32 %v553, %v1262
        %v1264 = vpop.f32.mrb[0].mxu0
        %v1265 = vadd.f32 %v557, %v1264
        %v1266 = vpop.f32.mrb[0].mxu0
        %v1267 = vadd.f32 %v553, %v1266
        %v1268 = vpop.f32.mrb[0].mxu0
        %v1269 = vadd.f32 %v557, %v1268
        %1270 = vmatprep.mubr.bf16.mxu0 %v907
        %1271 = vmatmul.mubr.bf16.gmra.mrb[0].mxu0 %v591
        %v1272 = vpop.f32.mrb[0].mxu0
        %v1273 = vadd.f32 %v553, %v1272
        %v1274 = vpop.f32.mrb[0].mxu0
        %v1275 = vadd.f32 %v557, %v1274
        %v1276 = vpop.f32.mrb[0].mxu0
        %v1277 = vadd.f32 %v553, %v1276
        %v1278 = vpop.f32.mrb[0].mxu0
        %v1279 = vadd.f32 %v557, %v1278
        %1280 = vmatprep.mubr.bf16.mxu0 %v910
        %1281 = vmatmul.mubr.bf16.gmra.mrb[0].mxu0 %v592
        %v1282 = vpop.f32.mrb[0].mxu0
        %v1283 = vadd.f32 %v553, %v1282
        %v1284 = vpop.f32.mrb[0].mxu0
        %v1285 = vadd.f32 %v557, %v1284
        %v1286 = vpop.f32.mrb[0].mxu0
        %v1287 = vadd.f32 %v553, %v1286
        %v1288 = vpop.f32.mrb[0].mxu0
        %v1289 = vadd.f32 %v557, %v1288
        %1290 = vmatprep.mubr.bf16.mxu0 %v913
        %1291 = vmatmul.mubr.bf16.gmra.mrb[0].mxu0 %v593
        %v1292 = vpop.f32.mrb[0].mxu0
        %v1293 = vadd.f32 %v553, %v1292
        %v1294 = vpop.f32.mrb[0].mxu0
        %v1295 = vadd.f32 %v557, %v1294
        %v1296 = vpop.f32.mrb[0].mxu0
        %v1297 = vadd.f32 %v553, %v1296
        %v1298 = vpop.f32.mrb[0].mxu0
        %v1299 = vadd.f32 %v557, %v1298
        %1300 = vdwg.mxu0
        %v1301 = vmax.f32 %v950, 0.0
        %v1302 = vmax.f32 %v952, 0.0
        %v1303 = vmax.f32 %v1143, 0.0
        %v1304 = vmax.f32 %v1145, 0.0
        %v1305 = vmax.f32 %v954, 0.0
        %v1306 = vmax.f32 %v956, 0.0
        %v1307 = vmax.f32 %v1147, 0.0
        %v1308 = vmax.f32 %v1149, 0.0
        %v1309 = vmax.f32 %v960, 0.0
        %v1310 = vmax.f32 %v962, 0.0
        %v1311 = vmax.f32 %v1153, 0.0
        %v1312 = vmax.f32 %v1155, 0.0
        %v1313 = vmax.f32 %v964, 0.0
        %v1314 = vmax.f32 %v966, 0.0
        %v1315 = vmax.f32 %v1157, 0.0
        %v1316 = vmax.f32 %v1159, 0.0
        %v1317 = vmax.f32 %v970, 0.0
        %v1318 = vmax.f32 %v972, 0.0
        %v1319 = vmax.f32 %v1163, 0.0
        %v1320 = vmax.f32 %v1165, 0.0
        %v1321 = vmax.f32 %v974, 0.0
        %v1322 = vmax.f32 %v976, 0.0
        %v1323 = vmax.f32 %v1167, 0.0
        %v1324 = vmax.f32 %v1169, 0.0
        %v1325 = vmax.f32 %v980, 0.0
        %v1326 = vmax.f32 %v982, 0.0
        %v1327 = vmax.f32 %v1173, 0.0
        %v1328 = vmax.f32 %v1175, 0.0
        %v1329 = vmax.f32 %v984, 0.0
        %v1330 = vmax.f32 %v986, 0.0
        %v1331 = vmax.f32 %v1177, 0.0
        %v1332 = vmax.f32 %v1179, 0.0
        %v1333 = vmax.f32 %v990, 0.0
        %v1334 = vmax.f32 %v992, 0.0
        %v1335 = vmax.f32 %v1183, 0.0
        %v1336 = vmax.f32 %v1185, 0.0
        %v1337 = vmax.f32 %v994, 0.0
        %v1338 = vmax.f32 %v996, 0.0
        %v1339 = vmax.f32 %v1187, 0.0
        %v1340 = vmax.f32 %v1189, 0.0
        %v1341 = vmax.f32 %v1000, 0.0
        %v1342 = vmax.f32 %v1002, 0.0
        %v1343 = vmax.f32 %v1193, 0.0
        %v1344 = vmax.f32 %v1195, 0.0
        %v1345 = vmax.f32 %v1004, 0.0
        %v1346 = vmax.f32 %v1006, 0.0
        %v1347 = vmax.f32 %v1197, 0.0
        %v1348 = vmax.f32 %v1199, 0.0
        %v1349 = vmax.f32 %v1010, 0.0
        %v1350 = vmax.f32 %v1012, 0.0
        %v1351 = vmax.f32 %v1203, 0.0
        %v1352 = vmax.f32 %v1205, 0.0
        %v1353 = vmax.f32 %v1014, 0.0
        %v1354 = vmax.f32 %v1016, 0.0
        %v1355 = vmax.f32 %v1207, 0.0
        %v1356 = vmax.f32 %v1209, 0.0
        %v1357 = vmax.f32 %v1020, 0.0
        %v1358 = vmax.f32 %v1022, 0.0
        %v1359 = vmax.f32 %v1213, 0.0
        %v1360 = vmax.f32 %v1215, 0.0
        %v1361 = vmax.f32 %v1024, 0.0
        %v1362 = vmax.f32 %v1026, 0.0
        %v1363 = vmax.f32 %v1217, 0.0
        %v1364 = vmax.f32 %v1219, 0.0
        %v1365 = vmax.f32 %v1030, 0.0
        %v1366 = vmax.f32 %v1032, 0.0
        %v1367 = vmax.f32 %v1223, 0.0
        %v1368 = vmax.f32 %v1225, 0.0
        %v1369 = vmax.f32 %v1034, 0.0
        %v1370 = vmax.f32 %v1036, 0.0
        %v1371 = vmax.f32 %v1227, 0.0
        %v1372 = vmax.f32 %v1229, 0.0
        %v1373 = vmax.f32 %v1040, 0.0
        %v1374 = vmax.f32 %v1042, 0.0
        %v1375 = vmax.f32 %v1233, 0.0
        %v1376 = vmax.f32 %v1235, 0.0
        %v1377 = vmax.f32 %v1044, 0.0
        %v1378 = vmax.f32 %v1046, 0.0
        %v1379 = vmax.f32 %v1237, 0.0
        %v1380 = vmax.f32 %v1239, 0.0
        %v1381 = vmax.f32 %v1050, 0.0
        %v1382 = vmax.f32 %v1052, 0.0
        %v1383 = vmax.f32 %v1243, 0.0
        %v1384 = vmax.f32 %v1245, 0.0
        %v1385 = vmax.f32 %v1054, 0.0
        %v1386 = vmax.f32 %v1056, 0.0
        %v1387 = vmax.f32 %v1247, 0.0
        %v1388 = vmax.f32 %v1249, 0.0
        %v1389 = vmax.f32 %v1060, 0.0
        %v1390 = vmax.f32 %v1062, 0.0
        %v1391 = vmax.f32 %v1253, 0.0
        %v1392 = vmax.f32 %v1255, 0.0
        %v1393 = vmax.f32 %v1064, 0.0
        %v1394 = vmax.f32 %v1066, 0.0
        %v1395 = vmax.f32 %v1257, 0.0
        %v1396 = vmax.f32 %v1259, 0.0
        %v1397 = vmax.f32 %v1070, 0.0
        %v1398 = vmax.f32 %v1072, 0.0
        %v1399 = vmax.f32 %v1263, 0.0
        %v1400 = vmax.f32 %v1265, 0.0
        %v1401 = vmax.f32 %v1074, 0.0
        %v1402 = vmax.f32 %v1076, 0.0
        %v1403 = vmax.f32 %v1267, 0.0
        %v1404 = vmax.f32 %v1269, 0.0
        %v1405 = vmax.f32 %v1080, 0.0
        %v1406 = vmax.f32 %v1082, 0.0
        %v1407 = vmax.f32 %v1273, 0.0
        %v1408 = vmax.f32 %v1275, 0.0
        %v1409 = vmax.f32 %v1084, 0.0
        %v1410 = vmax.f32 %v1086, 0.0
        %v1411 = vmax.f32 %v1277, 0.0
        %v1412 = vmax.f32 %v1279, 0.0
        %v1413 = vmax.f32 %v1090, 0.0
        %v1414 = vmax.f32 %v1092, 0.0
        %v1415 = vmax.f32 %v1283, 0.0
        %v1416 = vmax.f32 %v1285, 0.0
        %v1417 = vmax.f32 %v1094, 0.0
        %v1418 = vmax.f32 %v1096, 0.0
        %v1419 = vmax.f32 %v1287, 0.0
        %v1420 = vmax.f32 %v1289, 0.0
        %v1421 = vmax.f32 %v1100, 0.0
        %v1422 = vmax.f32 %v1102, 0.0
        %v1423 = vmax.f32 %v1293, 0.0
        %v1424 = vmax.f32 %v1295, 0.0
        %v1425 = vmax.f32 %v1104, 0.0
        %v1426 = vmax.f32 %v1106, 0.0
        %v1427 = vmax.f32 %v1297, 0.0
        %v1428 = vmax.f32 %v1299, 0.0
        %v1429 = vpack.c.bf16 %v1305, %v1301
        %v1430 = vpack.c.bf16 %v1306, %v1302
        %v1431 = vpack.c.bf16 %v1307, %v1303
        %v1432 = vpack.c.bf16 %v1308, %v1304
        %v1433 = vpack.c.bf16 %v1313, %v1309
        %v1434 = vpack.c.bf16 %v1314, %v1310
        %v1435 = vpack.c.bf16 %v1315, %v1311
        %v1436 = vpack.c.bf16 %v1316, %v1312
        %v1437 = vpack.c.bf16 %v1321, %v1317
        %v1438 = vpack.c.bf16 %v1322, %v1318
        %v1439 = vpack.c.bf16 %v1323, %v1319
        %v1440 = vpack.c.bf16 %v1324, %v1320
        %v1441 = vpack.c.bf16 %v1329, %v1325
        %v1442 = vpack.c.bf16 %v1330, %v1326
        %v1443 = vpack.c.bf16 %v1331, %v1327
        %v1444 = vpack.c.bf16 %v1332, %v1328
        %v1445 = vpack.c.bf16 %v1337, %v1333
        %v1446 = vpack.c.bf16 %v1338, %v1334
        %v1447 = vpack.c.bf16 %v1339, %v1335
        %v1448 = vpack.c.bf16 %v1340, %v1336
        %v1449 = vpack.c.bf16 %v1345, %v1341
        %v1450 = vpack.c.bf16 %v1346, %v1342
        %v1451 = vpack.c.bf16 %v1347, %v1343
        %v1452 = vpack.c.bf16 %v1348, %v1344
        %v1453 = vpack.c.bf16 %v1353, %v1349
        %v1454 = vpack.c.bf16 %v1354, %v1350
        %v1455 = vpack.c.bf16 %v1355, %v1351
        %v1456 = vpack.c.bf16 %v1356, %v1352
        %v1457 = vpack.c.bf16 %v1361, %v1357
        %v1458 = vpack.c.bf16 %v1362, %v1358
        %v1459 = vpack.c.bf16 %v1363, %v1359
        %v1460 = vpack.c.bf16 %v1364, %v1360
        %v1461 = vpack.c.bf16 %v1369, %v1365
        %v1462 = vpack.c.bf16 %v1370, %v1366
        %v1463 = vpack.c.bf16 %v1371, %v1367
        %v1464 = vpack.c.bf16 %v1372, %v1368
        %v1465 = vpack.c.bf16 %v1377, %v1373
        %v1466 = vpack.c.bf16 %v1378, %v1374
        %v1467 = vpack.c.bf16 %v1379, %v1375
        %v1468 = vpack.c.bf16 %v1380, %v1376
        %v1469 = vpack.c.bf16 %v1385, %v1381
        %v1470 = vpack.c.bf16 %v1386, %v1382
        %v1471 = vpack.c.bf16 %v1387, %v1383
        %v1472 = vpack.c.bf16 %v1388, %v1384
        %v1473 = vpack.c.bf16 %v1393, %v1389
        %v1474 = vpack.c.bf16 %v1394, %v1390
        %v1475 = vpack.c.bf16 %v1395, %v1391
        %v1476 = vpack.c.bf16 %v1396, %v1392
        %v1477 = vpack.c.bf16 %v1401, %v1397
        %v1478 = vpack.c.bf16 %v1402, %v1398
        %v1479 = vpack.c.bf16 %v1403, %v1399
        %v1480 = vpack.c.bf16 %v1404, %v1400
        %v1481 = vpack.c.bf16 %v1409, %v1405
        %v1482 = vpack.c.bf16 %v1410, %v1406
        %v1483 = vpack.c.bf16 %v1411, %v1407
        %v1484 = vpack.c.bf16 %v1412, %v1408
        %v1485 = vpack.c.bf16 %v1417, %v1413
        %v1486 = vpack.c.bf16 %v1418, %v1414
        %v1487 = vpack.c.bf16 %v1419, %v1415
        %v1488 = vpack.c.bf16 %v1420, %v1416
        %v1489 = vpack.c.bf16 %v1425, %v1421
        %v1490 = vpack.c.bf16 %v1426, %v1422
        %v1491 = vpack.c.bf16 %v1427, %v1423
        %v1492 = vpack.c.bf16 %v1428, %v1424
        %v1494 = vunpack.c.l.b16 %v468
        %v1495 = vunpack.c.h.b16 %v468
        %v1496 = vpack.c.b16 %v1494, %v1494
        %v1497 = vpack.c.b16 %v1495, %v1495
        %1500 = vmatprep.subr.bf16.mxu0 %v1430
        %1501 = vmatpush1.bf16.msra.mxu0 %v1429
        %1502 = vmatprep.subr.bf16.mxu0 %v1434
        %1503 = vmatpush1.bf16.msra.mxu0 %v1433
        %1504 = vmatprep.subr.bf16.mxu0 %v1438
        %1505 = vmatpush1.bf16.msra.mxu0 %v1437
        %1506 = vmatprep.subr.bf16.mxu0 %v1442
        %1507 = vmatpush1.bf16.msra.mxu0 %v1441
        %1508 = vmatprep.subr.bf16.mxu0 %v1446
        %1509 = vmatpush1.bf16.msra.mxu0 %v1445
        %1510 = vmatprep.subr.bf16.mxu0 %v1450
        %1511 = vmatpush1.bf16.msra.mxu0 %v1449
        %1512 = vmatprep.subr.bf16.mxu0 %v1454
        %1513 = vmatpush1.bf16.msra.mxu0 %v1453
        %1514 = vmatprep.subr.bf16.mxu0 %v1458
        %1515 = vmatpush1.bf16.msra.mxu0 %v1457
        %1516 = vmatprep.subr.bf16.mxu0 %v1462
        %1517 = vmatpush1.bf16.msra.mxu0 %v1461
        %1518 = vmatprep.subr.bf16.mxu0 %v1466
        %1519 = vmatpush1.bf16.msra.mxu0 %v1465
        %1520 = vmatprep.subr.bf16.mxu0 %v1470
        %1521 = vmatpush1.bf16.msra.mxu0 %v1469
        %1522 = vmatprep.subr.bf16.mxu0 %v1474
        %1523 = vmatpush1.bf16.msra.mxu0 %v1473
        %1524 = vmatprep.subr.bf16.mxu0 %v1478
        %1525 = vmatpush1.bf16.msra.mxu0 %v1477
        %1526 = vmatprep.subr.bf16.mxu0 %v1482
        %1527 = vmatpush1.bf16.msra.mxu0 %v1481
        %1528 = vmatprep.subr.bf16.mxu0 %v1486
        %1529 = vmatpush1.bf16.msra.mxu0 %v1485
        %1530 = vmatprep.subr.bf16.mxu0 %v1490
        %1531 = vmatpush1.bf16.msra.mxu0 %v1489
        %1532 = vmatprep.mubr.bf16.mxu0 %v1497
        %1533 = vmatmul.mubr.bf16.gmra.mrb[0].mxu0 %v1496
        %v1534 = vpop.f32.mrb[0].mxu0
        %v1535 = vadd.f32 0.0, %v1534
        %v1536 = vpop.f32.mrb[0].mxu0
        %v1537 = vadd.f32 0.0, %v1536
        %v1538 = vpop.f32.mrb[0].mxu0
        %v1539 = vpop.f32.mrb[0].mxu0
        %1540 = vdwg.mxu0
        %1541 = vmatprep.subr.bf16.mxu0 %v1432
        %1542 = vmatpush1.bf16.msra.mxu0 %v1431
        %1543 = vmatprep.subr.bf16.mxu0 %v1436
        %1544 = vmatpush1.bf16.msra.mxu0 %v1435
        %1545 = vmatprep.subr.bf16.mxu0 %v1440
        %1546 = vmatpush1.bf16.msra.mxu0 %v1439
        %1547 = vmatprep.subr.bf16.mxu0 %v1444
        %1548 = vmatpush1.bf16.msra.mxu0 %v1443
        %1549 = vmatprep.subr.bf16.mxu0 %v1448
        %1550 = vmatpush1.bf16.msra.mxu0 %v1447
        %1551 = vmatprep.subr.bf16.mxu0 %v1452
        %1552 = vmatpush1.bf16.msra.mxu0 %v1451
        %1553 = vmatprep.subr.bf16.mxu0 %v1456
        %1554 = vmatpush1.bf16.msra.mxu0 %v1455
        %1555 = vmatprep.subr.bf16.mxu0 %v1460
        %1556 = vmatpush1.bf16.msra.mxu0 %v1459
        %1557 = vmatprep.subr.bf16.mxu0 %v1464
        %1558 = vmatpush1.bf16.msra.mxu0 %v1463
        %1559 = vmatprep.subr.bf16.mxu0 %v1468
        %1560 = vmatpush1.bf16.msra.mxu0 %v1467
        %1561 = vmatprep.subr.bf16.mxu0 %v1472
        %1562 = vmatpush1.bf16.msra.mxu0 %v1471
        %1563 = vmatprep.subr.bf16.mxu0 %v1476
        %1564 = vmatpush1.bf16.msra.mxu0 %v1475
        %1565 = vmatprep.subr.bf16.mxu0 %v1480
        %1566 = vmatpush1.bf16.msra.mxu0 %v1479
        %1567 = vmatprep.subr.bf16.mxu0 %v1484
        %1568 = vmatpush1.bf16.msra.mxu0 %v1483
        %1569 = vmatprep.subr.bf16.mxu0 %v1488
        %1570 = vmatpush1.bf16.msra.mxu0 %v1487
        %1571 = vmatprep.subr.bf16.mxu0 %v1492
        %1572 = vmatpush1.bf16.msra.mxu0 %v1491
        %1573 = vmatprep.mubr.bf16.mxu0 %v1497
        %1574 = vmatmul.mubr.bf16.gmra.mrb[0].mxu0 %v1496
        %v1575 = vpop.f32.mrb[0].mxu0
        %v1576 = vadd.f32 0.0, %v1575
        %v1577 = vpop.f32.mrb[0].mxu0
        %v1578 = vadd.f32 0.0, %v1577
        %v1579 = vpop.f32.mrb[0].mxu0
        %v1580 = vpop.f32.mrb[0].mxu0
        %1581 = vdwg.mxu0
        %1582 = vst [vmem:[#allocation2] sm:$0xff] %v1535
        %1583 = vst [vmem:[#allocation2 + $0x8] sm:$0xff] %v1537
        %1584 = vst [vmem:[#allocation2 + $0x10] sm:$0xff] %v1576
        %vm1585 = vcmask 392192
        %1586 = vst.msk [vmem:[#allocation2 + $0x18] sm:$0xff] %vm1585, %v1578
        %s1587 = scalar_lea.vmem %s354, 384 [#allocation3]
        %v1588 = vld [vmem:[%s1587] sm:$0xff]
        %v1589 = vld [vmem:[%s1587 + $0x8] sm:$0xff]
        %v1590 = vld [vmem:[%s1587 + $0x10] sm:$0xff]
        %v1591 = vld [vmem:[%s1587 + $0x18] sm:$0xff]
        %v1592 = vld [vmem:[%s1587 + $0x20] sm:$0xff]
        %v1593 = vld [vmem:[%s1587 + $0x28] sm:$0xff]
        %v1594 = vld [vmem:[%s1587 + $0x30] sm:$0xff]
        %v1595 = vld [vmem:[%s1587 + $0x38] sm:$0xff]
        %v1596 = vld [vmem:[%s1587 + $0x40] sm:$0xff]
        %v1597 = vld [vmem:[%s1587 + $0x48] sm:$0xff]
        %v1598 = vld [vmem:[%s1587 + $0x50] sm:$0xff]
        %v1599 = vld [vmem:[%s1587 + $0x58] sm:$0xff]
        %v1600 = vld [vmem:[%s1587 + $0x60] sm:$0xff]
        %v1601 = vld [vmem:[%s1587 + $0x68] sm:$0xff]
        %v1602 = vld [vmem:[%s1587 + $0x70] sm:$0xff]
        %v1603 = vld [vmem:[%s1587 + $0x78] sm:$0xff]
        %v1604 = vld [vmem:[%s1587 + $0x80] sm:$0xff]
        %v1605 = vld [vmem:[%s1587 + $0x88] sm:$0xff]
        %v1606 = vld [vmem:[%s1587 + $0x90] sm:$0xff]
        %v1607 = vld [vmem:[%s1587 + $0x98] sm:$0xff]
        %v1608 = vld [vmem:[%s1587 + $0xa0] sm:$0xff]
        %v1609 = vld [vmem:[%s1587 + $0xa8] sm:$0xff]
        %v1610 = vld [vmem:[%s1587 + $0xb0] sm:$0xff]
        %v1611 = vld [vmem:[%s1587 + $0xb8] sm:$0xff]
        %v1612 = vld [vmem:[%s1587 + $0xc0] sm:$0xff]
        %v1613 = vld [vmem:[%s1587 + $0xc8] sm:$0xff]
        %v1614 = vld [vmem:[%s1587 + $0xd0] sm:$0xff]
        %v1615 = vld [vmem:[%s1587 + $0xd8] sm:$0xff]
        %v1616 = vld [vmem:[%s1587 + $0xe0] sm:$0xff]
        %v1617 = vld [vmem:[%s1587 + $0xe8] sm:$0xff]
        %v1618 = vld [vmem:[%s1587 + $0xf0] sm:$0xff]
        %v1619 = vld [vmem:[%s1587 + $0xf8] sm:$0xff]
        %v1620 = vld [vmem:[%s1587 + $0x100] sm:$0xff]
        %v1621 = vld [vmem:[%s1587 + $0x108] sm:$0xff]
        %v1622 = vld [vmem:[%s1587 + $0x110] sm:$0xff]
        %v1623 = vld [vmem:[%s1587 + $0x118] sm:$0xff]
        %v1624 = vld [vmem:[%s1587 + $0x120] sm:$0xff]
        %v1625 = vld [vmem:[%s1587 + $0x128] sm:$0xff]
        %v1626 = vld [vmem:[%s1587 + $0x130] sm:$0xff]
        %v1627 = vld [vmem:[%s1587 + $0x138] sm:$0xff]
        %v1628 = vld [vmem:[%s1587 + $0x140] sm:$0xff]
        %v1629 = vld [vmem:[%s1587 + $0x148] sm:$0xff]
        %v1630 = vld [vmem:[%s1587 + $0x150] sm:$0xff]
        %v1631 = vld [vmem:[%s1587 + $0x158] sm:$0xff]
        %v1632 = vld [vmem:[%s1587 + $0x160] sm:$0xff]
        %v1633 = vld [vmem:[%s1587 + $0x168] sm:$0xff]
        %v1634 = vld [vmem:[%s1587 + $0x170] sm:$0xff]
        %v1635 = vld [vmem:[%s1587 + $0x178] sm:$0xff]
        %v1636 = vpack.c.bf16 %v1590, %v1588
        %v1637 = vpack.c.bf16 %v1591, %v1589
        %v1638 = vpack.c.bf16 %v1594, %v1592
        %v1639 = vpack.c.bf16 %v1595, %v1593
        %v1640 = vpack.c.bf16 %v1598, %v1596
        %v1641 = vpack.c.bf16 %v1599, %v1597
        %v1642 = vpack.c.bf16 %v1602, %v1600
        %v1643 = vpack.c.bf16 %v1603, %v1601
        %v1644 = vpack.c.bf16 %v1606, %v1604
        %v1645 = vpack.c.bf16 %v1607, %v1605
        %v1646 = vpack.c.bf16 %v1610, %v1608
        %v1647 = vpack.c.bf16 %v1611, %v1609
        %v1648 = vpack.c.bf16 %v1614, %v1612
        %v1649 = vpack.c.bf16 %v1615, %v1613
        %v1650 = vpack.c.bf16 %v1618, %v1616
        %v1651 = vpack.c.bf16 %v1619, %v1617
        %v1652 = vpack.c.bf16 %v1622, %v1620
        %v1653 = vpack.c.bf16 %v1623, %v1621
        %v1654 = vpack.c.bf16 %v1626, %v1624
        %v1655 = vpack.c.bf16 %v1627, %v1625
        %v1656 = vpack.c.bf16 %v1630, %v1628
        %v1657 = vpack.c.bf16 %v1631, %v1629
        %v1658 = vpack.c.bf16 %v1634, %v1632
        %v1659 = vpack.c.bf16 %v1635, %v1633
        %1660 = vxpose.xlu0.c.b16.start [1/8] %v1636, 128
        %1661 = vxpose.xlu0.c.b16.cont [2/8] %v1638, 128
        %1662 = vxpose.xlu0.c.b16.cont [3/8] %v1640, 128
        %1663 = vxpose.xlu0.c.b16.cont [4/8] %v1642, 128
        %1664 = vxpose.xlu0.c.b16.cont [5/8] %v1644, 128
        %1665 = vxpose.xlu0.c.b16.cont [6/8] %v1646, 128
        %1666 = vxpose.xlu0.c.b16.cont [7/8] %v1648, 128
        %1667 = vxpose.xlu0.c.b16.end [8/8] %v1650, 128
        %v1668 = vpop.trf.xlu0
        %v1669 = vpop.trf.xlu0
        %v1670 = vpop.trf.xlu0
        %v1671 = vpop.trf.xlu0
        %v1672 = vpop.trf.xlu0
        %v1673 = vpop.trf.xlu0
        %v1674 = vpop.trf.xlu0
        %v1675 = vpop.trf.xlu0
        %1676 = vxpose.xlu0.c.b16.start [1/8] %v1637, 128
        %1677 = vxpose.xlu0.c.b16.cont [2/8] %v1639, 128
        %1678 = vxpose.xlu0.c.b16.cont [3/8] %v1641, 128
        %1679 = vxpose.xlu0.c.b16.cont [4/8] %v1643, 128
        %1680 = vxpose.xlu0.c.b16.cont [5/8] %v1645, 128
        %1681 = vxpose.xlu0.c.b16.cont [6/8] %v1647, 128
        %1682 = vxpose.xlu0.c.b16.cont [7/8] %v1649, 128
        %1683 = vxpose.xlu0.c.b16.end [8/8] %v1651, 128
        %v1684 = vpop.trf.xlu0
        %v1685 = vpop.trf.xlu0
        %v1686 = vpop.trf.xlu0
        %v1687 = vpop.trf.xlu0
        %v1688 = vpop.trf.xlu0
        %v1689 = vpop.trf.xlu0
        %v1690 = vpop.trf.xlu0
        %v1691 = vpop.trf.xlu0
        %1692 = vxpose.xlu0.c.b16.start [1/8] %v1652, 128
        %1693 = vxpose.xlu0.c.b16.cont [2/8] %v1654, 128
        %1694 = vxpose.xlu0.c.b16.cont [3/8] %v1656, 128
        %1695 = vxpose.xlu0.c.b16.cont [4/8] %v1658, 128
        %1696 = vxpose.xlu0.c.b16.cont [5/8] 0, 128
        %1697 = vxpose.xlu0.c.b16.cont [6/8] 0, 128
        %1698 = vxpose.xlu0.c.b16.cont [7/8] 0, 128
        %1699 = vxpose.xlu0.c.b16.end [8/8] 0, 128
        %v1700 = vpop.trf.xlu0
        %v1701 = vpop.trf.xlu0
        %v1702 = vpop.trf.xlu0
        %v1703 = vpop.trf.xlu0
        %v1704 = vpop.trf.xlu0
        %v1705 = vpop.trf.xlu0
        %v1706 = vpop.trf.xlu0
        %v1707 = vpop.trf.xlu0
        %1708 = vxpose.xlu0.c.b16.start [1/8] %v1653, 128
        %1709 = vxpose.xlu0.c.b16.cont [2/8] %v1655, 128
        %1710 = vxpose.xlu0.c.b16.cont [3/8] %v1657, 128
        %1711 = vxpose.xlu0.c.b16.cont [4/8] %v1659, 128
        %1712 = vxpose.xlu0.c.b16.cont [5/8] 0, 128
        %1713 = vxpose.xlu0.c.b16.cont [6/8] 0, 128
        %1714 = vxpose.xlu0.c.b16.cont [7/8] 0, 128
        %1715 = vxpose.xlu0.c.b16.end [8/8] 0, 128
        %v1716 = vpop.trf.xlu0
        %v1717 = vpop.trf.xlu0
        %v1718 = vpop.trf.xlu0
        %v1719 = vpop.trf.xlu0
        %v1720 = vpop.trf.xlu0
        %v1721 = vpop.trf.xlu0
        %v1722 = vpop.trf.xlu0
        %v1723 = vpop.trf.xlu0
        %v1725 = vsel %vm866, %v1700, 0
        %v1728 = vsel %vm866, %v1701, 0
        %v1731 = vsel %vm866, %v1702, 0
        %v1734 = vsel %vm866, %v1703, 0
        %v1737 = vsel %vm866, %v1704, 0
        %v1740 = vsel %vm866, %v1705, 0
        %v1743 = vsel %vm866, %v1706, 0
        %v1746 = vsel %vm866, %v1707, 0
        %v1749 = vsel %vm866, %v1716, 0
        %v1752 = vsel %vm866, %v1717, 0
        %v1755 = vsel %vm866, %v1718, 0
        %v1758 = vsel %vm866, %v1719, 0
        %v1761 = vsel %vm866, %v1720, 0
        %v1764 = vsel %vm866, %v1721, 0
        %v1767 = vsel %vm866, %v1722, 0
        %v1770 = vsel %vm866, %v1723, 0
        %1772 = vmatprep.subr.bf16.mxu0 %v771
        %1773 = vmatpush1.bf16.msra.mxu0 %v770
        %1774 = vmatprep.subr.bf16.mxu0 %v775
        %1775 = vmatpush1.bf16.msra.mxu0 %v774
        %1776 = vmatprep.subr.bf16.mxu0 %v779
        %1777 = vmatpush1.bf16.msra.mxu0 %v778
        %1778 = vmatprep.subr.bf16.mxu0 %v783
        %1779 = vmatpush1.bf16.msra.mxu0 %v782
        %1780 = vmatprep.subr.bf16.mxu0 %v787
        %1781 = vmatpush1.bf16.msra.mxu0 %v786
        %1782 = vmatprep.subr.bf16.mxu0 %v791
        %1783 = vmatpush1.bf16.msra.mxu0 %v790
        %1784 = vmatprep.subr.bf16.mxu0 %v795
        %1785 = vmatpush1.bf16.msra.mxu0 %v794
        %1786 = vmatprep.subr.bf16.mxu0 %v799
        %1787 = vmatpush1.bf16.msra.mxu0 %v798
        %1788 = vmatprep.subr.bf16.mxu0 %v803
        %1789 = vmatpush1.bf16.msra.mxu0 %v802
        %1790 = vmatprep.subr.bf16.mxu0 %v807
        %1791 = vmatpush1.bf16.msra.mxu0 %v806
        %1792 = vmatprep.subr.bf16.mxu0 %v811
        %1793 = vmatpush1.bf16.msra.mxu0 %v810
        %1794 = vmatprep.subr.bf16.mxu0 %v815
        %1795 = vmatpush1.bf16.msra.mxu0 %v814
        %1796 = vmatprep.subr.bf16.mxu0 0
        %1797 = vmatpush1.bf16.msra.mxu0 0
        %1798 = vmatprep.subr.bf16.mxu0 0
        %1799 = vmatpush1.bf16.msra.mxu0 0
        %1800 = vmatprep.subr.bf16.mxu0 0
        %1801 = vmatpush1.bf16.msra.mxu0 0
        %1802 = vmatprep.subr.bf16.mxu0 0
        %1803 = vmatpush1.bf16.msra.mxu0 0
        %1804 = vmatprep.mubr.bf16.mxu0 %v1725
        %1805 = vmatmul.mubr.bf16.gmra.mrb[0].mxu0 %v1668
        %v1806 = vpop.f32.mrb[0].mxu0
        %v1807 = vadd.f32 %v545, %v1806
        %v1808 = vpop.f32.mrb[0].mxu0
        %v1809 = vadd.f32 %v549, %v1808
        %v1810 = vpop.f32.mrb[0].mxu0
        %v1811 = vadd.f32 %v545, %v1810
        %v1812 = vpop.f32.mrb[0].mxu0
        %v1813 = vadd.f32 %v549, %v1812
        %1814 = vmatprep.mubr.bf16.mxu0 %v1728
        %1815 = vmatmul.mubr.bf16.gmra.mrb[0].mxu0 %v1669
        %v1816 = vpop.f32.mrb[0].mxu0
        %v1817 = vadd.f32 %v545, %v1816
        %v1818 = vpop.f32.mrb[0].mxu0
        %v1819 = vadd.f32 %v549, %v1818
        %v1820 = vpop.f32.mrb[0].mxu0
        %v1821 = vadd.f32 %v545, %v1820
        %v1822 = vpop.f32.mrb[0].mxu0
        %v1823 = vadd.f32 %v549, %v1822
        %1824 = vmatprep.mubr.bf16.mxu0 %v1731
        %1825 = vmatmul.mubr.bf16.gmra.mrb[0].mxu0 %v1670
        %v1826 = vpop.f32.mrb[0].mxu0
        %v1827 = vadd.f32 %v545, %v1826
        %v1828 = vpop.f32.mrb[0].mxu0
        %v1829 = vadd.f32 %v549, %v1828
        %v1830 = vpop.f32.mrb[0].mxu0
        %v1831 = vadd.f32 %v545, %v1830
        %v1832 = vpop.f32.mrb[0].mxu0
        %v1833 = vadd.f32 %v549, %v1832
        %1834 = vmatprep.mubr.bf16.mxu0 %v1734
        %1835 = vmatmul.mubr.bf16.gmra.mrb[0].mxu0 %v1671
        %v1836 = vpop.f32.mrb[0].mxu0
        %v1837 = vadd.f32 %v545, %v1836
        %v1838 = vpop.f32.mrb[0].mxu0
        %v1839 = vadd.f32 %v549, %v1838
        %v1840 = vpop.f32.mrb[0].mxu0
        %v1841 = vadd.f32 %v545, %v1840
        %v1842 = vpop.f32.mrb[0].mxu0
        %v1843 = vadd.f32 %v549, %v1842
        %1844 = vmatprep.mubr.bf16.mxu0 %v1737
        %1845 = vmatmul.mubr.bf16.gmra.mrb[0].mxu0 %v1672
        %v1846 = vpop.f32.mrb[0].mxu0
        %v1847 = vadd.f32 %v545, %v1846
        %v1848 = vpop.f32.mrb[0].mxu0
        %v1849 = vadd.f32 %v549, %v1848
        %v1850 = vpop.f32.mrb[0].mxu0
        %v1851 = vadd.f32 %v545, %v1850
        %v1852 = vpop.f32.mrb[0].mxu0
        %v1853 = vadd.f32 %v549, %v1852
        %1854 = vmatprep.mubr.bf16.mxu0 %v1740
        %1855 = vmatmul.mubr.bf16.gmra.mrb[0].mxu0 %v1673
        %v1856 = vpop.f32.mrb[0].mxu0
        %v1857 = vadd.f32 %v545, %v1856
        %v1858 = vpop.f32.mrb[0].mxu0
        %v1859 = vadd.f32 %v549, %v1858
        %v1860 = vpop.f32.mrb[0].mxu0
        %v1861 = vadd.f32 %v545, %v1860
        %v1862 = vpop.f32.mrb[0].mxu0
        %v1863 = vadd.f32 %v549, %v1862
        %1864 = vmatprep.mubr.bf16.mxu0 %v1743
        %1865 = vmatmul.mubr.bf16.gmra.mrb[0].mxu0 %v1674
        %v1866 = vpop.f32.mrb[0].mxu0
        %v1867 = vadd.f32 %v545, %v1866
        %v1868 = vpop.f32.mrb[0].mxu0
        %v1869 = vadd.f32 %v549, %v1868
        %v1870 = vpop.f32.mrb[0].mxu0
        %v1871 = vadd.f32 %v545, %v1870
        %v1872 = vpop.f32.mrb[0].mxu0
        %v1873 = vadd.f32 %v549, %v1872
        %1874 = vmatprep.mubr.bf16.mxu0 %v1746
        %1875 = vmatmul.mubr.bf16.gmra.mrb[0].mxu0 %v1675
        %v1876 = vpop.f32.mrb[0].mxu0
        %v1877 = vadd.f32 %v545, %v1876
        %v1878 = vpop.f32.mrb[0].mxu0
        %v1879 = vadd.f32 %v549, %v1878
        %v1880 = vpop.f32.mrb[0].mxu0
        %v1881 = vadd.f32 %v545, %v1880
        %v1882 = vpop.f32.mrb[0].mxu0
        %v1883 = vadd.f32 %v549, %v1882
        %1884 = vmatprep.mubr.bf16.mxu0 %v1749
        %1885 = vmatmul.mubr.bf16.gmra.mrb[0].mxu0 %v1684
        %v1886 = vpop.f32.mrb[0].mxu0
        %v1887 = vadd.f32 %v545, %v1886
        %v1888 = vpop.f32.mrb[0].mxu0
        %v1889 = vadd.f32 %v549, %v1888
        %v1890 = vpop.f32.mrb[0].mxu0
        %v1891 = vadd.f32 %v545, %v1890
        %v1892 = vpop.f32.mrb[0].mxu0
        %v1893 = vadd.f32 %v549, %v1892
        %1894 = vmatprep.mubr.bf16.mxu0 %v1752
        %1895 = vmatmul.mubr.bf16.gmra.mrb[0].mxu0 %v1685
        %v1896 = vpop.f32.mrb[0].mxu0
        %v1897 = vadd.f32 %v545, %v1896
        %v1898 = vpop.f32.mrb[0].mxu0
        %v1899 = vadd.f32 %v549, %v1898
        %v1900 = vpop.f32.mrb[0].mxu0
        %v1901 = vadd.f32 %v545, %v1900
        %v1902 = vpop.f32.mrb[0].mxu0
        %v1903 = vadd.f32 %v549, %v1902
        %1904 = vmatprep.mubr.bf16.mxu0 %v1755
        %1905 = vmatmul.mubr.bf16.gmra.mrb[0].mxu0 %v1686
        %v1906 = vpop.f32.mrb[0].mxu0
        %v1907 = vadd.f32 %v545, %v1906
        %v1908 = vpop.f32.mrb[0].mxu0
        %v1909 = vadd.f32 %v549, %v1908
        %v1910 = vpop.f32.mrb[0].mxu0
        %v1911 = vadd.f32 %v545, %v1910
        %v1912 = vpop.f32.mrb[0].mxu0
        %v1913 = vadd.f32 %v549, %v1912
        %1914 = vmatprep.mubr.bf16.mxu0 %v1758
        %1915 = vmatmul.mubr.bf16.gmra.mrb[0].mxu0 %v1687
        %v1916 = vpop.f32.mrb[0].mxu0
        %v1917 = vadd.f32 %v545, %v1916
        %v1918 = vpop.f32.mrb[0].mxu0
        %v1919 = vadd.f32 %v549, %v1918
        %v1920 = vpop.f32.mrb[0].mxu0
        %v1921 = vadd.f32 %v545, %v1920
        %v1922 = vpop.f32.mrb[0].mxu0
        %v1923 = vadd.f32 %v549, %v1922
        %1924 = vmatprep.mubr.bf16.mxu0 %v1761
        %1925 = vmatmul.mubr.bf16.gmra.mrb[0].mxu0 %v1688
        %v1926 = vpop.f32.mrb[0].mxu0
        %v1927 = vadd.f32 %v545, %v1926
        %v1928 = vpop.f32.mrb[0].mxu0
        %v1929 = vadd.f32 %v549, %v1928
        %v1930 = vpop.f32.mrb[0].mxu0
        %v1931 = vadd.f32 %v545, %v1930
        %v1932 = vpop.f32.mrb[0].mxu0
        %v1933 = vadd.f32 %v549, %v1932
        %1934 = vmatprep.mubr.bf16.mxu0 %v1764
        %1935 = vmatmul.mubr.bf16.gmra.mrb[0].mxu0 %v1689
        %v1936 = vpop.f32.mrb[0].mxu0
        %v1937 = vadd.f32 %v545, %v1936
        %v1938 = vpop.f32.mrb[0].mxu0
        %v1939 = vadd.f32 %v549, %v1938
        %v1940 = vpop.f32.mrb[0].mxu0
        %v1941 = vadd.f32 %v545, %v1940
        %v1942 = vpop.f32.mrb[0].mxu0
        %v1943 = vadd.f32 %v549, %v1942
        %1944 = vmatprep.mubr.bf16.mxu0 %v1767
        %1945 = vmatmul.mubr.bf16.gmra.mrb[0].mxu0 %v1690
        %v1946 = vpop.f32.mrb[0].mxu0
        %v1947 = vadd.f32 %v545, %v1946
        %v1948 = vpop.f32.mrb[0].mxu0
        %v1949 = vadd.f32 %v549, %v1948
        %v1950 = vpop.f32.mrb[0].mxu0
        %v1951 = vadd.f32 %v545, %v1950
        %v1952 = vpop.f32.mrb[0].mxu0
        %v1953 = vadd.f32 %v549, %v1952
        %1954 = vmatprep.mubr.bf16.mxu0 %v1770
        %1955 = vmatmul.mubr.bf16.gmra.mrb[0].mxu0 %v1691
        %v1956 = vpop.f32.mrb[0].mxu0
        %v1957 = vadd.f32 %v545, %v1956
        %v1958 = vpop.f32.mrb[0].mxu0
        %v1959 = vadd.f32 %v549, %v1958
        %v1960 = vpop.f32.mrb[0].mxu0
        %v1961 = vadd.f32 %v545, %v1960
        %v1962 = vpop.f32.mrb[0].mxu0
        %v1963 = vadd.f32 %v549, %v1962
        %1964 = vdwg.mxu0
        %1965 = vmatprep.subr.bf16.mxu0 %v773
        %1966 = vmatpush1.bf16.msra.mxu0 %v772
        %1967 = vmatprep.subr.bf16.mxu0 %v777
        %1968 = vmatpush1.bf16.msra.mxu0 %v776
        %1969 = vmatprep.subr.bf16.mxu0 %v781
        %1970 = vmatpush1.bf16.msra.mxu0 %v780
        %1971 = vmatprep.subr.bf16.mxu0 %v785
        %1972 = vmatpush1.bf16.msra.mxu0 %v784
        %1973 = vmatprep.subr.bf16.mxu0 %v789
        %1974 = vmatpush1.bf16.msra.mxu0 %v788
        %1975 = vmatprep.subr.bf16.mxu0 %v793
        %1976 = vmatpush1.bf16.msra.mxu0 %v792
        %1977 = vmatprep.subr.bf16.mxu0 %v797
        %1978 = vmatpush1.bf16.msra.mxu0 %v796
        %1979 = vmatprep.subr.bf16.mxu0 %v801
        %1980 = vmatpush1.bf16.msra.mxu0 %v800
        %1981 = vmatprep.subr.bf16.mxu0 %v805
        %1982 = vmatpush1.bf16.msra.mxu0 %v804
        %1983 = vmatprep.subr.bf16.mxu0 %v809
        %1984 = vmatpush1.bf16.msra.mxu0 %v808
        %1985 = vmatprep.subr.bf16.mxu0 %v813
        %1986 = vmatpush1.bf16.msra.mxu0 %v812
        %1987 = vmatprep.subr.bf16.mxu0 %v817
        %1988 = vmatpush1.bf16.msra.mxu0 %v816
        %1989 = vmatprep.subr.bf16.mxu0 0
        %1990 = vmatpush1.bf16.msra.mxu0 0
        %1991 = vmatprep.subr.bf16.mxu0 0
        %1992 = vmatpush1.bf16.msra.mxu0 0
        %1993 = vmatprep.subr.bf16.mxu0 0
        %1994 = vmatpush1.bf16.msra.mxu0 0
        %1995 = vmatprep.subr.bf16.mxu0 0
        %1996 = vmatpush1.bf16.msra.mxu0 0
        %1997 = vmatprep.mubr.bf16.mxu0 %v1725
        %1998 = vmatmul.mubr.bf16.gmra.mrb[0].mxu0 %v1668
        %v1999 = vpop.f32.mrb[0].mxu0
        %v2000 = vadd.f32 %v553, %v1999
        %v2001 = vpop.f32.mrb[0].mxu0
        %v2002 = vadd.f32 %v557, %v2001
        %v2003 = vpop.f32.mrb[0].mxu0
        %v2004 = vadd.f32 %v553, %v2003
        %v2005 = vpop.f32.mrb[0].mxu0
        %v2006 = vadd.f32 %v557, %v2005
        %2007 = vmatprep.mubr.bf16.mxu0 %v1728
        %2008 = vmatmul.mubr.bf16.gmra.mrb[0].mxu0 %v1669
        %v2009 = vpop.f32.mrb[0].mxu0
        %v2010 = vadd.f32 %v553, %v2009
        %v2011 = vpop.f32.mrb[0].mxu0
        %v2012 = vadd.f32 %v557, %v2011
        %v2013 = vpop.f32.mrb[0].mxu0
        %v2014 = vadd.f32 %v553, %v2013
        %v2015 = vpop.f32.mrb[0].mxu0
        %v2016 = vadd.f32 %v557, %v2015
        %2017 = vmatprep.mubr.bf16.mxu0 %v1731
        %2018 = vmatmul.mubr.bf16.gmra.mrb[0].mxu0 %v1670
        %v2019 = vpop.f32.mrb[0].mxu0
        %v2020 = vadd.f32 %v553, %v2019
        %v2021 = vpop.f32.mrb[0].mxu0
        %v2022 = vadd.f32 %v557, %v2021
        %v2023 = vpop.f32.mrb[0].mxu0
        %v2024 = vadd.f32 %v553, %v2023
        %v2025 = vpop.f32.mrb[0].mxu0
        %v2026 = vadd.f32 %v557, %v2025
        %2027 = vmatprep.mubr.bf16.mxu0 %v1734
        %2028 = vmatmul.mubr.bf16.gmra.mrb[0].mxu0 %v1671
        %v2029 = vpop.f32.mrb[0].mxu0
        %v2030 = vadd.f32 %v553, %v2029
        %v2031 = vpop.f32.mrb[0].mxu0
        %v2032 = vadd.f32 %v557, %v2031
        %v2033 = vpop.f32.mrb[0].mxu0
        %v2034 = vadd.f32 %v553, %v2033
        %v2035 = vpop.f32.mrb[0].mxu0
        %v2036 = vadd.f32 %v557, %v2035
        %2037 = vmatprep.mubr.bf16.mxu0 %v1737
        %2038 = vmatmul.mubr.bf16.gmra.mrb[0].mxu0 %v1672
        %v2039 = vpop.f32.mrb[0].mxu0
        %v2040 = vadd.f32 %v553, %v2039
        %v2041 = vpop.f32.mrb[0].mxu0
        %v2042 = vadd.f32 %v557, %v2041
        %v2043 = vpop.f32.mrb[0].mxu0
        %v2044 = vadd.f32 %v553, %v2043
        %v2045 = vpop.f32.mrb[0].mxu0
        %v2046 = vadd.f32 %v557, %v2045
        %2047 = vmatprep.mubr.bf16.mxu0 %v1740
        %2048 = vmatmul.mubr.bf16.gmra.mrb[0].mxu0 %v1673
        %v2049 = vpop.f32.mrb[0].mxu0
        %v2050 = vadd.f32 %v553, %v2049
        %v2051 = vpop.f32.mrb[0].mxu0
        %v2052 = vadd.f32 %v557, %v2051
        %v2053 = vpop.f32.mrb[0].mxu0
        %v2054 = vadd.f32 %v553, %v2053
        %v2055 = vpop.f32.mrb[0].mxu0
        %v2056 = vadd.f32 %v557, %v2055
        %2057 = vmatprep.mubr.bf16.mxu0 %v1743
        %2058 = vmatmul.mubr.bf16.gmra.mrb[0].mxu0 %v1674
        %v2059 = vpop.f32.mrb[0].mxu0
        %v2060 = vadd.f32 %v553, %v2059
        %v2061 = vpop.f32.mrb[0].mxu0
        %v2062 = vadd.f32 %v557, %v2061
        %v2063 = vpop.f32.mrb[0].mxu0
        %v2064 = vadd.f32 %v553, %v2063
        %v2065 = vpop.f32.mrb[0].mxu0
        %v2066 = vadd.f32 %v557, %v2065
        %2067 = vmatprep.mubr.bf16.mxu0 %v1746
        %2068 = vmatmul.mubr.bf16.gmra.mrb[0].mxu0 %v1675
        %v2069 = vpop.f32.mrb[0].mxu0
        %v2070 = vadd.f32 %v553, %v2069
        %v2071 = vpop.f32.mrb[0].mxu0
        %v2072 = vadd.f32 %v557, %v2071
        %v2073 = vpop.f32.mrb[0].mxu0
        %v2074 = vadd.f32 %v553, %v2073
        %v2075 = vpop.f32.mrb[0].mxu0
        %v2076 = vadd.f32 %v557, %v2075
        %2077 = vmatprep.mubr.bf16.mxu0 %v1749
        %2078 = vmatmul.mubr.bf16.gmra.mrb[0].mxu0 %v1684
        %v2079 = vpop.f32.mrb[0].mxu0
        %v2080 = vadd.f32 %v553, %v2079
        %v2081 = vpop.f32.mrb[0].mxu0
        %v2082 = vadd.f32 %v557, %v2081
        %v2083 = vpop.f32.mrb[0].mxu0
        %v2084 = vadd.f32 %v553, %v2083
        %v2085 = vpop.f32.mrb[0].mxu0
        %v2086 = vadd.f32 %v557, %v2085
        %2087 = vmatprep.mubr.bf16.mxu0 %v1752
        %2088 = vmatmul.mubr.bf16.gmra.mrb[0].mxu0 %v1685
        %v2089 = vpop.f32.mrb[0].mxu0
        %v2090 = vadd.f32 %v553, %v2089
        %v2091 = vpop.f32.mrb[0].mxu0
        %v2092 = vadd.f32 %v557, %v2091
        %v2093 = vpop.f32.mrb[0].mxu0
        %v2094 = vadd.f32 %v553, %v2093
        %v2095 = vpop.f32.mrb[0].mxu0
        %v2096 = vadd.f32 %v557, %v2095
        %2097 = vmatprep.mubr.bf16.mxu0 %v1755
        %2098 = vmatmul.mubr.bf16.gmra.mrb[0].mxu0 %v1686
        %v2099 = vpop.f32.mrb[0].mxu0
        %v2100 = vadd.f32 %v553, %v2099
        %v2101 = vpop.f32.mrb[0].mxu0
        %v2102 = vadd.f32 %v557, %v2101
        %v2103 = vpop.f32.mrb[0].mxu0
        %v2104 = vadd.f32 %v553, %v2103
        %v2105 = vpop.f32.mrb[0].mxu0
        %v2106 = vadd.f32 %v557, %v2105
        %2107 = vmatprep.mubr.bf16.mxu0 %v1758
        %2108 = vmatmul.mubr.bf16.gmra.mrb[0].mxu0 %v1687
        %v2109 = vpop.f32.mrb[0].mxu0
        %v2110 = vadd.f32 %v553, %v2109
        %v2111 = vpop.f32.mrb[0].mxu0
        %v2112 = vadd.f32 %v557, %v2111
        %v2113 = vpop.f32.mrb[0].mxu0
        %v2114 = vadd.f32 %v553, %v2113
        %v2115 = vpop.f32.mrb[0].mxu0
        %v2116 = vadd.f32 %v557, %v2115
        %2117 = vmatprep.mubr.bf16.mxu0 %v1761
        %2118 = vmatmul.mubr.bf16.gmra.mrb[0].mxu0 %v1688
        %v2119 = vpop.f32.mrb[0].mxu0
        %v2120 = vadd.f32 %v553, %v2119
        %v2121 = vpop.f32.mrb[0].mxu0
        %v2122 = vadd.f32 %v557, %v2121
        %v2123 = vpop.f32.mrb[0].mxu0
        %v2124 = vadd.f32 %v553, %v2123
        %v2125 = vpop.f32.mrb[0].mxu0
        %v2126 = vadd.f32 %v557, %v2125
        %2127 = vmatprep.mubr.bf16.mxu0 %v1764
        %2128 = vmatmul.mubr.bf16.gmra.mrb[0].mxu0 %v1689
        %v2129 = vpop.f32.mrb[0].mxu0
        %v2130 = vadd.f32 %v553, %v2129
        %v2131 = vpop.f32.mrb[0].mxu0
        %v2132 = vadd.f32 %v557, %v2131
        %v2133 = vpop.f32.mrb[0].mxu0
        %v2134 = vadd.f32 %v553, %v2133
        %v2135 = vpop.f32.mrb[0].mxu0
        %v2136 = vadd.f32 %v557, %v2135
        %2137 = vmatprep.mubr.bf16.mxu0 %v1767
        %2138 = vmatmul.mubr.bf16.gmra.mrb[0].mxu0 %v1690
        %v2139 = vpop.f32.mrb[0].mxu0
        %v2140 = vadd.f32 %v553, %v2139
        %v2141 = vpop.f32.mrb[0].mxu0
        %v2142 = vadd.f32 %v557, %v2141
        %v2143 = vpop.f32.mrb[0].mxu0
        %v2144 = vadd.f32 %v553, %v2143
        %v2145 = vpop.f32.mrb[0].mxu0
        %v2146 = vadd.f32 %v557, %v2145
        %2147 = vmatprep.mubr.bf16.mxu0 %v1770
        %2148 = vmatmul.mubr.bf16.gmra.mrb[0].mxu0 %v1691
        %v2149 = vpop.f32.mrb[0].mxu0
        %v2150 = vadd.f32 %v553, %v2149
        %v2151 = vpop.f32.mrb[0].mxu0
        %v2152 = vadd.f32 %v557, %v2151
        %v2153 = vpop.f32.mrb[0].mxu0
        %v2154 = vadd.f32 %v553, %v2153
        %v2155 = vpop.f32.mrb[0].mxu0
        %v2156 = vadd.f32 %v557, %v2155
        %2157 = vdwg.mxu0
        %v2158 = vmax.f32 %v1807, 0.0
        %v2159 = vmax.f32 %v1809, 0.0
        %v2160 = vmax.f32 %v2000, 0.0
        %v2161 = vmax.f32 %v2002, 0.0
        %v2162 = vmax.f32 %v1811, 0.0
        %v2163 = vmax.f32 %v1813, 0.0
        %v2164 = vmax.f32 %v2004, 0.0
        %v2165 = vmax.f32 %v2006, 0.0
        %v2166 = vmax.f32 %v1817, 0.0
        %v2167 = vmax.f32 %v1819, 0.0
        %v2168 = vmax.f32 %v2010, 0.0
        %v2169 = vmax.f32 %v2012, 0.0
        %v2170 = vmax.f32 %v1821, 0.0
        %v2171 = vmax.f32 %v1823, 0.0
        %v2172 = vmax.f32 %v2014, 0.0
        %v2173 = vmax.f32 %v2016, 0.0
        %v2174 = vmax.f32 %v1827, 0.0
        %v2175 = vmax.f32 %v1829, 0.0
        %v2176 = vmax.f32 %v2020, 0.0
        %v2177 = vmax.f32 %v2022, 0.0
        %v2178 = vmax.f32 %v1831, 0.0
        %v2179 = vmax.f32 %v1833, 0.0
        %v2180 = vmax.f32 %v2024, 0.0
        %v2181 = vmax.f32 %v2026, 0.0
        %v2182 = vmax.f32 %v1837, 0.0
        %v2183 = vmax.f32 %v1839, 0.0
        %v2184 = vmax.f32 %v2030, 0.0
        %v2185 = vmax.f32 %v2032, 0.0
        %v2186 = vmax.f32 %v1841, 0.0
        %v2187 = vmax.f32 %v1843, 0.0
        %v2188 = vmax.f32 %v2034, 0.0
        %v2189 = vmax.f32 %v2036, 0.0
        %v2190 = vmax.f32 %v1847, 0.0
        %v2191 = vmax.f32 %v1849, 0.0
        %v2192 = vmax.f32 %v2040, 0.0
        %v2193 = vmax.f32 %v2042, 0.0
        %v2194 = vmax.f32 %v1851, 0.0
        %v2195 = vmax.f32 %v1853, 0.0
        %v2196 = vmax.f32 %v2044, 0.0
        %v2197 = vmax.f32 %v2046, 0.0
        %v2198 = vmax.f32 %v1857, 0.0
        %v2199 = vmax.f32 %v1859, 0.0
        %v2200 = vmax.f32 %v2050, 0.0
        %v2201 = vmax.f32 %v2052, 0.0
        %v2202 = vmax.f32 %v1861, 0.0
        %v2203 = vmax.f32 %v1863, 0.0
        %v2204 = vmax.f32 %v2054, 0.0
        %v2205 = vmax.f32 %v2056, 0.0
        %v2206 = vmax.f32 %v1867, 0.0
        %v2207 = vmax.f32 %v1869, 0.0
        %v2208 = vmax.f32 %v2060, 0.0
        %v2209 = vmax.f32 %v2062, 0.0
        %v2210 = vmax.f32 %v1871, 0.0
        %v2211 = vmax.f32 %v1873, 0.0
        %v2212 = vmax.f32 %v2064, 0.0
        %v2213 = vmax.f32 %v2066, 0.0
        %v2214 = vmax.f32 %v1877, 0.0
        %v2215 = vmax.f32 %v1879, 0.0
        %v2216 = vmax.f32 %v2070, 0.0
        %v2217 = vmax.f32 %v2072, 0.0
        %v2218 = vmax.f32 %v1881, 0.0
        %v2219 = vmax.f32 %v1883, 0.0
        %v2220 = vmax.f32 %v2074, 0.0
        %v2221 = vmax.f32 %v2076, 0.0
        %v2222 = vmax.f32 %v1887, 0.0
        %v2223 = vmax.f32 %v1889, 0.0
        %v2224 = vmax.f32 %v2080, 0.0
        %v2225 = vmax.f32 %v2082, 0.0
        %v2226 = vmax.f32 %v1891, 0.0
        %v2227 = vmax.f32 %v1893, 0.0
        %v2228 = vmax.f32 %v2084, 0.0
        %v2229 = vmax.f32 %v2086, 0.0
        %v2230 = vmax.f32 %v1897, 0.0
        %v2231 = vmax.f32 %v1899, 0.0
        %v2232 = vmax.f32 %v2090, 0.0
        %v2233 = vmax.f32 %v2092, 0.0
        %v2234 = vmax.f32 %v1901, 0.0
        %v2235 = vmax.f32 %v1903, 0.0
        %v2236 = vmax.f32 %v2094, 0.0
        %v2237 = vmax.f32 %v2096, 0.0
        %v2238 = vmax.f32 %v1907, 0.0
        %v2239 = vmax.f32 %v1909, 0.0
        %v2240 = vmax.f32 %v2100, 0.0
        %v2241 = vmax.f32 %v2102, 0.0
        %v2242 = vmax.f32 %v1911, 0.0
        %v2243 = vmax.f32 %v1913, 0.0
        %v2244 = vmax.f32 %v2104, 0.0
        %v2245 = vmax.f32 %v2106, 0.0
        %v2246 = vmax.f32 %v1917, 0.0
        %v2247 = vmax.f32 %v1919, 0.0
        %v2248 = vmax.f32 %v2110, 0.0
        %v2249 = vmax.f32 %v2112, 0.0
        %v2250 = vmax.f32 %v1921, 0.0
        %v2251 = vmax.f32 %v1923, 0.0
        %v2252 = vmax.f32 %v2114, 0.0
        %v2253 = vmax.f32 %v2116, 0.0
        %v2254 = vmax.f32 %v1927, 0.0
        %v2255 = vmax.f32 %v1929, 0.0
        %v2256 = vmax.f32 %v2120, 0.0
        %v2257 = vmax.f32 %v2122, 0.0
        %v2258 = vmax.f32 %v1931, 0.0
        %v2259 = vmax.f32 %v1933, 0.0
        %v2260 = vmax.f32 %v2124, 0.0
        %v2261 = vmax.f32 %v2126, 0.0
        %v2262 = vmax.f32 %v1937, 0.0
        %v2263 = vmax.f32 %v1939, 0.0
        %v2264 = vmax.f32 %v2130, 0.0
        %v2265 = vmax.f32 %v2132, 0.0
        %v2266 = vmax.f32 %v1941, 0.0
        %v2267 = vmax.f32 %v1943, 0.0
        %v2268 = vmax.f32 %v2134, 0.0
        %v2269 = vmax.f32 %v2136, 0.0
        %v2270 = vmax.f32 %v1947, 0.0
        %v2271 = vmax.f32 %v1949, 0.0
        %v2272 = vmax.f32 %v2140, 0.0
        %v2273 = vmax.f32 %v2142, 0.0
        %v2274 = vmax.f32 %v1951, 0.0
        %v2275 = vmax.f32 %v1953, 0.0
        %v2276 = vmax.f32 %v2144, 0.0
        %v2277 = vmax.f32 %v2146, 0.0
        %v2278 = vmax.f32 %v1957, 0.0
        %v2279 = vmax.f32 %v1959, 0.0
        %v2280 = vmax.f32 %v2150, 0.0
        %v2281 = vmax.f32 %v2152, 0.0
        %v2282 = vmax.f32 %v1961, 0.0
        %v2283 = vmax.f32 %v1963, 0.0
        %v2284 = vmax.f32 %v2154, 0.0
        %v2285 = vmax.f32 %v2156, 0.0
        %v2286 = vpack.c.bf16 %v2162, %v2158
        %v2287 = vpack.c.bf16 %v2163, %v2159
        %v2288 = vpack.c.bf16 %v2164, %v2160
        %v2289 = vpack.c.bf16 %v2165, %v2161
        %v2290 = vpack.c.bf16 %v2170, %v2166
        %v2291 = vpack.c.bf16 %v2171, %v2167
        %v2292 = vpack.c.bf16 %v2172, %v2168
        %v2293 = vpack.c.bf16 %v2173, %v2169
        %v2294 = vpack.c.bf16 %v2178, %v2174
        %v2295 = vpack.c.bf16 %v2179, %v2175
        %v2296 = vpack.c.bf16 %v2180, %v2176
        %v2297 = vpack.c.bf16 %v2181, %v2177
        %v2298 = vpack.c.bf16 %v2186, %v2182
        %v2299 = vpack.c.bf16 %v2187, %v2183
        %v2300 = vpack.c.bf16 %v2188, %v2184
        %v2301 = vpack.c.bf16 %v2189, %v2185
        %v2302 = vpack.c.bf16 %v2194, %v2190
        %v2303 = vpack.c.bf16 %v2195, %v2191
        %v2304 = vpack.c.bf16 %v2196, %v2192
        %v2305 = vpack.c.bf16 %v2197, %v2193
        %v2306 = vpack.c.bf16 %v2202, %v2198
        %v2307 = vpack.c.bf16 %v2203, %v2199
        %v2308 = vpack.c.bf16 %v2204, %v2200
        %v2309 = vpack.c.bf16 %v2205, %v2201
        %v2310 = vpack.c.bf16 %v2210, %v2206
        %v2311 = vpack.c.bf16 %v2211, %v2207
        %v2312 = vpack.c.bf16 %v2212, %v2208
        %v2313 = vpack.c.bf16 %v2213, %v2209
        %v2314 = vpack.c.bf16 %v2218, %v2214
        %v2315 = vpack.c.bf16 %v2219, %v2215
        %v2316 = vpack.c.bf16 %v2220, %v2216
        %v2317 = vpack.c.bf16 %v2221, %v2217
        %v2318 = vpack.c.bf16 %v2226, %v2222
        %v2319 = vpack.c.bf16 %v2227, %v2223
        %v2320 = vpack.c.bf16 %v2228, %v2224
        %v2321 = vpack.c.bf16 %v2229, %v2225
        %v2322 = vpack.c.bf16 %v2234, %v2230
        %v2323 = vpack.c.bf16 %v2235, %v2231
        %v2324 = vpack.c.bf16 %v2236, %v2232
        %v2325 = vpack.c.bf16 %v2237, %v2233
        %v2326 = vpack.c.bf16 %v2242, %v2238
        %v2327 = vpack.c.bf16 %v2243, %v2239
        %v2328 = vpack.c.bf16 %v2244, %v2240
        %v2329 = vpack.c.bf16 %v2245, %v2241
        %v2330 = vpack.c.bf16 %v2250, %v2246
        %v2331 = vpack.c.bf16 %v2251, %v2247
        %v2332 = vpack.c.bf16 %v2252, %v2248
        %v2333 = vpack.c.bf16 %v2253, %v2249
        %v2334 = vpack.c.bf16 %v2258, %v2254
        %v2335 = vpack.c.bf16 %v2259, %v2255
        %v2336 = vpack.c.bf16 %v2260, %v2256
        %v2337 = vpack.c.bf16 %v2261, %v2257
        %v2338 = vpack.c.bf16 %v2266, %v2262
        %v2339 = vpack.c.bf16 %v2267, %v2263
        %v2340 = vpack.c.bf16 %v2268, %v2264
        %v2341 = vpack.c.bf16 %v2269, %v2265
        %v2342 = vpack.c.bf16 %v2274, %v2270
        %v2343 = vpack.c.bf16 %v2275, %v2271
        %v2344 = vpack.c.bf16 %v2276, %v2272
        %v2345 = vpack.c.bf16 %v2277, %v2273
        %v2346 = vpack.c.bf16 %v2282, %v2278
        %v2347 = vpack.c.bf16 %v2283, %v2279
        %v2348 = vpack.c.bf16 %v2284, %v2280
        %v2349 = vpack.c.bf16 %v2285, %v2281
        %2350 = vmatprep.subr.bf16.mxu0 %v2287
        %2351 = vmatpush1.bf16.msra.mxu0 %v2286
        %2352 = vmatprep.subr.bf16.mxu0 %v2291
        %2353 = vmatpush1.bf16.msra.mxu0 %v2290
        %2354 = vmatprep.subr.bf16.mxu0 %v2295
        %2355 = vmatpush1.bf16.msra.mxu0 %v2294
        %2356 = vmatprep.subr.bf16.mxu0 %v2299
        %2357 = vmatpush1.bf16.msra.mxu0 %v2298
        %2358 = vmatprep.subr.bf16.mxu0 %v2303
        %2359 = vmatpush1.bf16.msra.mxu0 %v2302
        %2360 = vmatprep.subr.bf16.mxu0 %v2307
        %2361 = vmatpush1.bf16.msra.mxu0 %v2306
        %2362 = vmatprep.subr.bf16.mxu0 %v2311
        %2363 = vmatpush1.bf16.msra.mxu0 %v2310
        %2364 = vmatprep.subr.bf16.mxu0 %v2315
        %2365 = vmatpush1.bf16.msra.mxu0 %v2314
        %2366 = vmatprep.subr.bf16.mxu0 %v2319
        %2367 = vmatpush1.bf16.msra.mxu0 %v2318
        %2368 = vmatprep.subr.bf16.mxu0 %v2323
        %2369 = vmatpush1.bf16.msra.mxu0 %v2322
        %2370 = vmatprep.subr.bf16.mxu0 %v2327
        %2371 = vmatpush1.bf16.msra.mxu0 %v2326
        %2372 = vmatprep.subr.bf16.mxu0 %v2331
        %2373 = vmatpush1.bf16.msra.mxu0 %v2330
        %2374 = vmatprep.subr.bf16.mxu0 %v2335
        %2375 = vmatpush1.bf16.msra.mxu0 %v2334
        %2376 = vmatprep.subr.bf16.mxu0 %v2339
        %2377 = vmatpush1.bf16.msra.mxu0 %v2338
        %2378 = vmatprep.subr.bf16.mxu0 %v2343
        %2379 = vmatpush1.bf16.msra.mxu0 %v2342
        %2380 = vmatprep.subr.bf16.mxu0 %v2347
        %2381 = vmatpush1.bf16.msra.mxu0 %v2346
        %2382 = vmatprep.mubr.bf16.mxu0 %v1497
        %2383 = vmatmul.mubr.bf16.gmra.mrb[0].mxu0 %v1496
        %v2384 = vpop.f32.mrb[0].mxu0
        %v2385 = vadd.f32 0.0, %v2384
        %v2386 = vpop.f32.mrb[0].mxu0
        %v2387 = vadd.f32 0.0, %v2386
        %v2388 = vpop.f32.mrb[0].mxu0
        %v2389 = vpop.f32.mrb[0].mxu0
        %2390 = vdwg.mxu0
        %2391 = vmatprep.subr.bf16.mxu0 %v2289
        %2392 = vmatpush1.bf16.msra.mxu0 %v2288
        %2393 = vmatprep.subr.bf16.mxu0 %v2293
        %2394 = vmatpush1.bf16.msra.mxu0 %v2292
        %2395 = vmatprep.subr.bf16.mxu0 %v2297
        %2396 = vmatpush1.bf16.msra.mxu0 %v2296
        %2397 = vmatprep.subr.bf16.mxu0 %v2301
        %2398 = vmatpush1.bf16.msra.mxu0 %v2300
        %2399 = vmatprep.subr.bf16.mxu0 %v2305
        %2400 = vmatpush1.bf16.msra.mxu0 %v2304
        %2401 = vmatprep.subr.bf16.mxu0 %v2309
        %2402 = vmatpush1.bf16.msra.mxu0 %v2308
        %2403 = vmatprep.subr.bf16.mxu0 %v2313
        %2404 = vmatpush1.bf16.msra.mxu0 %v2312
        %2405 = vmatprep.subr.bf16.mxu0 %v2317
        %2406 = vmatpush1.bf16.msra.mxu0 %v2316
        %2407 = vmatprep.subr.bf16.mxu0 %v2321
        %2408 = vmatpush1.bf16.msra.mxu0 %v2320
        %2409 = vmatprep.subr.bf16.mxu0 %v2325
        %2410 = vmatpush1.bf16.msra.mxu0 %v2324
        %2411 = vmatprep.subr.bf16.mxu0 %v2329
        %2412 = vmatpush1.bf16.msra.mxu0 %v2328
        %2413 = vmatprep.subr.bf16.mxu0 %v2333
        %2414 = vmatpush1.bf16.msra.mxu0 %v2332
        %2415 = vmatprep.subr.bf16.mxu0 %v2337
        %2416 = vmatpush1.bf16.msra.mxu0 %v2336
        %2417 = vmatprep.subr.bf16.mxu0 %v2341
        %2418 = vmatpush1.bf16.msra.mxu0 %v2340
        %2419 = vmatprep.subr.bf16.mxu0 %v2345
        %2420 = vmatpush1.bf16.msra.mxu0 %v2344
        %2421 = vmatprep.subr.bf16.mxu0 %v2349
        %2422 = vmatpush1.bf16.msra.mxu0 %v2348
        %2423 = vmatprep.mubr.bf16.mxu0 %v1497
        %2424 = vmatmul.mubr.bf16.gmra.mrb[0].mxu0 %v1496
        %v2425 = vpop.f32.mrb[0].mxu0
        %v2426 = vadd.f32 0.0, %v2425
        %v2427 = vpop.f32.mrb[0].mxu0
        %v2428 = vadd.f32 0.0, %v2427
        %v2429 = vpop.f32.mrb[0].mxu0
        %v2430 = vpop.f32.mrb[0].mxu0
        %2431 = vdwg.mxu0
        %2432 = vst [vmem:[#allocation2 + $0x20] sm:$0xff] %v2385
        %2433 = vst [vmem:[#allocation2 + $0x28] sm:$0xff] %v2387
        %2434 = vst [vmem:[#allocation2 + $0x30] sm:$0xff] %v2426
        %2435 = vst.msk [vmem:[#allocation2 + $0x38] sm:$0xff] %vm1585, %v2428
        %s2436 = scalar_lea.vmem %s354, 768 [#allocation3]
        %v2437 = vld [vmem:[%s2436] sm:$0xff]
        %v2438 = vld [vmem:[%s2436 + $0x8] sm:$0xff]
        %v2439 = vld [vmem:[%s2436 + $0x10] sm:$0xff]
        %v2440 = vld [vmem:[%s2436 + $0x18] sm:$0xff]
        %v2441 = vld [vmem:[%s2436 + $0x20] sm:$0xff]
        %v2442 = vld [vmem:[%s2436 + $0x28] sm:$0xff]
        %v2443 = vld [vmem:[%s2436 + $0x30] sm:$0xff]
        %v2444 = vld [vmem:[%s2436 + $0x38] sm:$0xff]
        %v2445 = vld [vmem:[%s2436 + $0x40] sm:$0xff]
        %v2446 = vld [vmem:[%s2436 + $0x48] sm:$0xff]
        %v2447 = vld [vmem:[%s2436 + $0x50] sm:$0xff]
        %v2448 = vld [vmem:[%s2436 + $0x58] sm:$0xff]
        %v2449 = vld [vmem:[%s2436 + $0x60] sm:$0xff]
        %v2450 = vld [vmem:[%s2436 + $0x68] sm:$0xff]
        %v2451 = vld [vmem:[%s2436 + $0x70] sm:$0xff]
        %v2452 = vld [vmem:[%s2436 + $0x78] sm:$0xff]
        %v2453 = vld [vmem:[%s2436 + $0x80] sm:$0xff]
        %v2454 = vld [vmem:[%s2436 + $0x88] sm:$0xff]
        %v2455 = vld [vmem:[%s2436 + $0x90] sm:$0xff]
        %v2456 = vld [vmem:[%s2436 + $0x98] sm:$0xff]
        %v2457 = vld [vmem:[%s2436 + $0xa0] sm:$0xff]
        %v2458 = vld [vmem:[%s2436 + $0xa8] sm:$0xff]
        %v2459 = vld [vmem:[%s2436 + $0xb0] sm:$0xff]
        %v2460 = vld [vmem:[%s2436 + $0xb8] sm:$0xff]
        %v2461 = vld [vmem:[%s2436 + $0xc0] sm:$0xff]
        %v2462 = vld [vmem:[%s2436 + $0xc8] sm:$0xff]
        %v2463 = vld [vmem:[%s2436 + $0xd0] sm:$0xff]
        %v2464 = vld [vmem:[%s2436 + $0xd8] sm:$0xff]
        %v2465 = vld [vmem:[%s2436 + $0xe0] sm:$0xff]
        %v2466 = vld [vmem:[%s2436 + $0xe8] sm:$0xff]
        %v2467 = vld [vmem:[%s2436 + $0xf0] sm:$0xff]
        %v2468 = vld [vmem:[%s2436 + $0xf8] sm:$0xff]
        %v2469 = vld [vmem:[%s2436 + $0x100] sm:$0xff]
        %v2470 = vld [vmem:[%s2436 + $0x108] sm:$0xff]
        %v2471 = vld [vmem:[%s2436 + $0x110] sm:$0xff]
        %v2472 = vld [vmem:[%s2436 + $0x118] sm:$0xff]
        %v2473 = vld [vmem:[%s2436 + $0x120] sm:$0xff]
        %v2474 = vld [vmem:[%s2436 + $0x128] sm:$0xff]
        %v2475 = vld [vmem:[%s2436 + $0x130] sm:$0xff]
        %v2476 = vld [vmem:[%s2436 + $0x138] sm:$0xff]
        %v2477 = vld [vmem:[%s2436 + $0x140] sm:$0xff]
        %v2478 = vld [vmem:[%s2436 + $0x148] sm:$0xff]
        %v2479 = vld [vmem:[%s2436 + $0x150] sm:$0xff]
        %v2480 = vld [vmem:[%s2436 + $0x158] sm:$0xff]
        %v2481 = vld [vmem:[%s2436 + $0x160] sm:$0xff]
        %v2482 = vld [vmem:[%s2436 + $0x168] sm:$0xff]
        %v2483 = vld [vmem:[%s2436 + $0x170] sm:$0xff]
        %v2484 = vld [vmem:[%s2436 + $0x178] sm:$0xff]
        %v2485 = vpack.c.bf16 %v2439, %v2437
        %v2486 = vpack.c.bf16 %v2440, %v2438
        %v2487 = vpack.c.bf16 %v2443, %v2441
        %v2488 = vpack.c.bf16 %v2444, %v2442
        %v2489 = vpack.c.bf16 %v2447, %v2445
        %v2490 = vpack.c.bf16 %v2448, %v2446
        %v2491 = vpack.c.bf16 %v2451, %v2449
        %v2492 = vpack.c.bf16 %v2452, %v2450
        %v2493 = vpack.c.bf16 %v2455, %v2453
        %v2494 = vpack.c.bf16 %v2456, %v2454
        %v2495 = vpack.c.bf16 %v2459, %v2457
        %v2496 = vpack.c.bf16 %v2460, %v2458
        %v2497 = vpack.c.bf16 %v2463, %v2461
        %v2498 = vpack.c.bf16 %v2464, %v2462
        %v2499 = vpack.c.bf16 %v2467, %v2465
        %v2500 = vpack.c.bf16 %v2468, %v2466
        %v2501 = vpack.c.bf16 %v2471, %v2469
        %v2502 = vpack.c.bf16 %v2472, %v2470
        %v2503 = vpack.c.bf16 %v2475, %v2473
        %v2504 = vpack.c.bf16 %v2476, %v2474
        %v2505 = vpack.c.bf16 %v2479, %v2477
        %v2506 = vpack.c.bf16 %v2480, %v2478
        %v2507 = vpack.c.bf16 %v2483, %v2481
        %v2508 = vpack.c.bf16 %v2484, %v2482
        %2509 = vxpose.xlu0.c.b16.start [1/8] %v2485, 128
        %2510 = vxpose.xlu0.c.b16.cont [2/8] %v2487, 128
        %2511 = vxpose.xlu0.c.b16.cont [3/8] %v2489, 128
        %2512 = vxpose.xlu0.c.b16.cont [4/8] %v2491, 128
        %2513 = vxpose.xlu0.c.b16.cont [5/8] %v2493, 128
        %2514 = vxpose.xlu0.c.b16.cont [6/8] %v2495, 128
        %2515 = vxpose.xlu0.c.b16.cont [7/8] %v2497, 128
        %2516 = vxpose.xlu0.c.b16.end [8/8] %v2499, 128
        %v2517 = vpop.trf.xlu0
        %v2518 = vpop.trf.xlu0
        %v2519 = vpop.trf.xlu0
        %v2520 = vpop.trf.xlu0
        %v2521 = vpop.trf.xlu0
        %v2522 = vpop.trf.xlu0
        %v2523 = vpop.trf.xlu0
        %v2524 = vpop.trf.xlu0
        %2525 = vxpose.xlu0.c.b16.start [1/8] %v2486, 128
        %2526 = vxpose.xlu0.c.b16.cont [2/8] %v2488, 128
        %2527 = vxpose.xlu0.c.b16.cont [3/8] %v2490, 128
        %2528 = vxpose.xlu0.c.b16.cont [4/8] %v2492, 128
        %2529 = vxpose.xlu0.c.b16.cont [5/8] %v2494, 128
        %2530 = vxpose.xlu0.c.b16.cont [6/8] %v2496, 128
        %2531 = vxpose.xlu0.c.b16.cont [7/8] %v2498, 128
        %2532 = vxpose.xlu0.c.b16.end [8/8] %v2500, 128
        %v2533 = vpop.trf.xlu0
        %v2534 = vpop.trf.xlu0
        %v2535 = vpop.trf.xlu0
        %v2536 = vpop.trf.xlu0
        %v2537 = vpop.trf.xlu0
        %v2538 = vpop.trf.xlu0
        %v2539 = vpop.trf.xlu0
        %v2540 = vpop.trf.xlu0
        %2541 = vxpose.xlu0.c.b16.start [1/8] %v2501, 128
        %2542 = vxpose.xlu0.c.b16.cont [2/8] %v2503, 128
        %2543 = vxpose.xlu0.c.b16.cont [3/8] %v2505, 128
        %2544 = vxpose.xlu0.c.b16.cont [4/8] %v2507, 128
        %2545 = vxpose.xlu0.c.b16.cont [5/8] 0, 128
        %2546 = vxpose.xlu0.c.b16.cont [6/8] 0, 128
        %2547 = vxpose.xlu0.c.b16.cont [7/8] 0, 128
        %2548 = vxpose.xlu0.c.b16.end [8/8] 0, 128
        %v2549 = vpop.trf.xlu0
        %v2550 = vpop.trf.xlu0
        %v2551 = vpop.trf.xlu0
        %v2552 = vpop.trf.xlu0
        %v2553 = vpop.trf.xlu0
        %v2554 = vpop.trf.xlu0
        %v2555 = vpop.trf.xlu0
        %v2556 = vpop.trf.xlu0
        %2557 = vxpose.xlu0.c.b16.start [1/8] %v2502, 128
        %2558 = vxpose.xlu0.c.b16.cont [2/8] %v2504, 128
        %2559 = vxpose.xlu0.c.b16.cont [3/8] %v2506, 128
        %2560 = vxpose.xlu0.c.b16.cont [4/8] %v2508, 128
        %2561 = vxpose.xlu0.c.b16.cont [5/8] 0, 128
        %2562 = vxpose.xlu0.c.b16.cont [6/8] 0, 128
        %2563 = vxpose.xlu0.c.b16.cont [7/8] 0, 128
        %2564 = vxpose.xlu0.c.b16.end [8/8] 0, 128
        %v2565 = vpop.trf.xlu0
        %v2566 = vpop.trf.xlu0
        %v2567 = vpop.trf.xlu0
        %v2568 = vpop.trf.xlu0
        %v2569 = vpop.trf.xlu0
        %v2570 = vpop.trf.xlu0
        %v2571 = vpop.trf.xlu0
        %v2572 = vpop.trf.xlu0
        %v2574 = vsel %vm866, %v2549, 0
        %v2577 = vsel %vm866, %v2550, 0
        %v2580 = vsel %vm866, %v2551, 0
        %v2583 = vsel %vm866, %v2552, 0
        %v2586 = vsel %vm866, %v2553, 0
        %v2589 = vsel %vm866, %v2554, 0
        %v2592 = vsel %vm866, %v2555, 0
        %v2595 = vsel %vm866, %v2556, 0
        %v2598 = vsel %vm866, %v2565, 0
        %v2601 = vsel %vm866, %v2566, 0
        %v2604 = vsel %vm866, %v2567, 0
        %v2607 = vsel %vm866, %v2568, 0
        %v2610 = vsel %vm866, %v2569, 0
        %v2613 = vsel %vm866, %v2570, 0
        %v2616 = vsel %vm866, %v2571, 0
        %v2619 = vsel %vm866, %v2572, 0
        %2621 = vmatprep.subr.bf16.mxu0 %v771
        %2622 = vmatpush1.bf16.msra.mxu0 %v770
        %2623 = vmatprep.subr.bf16.mxu0 %v775
        %2624 = vmatpush1.bf16.msra.mxu0 %v774
        %2625 = vmatprep.subr.bf16.mxu0 %v779
        %2626 = vmatpush1.bf16.msra.mxu0 %v778
        %2627 = vmatprep.subr.bf16.mxu0 %v783
        %2628 = vmatpush1.bf16.msra.mxu0 %v782
        %2629 = vmatprep.subr.bf16.mxu0 %v787
        %2630 = vmatpush1.bf16.msra.mxu0 %v786
        %2631 = vmatprep.subr.bf16.mxu0 %v791
        %2632 = vmatpush1.bf16.msra.mxu0 %v790
        %2633 = vmatprep.subr.bf16.mxu0 %v795
        %2634 = vmatpush1.bf16.msra.mxu0 %v794
        %2635 = vmatprep.subr.bf16.mxu0 %v799
        %2636 = vmatpush1.bf16.msra.mxu0 %v798
        %2637 = vmatprep.subr.bf16.mxu0 %v803
        %2638 = vmatpush1.bf16.msra.mxu0 %v802
        %2639 = vmatprep.subr.bf16.mxu0 %v807
        %2640 = vmatpush1.bf16.msra.mxu0 %v806
        %2641 = vmatprep.subr.bf16.mxu0 %v811
        %2642 = vmatpush1.bf16.msra.mxu0 %v810
        %2643 = vmatprep.subr.bf16.mxu0 %v815
        %2644 = vmatpush1.bf16.msra.mxu0 %v814
        %2645 = vmatprep.subr.bf16.mxu0 0
        %2646 = vmatpush1.bf16.msra.mxu0 0
        %2647 = vmatprep.subr.bf16.mxu0 0
        %2648 = vmatpush1.bf16.msra.mxu0 0
        %2649 = vmatprep.subr.bf16.mxu0 0
        %2650 = vmatpush1.bf16.msra.mxu0 0
        %2651 = vmatprep.subr.bf16.mxu0 0
        %2652 = vmatpush1.bf16.msra.mxu0 0
        %2653 = vmatprep.mubr.bf16.mxu0 %v2574
        %2654 = vmatmul.mubr.bf16.gmra.mrb[0].mxu0 %v2517
        %v2655 = vpop.f32.mrb[0].mxu0
        %v2656 = vadd.f32 %v545, %v2655
        %v2657 = vpop.f32.mrb[0].mxu0
        %v2658 = vadd.f32 %v549, %v2657
        %v2659 = vpop.f32.mrb[0].mxu0
        %v2660 = vadd.f32 %v545, %v2659
        %v2661 = vpop.f32.mrb[0].mxu0
        %v2662 = vadd.f32 %v549, %v2661
        %2663 = vmatprep.mubr.bf16.mxu0 %v2577
        %2664 = vmatmul.mubr.bf16.gmra.mrb[0].mxu0 %v2518
        %v2665 = vpop.f32.mrb[0].mxu0
        %v2666 = vadd.f32 %v545, %v2665
        %v2667 = vpop.f32.mrb[0].mxu0
        %v2668 = vadd.f32 %v549, %v2667
        %v2669 = vpop.f32.mrb[0].mxu0
        %v2670 = vadd.f32 %v545, %v2669
        %v2671 = vpop.f32.mrb[0].mxu0
        %v2672 = vadd.f32 %v549, %v2671
        %2673 = vmatprep.mubr.bf16.mxu0 %v2580
        %2674 = vmatmul.mubr.bf16.gmra.mrb[0].mxu0 %v2519
        %v2675 = vpop.f32.mrb[0].mxu0
        %v2676 = vadd.f32 %v545, %v2675
        %v2677 = vpop.f32.mrb[0].mxu0
        %v2678 = vadd.f32 %v549, %v2677
        %v2679 = vpop.f32.mrb[0].mxu0
        %v2680 = vadd.f32 %v545, %v2679
        %v2681 = vpop.f32.mrb[0].mxu0
        %v2682 = vadd.f32 %v549, %v2681
        %2683 = vmatprep.mubr.bf16.mxu0 %v2583
        %2684 = vmatmul.mubr.bf16.gmra.mrb[0].mxu0 %v2520
        %v2685 = vpop.f32.mrb[0].mxu0
        %v2686 = vadd.f32 %v545, %v2685
        %v2687 = vpop.f32.mrb[0].mxu0
        %v2688 = vadd.f32 %v549, %v2687
        %v2689 = vpop.f32.mrb[0].mxu0
        %v2690 = vadd.f32 %v545, %v2689
        %v2691 = vpop.f32.mrb[0].mxu0
        %v2692 = vadd.f32 %v549, %v2691
        %2693 = vmatprep.mubr.bf16.mxu0 %v2586
        %2694 = vmatmul.mubr.bf16.gmra.mrb[0].mxu0 %v2521
        %v2695 = vpop.f32.mrb[0].mxu0
        %v2696 = vadd.f32 %v545, %v2695
        %v2697 = vpop.f32.mrb[0].mxu0
        %v2698 = vadd.f32 %v549, %v2697
        %v2699 = vpop.f32.mrb[0].mxu0
        %v2700 = vadd.f32 %v545, %v2699
        %v2701 = vpop.f32.mrb[0].mxu0
        %v2702 = vadd.f32 %v549, %v2701
        %2703 = vmatprep.mubr.bf16.mxu0 %v2589
        %2704 = vmatmul.mubr.bf16.gmra.mrb[0].mxu0 %v2522
        %v2705 = vpop.f32.mrb[0].mxu0
        %v2706 = vadd.f32 %v545, %v2705
        %v2707 = vpop.f32.mrb[0].mxu0
        %v2708 = vadd.f32 %v549, %v2707
        %v2709 = vpop.f32.mrb[0].mxu0
        %v2710 = vadd.f32 %v545, %v2709
        %v2711 = vpop.f32.mrb[0].mxu0
        %v2712 = vadd.f32 %v549, %v2711
        %2713 = vmatprep.mubr.bf16.mxu0 %v2592
        %2714 = vmatmul.mubr.bf16.gmra.mrb[0].mxu0 %v2523
        %v2715 = vpop.f32.mrb[0].mxu0
        %v2716 = vadd.f32 %v545, %v2715
        %v2717 = vpop.f32.mrb[0].mxu0
        %v2718 = vadd.f32 %v549, %v2717
        %v2719 = vpop.f32.mrb[0].mxu0
        %v2720 = vadd.f32 %v545, %v2719
        %v2721 = vpop.f32.mrb[0].mxu0
        %v2722 = vadd.f32 %v549, %v2721
        %2723 = vmatprep.mubr.bf16.mxu0 %v2595
        %2724 = vmatmul.mubr.bf16.gmra.mrb[0].mxu0 %v2524
        %v2725 = vpop.f32.mrb[0].mxu0
        %v2726 = vadd.f32 %v545, %v2725
        %v2727 = vpop.f32.mrb[0].mxu0
        %v2728 = vadd.f32 %v549, %v2727
        %v2729 = vpop.f32.mrb[0].mxu0
        %v2730 = vadd.f32 %v545, %v2729
        %v2731 = vpop.f32.mrb[0].mxu0
        %v2732 = vadd.f32 %v549, %v2731
        %2733 = vmatprep.mubr.bf16.mxu0 %v2598
        %2734 = vmatmul.mubr.bf16.gmra.mrb[0].mxu0 %v2533
        %v2735 = vpop.f32.mrb[0].mxu0
        %v2736 = vadd.f32 %v545, %v2735
        %v2737 = vpop.f32.mrb[0].mxu0
        %v2738 = vadd.f32 %v549, %v2737
        %v2739 = vpop.f32.mrb[0].mxu0
        %v2740 = vadd.f32 %v545, %v2739
        %v2741 = vpop.f32.mrb[0].mxu0
        %v2742 = vadd.f32 %v549, %v2741
        %2743 = vmatprep.mubr.bf16.mxu0 %v2601
        %2744 = vmatmul.mubr.bf16.gmra.mrb[0].mxu0 %v2534
        %v2745 = vpop.f32.mrb[0].mxu0
        %v2746 = vadd.f32 %v545, %v2745
        %v2747 = vpop.f32.mrb[0].mxu0
        %v2748 = vadd.f32 %v549, %v2747
        %v2749 = vpop.f32.mrb[0].mxu0
        %v2750 = vadd.f32 %v545, %v2749
        %v2751 = vpop.f32.mrb[0].mxu0
        %v2752 = vadd.f32 %v549, %v2751
        %2753 = vmatprep.mubr.bf16.mxu0 %v2604
        %2754 = vmatmul.mubr.bf16.gmra.mrb[0].mxu0 %v2535
        %v2755 = vpop.f32.mrb[0].mxu0
        %v2756 = vadd.f32 %v545, %v2755
        %v2757 = vpop.f32.mrb[0].mxu0
        %v2758 = vadd.f32 %v549, %v2757
        %v2759 = vpop.f32.mrb[0].mxu0
        %v2760 = vadd.f32 %v545, %v2759
        %v2761 = vpop.f32.mrb[0].mxu0
        %v2762 = vadd.f32 %v549, %v2761
        %2763 = vmatprep.mubr.bf16.mxu0 %v2607
        %2764 = vmatmul.mubr.bf16.gmra.mrb[0].mxu0 %v2536
        %v2765 = vpop.f32.mrb[0].mxu0
        %v2766 = vadd.f32 %v545, %v2765
        %v2767 = vpop.f32.mrb[0].mxu0
        %v2768 = vadd.f32 %v549, %v2767
        %v2769 = vpop.f32.mrb[0].mxu0
        %v2770 = vadd.f32 %v545, %v2769
        %v2771 = vpop.f32.mrb[0].mxu0
        %v2772 = vadd.f32 %v549, %v2771
        %2773 = vmatprep.mubr.bf16.mxu0 %v2610
        %2774 = vmatmul.mubr.bf16.gmra.mrb[0].mxu0 %v2537
        %v2775 = vpop.f32.mrb[0].mxu0
        %v2776 = vadd.f32 %v545, %v2775
        %v2777 = vpop.f32.mrb[0].mxu0
        %v2778 = vadd.f32 %v549, %v2777
        %v2779 = vpop.f32.mrb[0].mxu0
        %v2780 = vadd.f32 %v545, %v2779
        %v2781 = vpop.f32.mrb[0].mxu0
        %v2782 = vadd.f32 %v549, %v2781
        %2783 = vmatprep.mubr.bf16.mxu0 %v2613
        %2784 = vmatmul.mubr.bf16.gmra.mrb[0].mxu0 %v2538
        %v2785 = vpop.f32.mrb[0].mxu0
        %v2786 = vadd.f32 %v545, %v2785
        %v2787 = vpop.f32.mrb[0].mxu0
        %v2788 = vadd.f32 %v549, %v2787
        %v2789 = vpop.f32.mrb[0].mxu0
        %v2790 = vadd.f32 %v545, %v2789
        %v2791 = vpop.f32.mrb[0].mxu0
        %v2792 = vadd.f32 %v549, %v2791
        %2793 = vmatprep.mubr.bf16.mxu0 %v2616
        %2794 = vmatmul.mubr.bf16.gmra.mrb[0].mxu0 %v2539
        %v2795 = vpop.f32.mrb[0].mxu0
        %v2796 = vadd.f32 %v545, %v2795
        %v2797 = vpop.f32.mrb[0].mxu0
        %v2798 = vadd.f32 %v549, %v2797
        %v2799 = vpop.f32.mrb[0].mxu0
        %v2800 = vadd.f32 %v545, %v2799
        %v2801 = vpop.f32.mrb[0].mxu0
        %v2802 = vadd.f32 %v549, %v2801
        %2803 = vmatprep.mubr.bf16.mxu0 %v2619
        %2804 = vmatmul.mubr.bf16.gmra.mrb[0].mxu0 %v2540
        %v2805 = vpop.f32.mrb[0].mxu0
        %v2806 = vadd.f32 %v545, %v2805
        %v2807 = vpop.f32.mrb[0].mxu0
        %v2808 = vadd.f32 %v549, %v2807
        %v2809 = vpop.f32.mrb[0].mxu0
        %v2810 = vadd.f32 %v545, %v2809
        %v2811 = vpop.f32.mrb[0].mxu0
        %v2812 = vadd.f32 %v549, %v2811
        %2813 = vdwg.mxu0
        %2814 = vmatprep.subr.bf16.mxu0 %v773
        %2815 = vmatpush1.bf16.msra.mxu0 %v772
        %2816 = vmatprep.subr.bf16.mxu0 %v777
        %2817 = vmatpush1.bf16.msra.mxu0 %v776
        %2818 = vmatprep.subr.bf16.mxu0 %v781
        %2819 = vmatpush1.bf16.msra.mxu0 %v780
        %2820 = vmatprep.subr.bf16.mxu0 %v785
        %2821 = vmatpush1.bf16.msra.mxu0 %v784
        %2822 = vmatprep.subr.bf16.mxu0 %v789
        %2823 = vmatpush1.bf16.msra.mxu0 %v788
        %2824 = vmatprep.subr.bf16.mxu0 %v793
        %2825 = vmatpush1.bf16.msra.mxu0 %v792
        %2826 = vmatprep.subr.bf16.mxu0 %v797
        %2827 = vmatpush1.bf16.msra.mxu0 %v796
        %2828 = vmatprep.subr.bf16.mxu0 %v801
        %2829 = vmatpush1.bf16.msra.mxu0 %v800
        %2830 = vmatprep.subr.bf16.mxu0 %v805
        %2831 = vmatpush1.bf16.msra.mxu0 %v804
        %2832 = vmatprep.subr.bf16.mxu0 %v809
        %2833 = vmatpush1.bf16.msra.mxu0 %v808
        %2834 = vmatprep.subr.bf16.mxu0 %v813
        %2835 = vmatpush1.bf16.msra.mxu0 %v812
        %2836 = vmatprep.subr.bf16.mxu0 %v817
        %2837 = vmatpush1.bf16.msra.mxu0 %v816
        %2838 = vmatprep.subr.bf16.mxu0 0
        %2839 = vmatpush1.bf16.msra.mxu0 0
        %2840 = vmatprep.subr.bf16.mxu0 0
        %2841 = vmatpush1.bf16.msra.mxu0 0
        %2842 = vmatprep.subr.bf16.mxu0 0
        %2843 = vmatpush1.bf16.msra.mxu0 0
        %2844 = vmatprep.subr.bf16.mxu0 0
        %2845 = vmatpush1.bf16.msra.mxu0 0
        %2846 = vmatprep.mubr.bf16.mxu0 %v2574
        %2847 = vmatmul.mubr.bf16.gmra.mrb[0].mxu0 %v2517
        %v2848 = vpop.f32.mrb[0].mxu0
        %v2849 = vadd.f32 %v553, %v2848
        %v2850 = vpop.f32.mrb[0].mxu0
        %v2851 = vadd.f32 %v557, %v2850
        %v2852 = vpop.f32.mrb[0].mxu0
        %v2853 = vadd.f32 %v553, %v2852
        %v2854 = vpop.f32.mrb[0].mxu0
        %v2855 = vadd.f32 %v557, %v2854
        %2856 = vmatprep.mubr.bf16.mxu0 %v2577
        %2857 = vmatmul.mubr.bf16.gmra.mrb[0].mxu0 %v2518
        %v2858 = vpop.f32.mrb[0].mxu0
        %v2859 = vadd.f32 %v553, %v2858
        %v2860 = vpop.f32.mrb[0].mxu0
        %v2861 = vadd.f32 %v557, %v2860
        %v2862 = vpop.f32.mrb[0].mxu0
        %v2863 = vadd.f32 %v553, %v2862
        %v2864 = vpop.f32.mrb[0].mxu0
        %v2865 = vadd.f32 %v557, %v2864
        %2866 = vmatprep.mubr.bf16.mxu0 %v2580
        %2867 = vmatmul.mubr.bf16.gmra.mrb[0].mxu0 %v2519
        %v2868 = vpop.f32.mrb[0].mxu0
        %v2869 = vadd.f32 %v553, %v2868
        %v2870 = vpop.f32.mrb[0].mxu0
        %v2871 = vadd.f32 %v557, %v2870
        %v2872 = vpop.f32.mrb[0].mxu0
        %v2873 = vadd.f32 %v553, %v2872
        %v2874 = vpop.f32.mrb[0].mxu0
        %v2875 = vadd.f32 %v557, %v2874
        %2876 = vmatprep.mubr.bf16.mxu0 %v2583
        %2877 = vmatmul.mubr.bf16.gmra.mrb[0].mxu0 %v2520
        %v2878 = vpop.f32.mrb[0].mxu0
        %v2879 = vadd.f32 %v553, %v2878
        %v2880 = vpop.f32.mrb[0].mxu0
        %v2881 = vadd.f32 %v557, %v2880
        %v2882 = vpop.f32.mrb[0].mxu0
        %v2883 = vadd.f32 %v553, %v2882
        %v2884 = vpop.f32.mrb[0].mxu0
        %v2885 = vadd.f32 %v557, %v2884
        %2886 = vmatprep.mubr.bf16.mxu0 %v2586
        %2887 = vmatmul.mubr.bf16.gmra.mrb[0].mxu0 %v2521
        %v2888 = vpop.f32.mrb[0].mxu0
        %v2889 = vadd.f32 %v553, %v2888
        %v2890 = vpop.f32.mrb[0].mxu0
        %v2891 = vadd.f32 %v557, %v2890
        %v2892 = vpop.f32.mrb[0].mxu0
        %v2893 = vadd.f32 %v553, %v2892
        %v2894 = vpop.f32.mrb[0].mxu0
        %v2895 = vadd.f32 %v557, %v2894
        %2896 = vmatprep.mubr.bf16.mxu0 %v2589
        %2897 = vmatmul.mubr.bf16.gmra.mrb[0].mxu0 %v2522
        %v2898 = vpop.f32.mrb[0].mxu0
        %v2899 = vadd.f32 %v553, %v2898
        %v2900 = vpop.f32.mrb[0].mxu0
        %v2901 = vadd.f32 %v557, %v2900
        %v2902 = vpop.f32.mrb[0].mxu0
        %v2903 = vadd.f32 %v553, %v2902
        %v2904 = vpop.f32.mrb[0].mxu0
        %v2905 = vadd.f32 %v557, %v2904
        %2906 = vmatprep.mubr.bf16.mxu0 %v2592
        %2907 = vmatmul.mubr.bf16.gmra.mrb[0].mxu0 %v2523
        %v2908 = vpop.f32.mrb[0].mxu0
        %v2909 = vadd.f32 %v553, %v2908
        %v2910 = vpop.f32.mrb[0].mxu0
        %v2911 = vadd.f32 %v557, %v2910
        %v2912 = vpop.f32.mrb[0].mxu0
        %v2913 = vadd.f32 %v553, %v2912
        %v2914 = vpop.f32.mrb[0].mxu0
        %v2915 = vadd.f32 %v557, %v2914
        %2916 = vmatprep.mubr.bf16.mxu0 %v2595
        %2917 = vmatmul.mubr.bf16.gmra.mrb[0].mxu0 %v2524
        %v2918 = vpop.f32.mrb[0].mxu0
        %v2919 = vadd.f32 %v553, %v2918
        %v2920 = vpop.f32.mrb[0].mxu0
        %v2921 = vadd.f32 %v557, %v2920
        %v2922 = vpop.f32.mrb[0].mxu0
        %v2923 = vadd.f32 %v553, %v2922
        %v2924 = vpop.f32.mrb[0].mxu0
        %v2925 = vadd.f32 %v557, %v2924
        %2926 = vmatprep.mubr.bf16.mxu0 %v2598
        %2927 = vmatmul.mubr.bf16.gmra.mrb[0].mxu0 %v2533
        %v2928 = vpop.f32.mrb[0].mxu0
        %v2929 = vadd.f32 %v553, %v2928
        %v2930 = vpop.f32.mrb[0].mxu0
        %v2931 = vadd.f32 %v557, %v2930
        %v2932 = vpop.f32.mrb[0].mxu0
        %v2933 = vadd.f32 %v553, %v2932
        %v2934 = vpop.f32.mrb[0].mxu0
        %v2935 = vadd.f32 %v557, %v2934
        %2936 = vmatprep.mubr.bf16.mxu0 %v2601
        %2937 = vmatmul.mubr.bf16.gmra.mrb[0].mxu0 %v2534
        %v2938 = vpop.f32.mrb[0].mxu0
        %v2939 = vadd.f32 %v553, %v2938
        %v2940 = vpop.f32.mrb[0].mxu0
        %v2941 = vadd.f32 %v557, %v2940
        %v2942 = vpop.f32.mrb[0].mxu0
        %v2943 = vadd.f32 %v553, %v2942
        %v2944 = vpop.f32.mrb[0].mxu0
        %v2945 = vadd.f32 %v557, %v2944
        %2946 = vmatprep.mubr.bf16.mxu0 %v2604
        %2947 = vmatmul.mubr.bf16.gmra.mrb[0].mxu0 %v2535
        %v2948 = vpop.f32.mrb[0].mxu0
        %v2949 = vadd.f32 %v553, %v2948
        %v2950 = vpop.f32.mrb[0].mxu0
        %v2951 = vadd.f32 %v557, %v2950
        %v2952 = vpop.f32.mrb[0].mxu0
        %v2953 = vadd.f32 %v553, %v2952
        %v2954 = vpop.f32.mrb[0].mxu0
        %v2955 = vadd.f32 %v557, %v2954
        %2956 = vmatprep.mubr.bf16.mxu0 %v2607
        %2957 = vmatmul.mubr.bf16.gmra.mrb[0].mxu0 %v2536
        %v2958 = vpop.f32.mrb[0].mxu0
        %v2959 = vadd.f32 %v553, %v2958
        %v2960 = vpop.f32.mrb[0].mxu0
        %v2961 = vadd.f32 %v557, %v2960
        %v2962 = vpop.f32.mrb[0].mxu0
        %v2963 = vadd.f32 %v553, %v2962
        %v2964 = vpop.f32.mrb[0].mxu0
        %v2965 = vadd.f32 %v557, %v2964
        %2966 = vmatprep.mubr.bf16.mxu0 %v2610
        %2967 = vmatmul.mubr.bf16.gmra.mrb[0].mxu0 %v2537
        %v2968 = vpop.f32.mrb[0].mxu0
        %v2969 = vadd.f32 %v553, %v2968
        %v2970 = vpop.f32.mrb[0].mxu0
        %v2971 = vadd.f32 %v557, %v2970
        %v2972 = vpop.f32.mrb[0].mxu0
        %v2973 = vadd.f32 %v553, %v2972
        %v2974 = vpop.f32.mrb[0].mxu0
        %v2975 = vadd.f32 %v557, %v2974
        %2976 = vmatprep.mubr.bf16.mxu0 %v2613
        %2977 = vmatmul.mubr.bf16.gmra.mrb[0].mxu0 %v2538
        %v2978 = vpop.f32.mrb[0].mxu0
        %v2979 = vadd.f32 %v553, %v2978
        %v2980 = vpop.f32.mrb[0].mxu0
        %v2981 = vadd.f32 %v557, %v2980
        %v2982 = vpop.f32.mrb[0].mxu0
        %v2983 = vadd.f32 %v553, %v2982
        %v2984 = vpop.f32.mrb[0].mxu0
        %v2985 = vadd.f32 %v557, %v2984
        %2986 = vmatprep.mubr.bf16.mxu0 %v2616
        %2987 = vmatmul.mubr.bf16.gmra.mrb[0].mxu0 %v2539
        %v2988 = vpop.f32.mrb[0].mxu0
        %v2989 = vadd.f32 %v553, %v2988
        %v2990 = vpop.f32.mrb[0].mxu0
        %v2991 = vadd.f32 %v557, %v2990
        %v2992 = vpop.f32.mrb[0].mxu0
        %v2993 = vadd.f32 %v553, %v2992
        %v2994 = vpop.f32.mrb[0].mxu0
        %v2995 = vadd.f32 %v557, %v2994
        %2996 = vmatprep.mubr.bf16.mxu0 %v2619
        %2997 = vmatmul.mubr.bf16.gmra.mrb[0].mxu0 %v2540
        %v2998 = vpop.f32.mrb[0].mxu0
        %v2999 = vadd.f32 %v553, %v2998
        %v3000 = vpop.f32.mrb[0].mxu0
        %v3001 = vadd.f32 %v557, %v3000
        %v3002 = vpop.f32.mrb[0].mxu0
        %v3003 = vadd.f32 %v553, %v3002
        %v3004 = vpop.f32.mrb[0].mxu0
        %v3005 = vadd.f32 %v557, %v3004
        %3006 = vdwg.mxu0
        %v3007 = vmax.f32 %v2656, 0.0
        %v3008 = vmax.f32 %v2658, 0.0
        %v3009 = vmax.f32 %v2849, 0.0
        %v3010 = vmax.f32 %v2851, 0.0
        %v3011 = vmax.f32 %v2660, 0.0
        %v3012 = vmax.f32 %v2662, 0.0
        %v3013 = vmax.f32 %v2853, 0.0
        %v3014 = vmax.f32 %v2855, 0.0
        %v3015 = vmax.f32 %v2666, 0.0
        %v3016 = vmax.f32 %v2668, 0.0
        %v3017 = vmax.f32 %v2859, 0.0
        %v3018 = vmax.f32 %v2861, 0.0
        %v3019 = vmax.f32 %v2670, 0.0
        %v3020 = vmax.f32 %v2672, 0.0
        %v3021 = vmax.f32 %v2863, 0.0
        %v3022 = vmax.f32 %v2865, 0.0
        %v3023 = vmax.f32 %v2676, 0.0
        %v3024 = vmax.f32 %v2678, 0.0
        %v3025 = vmax.f32 %v2869, 0.0
        %v3026 = vmax.f32 %v2871, 0.0
        %v3027 = vmax.f32 %v2680, 0.0
        %v3028 = vmax.f32 %v2682, 0.0
        %v3029 = vmax.f32 %v2873, 0.0
        %v3030 = vmax.f32 %v2875, 0.0
        %v3031 = vmax.f32 %v2686, 0.0
        %v3032 = vmax.f32 %v2688, 0.0
        %v3033 = vmax.f32 %v2879, 0.0
        %v3034 = vmax.f32 %v2881, 0.0
        %v3035 = vmax.f32 %v2690, 0.0
        %v3036 = vmax.f32 %v2692, 0.0
        %v3037 = vmax.f32 %v2883, 0.0
        %v3038 = vmax.f32 %v2885, 0.0
        %v3039 = vmax.f32 %v2696, 0.0
        %v3040 = vmax.f32 %v2698, 0.0
        %v3041 = vmax.f32 %v2889, 0.0
        %v3042 = vmax.f32 %v2891, 0.0
        %v3043 = vmax.f32 %v2700, 0.0
        %v3044 = vmax.f32 %v2702, 0.0
        %v3045 = vmax.f32 %v2893, 0.0
        %v3046 = vmax.f32 %v2895, 0.0
        %v3047 = vmax.f32 %v2706, 0.0
        %v3048 = vmax.f32 %v2708, 0.0
        %v3049 = vmax.f32 %v2899, 0.0
        %v3050 = vmax.f32 %v2901, 0.0
        %v3051 = vmax.f32 %v2710, 0.0
        %v3052 = vmax.f32 %v2712, 0.0
        %v3053 = vmax.f32 %v2903, 0.0
        %v3054 = vmax.f32 %v2905, 0.0
        %v3055 = vmax.f32 %v2716, 0.0
        %v3056 = vmax.f32 %v2718, 0.0
        %v3057 = vmax.f32 %v2909, 0.0
        %v3058 = vmax.f32 %v2911, 0.0
        %v3059 = vmax.f32 %v2720, 0.0
        %v3060 = vmax.f32 %v2722, 0.0
        %v3061 = vmax.f32 %v2913, 0.0
        %v3062 = vmax.f32 %v2915, 0.0
        %v3063 = vmax.f32 %v2726, 0.0
        %v3064 = vmax.f32 %v2728, 0.0
        %v3065 = vmax.f32 %v2919, 0.0
        %v3066 = vmax.f32 %v2921, 0.0
        %v3067 = vmax.f32 %v2730, 0.0
        %v3068 = vmax.f32 %v2732, 0.0
        %v3069 = vmax.f32 %v2923, 0.0
        %v3070 = vmax.f32 %v2925, 0.0
        %v3071 = vmax.f32 %v2736, 0.0
        %v3072 = vmax.f32 %v2738, 0.0
        %v3073 = vmax.f32 %v2929, 0.0
        %v3074 = vmax.f32 %v2931, 0.0
        %v3075 = vmax.f32 %v2740, 0.0
        %v3076 = vmax.f32 %v2742, 0.0
        %v3077 = vmax.f32 %v2933, 0.0
        %v3078 = vmax.f32 %v2935, 0.0
        %v3079 = vmax.f32 %v2746, 0.0
        %v3080 = vmax.f32 %v2748, 0.0
        %v3081 = vmax.f32 %v2939, 0.0
        %v3082 = vmax.f32 %v2941, 0.0
        %v3083 = vmax.f32 %v2750, 0.0
        %v3084 = vmax.f32 %v2752, 0.0
        %v3085 = vmax.f32 %v2943, 0.0
        %v3086 = vmax.f32 %v2945, 0.0
        %v3087 = vmax.f32 %v2756, 0.0
        %v3088 = vmax.f32 %v2758, 0.0
        %v3089 = vmax.f32 %v2949, 0.0
        %v3090 = vmax.f32 %v2951, 0.0
        %v3091 = vmax.f32 %v2760, 0.0
        %v3092 = vmax.f32 %v2762, 0.0
        %v3093 = vmax.f32 %v2953, 0.0
        %v3094 = vmax.f32 %v2955, 0.0
        %v3095 = vmax.f32 %v2766, 0.0
        %v3096 = vmax.f32 %v2768, 0.0
        %v3097 = vmax.f32 %v2959, 0.0
        %v3098 = vmax.f32 %v2961, 0.0
        %v3099 = vmax.f32 %v2770, 0.0
        %v3100 = vmax.f32 %v2772, 0.0
        %v3101 = vmax.f32 %v2963, 0.0
        %v3102 = vmax.f32 %v2965, 0.0
        %v3103 = vmax.f32 %v2776, 0.0
        %v3104 = vmax.f32 %v2778, 0.0
        %v3105 = vmax.f32 %v2969, 0.0
        %v3106 = vmax.f32 %v2971, 0.0
        %v3107 = vmax.f32 %v2780, 0.0
        %v3108 = vmax.f32 %v2782, 0.0
        %v3109 = vmax.f32 %v2973, 0.0
        %v3110 = vmax.f32 %v2975, 0.0
        %v3111 = vmax.f32 %v2786, 0.0
        %v3112 = vmax.f32 %v2788, 0.0
        %v3113 = vmax.f32 %v2979, 0.0
        %v3114 = vmax.f32 %v2981, 0.0
        %v3115 = vmax.f32 %v2790, 0.0
        %v3116 = vmax.f32 %v2792, 0.0
        %v3117 = vmax.f32 %v2983, 0.0
        %v3118 = vmax.f32 %v2985, 0.0
        %v3119 = vmax.f32 %v2796, 0.0
        %v3120 = vmax.f32 %v2798, 0.0
        %v3121 = vmax.f32 %v2989, 0.0
        %v3122 = vmax.f32 %v2991, 0.0
        %v3123 = vmax.f32 %v2800, 0.0
        %v3124 = vmax.f32 %v2802, 0.0
        %v3125 = vmax.f32 %v2993, 0.0
        %v3126 = vmax.f32 %v2995, 0.0
        %v3127 = vmax.f32 %v2806, 0.0
        %v3128 = vmax.f32 %v2808, 0.0
        %v3129 = vmax.f32 %v2999, 0.0
        %v3130 = vmax.f32 %v3001, 0.0
        %v3131 = vmax.f32 %v2810, 0.0
        %v3132 = vmax.f32 %v2812, 0.0
        %v3133 = vmax.f32 %v3003, 0.0
        %v3134 = vmax.f32 %v3005, 0.0
        %v3135 = vpack.c.bf16 %v3011, %v3007
        %v3136 = vpack.c.bf16 %v3012, %v3008
        %v3137 = vpack.c.bf16 %v3013, %v3009
        %v3138 = vpack.c.bf16 %v3014, %v3010
        %v3139 = vpack.c.bf16 %v3019, %v3015
        %v3140 = vpack.c.bf16 %v3020, %v3016
        %v3141 = vpack.c.bf16 %v3021, %v3017
        %v3142 = vpack.c.bf16 %v3022, %v3018
        %v3143 = vpack.c.bf16 %v3027, %v3023
        %v3144 = vpack.c.bf16 %v3028, %v3024
        %v3145 = vpack.c.bf16 %v3029, %v3025
        %v3146 = vpack.c.bf16 %v3030, %v3026
        %v3147 = vpack.c.bf16 %v3035, %v3031
        %v3148 = vpack.c.bf16 %v3036, %v3032
        %v3149 = vpack.c.bf16 %v3037, %v3033
        %v3150 = vpack.c.bf16 %v3038, %v3034
        %v3151 = vpack.c.bf16 %v3043, %v3039
        %v3152 = vpack.c.bf16 %v3044, %v3040
        %v3153 = vpack.c.bf16 %v3045, %v3041
        %v3154 = vpack.c.bf16 %v3046, %v3042
        %v3155 = vpack.c.bf16 %v3051, %v3047
        %v3156 = vpack.c.bf16 %v3052, %v3048
        %v3157 = vpack.c.bf16 %v3053, %v3049
        %v3158 = vpack.c.bf16 %v3054, %v3050
        %v3159 = vpack.c.bf16 %v3059, %v3055
        %v3160 = vpack.c.bf16 %v3060, %v3056
        %v3161 = vpack.c.bf16 %v3061, %v3057
        %v3162 = vpack.c.bf16 %v3062, %v3058
        %v3163 = vpack.c.bf16 %v3067, %v3063
        %v3164 = vpack.c.bf16 %v3068, %v3064
        %v3165 = vpack.c.bf16 %v3069, %v3065
        %v3166 = vpack.c.bf16 %v3070, %v3066
        %v3167 = vpack.c.bf16 %v3075, %v3071
        %v3168 = vpack.c.bf16 %v3076, %v3072
        %v3169 = vpack.c.bf16 %v3077, %v3073
        %v3170 = vpack.c.bf16 %v3078, %v3074
        %v3171 = vpack.c.bf16 %v3083, %v3079
        %v3172 = vpack.c.bf16 %v3084, %v3080
        %v3173 = vpack.c.bf16 %v3085, %v3081
        %v3174 = vpack.c.bf16 %v3086, %v3082
        %v3175 = vpack.c.bf16 %v3091, %v3087
        %v3176 = vpack.c.bf16 %v3092, %v3088
        %v3177 = vpack.c.bf16 %v3093, %v3089
        %v3178 = vpack.c.bf16 %v3094, %v3090
        %v3179 = vpack.c.bf16 %v3099, %v3095
        %v3180 = vpack.c.bf16 %v3100, %v3096
        %v3181 = vpack.c.bf16 %v3101, %v3097
        %v3182 = vpack.c.bf16 %v3102, %v3098
        %v3183 = vpack.c.bf16 %v3107, %v3103
        %v3184 = vpack.c.bf16 %v3108, %v3104
        %v3185 = vpack.c.bf16 %v3109, %v3105
        %v3186 = vpack.c.bf16 %v3110, %v3106
        %v3187 = vpack.c.bf16 %v3115, %v3111
        %v3188 = vpack.c.bf16 %v3116, %v3112
        %v3189 = vpack.c.bf16 %v3117, %v3113
        %v3190 = vpack.c.bf16 %v3118, %v3114
        %v3191 = vpack.c.bf16 %v3123, %v3119
        %v3192 = vpack.c.bf16 %v3124, %v3120
        %v3193 = vpack.c.bf16 %v3125, %v3121
        %v3194 = vpack.c.bf16 %v3126, %v3122
        %v3195 = vpack.c.bf16 %v3131, %v3127
        %v3196 = vpack.c.bf16 %v3132, %v3128
        %v3197 = vpack.c.bf16 %v3133, %v3129
        %v3198 = vpack.c.bf16 %v3134, %v3130
        %3199 = vmatprep.subr.bf16.mxu0 %v3136
        %3200 = vmatpush1.bf16.msra.mxu0 %v3135
        %3201 = vmatprep.subr.bf16.mxu0 %v3140
        %3202 = vmatpush1.bf16.msra.mxu0 %v3139
        %3203 = vmatprep.subr.bf16.mxu0 %v3144
        %3204 = vmatpush1.bf16.msra.mxu0 %v3143
        %3205 = vmatprep.subr.bf16.mxu0 %v3148
        %3206 = vmatpush1.bf16.msra.mxu0 %v3147
        %3207 = vmatprep.subr.bf16.mxu0 %v3152
        %3208 = vmatpush1.bf16.msra.mxu0 %v3151
        %3209 = vmatprep.subr.bf16.mxu0 %v3156
        %3210 = vmatpush1.bf16.msra.mxu0 %v3155
        %3211 = vmatprep.subr.bf16.mxu0 %v3160
        %3212 = vmatpush1.bf16.msra.mxu0 %v3159
        %3213 = vmatprep.subr.bf16.mxu0 %v3164
        %3214 = vmatpush1.bf16.msra.mxu0 %v3163
        %3215 = vmatprep.subr.bf16.mxu0 %v3168
        %3216 = vmatpush1.bf16.msra.mxu0 %v3167
        %3217 = vmatprep.subr.bf16.mxu0 %v3172
        %3218 = vmatpush1.bf16.msra.mxu0 %v3171
        %3219 = vmatprep.subr.bf16.mxu0 %v3176
        %3220 = vmatpush1.bf16.msra.mxu0 %v3175
        %3221 = vmatprep.subr.bf16.mxu0 %v3180
        %3222 = vmatpush1.bf16.msra.mxu0 %v3179
        %3223 = vmatprep.subr.bf16.mxu0 %v3184
        %3224 = vmatpush1.bf16.msra.mxu0 %v3183
        %3225 = vmatprep.subr.bf16.mxu0 %v3188
        %3226 = vmatpush1.bf16.msra.mxu0 %v3187
        %3227 = vmatprep.subr.bf16.mxu0 %v3192
        %3228 = vmatpush1.bf16.msra.mxu0 %v3191
        %3229 = vmatprep.subr.bf16.mxu0 %v3196
        %3230 = vmatpush1.bf16.msra.mxu0 %v3195
        %3231 = vmatprep.mubr.bf16.mxu0 %v1497
        %3232 = vmatmul.mubr.bf16.gmra.mrb[0].mxu0 %v1496
        %v3233 = vpop.f32.mrb[0].mxu0
        %v3234 = vadd.f32 0.0, %v3233
        %v3235 = vpop.f32.mrb[0].mxu0
        %v3236 = vadd.f32 0.0, %v3235
        %v3237 = vpop.f32.mrb[0].mxu0
        %v3238 = vpop.f32.mrb[0].mxu0
        %3239 = vdwg.mxu0
        %3240 = vmatprep.subr.bf16.mxu0 %v3138
        %3241 = vmatpush1.bf16.msra.mxu0 %v3137
        %3242 = vmatprep.subr.bf16.mxu0 %v3142
        %3243 = vmatpush1.bf16.msra.mxu0 %v3141
        %3244 = vmatprep.subr.bf16.mxu0 %v3146
        %3245 = vmatpush1.bf16.msra.mxu0 %v3145
        %3246 = vmatprep.subr.bf16.mxu0 %v3150
        %3247 = vmatpush1.bf16.msra.mxu0 %v3149
        %3248 = vmatprep.subr.bf16.mxu0 %v3154
        %3249 = vmatpush1.bf16.msra.mxu0 %v3153
        %3250 = vmatprep.subr.bf16.mxu0 %v3158
        %3251 = vmatpush1.bf16.msra.mxu0 %v3157
        %3252 = vmatprep.subr.bf16.mxu0 %v3162
        %3253 = vmatpush1.bf16.msra.mxu0 %v3161
        %3254 = vmatprep.subr.bf16.mxu0 %v3166
        %3255 = vmatpush1.bf16.msra.mxu0 %v3165
        %3256 = vmatprep.subr.bf16.mxu0 %v3170
        %3257 = vmatpush1.bf16.msra.mxu0 %v3169
        %3258 = vmatprep.subr.bf16.mxu0 %v3174
        %3259 = vmatpush1.bf16.msra.mxu0 %v3173
        %3260 = vmatprep.subr.bf16.mxu0 %v3178
        %3261 = vmatpush1.bf16.msra.mxu0 %v3177
        %3262 = vmatprep.subr.bf16.mxu0 %v3182
        %3263 = vmatpush1.bf16.msra.mxu0 %v3181
        %3264 = vmatprep.subr.bf16.mxu0 %v3186
        %3265 = vmatpush1.bf16.msra.mxu0 %v3185
        %3266 = vmatprep.subr.bf16.mxu0 %v3190
        %3267 = vmatpush1.bf16.msra.mxu0 %v3189
        %3268 = vmatprep.subr.bf16.mxu0 %v3194
        %3269 = vmatpush1.bf16.msra.mxu0 %v3193
        %3270 = vmatprep.subr.bf16.mxu0 %v3198
        %3271 = vmatpush1.bf16.msra.mxu0 %v3197
        %3272 = vmatprep.mubr.bf16.mxu0 %v1497
        %3273 = vmatmul.mubr.bf16.gmra.mrb[0].mxu0 %v1496
        %v3274 = vpop.f32.mrb[0].mxu0
        %v3275 = vadd.f32 0.0, %v3274
        %v3276 = vpop.f32.mrb[0].mxu0
        %v3277 = vadd.f32 0.0, %v3276
        %v3278 = vpop.f32.mrb[0].mxu0
        %v3279 = vpop.f32.mrb[0].mxu0
        %3280 = vdwg.mxu0
        %3281 = vst [vmem:[#allocation2 + $0x40] sm:$0xff] %v3234
        %3282 = vst [vmem:[#allocation2 + $0x48] sm:$0xff] %v3236
        %3283 = vst [vmem:[#allocation2 + $0x50] sm:$0xff] %v3275
        %3284 = vst.msk [vmem:[#allocation2 + $0x58] sm:$0xff] %vm1585, %v3277
        %v3285 = vld [vmem:[#allocation2] sm:$0xff]
        %v3286 = vld [vmem:[#allocation2 + $0x8] sm:$0xff]
        %v3287 = vld [vmem:[#allocation2 + $0x10] sm:$0xff]
        %v3288 = vld [vmem:[#allocation2 + $0x18] sm:$0xff]
        %v3289 = vld [vmem:[#allocation2 + $0x20] sm:$0xff]
        %v3290 = vld [vmem:[#allocation2 + $0x28] sm:$0xff]
        %v3291 = vld [vmem:[#allocation2 + $0x30] sm:$0xff]
        %v3292 = vld [vmem:[#allocation2 + $0x38] sm:$0xff]
        %v3293 = vld [vmem:[#allocation2 + $0x40] sm:$0xff]
        %v3294 = vld [vmem:[#allocation2 + $0x48] sm:$0xff]
        %v3295 = vld [vmem:[#allocation2 + $0x50] sm:$0xff]
        %v3296 = vld [vmem:[#allocation2 + $0x58] sm:$0xff]
        %v3297 = vpack.c.bf16 %v3289, %v3285
        %v3298 = vpack.c.bf16 %v3290, %v3286
        %v3299 = vpack.c.bf16 %v3291, %v3287
        %v3300 = vpack.c.bf16 %v3292, %v3288
        %v3301 = vpack.c.bf16 %v3293, %v3293
        %v3302 = vpack.c.bf16 %v3294, %v3294
        %v3303 = vpack.c.bf16 %v3295, %v3295
        %v3304 = vpack.c.bf16 %v3296, %v3296
        %v3305 = vld [vmem:[#allocation10] sm:$0xff]
        %v3306 = vld [vmem:[#allocation10 + $0x8] sm:$0xff]
        %v3307 = vld [vmem:[#allocation10 + $0x10] sm:$0xff]
        %v3308 = vld [vmem:[#allocation10 + $0x18] sm:$0xff]
        %v3309 = vld [vmem:[#allocation10 + $0x20] sm:$0xff]
        %v3310 = vld [vmem:[#allocation10 + $0x28] sm:$0xff]
        %v3311 = vld [vmem:[#allocation10 + $0x30] sm:$0xff]
        %v3312 = vld [vmem:[#allocation10 + $0x38] sm:$0xff]
        %v3313 = vld [vmem:[#allocation10 + $0x40] sm:$0xff]
        %v3314 = vld [vmem:[#allocation10 + $0x48] sm:$0xff]
        %v3315 = vld [vmem:[#allocation10 + $0x50] sm:$0xff]
        %v3316 = vld [vmem:[#allocation10 + $0x58] sm:$0xff]
        %v3317 = vld [vmem:[#allocation10 + $0x60] sm:$0xff]
        %v3318 = vld [vmem:[#allocation10 + $0x68] sm:$0xff]
        %v3319 = vld [vmem:[#allocation10 + $0x70] sm:$0xff]
        %v3320 = vld [vmem:[#allocation10 + $0x78] sm:$0xff]
        %v3321 = vld [vmem:[#allocation10 + $0x80] sm:$0xff]
        %v3322 = vld [vmem:[#allocation10 + $0x88] sm:$0xff]
        %v3323 = vld [vmem:[#allocation10 + $0x90] sm:$0xff]
        %v3324 = vld [vmem:[#allocation10 + $0x98] sm:$0xff]
        %v3325 = vld [vmem:[#allocation10 + $0xa0] sm:$0xff]
        %v3326 = vld [vmem:[#allocation10 + $0xa8] sm:$0xff]
        %v3327 = vld [vmem:[#allocation10 + $0xb0] sm:$0xff]
        %v3328 = vld [vmem:[#allocation10 + $0xb8] sm:$0xff]
        %v3329 = vld [vmem:[#allocation10 + $0xc0] sm:$0xff]
        %v3330 = vld [vmem:[#allocation10 + $0xc8] sm:$0xff]
        %v3331 = vld [vmem:[#allocation10 + $0xd0] sm:$0xff]
        %v3332 = vld [vmem:[#allocation10 + $0xd8] sm:$0xff]
        %v3333 = vld [vmem:[#allocation10 + $0xe0] sm:$0xff]
        %v3334 = vld [vmem:[#allocation10 + $0xe8] sm:$0xff]
        %v3335 = vld [vmem:[#allocation10 + $0xf0] sm:$0xff]
        %v3336 = vld [vmem:[#allocation10 + $0xf8] sm:$0xff]
        %v3337 = vld [vmem:[#allocation10 + $0x100] sm:$0xff]
        %v3338 = vld [vmem:[#allocation10 + $0x108] sm:$0xff]
        %v3339 = vld [vmem:[#allocation10 + $0x110] sm:$0xff]
        %v3340 = vld [vmem:[#allocation10 + $0x118] sm:$0xff]
        %v3341 = vld [vmem:[#allocation10 + $0x120] sm:$0xff]
        %v3342 = vld [vmem:[#allocation10 + $0x128] sm:$0xff]
        %v3343 = vld [vmem:[#allocation10 + $0x130] sm:$0xff]
        %v3344 = vld [vmem:[#allocation10 + $0x138] sm:$0xff]
        %v3345 = vld [vmem:[#allocation10 + $0x140] sm:$0xff]
        %v3346 = vld [vmem:[#allocation10 + $0x148] sm:$0xff]
        %v3347 = vld [vmem:[#allocation10 + $0x150] sm:$0xff]
        %v3348 = vld [vmem:[#allocation10 + $0x158] sm:$0xff]
        %v3349 = vld [vmem:[#allocation10 + $0x160] sm:$0xff]
        %v3350 = vld [vmem:[#allocation10 + $0x168] sm:$0xff]
        %v3351 = vld [vmem:[#allocation10 + $0x170] sm:$0xff]
        %v3352 = vld [vmem:[#allocation10 + $0x178] sm:$0xff]
        %v3353 = vld [vmem:[#allocation10 + $0x180] sm:$0xff]
        %v3354 = vld [vmem:[#allocation10 + $0x188] sm:$0xff]
        %v3355 = vld [vmem:[#allocation10 + $0x190] sm:$0xff]
        %v3356 = vld [vmem:[#allocation10 + $0x198] sm:$0xff]
        %v3357 = vld [vmem:[#allocation10 + $0x1a0] sm:$0xff]
        %v3358 = vld [vmem:[#allocation10 + $0x1a8] sm:$0xff]
        %v3359 = vld [vmem:[#allocation10 + $0x1b0] sm:$0xff]
        %v3360 = vld [vmem:[#allocation10 + $0x1b8] sm:$0xff]
        %v3361 = vld [vmem:[#allocation10 + $0x1c0] sm:$0xff]
        %v3362 = vld [vmem:[#allocation10 + $0x1c8] sm:$0xff]
        %v3363 = vld [vmem:[#allocation10 + $0x1d0] sm:$0xff]
        %v3364 = vld [vmem:[#allocation10 + $0x1d8] sm:$0xff]
        %v3365 = vld [vmem:[#allocation10 + $0x1e0] sm:$0xff]
        %v3366 = vld [vmem:[#allocation10 + $0x1e8] sm:$0xff]
        %v3367 = vld [vmem:[#allocation10 + $0x1f0] sm:$0xff]
        %v3368 = vld [vmem:[#allocation10 + $0x1f8] sm:$0xff]
        %v3369 = vld [vmem:[#allocation10 + $0x200] sm:$0xff]
        %v3370 = vld [vmem:[#allocation10 + $0x208] sm:$0xff]
        %v3371 = vld [vmem:[#allocation10 + $0x210] sm:$0xff]
        %v3372 = vld [vmem:[#allocation10 + $0x218] sm:$0xff]
        %v3373 = vld [vmem:[#allocation10 + $0x220] sm:$0xff]
        %v3374 = vld [vmem:[#allocation10 + $0x228] sm:$0xff]
        %v3375 = vld [vmem:[#allocation10 + $0x230] sm:$0xff]
        %v3376 = vld [vmem:[#allocation10 + $0x238] sm:$0xff]
        %v3377 = vld [vmem:[#allocation10 + $0x240] sm:$0xff]
        %v3378 = vld [vmem:[#allocation10 + $0x248] sm:$0xff]
        %v3379 = vld [vmem:[#allocation10 + $0x250] sm:$0xff]
        %v3380 = vld [vmem:[#allocation10 + $0x258] sm:$0xff]
        %v3381 = vld [vmem:[#allocation10 + $0x260] sm:$0xff]
        %v3382 = vld [vmem:[#allocation10 + $0x268] sm:$0xff]
        %v3383 = vld [vmem:[#allocation10 + $0x270] sm:$0xff]
        %v3384 = vld [vmem:[#allocation10 + $0x278] sm:$0xff]
        %v3385 = vld [vmem:[#allocation10 + $0x280] sm:$0xff]
        %v3386 = vld [vmem:[#allocation10 + $0x288] sm:$0xff]
        %v3387 = vld [vmem:[#allocation10 + $0x290] sm:$0xff]
        %v3388 = vld [vmem:[#allocation10 + $0x298] sm:$0xff]
        %v3389 = vld [vmem:[#allocation10 + $0x2a0] sm:$0xff]
        %v3390 = vld [vmem:[#allocation10 + $0x2a8] sm:$0xff]
        %v3391 = vld [vmem:[#allocation10 + $0x2b0] sm:$0xff]
        %v3392 = vld [vmem:[#allocation10 + $0x2b8] sm:$0xff]
        %v3393 = vld [vmem:[#allocation10 + $0x2c0] sm:$0xff]
        %v3394 = vld [vmem:[#allocation10 + $0x2c8] sm:$0xff]
        %v3395 = vld [vmem:[#allocation10 + $0x2d0] sm:$0xff]
        %v3396 = vld [vmem:[#allocation10 + $0x2d8] sm:$0xff]
        %v3397 = vld [vmem:[#allocation10 + $0x2e0] sm:$0xff]
        %v3398 = vld [vmem:[#allocation10 + $0x2e8] sm:$0xff]
        %v3399 = vld [vmem:[#allocation10 + $0x2f0] sm:$0xff]
        %v3400 = vld [vmem:[#allocation10 + $0x2f8] sm:$0xff]
        %v3401 = vld [vmem:[#allocation10 + $0x300] sm:$0xff]
        %v3402 = vld [vmem:[#allocation10 + $0x308] sm:$0xff]
        %v3403 = vld [vmem:[#allocation10 + $0x310] sm:$0xff]
        %v3404 = vld [vmem:[#allocation10 + $0x318] sm:$0xff]
        %v3405 = vld [vmem:[#allocation10 + $0x320] sm:$0xff]
        %v3406 = vld [vmem:[#allocation10 + $0x328] sm:$0xff]
        %v3407 = vld [vmem:[#allocation10 + $0x330] sm:$0xff]
        %v3408 = vld [vmem:[#allocation10 + $0x338] sm:$0xff]
        %v3409 = vld [vmem:[#allocation10 + $0x340] sm:$0xff]
        %v3410 = vld [vmem:[#allocation10 + $0x348] sm:$0xff]
        %v3411 = vld [vmem:[#allocation10 + $0x350] sm:$0xff]
        %v3412 = vld [vmem:[#allocation10 + $0x358] sm:$0xff]
        %v3413 = vld [vmem:[#allocation10 + $0x360] sm:$0xff]
        %v3414 = vld [vmem:[#allocation10 + $0x368] sm:$0xff]
        %v3415 = vld [vmem:[#allocation10 + $0x370] sm:$0xff]
        %v3416 = vld [vmem:[#allocation10 + $0x378] sm:$0xff]
        %v3417 = vld [vmem:[#allocation10 + $0x380] sm:$0xff]
        %v3418 = vld [vmem:[#allocation10 + $0x388] sm:$0xff]
        %v3419 = vld [vmem:[#allocation10 + $0x390] sm:$0xff]
        %v3420 = vld [vmem:[#allocation10 + $0x398] sm:$0xff]
        %v3421 = vld [vmem:[#allocation10 + $0x3a0] sm:$0xff]
        %v3422 = vld [vmem:[#allocation10 + $0x3a8] sm:$0xff]
        %v3423 = vld [vmem:[#allocation10 + $0x3b0] sm:$0xff]
        %v3424 = vld [vmem:[#allocation10 + $0x3b8] sm:$0xff]
        %v3425 = vld [vmem:[#allocation10 + $0x3c0] sm:$0xff]
        %v3426 = vld [vmem:[#allocation10 + $0x3c8] sm:$0xff]
        %v3427 = vld [vmem:[#allocation10 + $0x3d0] sm:$0xff]
        %v3428 = vld [vmem:[#allocation10 + $0x3d8] sm:$0xff]
        %v3429 = vld [vmem:[#allocation10 + $0x3e0] sm:$0xff]
        %v3430 = vld [vmem:[#allocation10 + $0x3e8] sm:$0xff]
        %v3431 = vld [vmem:[#allocation10 + $0x3f0] sm:$0xff]
        %v3432 = vld [vmem:[#allocation10 + $0x3f8] sm:$0xff]
        %v3433 = vld [vmem:[#allocation10 + $0x400] sm:$0xff]
        %v3434 = vld [vmem:[#allocation10 + $0x408] sm:$0xff]
        %v3435 = vld [vmem:[#allocation10 + $0x410] sm:$0xff]
        %v3436 = vld [vmem:[#allocation10 + $0x418] sm:$0xff]
        %v3437 = vld [vmem:[#allocation10 + $0x420] sm:$0xff]
        %v3438 = vld [vmem:[#allocation10 + $0x428] sm:$0xff]
        %v3439 = vld [vmem:[#allocation10 + $0x430] sm:$0xff]
        %v3440 = vld [vmem:[#allocation10 + $0x438] sm:$0xff]
        %v3441 = vld [vmem:[#allocation10 + $0x440] sm:$0xff]
        %v3442 = vld [vmem:[#allocation10 + $0x448] sm:$0xff]
        %v3443 = vld [vmem:[#allocation10 + $0x450] sm:$0xff]
        %v3444 = vld [vmem:[#allocation10 + $0x458] sm:$0xff]
        %v3445 = vld [vmem:[#allocation10 + $0x460] sm:$0xff]
        %v3446 = vld [vmem:[#allocation10 + $0x468] sm:$0xff]
        %v3447 = vld [vmem:[#allocation10 + $0x470] sm:$0xff]
        %v3448 = vld [vmem:[#allocation10 + $0x478] sm:$0xff]
        %v3449 = vld [vmem:[#allocation10 + $0x480] sm:$0xff]
        %v3450 = vld [vmem:[#allocation10 + $0x488] sm:$0xff]
        %v3451 = vld [vmem:[#allocation10 + $0x490] sm:$0xff]
        %v3452 = vld [vmem:[#allocation10 + $0x498] sm:$0xff]
        %v3453 = vld [vmem:[#allocation10 + $0x4a0] sm:$0xff]
        %v3454 = vld [vmem:[#allocation10 + $0x4a8] sm:$0xff]
        %v3455 = vld [vmem:[#allocation10 + $0x4b0] sm:$0xff]
        %v3456 = vld [vmem:[#allocation10 + $0x4b8] sm:$0xff]
        %v3457 = vld [vmem:[#allocation10 + $0x4c0] sm:$0xff]
        %v3458 = vld [vmem:[#allocation10 + $0x4c8] sm:$0xff]
        %v3459 = vld [vmem:[#allocation10 + $0x4d0] sm:$0xff]
        %v3460 = vld [vmem:[#allocation10 + $0x4d8] sm:$0xff]
        %v3461 = vld [vmem:[#allocation10 + $0x4e0] sm:$0xff]
        %v3462 = vld [vmem:[#allocation10 + $0x4e8] sm:$0xff]
        %v3463 = vld [vmem:[#allocation10 + $0x4f0] sm:$0xff]
        %v3464 = vld [vmem:[#allocation10 + $0x4f8] sm:$0xff]
        %v3465 = vld [vmem:[#allocation10 + $0x500] sm:$0xff]
        %v3466 = vld [vmem:[#allocation10 + $0x508] sm:$0xff]
        %v3467 = vld [vmem:[#allocation10 + $0x510] sm:$0xff]
        %v3468 = vld [vmem:[#allocation10 + $0x518] sm:$0xff]
        %v3469 = vld [vmem:[#allocation10 + $0x520] sm:$0xff]
        %v3470 = vld [vmem:[#allocation10 + $0x528] sm:$0xff]
        %v3471 = vld [vmem:[#allocation10 + $0x530] sm:$0xff]
        %v3472 = vld [vmem:[#allocation10 + $0x538] sm:$0xff]
        %v3473 = vld [vmem:[#allocation10 + $0x540] sm:$0xff]
        %v3474 = vld [vmem:[#allocation10 + $0x548] sm:$0xff]
        %v3475 = vld [vmem:[#allocation10 + $0x550] sm:$0xff]
        %v3476 = vld [vmem:[#allocation10 + $0x558] sm:$0xff]
        %v3477 = vld [vmem:[#allocation10 + $0x560] sm:$0xff]
        %v3478 = vld [vmem:[#allocation10 + $0x568] sm:$0xff]
        %v3479 = vld [vmem:[#allocation10 + $0x570] sm:$0xff]
        %v3480 = vld [vmem:[#allocation10 + $0x578] sm:$0xff]
        %v3481 = vld [vmem:[#allocation10 + $0x580] sm:$0xff]
        %v3482 = vld [vmem:[#allocation10 + $0x588] sm:$0xff]
        %v3483 = vld [vmem:[#allocation10 + $0x590] sm:$0xff]
        %v3484 = vld [vmem:[#allocation10 + $0x598] sm:$0xff]
        %v3485 = vld [vmem:[#allocation10 + $0x5a0] sm:$0xff]
        %v3486 = vld [vmem:[#allocation10 + $0x5a8] sm:$0xff]
        %v3487 = vld [vmem:[#allocation10 + $0x5b0] sm:$0xff]
        %v3488 = vld [vmem:[#allocation10 + $0x5b8] sm:$0xff]
        %v3489 = vld [vmem:[#allocation10 + $0x5c0] sm:$0xff]
        %v3490 = vld [vmem:[#allocation10 + $0x5c8] sm:$0xff]
        %v3491 = vld [vmem:[#allocation10 + $0x5d0] sm:$0xff]
        %v3492 = vld [vmem:[#allocation10 + $0x5d8] sm:$0xff]
        %v3493 = vld [vmem:[#allocation10 + $0x5e0] sm:$0xff]
        %v3494 = vld [vmem:[#allocation10 + $0x5e8] sm:$0xff]
        %v3495 = vld [vmem:[#allocation10 + $0x5f0] sm:$0xff]
        %v3496 = vld [vmem:[#allocation10 + $0x5f8] sm:$0xff]
        %v3497 = vld [vmem:[#allocation10 + $0x600] sm:$0xff]
        %v3498 = vld [vmem:[#allocation10 + $0x608] sm:$0xff]
        %v3499 = vld [vmem:[#allocation10 + $0x610] sm:$0xff]
        %v3500 = vld [vmem:[#allocation10 + $0x618] sm:$0xff]
        %v3501 = vld [vmem:[#allocation10 + $0x620] sm:$0xff]
        %v3502 = vld [vmem:[#allocation10 + $0x628] sm:$0xff]
        %v3503 = vld [vmem:[#allocation10 + $0x630] sm:$0xff]
        %v3504 = vld [vmem:[#allocation10 + $0x638] sm:$0xff]
        %v3505 = vld [vmem:[#allocation10 + $0x640] sm:$0xff]
        %v3506 = vld [vmem:[#allocation10 + $0x648] sm:$0xff]
        %v3507 = vld [vmem:[#allocation10 + $0x650] sm:$0xff]
        %v3508 = vld [vmem:[#allocation10 + $0x658] sm:$0xff]
        %v3509 = vld [vmem:[#allocation10 + $0x660] sm:$0xff]
        %v3510 = vld [vmem:[#allocation10 + $0x668] sm:$0xff]
        %v3511 = vld [vmem:[#allocation10 + $0x670] sm:$0xff]
        %v3512 = vld [vmem:[#allocation10 + $0x678] sm:$0xff]
        %v3513 = vld [vmem:[#allocation10 + $0x680] sm:$0xff]
        %v3514 = vld [vmem:[#allocation10 + $0x688] sm:$0xff]
        %v3515 = vld [vmem:[#allocation10 + $0x690] sm:$0xff]
        %v3516 = vld [vmem:[#allocation10 + $0x698] sm:$0xff]
        %v3517 = vld [vmem:[#allocation10 + $0x6a0] sm:$0xff]
        %v3518 = vld [vmem:[#allocation10 + $0x6a8] sm:$0xff]
        %v3519 = vld [vmem:[#allocation10 + $0x6b0] sm:$0xff]
        %v3520 = vld [vmem:[#allocation10 + $0x6b8] sm:$0xff]
        %v3521 = vld [vmem:[#allocation10 + $0x6c0] sm:$0xff]
        %v3522 = vld [vmem:[#allocation10 + $0x6c8] sm:$0xff]
        %v3523 = vld [vmem:[#allocation10 + $0x6d0] sm:$0xff]
        %v3524 = vld [vmem:[#allocation10 + $0x6d8] sm:$0xff]
        %v3525 = vld [vmem:[#allocation10 + $0x6e0] sm:$0xff]
        %v3526 = vld [vmem:[#allocation10 + $0x6e8] sm:$0xff]
        %v3527 = vld [vmem:[#allocation10 + $0x6f0] sm:$0xff]
        %v3528 = vld [vmem:[#allocation10 + $0x6f8] sm:$0xff]
        %v3529 = vld [vmem:[#allocation10 + $0x700] sm:$0xff]
        %v3530 = vld [vmem:[#allocation10 + $0x708] sm:$0xff]
        %v3531 = vld [vmem:[#allocation10 + $0x710] sm:$0xff]
        %v3532 = vld [vmem:[#allocation10 + $0x718] sm:$0xff]
        %v3533 = vld [vmem:[#allocation10 + $0x720] sm:$0xff]
        %v3534 = vld [vmem:[#allocation10 + $0x728] sm:$0xff]
        %v3535 = vld [vmem:[#allocation10 + $0x730] sm:$0xff]
        %v3536 = vld [vmem:[#allocation10 + $0x738] sm:$0xff]
        %v3537 = vld [vmem:[#allocation10 + $0x740] sm:$0xff]
        %v3538 = vld [vmem:[#allocation10 + $0x748] sm:$0xff]
        %v3539 = vld [vmem:[#allocation10 + $0x750] sm:$0xff]
        %v3540 = vld [vmem:[#allocation10 + $0x758] sm:$0xff]
        %v3541 = vld [vmem:[#allocation10 + $0x760] sm:$0xff]
        %v3542 = vld [vmem:[#allocation10 + $0x768] sm:$0xff]
        %v3543 = vld [vmem:[#allocation10 + $0x770] sm:$0xff]
        %v3544 = vld [vmem:[#allocation10 + $0x778] sm:$0xff]
        %v3545 = vld [vmem:[#allocation10 + $0x780] sm:$0xff]
        %v3546 = vld [vmem:[#allocation10 + $0x788] sm:$0xff]
        %v3547 = vld [vmem:[#allocation10 + $0x790] sm:$0xff]
        %v3548 = vld [vmem:[#allocation10 + $0x798] sm:$0xff]
        %v3549 = vld [vmem:[#allocation10 + $0x7a0] sm:$0xff]
        %v3550 = vld [vmem:[#allocation10 + $0x7a8] sm:$0xff]
        %v3551 = vld [vmem:[#allocation10 + $0x7b0] sm:$0xff]
        %v3552 = vld [vmem:[#allocation10 + $0x7b8] sm:$0xff]
        %v3553 = vld [vmem:[#allocation10 + $0x7c0] sm:$0xff]
        %v3554 = vld [vmem:[#allocation10 + $0x7c8] sm:$0xff]
        %v3555 = vld [vmem:[#allocation10 + $0x7d0] sm:$0xff]
        %v3556 = vld [vmem:[#allocation10 + $0x7d8] sm:$0xff]
        %v3557 = vld [vmem:[#allocation10 + $0x7e0] sm:$0xff]
        %v3558 = vld [vmem:[#allocation10 + $0x7e8] sm:$0xff]
        %v3559 = vld [vmem:[#allocation10 + $0x7f0] sm:$0xff]
        %v3560 = vld [vmem:[#allocation10 + $0x7f8] sm:$0xff]
        %v3561 = vld [vmem:[#allocation10 + $0x800] sm:$0xff]
        %v3562 = vld [vmem:[#allocation10 + $0x808] sm:$0xff]
        %v3563 = vld [vmem:[#allocation10 + $0x810] sm:$0xff]
        %v3564 = vld [vmem:[#allocation10 + $0x818] sm:$0xff]
        %v3565 = vld [vmem:[#allocation10 + $0x820] sm:$0xff]
        %v3566 = vld [vmem:[#allocation10 + $0x828] sm:$0xff]
        %v3567 = vld [vmem:[#allocation10 + $0x830] sm:$0xff]
        %v3568 = vld [vmem:[#allocation10 + $0x838] sm:$0xff]
        %v3569 = vld [vmem:[#allocation10 + $0x840] sm:$0xff]
        %v3570 = vld [vmem:[#allocation10 + $0x848] sm:$0xff]
        %v3571 = vld [vmem:[#allocation10 + $0x850] sm:$0xff]
        %v3572 = vld [vmem:[#allocation10 + $0x858] sm:$0xff]
        %v3573 = vld [vmem:[#allocation10 + $0x860] sm:$0xff]
        %v3574 = vld [vmem:[#allocation10 + $0x868] sm:$0xff]
        %v3575 = vld [vmem:[#allocation10 + $0x870] sm:$0xff]
        %v3576 = vld [vmem:[#allocation10 + $0x878] sm:$0xff]
        %v3577 = vld [vmem:[#allocation10 + $0x880] sm:$0xff]
        %v3578 = vld [vmem:[#allocation10 + $0x888] sm:$0xff]
        %v3579 = vld [vmem:[#allocation10 + $0x890] sm:$0xff]
        %v3580 = vld [vmem:[#allocation10 + $0x898] sm:$0xff]
        %v3581 = vld [vmem:[#allocation10 + $0x8a0] sm:$0xff]
        %v3582 = vld [vmem:[#allocation10 + $0x8a8] sm:$0xff]
        %v3583 = vld [vmem:[#allocation10 + $0x8b0] sm:$0xff]
        %v3584 = vld [vmem:[#allocation10 + $0x8b8] sm:$0xff]
        %v3585 = vld [vmem:[#allocation10 + $0x8c0] sm:$0xff]
        %v3586 = vld [vmem:[#allocation10 + $0x8c8] sm:$0xff]
        %v3587 = vld [vmem:[#allocation10 + $0x8d0] sm:$0xff]
        %v3588 = vld [vmem:[#allocation10 + $0x8d8] sm:$0xff]
        %v3589 = vld [vmem:[#allocation10 + $0x8e0] sm:$0xff]
        %v3590 = vld [vmem:[#allocation10 + $0x8e8] sm:$0xff]
        %v3591 = vld [vmem:[#allocation10 + $0x8f0] sm:$0xff]
        %v3592 = vld [vmem:[#allocation10 + $0x8f8] sm:$0xff]
        %v3593 = vld [vmem:[#allocation10 + $0x900] sm:$0xff]
        %v3594 = vld [vmem:[#allocation10 + $0x908] sm:$0xff]
        %v3595 = vld [vmem:[#allocation10 + $0x910] sm:$0xff]
        %v3596 = vld [vmem:[#allocation10 + $0x918] sm:$0xff]
        %v3597 = vld [vmem:[#allocation10 + $0x920] sm:$0xff]
        %v3598 = vld [vmem:[#allocation10 + $0x928] sm:$0xff]
        %v3599 = vld [vmem:[#allocation10 + $0x930] sm:$0xff]
        %v3600 = vld [vmem:[#allocation10 + $0x938] sm:$0xff]
        %v3601 = vld [vmem:[#allocation10 + $0x940] sm:$0xff]
        %v3602 = vld [vmem:[#allocation10 + $0x948] sm:$0xff]
        %v3603 = vld [vmem:[#allocation10 + $0x950] sm:$0xff]
        %v3604 = vld [vmem:[#allocation10 + $0x958] sm:$0xff]
        %v3605 = vld [vmem:[#allocation10 + $0x960] sm:$0xff]
        %v3606 = vld [vmem:[#allocation10 + $0x968] sm:$0xff]
        %v3607 = vld [vmem:[#allocation10 + $0x970] sm:$0xff]
        %v3608 = vld [vmem:[#allocation10 + $0x978] sm:$0xff]
        %v3609 = vld [vmem:[#allocation10 + $0x980] sm:$0xff]
        %v3610 = vld [vmem:[#allocation10 + $0x988] sm:$0xff]
        %v3611 = vld [vmem:[#allocation10 + $0x990] sm:$0xff]
        %v3612 = vld [vmem:[#allocation10 + $0x998] sm:$0xff]
        %v3613 = vld [vmem:[#allocation10 + $0x9a0] sm:$0xff]
        %v3614 = vld [vmem:[#allocation10 + $0x9a8] sm:$0xff]
        %v3615 = vld [vmem:[#allocation10 + $0x9b0] sm:$0xff]
        %v3616 = vld [vmem:[#allocation10 + $0x9b8] sm:$0xff]
        %v3617 = vld [vmem:[#allocation10 + $0x9c0] sm:$0xff]
        %v3618 = vld [vmem:[#allocation10 + $0x9c8] sm:$0xff]
        %v3619 = vld [vmem:[#allocation10 + $0x9d0] sm:$0xff]
        %v3620 = vld [vmem:[#allocation10 + $0x9d8] sm:$0xff]
        %v3621 = vld [vmem:[#allocation10 + $0x9e0] sm:$0xff]
        %v3622 = vld [vmem:[#allocation10 + $0x9e8] sm:$0xff]
        %v3623 = vld [vmem:[#allocation10 + $0x9f0] sm:$0xff]
        %v3624 = vld [vmem:[#allocation10 + $0x9f8] sm:$0xff]
        %v3625 = vld [vmem:[#allocation10 + $0xa00] sm:$0xff]
        %v3626 = vld [vmem:[#allocation10 + $0xa08] sm:$0xff]
        %v3627 = vld [vmem:[#allocation10 + $0xa10] sm:$0xff]
        %v3628 = vld [vmem:[#allocation10 + $0xa18] sm:$0xff]
        %v3629 = vld [vmem:[#allocation10 + $0xa20] sm:$0xff]
        %v3630 = vld [vmem:[#allocation10 + $0xa28] sm:$0xff]
        %v3631 = vld [vmem:[#allocation10 + $0xa30] sm:$0xff]
        %v3632 = vld [vmem:[#allocation10 + $0xa38] sm:$0xff]
        %v3633 = vld [vmem:[#allocation10 + $0xa40] sm:$0xff]
        %v3634 = vld [vmem:[#allocation10 + $0xa48] sm:$0xff]
        %v3635 = vld [vmem:[#allocation10 + $0xa50] sm:$0xff]
        %v3636 = vld [vmem:[#allocation10 + $0xa58] sm:$0xff]
        %v3637 = vld [vmem:[#allocation10 + $0xa60] sm:$0xff]
        %v3638 = vld [vmem:[#allocation10 + $0xa68] sm:$0xff]
        %v3639 = vld [vmem:[#allocation10 + $0xa70] sm:$0xff]
        %v3640 = vld [vmem:[#allocation10 + $0xa78] sm:$0xff]
        %v3641 = vld [vmem:[#allocation10 + $0xa80] sm:$0xff]
        %v3642 = vld [vmem:[#allocation10 + $0xa88] sm:$0xff]
        %v3643 = vld [vmem:[#allocation10 + $0xa90] sm:$0xff]
        %v3644 = vld [vmem:[#allocation10 + $0xa98] sm:$0xff]
        %v3645 = vld [vmem:[#allocation10 + $0xaa0] sm:$0xff]
        %v3646 = vld [vmem:[#allocation10 + $0xaa8] sm:$0xff]
        %v3647 = vld [vmem:[#allocation10 + $0xab0] sm:$0xff]
        %v3648 = vld [vmem:[#allocation10 + $0xab8] sm:$0xff]
        %v3649 = vld [vmem:[#allocation10 + $0xac0] sm:$0xff]
        %v3650 = vld [vmem:[#allocation10 + $0xac8] sm:$0xff]
        %v3651 = vld [vmem:[#allocation10 + $0xad0] sm:$0xff]
        %v3652 = vld [vmem:[#allocation10 + $0xad8] sm:$0xff]
        %v3653 = vld [vmem:[#allocation10 + $0xae0] sm:$0xff]
        %v3654 = vld [vmem:[#allocation10 + $0xae8] sm:$0xff]
        %v3655 = vld [vmem:[#allocation10 + $0xaf0] sm:$0xff]
        %v3656 = vld [vmem:[#allocation10 + $0xaf8] sm:$0xff]
        %v3657 = vld [vmem:[#allocation10 + $0xb00] sm:$0xff]
        %v3658 = vld [vmem:[#allocation10 + $0xb08] sm:$0xff]
        %v3659 = vld [vmem:[#allocation10 + $0xb10] sm:$0xff]
        %v3660 = vld [vmem:[#allocation10 + $0xb18] sm:$0xff]
        %v3661 = vld [vmem:[#allocation10 + $0xb20] sm:$0xff]
        %v3662 = vld [vmem:[#allocation10 + $0xb28] sm:$0xff]
        %v3663 = vld [vmem:[#allocation10 + $0xb30] sm:$0xff]
        %v3664 = vld [vmem:[#allocation10 + $0xb38] sm:$0xff]
        %v3665 = vld [vmem:[#allocation10 + $0xb40] sm:$0xff]
        %v3666 = vld [vmem:[#allocation10 + $0xb48] sm:$0xff]
        %v3667 = vld [vmem:[#allocation10 + $0xb50] sm:$0xff]
        %v3668 = vld [vmem:[#allocation10 + $0xb58] sm:$0xff]
        %v3669 = vld [vmem:[#allocation10 + $0xb60] sm:$0xff]
        %v3670 = vld [vmem:[#allocation10 + $0xb68] sm:$0xff]
        %v3671 = vld [vmem:[#allocation10 + $0xb70] sm:$0xff]
        %v3672 = vld [vmem:[#allocation10 + $0xb78] sm:$0xff]
        %v3673 = vld [vmem:[#allocation10 + $0xb80] sm:$0xff]
        %v3674 = vld [vmem:[#allocation10 + $0xb88] sm:$0xff]
        %v3675 = vld [vmem:[#allocation10 + $0xb90] sm:$0xff]
        %v3676 = vld [vmem:[#allocation10 + $0xb98] sm:$0xff]
        %v3677 = vld [vmem:[#allocation10 + $0xba0] sm:$0xff]
        %v3678 = vld [vmem:[#allocation10 + $0xba8] sm:$0xff]
        %v3679 = vld [vmem:[#allocation10 + $0xbb0] sm:$0xff]
        %v3680 = vld [vmem:[#allocation10 + $0xbb8] sm:$0xff]
        %v3681 = vld [vmem:[#allocation10 + $0xbc0] sm:$0xff]
        %v3682 = vld [vmem:[#allocation10 + $0xbc8] sm:$0xff]
        %v3683 = vld [vmem:[#allocation10 + $0xbd0] sm:$0xff]
        %v3684 = vld [vmem:[#allocation10 + $0xbd8] sm:$0xff]
        %v3685 = vld [vmem:[#allocation10 + $0xbe0] sm:$0xff]
        %v3686 = vld [vmem:[#allocation10 + $0xbe8] sm:$0xff]
        %v3687 = vld [vmem:[#allocation10 + $0xbf0] sm:$0xff]
        %v3688 = vld [vmem:[#allocation10 + $0xbf8] sm:$0xff]
        %v3689 = vld [vmem:[#allocation10 + $0xc00] sm:$0xff]
        %v3690 = vld [vmem:[#allocation10 + $0xc08] sm:$0xff]
        %v3691 = vld [vmem:[#allocation10 + $0xc10] sm:$0xff]
        %v3692 = vld [vmem:[#allocation10 + $0xc18] sm:$0xff]
        %v3693 = vld [vmem:[#allocation10 + $0xc20] sm:$0xff]
        %v3694 = vld [vmem:[#allocation10 + $0xc28] sm:$0xff]
        %v3695 = vld [vmem:[#allocation10 + $0xc30] sm:$0xff]
        %v3696 = vld [vmem:[#allocation10 + $0xc38] sm:$0xff]
        %v3697 = vld [vmem:[#allocation10 + $0xc40] sm:$0xff]
        %v3698 = vld [vmem:[#allocation10 + $0xc48] sm:$0xff]
        %v3699 = vld [vmem:[#allocation10 + $0xc50] sm:$0xff]
        %v3700 = vld [vmem:[#allocation10 + $0xc58] sm:$0xff]
        %v3701 = vld [vmem:[#allocation10 + $0xc60] sm:$0xff]
        %v3702 = vld [vmem:[#allocation10 + $0xc68] sm:$0xff]
        %v3703 = vld [vmem:[#allocation10 + $0xc70] sm:$0xff]
        %v3704 = vld [vmem:[#allocation10 + $0xc78] sm:$0xff]
        %v3705 = vld [vmem:[#allocation10 + $0xc80] sm:$0xff]
        %v3706 = vld [vmem:[#allocation10 + $0xc88] sm:$0xff]
        %v3707 = vld [vmem:[#allocation10 + $0xc90] sm:$0xff]
        %v3708 = vld [vmem:[#allocation10 + $0xc98] sm:$0xff]
        %v3709 = vld [vmem:[#allocation10 + $0xca0] sm:$0xff]
        %v3710 = vld [vmem:[#allocation10 + $0xca8] sm:$0xff]
        %v3711 = vld [vmem:[#allocation10 + $0xcb0] sm:$0xff]
        %v3712 = vld [vmem:[#allocation10 + $0xcb8] sm:$0xff]
        %v3713 = vld [vmem:[#allocation10 + $0xcc0] sm:$0xff]
        %v3714 = vld [vmem:[#allocation10 + $0xcc8] sm:$0xff]
        %v3715 = vld [vmem:[#allocation10 + $0xcd0] sm:$0xff]
        %v3716 = vld [vmem:[#allocation10 + $0xcd8] sm:$0xff]
        %v3717 = vld [vmem:[#allocation10 + $0xce0] sm:$0xff]
        %v3718 = vld [vmem:[#allocation10 + $0xce8] sm:$0xff]
        %v3719 = vld [vmem:[#allocation10 + $0xcf0] sm:$0xff]
        %v3720 = vld [vmem:[#allocation10 + $0xcf8] sm:$0xff]
        %v3721 = vld [vmem:[#allocation10 + $0xd00] sm:$0xff]
        %v3722 = vld [vmem:[#allocation10 + $0xd08] sm:$0xff]
        %v3723 = vld [vmem:[#allocation10 + $0xd10] sm:$0xff]
        %v3724 = vld [vmem:[#allocation10 + $0xd18] sm:$0xff]
        %v3725 = vld [vmem:[#allocation10 + $0xd20] sm:$0xff]
        %v3726 = vld [vmem:[#allocation10 + $0xd28] sm:$0xff]
        %v3727 = vld [vmem:[#allocation10 + $0xd30] sm:$0xff]
        %v3728 = vld [vmem:[#allocation10 + $0xd38] sm:$0xff]
        %v3729 = vld [vmem:[#allocation10 + $0xd40] sm:$0xff]
        %v3730 = vld [vmem:[#allocation10 + $0xd48] sm:$0xff]
        %v3731 = vld [vmem:[#allocation10 + $0xd50] sm:$0xff]
        %v3732 = vld [vmem:[#allocation10 + $0xd58] sm:$0xff]
        %v3733 = vld [vmem:[#allocation10 + $0xd60] sm:$0xff]
        %v3734 = vld [vmem:[#allocation10 + $0xd68] sm:$0xff]
        %v3735 = vld [vmem:[#allocation10 + $0xd70] sm:$0xff]
        %v3736 = vld [vmem:[#allocation10 + $0xd78] sm:$0xff]
        %v4169 = vunpack.c.l.b16 %v3305
        %v4170 = vunpack.c.h.b16 %v3305
        %v4171 = vunpack.c.l.b16 %v3306
        %v4172 = vunpack.c.h.b16 %v3306
        %v4173 = vunpack.c.l.b16 %v3307
        %v4174 = vunpack.c.h.b16 %v3307
        %v4175 = vunpack.c.l.b16 %v3308
        %v4176 = vunpack.c.h.b16 %v3308
        %v4177 = vunpack.c.l.b16 %v3309
        %v4178 = vunpack.c.h.b16 %v3309
        %v4179 = vunpack.c.l.b16 %v3310
        %v4180 = vunpack.c.h.b16 %v3310
        %v4181 = vunpack.c.l.b16 %v3311
        %v4182 = vunpack.c.h.b16 %v3311
        %v4183 = vunpack.c.l.b16 %v3312
        %v4184 = vunpack.c.h.b16 %v3312
        %v4185 = vunpack.c.l.b16 %v3313
        %v4186 = vunpack.c.h.b16 %v3313
        %v4187 = vunpack.c.l.b16 %v3314
        %v4188 = vunpack.c.h.b16 %v3314
        %v4189 = vunpack.c.l.b16 %v3315
        %v4190 = vunpack.c.h.b16 %v3315
        %v4191 = vunpack.c.l.b16 %v3316
        %v4192 = vunpack.c.h.b16 %v3316
        %v4193 = vunpack.c.l.b16 %v3317
        %v4194 = vunpack.c.h.b16 %v3317
        %v4195 = vunpack.c.l.b16 %v3318
        %v4196 = vunpack.c.h.b16 %v3318
        %v4197 = vunpack.c.l.b16 %v3319
        %v4198 = vunpack.c.h.b16 %v3319
        %v4199 = vunpack.c.l.b16 %v3320
        %v4200 = vunpack.c.h.b16 %v3320
        %v4201 = vunpack.c.l.b16 %v3321
        %v4202 = vunpack.c.h.b16 %v3321
        %v4203 = vunpack.c.l.b16 %v3322
        %v4204 = vunpack.c.h.b16 %v3322
        %v4205 = vunpack.c.l.b16 %v3323
        %v4206 = vunpack.c.h.b16 %v3323
        %v4207 = vunpack.c.l.b16 %v3324
        %v4208 = vunpack.c.h.b16 %v3324
        %v4209 = vunpack.c.l.b16 %v3325
        %v4210 = vunpack.c.h.b16 %v3325
        %v4211 = vunpack.c.l.b16 %v3326
        %v4212 = vunpack.c.h.b16 %v3326
        %v4213 = vunpack.c.l.b16 %v3327
        %v4214 = vunpack.c.h.b16 %v3327
        %v4215 = vunpack.c.l.b16 %v3328
        %v4216 = vunpack.c.h.b16 %v3328
        %v4217 = vunpack.c.l.b16 %v3329
        %v4218 = vunpack.c.h.b16 %v3329
        %v4219 = vunpack.c.l.b16 %v3330
        %v4220 = vunpack.c.h.b16 %v3330
        %v4221 = vunpack.c.l.b16 %v3331
        %v4222 = vunpack.c.h.b16 %v3331
        %v4223 = vunpack.c.l.b16 %v3332
        %v4224 = vunpack.c.h.b16 %v3332
        %v4225 = vunpack.c.l.b16 %v3333
        %v4226 = vunpack.c.h.b16 %v3333
        %v4227 = vunpack.c.l.b16 %v3334
        %v4228 = vunpack.c.h.b16 %v3334
        %v4229 = vunpack.c.l.b16 %v3335
        %v4230 = vunpack.c.h.b16 %v3335
        %v4231 = vunpack.c.l.b16 %v3336
        %v4232 = vunpack.c.h.b16 %v3336
        %v4233 = vunpack.c.l.b16 %v3337
        %v4234 = vunpack.c.h.b16 %v3337
        %v4235 = vunpack.c.l.b16 %v3338
        %v4236 = vunpack.c.h.b16 %v3338
        %v4237 = vunpack.c.l.b16 %v3339
        %v4238 = vunpack.c.h.b16 %v3339
        %v4239 = vunpack.c.l.b16 %v3340
        %v4240 = vunpack.c.h.b16 %v3340
        %v4241 = vunpack.c.l.b16 %v3341
        %v4242 = vunpack.c.h.b16 %v3341
        %v4243 = vunpack.c.l.b16 %v3342
        %v4244 = vunpack.c.h.b16 %v3342
        %v4245 = vunpack.c.l.b16 %v3343
        %v4246 = vunpack.c.h.b16 %v3343
        %v4247 = vunpack.c.l.b16 %v3344
        %v4248 = vunpack.c.h.b16 %v3344
        %v4249 = vunpack.c.l.b16 %v3345
        %v4250 = vunpack.c.h.b16 %v3345
        %v4251 = vunpack.c.l.b16 %v3346
        %v4252 = vunpack.c.h.b16 %v3346
        %v4253 = vunpack.c.l.b16 %v3347
        %v4254 = vunpack.c.h.b16 %v3347
        %v4255 = vunpack.c.l.b16 %v3348
        %v4256 = vunpack.c.h.b16 %v3348
        %v4257 = vunpack.c.l.b16 %v3349
        %v4258 = vunpack.c.h.b16 %v3349
        %v4259 = vunpack.c.l.b16 %v3350
        %v4260 = vunpack.c.h.b16 %v3350
        %v4261 = vunpack.c.l.b16 %v3351
        %v4262 = vunpack.c.h.b16 %v3351
        %v4263 = vunpack.c.l.b16 %v3352
        %v4264 = vunpack.c.h.b16 %v3352
        %v4265 = vunpack.c.l.b16 %v3353
        %v4266 = vunpack.c.h.b16 %v3353
        %v4267 = vunpack.c.l.b16 %v3354
        %v4268 = vunpack.c.h.b16 %v3354
        %v4269 = vunpack.c.l.b16 %v3355
        %v4270 = vunpack.c.h.b16 %v3355
        %v4271 = vunpack.c.l.b16 %v3356
        %v4272 = vunpack.c.h.b16 %v3356
        %v4273 = vunpack.c.l.b16 %v3357
        %v4274 = vunpack.c.h.b16 %v3357
        %v4275 = vunpack.c.l.b16 %v3358
        %v4276 = vunpack.c.h.b16 %v3358
        %v4277 = vunpack.c.l.b16 %v3359
        %v4278 = vunpack.c.h.b16 %v3359
        %v4279 = vunpack.c.l.b16 %v3360
        %v4280 = vunpack.c.h.b16 %v3360
        %v4281 = vunpack.c.l.b16 %v3361
        %v4282 = vunpack.c.h.b16 %v3361
        %v4283 = vunpack.c.l.b16 %v3362
        %v4284 = vunpack.c.h.b16 %v3362
        %v4285 = vunpack.c.l.b16 %v3363
        %v4286 = vunpack.c.h.b16 %v3363
        %v4287 = vunpack.c.l.b16 %v3364
        %v4288 = vunpack.c.h.b16 %v3364
        %v4289 = vunpack.c.l.b16 %v3365
        %v4290 = vunpack.c.h.b16 %v3365
        %v4291 = vunpack.c.l.b16 %v3366
        %v4292 = vunpack.c.h.b16 %v3366
        %v4293 = vunpack.c.l.b16 %v3367
        %v4294 = vunpack.c.h.b16 %v3367
        %v4295 = vunpack.c.l.b16 %v3368
        %v4296 = vunpack.c.h.b16 %v3368
        %v4297 = vunpack.c.l.b16 %v3369
        %v4298 = vunpack.c.h.b16 %v3369
        %v4299 = vunpack.c.l.b16 %v3370
        %v4300 = vunpack.c.h.b16 %v3370
        %v4301 = vunpack.c.l.b16 %v3371
        %v4302 = vunpack.c.h.b16 %v3371
        %v4303 = vunpack.c.l.b16 %v3372
        %v4304 = vunpack.c.h.b16 %v3372
        %v4305 = vunpack.c.l.b16 %v3373
        %v4306 = vunpack.c.h.b16 %v3373
        %v4307 = vunpack.c.l.b16 %v3374
        %v4308 = vunpack.c.h.b16 %v3374
        %v4309 = vunpack.c.l.b16 %v3375
        %v4310 = vunpack.c.h.b16 %v3375
        %v4311 = vunpack.c.l.b16 %v3376
        %v4312 = vunpack.c.h.b16 %v3376
        %v4313 = vunpack.c.l.b16 %v3377
        %v4314 = vunpack.c.h.b16 %v3377
        %v4315 = vunpack.c.l.b16 %v3378
        %v4316 = vunpack.c.h.b16 %v3378
        %v4317 = vunpack.c.l.b16 %v3379
        %v4318 = vunpack.c.h.b16 %v3379
        %v4319 = vunpack.c.l.b16 %v3380
        %v4320 = vunpack.c.h.b16 %v3380
        %v4321 = vunpack.c.l.b16 %v3381
        %v4322 = vunpack.c.h.b16 %v3381
        %v4323 = vunpack.c.l.b16 %v3382
        %v4324 = vunpack.c.h.b16 %v3382
        %v4325 = vunpack.c.l.b16 %v3383
        %v4326 = vunpack.c.h.b16 %v3383
        %v4327 = vunpack.c.l.b16 %v3384
        %v4328 = vunpack.c.h.b16 %v3384
        %v4329 = vunpack.c.l.b16 %v3385
        %v4330 = vunpack.c.h.b16 %v3385
        %v4331 = vunpack.c.l.b16 %v3386
        %v4332 = vunpack.c.h.b16 %v3386
        %v4333 = vunpack.c.l.b16 %v3387
        %v4334 = vunpack.c.h.b16 %v3387
        %v4335 = vunpack.c.l.b16 %v3388
        %v4336 = vunpack.c.h.b16 %v3388
        %v4337 = vunpack.c.l.b16 %v3389
        %v4338 = vunpack.c.h.b16 %v3389
        %v4339 = vunpack.c.l.b16 %v3390
        %v4340 = vunpack.c.h.b16 %v3390
        %v4341 = vunpack.c.l.b16 %v3391
        %v4342 = vunpack.c.h.b16 %v3391
        %v4343 = vunpack.c.l.b16 %v3392
        %v4344 = vunpack.c.h.b16 %v3392
        %v4345 = vunpack.c.l.b16 %v3393
        %v4346 = vunpack.c.h.b16 %v3393
        %v4347 = vunpack.c.l.b16 %v3394
        %v4348 = vunpack.c.h.b16 %v3394
        %v4349 = vunpack.c.l.b16 %v3395
        %v4350 = vunpack.c.h.b16 %v3395
        %v4351 = vunpack.c.l.b16 %v3396
        %v4352 = vunpack.c.h.b16 %v3396
        %v4353 = vunpack.c.l.b16 %v3397
        %v4354 = vunpack.c.h.b16 %v3397
        %v4355 = vunpack.c.l.b16 %v3398
        %v4356 = vunpack.c.h.b16 %v3398
        %v4357 = vunpack.c.l.b16 %v3399
        %v4358 = vunpack.c.h.b16 %v3399
        %v4359 = vunpack.c.l.b16 %v3400
        %v4360 = vunpack.c.h.b16 %v3400
        %v4361 = vunpack.c.l.b16 %v3401
        %v4362 = vunpack.c.h.b16 %v3401
        %v4363 = vunpack.c.l.b16 %v3402
        %v4364 = vunpack.c.h.b16 %v3402
        %v4365 = vunpack.c.l.b16 %v3403
        %v4366 = vunpack.c.h.b16 %v3403
        %v4367 = vunpack.c.l.b16 %v3404
        %v4368 = vunpack.c.h.b16 %v3404
        %v4369 = vunpack.c.l.b16 %v3405
        %v4370 = vunpack.c.h.b16 %v3405
        %v4371 = vunpack.c.l.b16 %v3406
        %v4372 = vunpack.c.h.b16 %v3406
        %v4373 = vunpack.c.l.b16 %v3407
        %v4374 = vunpack.c.h.b16 %v3407
        %v4375 = vunpack.c.l.b16 %v3408
        %v4376 = vunpack.c.h.b16 %v3408
        %v4377 = vunpack.c.l.b16 %v3409
        %v4378 = vunpack.c.h.b16 %v3409
        %v4379 = vunpack.c.l.b16 %v3410
        %v4380 = vunpack.c.h.b16 %v3410
        %v4381 = vunpack.c.l.b16 %v3411
        %v4382 = vunpack.c.h.b16 %v3411
        %v4383 = vunpack.c.l.b16 %v3412
        %v4384 = vunpack.c.h.b16 %v3412
        %v4385 = vunpack.c.l.b16 %v3413
        %v4386 = vunpack.c.h.b16 %v3413
        %v4387 = vunpack.c.l.b16 %v3414
        %v4388 = vunpack.c.h.b16 %v3414
        %v4389 = vunpack.c.l.b16 %v3415
        %v4390 = vunpack.c.h.b16 %v3415
        %v4391 = vunpack.c.l.b16 %v3416
        %v4392 = vunpack.c.h.b16 %v3416
        %v4393 = vunpack.c.l.b16 %v3417
        %v4394 = vunpack.c.h.b16 %v3417
        %v4395 = vunpack.c.l.b16 %v3418
        %v4396 = vunpack.c.h.b16 %v3418
        %v4397 = vunpack.c.l.b16 %v3419
        %v4398 = vunpack.c.h.b16 %v3419
        %v4399 = vunpack.c.l.b16 %v3420
        %v4400 = vunpack.c.h.b16 %v3420
        %v4401 = vunpack.c.l.b16 %v3421
        %v4402 = vunpack.c.h.b16 %v3421
        %v4403 = vunpack.c.l.b16 %v3422
        %v4404 = vunpack.c.h.b16 %v3422
        %v4405 = vunpack.c.l.b16 %v3423
        %v4406 = vunpack.c.h.b16 %v3423
        %v4407 = vunpack.c.l.b16 %v3424
        %v4408 = vunpack.c.h.b16 %v3424
        %v4409 = vunpack.c.l.b16 %v3425
        %v4410 = vunpack.c.h.b16 %v3425
        %v4411 = vunpack.c.l.b16 %v3426
        %v4412 = vunpack.c.h.b16 %v3426
        %v4413 = vunpack.c.l.b16 %v3427
        %v4414 = vunpack.c.h.b16 %v3427
        %v4415 = vunpack.c.l.b16 %v3428
        %v4416 = vunpack.c.h.b16 %v3428
        %v4417 = vunpack.c.l.b16 %v3429
        %v4418 = vunpack.c.h.b16 %v3429
        %v4419 = vunpack.c.l.b16 %v3430
        %v4420 = vunpack.c.h.b16 %v3430
        %v4421 = vunpack.c.l.b16 %v3431
        %v4422 = vunpack.c.h.b16 %v3431
        %v4423 = vunpack.c.l.b16 %v3432
        %v4424 = vunpack.c.h.b16 %v3432
        %v4425 = vunpack.c.l.b16 %v3433
        %v4426 = vunpack.c.h.b16 %v3433
        %v4427 = vunpack.c.l.b16 %v3434
        %v4428 = vunpack.c.h.b16 %v3434
        %v4429 = vunpack.c.l.b16 %v3435
        %v4430 = vunpack.c.h.b16 %v3435
        %v4431 = vunpack.c.l.b16 %v3436
        %v4432 = vunpack.c.h.b16 %v3436
        %v4433 = vunpack.c.l.b16 %v3437
        %v4434 = vunpack.c.h.b16 %v3437
        %v4435 = vunpack.c.l.b16 %v3438
        %v4436 = vunpack.c.h.b16 %v3438
        %v4437 = vunpack.c.l.b16 %v3439
        %v4438 = vunpack.c.h.b16 %v3439
        %v4439 = vunpack.c.l.b16 %v3440
        %v4440 = vunpack.c.h.b16 %v3440
        %v4441 = vunpack.c.l.b16 %v3441
        %v4442 = vunpack.c.h.b16 %v3441
        %v4443 = vunpack.c.l.b16 %v3442
        %v4444 = vunpack.c.h.b16 %v3442
        %v4445 = vunpack.c.l.b16 %v3443
        %v4446 = vunpack.c.h.b16 %v3443
        %v4447 = vunpack.c.l.b16 %v3444
        %v4448 = vunpack.c.h.b16 %v3444
        %v4449 = vunpack.c.l.b16 %v3445
        %v4450 = vunpack.c.h.b16 %v3445
        %v4451 = vunpack.c.l.b16 %v3446
        %v4452 = vunpack.c.h.b16 %v3446
        %v4453 = vunpack.c.l.b16 %v3447
        %v4454 = vunpack.c.h.b16 %v3447
        %v4455 = vunpack.c.l.b16 %v3448
        %v4456 = vunpack.c.h.b16 %v3448
        %v4457 = vunpack.c.l.b16 %v3449
        %v4458 = vunpack.c.h.b16 %v3449
        %v4459 = vunpack.c.l.b16 %v3450
        %v4460 = vunpack.c.h.b16 %v3450
        %v4461 = vunpack.c.l.b16 %v3451
        %v4462 = vunpack.c.h.b16 %v3451
        %v4463 = vunpack.c.l.b16 %v3452
        %v4464 = vunpack.c.h.b16 %v3452
        %v4465 = vunpack.c.l.b16 %v3453
        %v4466 = vunpack.c.h.b16 %v3453
        %v4467 = vunpack.c.l.b16 %v3454
        %v4468 = vunpack.c.h.b16 %v3454
        %v4469 = vunpack.c.l.b16 %v3455
        %v4470 = vunpack.c.h.b16 %v3455
        %v4471 = vunpack.c.l.b16 %v3456
        %v4472 = vunpack.c.h.b16 %v3456
        %v4473 = vunpack.c.l.b16 %v3457
        %v4474 = vunpack.c.h.b16 %v3457
        %v4475 = vunpack.c.l.b16 %v3458
        %v4476 = vunpack.c.h.b16 %v3458
        %v4477 = vunpack.c.l.b16 %v3459
        %v4478 = vunpack.c.h.b16 %v3459
        %v4479 = vunpack.c.l.b16 %v3460
        %v4480 = vunpack.c.h.b16 %v3460
        %v4481 = vunpack.c.l.b16 %v3461
        %v4482 = vunpack.c.h.b16 %v3461
        %v4483 = vunpack.c.l.b16 %v3462
        %v4484 = vunpack.c.h.b16 %v3462
        %v4485 = vunpack.c.l.b16 %v3463
        %v4486 = vunpack.c.h.b16 %v3463
        %v4487 = vunpack.c.l.b16 %v3464
        %v4488 = vunpack.c.h.b16 %v3464
        %v4489 = vunpack.c.l.b16 %v3465
        %v4490 = vunpack.c.h.b16 %v3465
        %v4491 = vunpack.c.l.b16 %v3466
        %v4492 = vunpack.c.h.b16 %v3466
        %v4493 = vunpack.c.l.b16 %v3467
        %v4494 = vunpack.c.h.b16 %v3467
        %v4495 = vunpack.c.l.b16 %v3468
        %v4496 = vunpack.c.h.b16 %v3468
        %v4497 = vunpack.c.l.b16 %v3469
        %v4498 = vunpack.c.h.b16 %v3469
        %v4499 = vunpack.c.l.b16 %v3470
        %v4500 = vunpack.c.h.b16 %v3470
        %v4501 = vunpack.c.l.b16 %v3471
        %v4502 = vunpack.c.h.b16 %v3471
        %v4503 = vunpack.c.l.b16 %v3472
        %v4504 = vunpack.c.h.b16 %v3472
        %v4505 = vunpack.c.l.b16 %v3473
        %v4506 = vunpack.c.h.b16 %v3473
        %v4507 = vunpack.c.l.b16 %v3474
        %v4508 = vunpack.c.h.b16 %v3474
        %v4509 = vunpack.c.l.b16 %v3475
        %v4510 = vunpack.c.h.b16 %v3475
        %v4511 = vunpack.c.l.b16 %v3476
        %v4512 = vunpack.c.h.b16 %v3476
        %v4513 = vunpack.c.l.b16 %v3477
        %v4514 = vunpack.c.h.b16 %v3477
        %v4515 = vunpack.c.l.b16 %v3478
        %v4516 = vunpack.c.h.b16 %v3478
        %v4517 = vunpack.c.l.b16 %v3479
        %v4518 = vunpack.c.h.b16 %v3479
        %v4519 = vunpack.c.l.b16 %v3480
        %v4520 = vunpack.c.h.b16 %v3480
        %v4521 = vunpack.c.l.b16 %v3481
        %v4522 = vunpack.c.h.b16 %v3481
        %v4523 = vunpack.c.l.b16 %v3482
        %v4524 = vunpack.c.h.b16 %v3482
        %v4525 = vunpack.c.l.b16 %v3483
        %v4526 = vunpack.c.h.b16 %v3483
        %v4527 = vunpack.c.l.b16 %v3484
        %v4528 = vunpack.c.h.b16 %v3484
        %v4529 = vunpack.c.l.b16 %v3485
        %v4530 = vunpack.c.h.b16 %v3485
        %v4531 = vunpack.c.l.b16 %v3486
        %v4532 = vunpack.c.h.b16 %v3486
        %v4533 = vunpack.c.l.b16 %v3487
        %v4534 = vunpack.c.h.b16 %v3487
        %v4535 = vunpack.c.l.b16 %v3488
        %v4536 = vunpack.c.h.b16 %v3488
        %v4537 = vunpack.c.l.b16 %v3489
        %v4538 = vunpack.c.h.b16 %v3489
        %v4539 = vunpack.c.l.b16 %v3490
        %v4540 = vunpack.c.h.b16 %v3490
        %v4541 = vunpack.c.l.b16 %v3491
        %v4542 = vunpack.c.h.b16 %v3491
        %v4543 = vunpack.c.l.b16 %v3492
        %v4544 = vunpack.c.h.b16 %v3492
        %v4545 = vunpack.c.l.b16 %v3493
        %v4546 = vunpack.c.h.b16 %v3493
        %v4547 = vunpack.c.l.b16 %v3494
        %v4548 = vunpack.c.h.b16 %v3494
        %v4549 = vunpack.c.l.b16 %v3495
        %v4550 = vunpack.c.h.b16 %v3495
        %v4551 = vunpack.c.l.b16 %v3496
        %v4552 = vunpack.c.h.b16 %v3496
        %v4553 = vunpack.c.l.b16 %v3497
        %v4554 = vunpack.c.h.b16 %v3497
        %v4555 = vunpack.c.l.b16 %v3498
        %v4556 = vunpack.c.h.b16 %v3498
        %v4557 = vunpack.c.l.b16 %v3499
        %v4558 = vunpack.c.h.b16 %v3499
        %v4559 = vunpack.c.l.b16 %v3500
        %v4560 = vunpack.c.h.b16 %v3500
        %v4561 = vunpack.c.l.b16 %v3501
        %v4562 = vunpack.c.h.b16 %v3501
        %v4563 = vunpack.c.l.b16 %v3502
        %v4564 = vunpack.c.h.b16 %v3502
        %v4565 = vunpack.c.l.b16 %v3503
        %v4566 = vunpack.c.h.b16 %v3503
        %v4567 = vunpack.c.l.b16 %v3504
        %v4568 = vunpack.c.h.b16 %v3504
        %v4569 = vunpack.c.l.b16 %v3505
        %v4570 = vunpack.c.h.b16 %v3505
        %v4571 = vunpack.c.l.b16 %v3506
        %v4572 = vunpack.c.h.b16 %v3506
        %v4573 = vunpack.c.l.b16 %v3507
        %v4574 = vunpack.c.h.b16 %v3507
        %v4575 = vunpack.c.l.b16 %v3508
        %v4576 = vunpack.c.h.b16 %v3508
        %v4577 = vunpack.c.l.b16 %v3509
        %v4578 = vunpack.c.h.b16 %v3509
        %v4579 = vunpack.c.l.b16 %v3510
        %v4580 = vunpack.c.h.b16 %v3510
        %v4581 = vunpack.c.l.b16 %v3511
        %v4582 = vunpack.c.h.b16 %v3511
        %v4583 = vunpack.c.l.b16 %v3512
        %v4584 = vunpack.c.h.b16 %v3512
        %v4585 = vunpack.c.l.b16 %v3513
        %v4586 = vunpack.c.h.b16 %v3513
        %v4587 = vunpack.c.l.b16 %v3514
        %v4588 = vunpack.c.h.b16 %v3514
        %v4589 = vunpack.c.l.b16 %v3515
        %v4590 = vunpack.c.h.b16 %v3515
        %v4591 = vunpack.c.l.b16 %v3516
        %v4592 = vunpack.c.h.b16 %v3516
        %v4593 = vunpack.c.l.b16 %v3517
        %v4594 = vunpack.c.h.b16 %v3517
        %v4595 = vunpack.c.l.b16 %v3518
        %v4596 = vunpack.c.h.b16 %v3518
        %v4597 = vunpack.c.l.b16 %v3519
        %v4598 = vunpack.c.h.b16 %v3519
        %v4599 = vunpack.c.l.b16 %v3520
        %v4600 = vunpack.c.h.b16 %v3520
        %v4601 = vunpack.c.l.b16 %v3521
        %v4602 = vunpack.c.h.b16 %v3521
        %v4603 = vunpack.c.l.b16 %v3522
        %v4604 = vunpack.c.h.b16 %v3522
        %v4605 = vunpack.c.l.b16 %v3523
        %v4606 = vunpack.c.h.b16 %v3523
        %v4607 = vunpack.c.l.b16 %v3524
        %v4608 = vunpack.c.h.b16 %v3524
        %v4609 = vunpack.c.l.b16 %v3525
        %v4610 = vunpack.c.h.b16 %v3525
        %v4611 = vunpack.c.l.b16 %v3526
        %v4612 = vunpack.c.h.b16 %v3526
        %v4613 = vunpack.c.l.b16 %v3527
        %v4614 = vunpack.c.h.b16 %v3527
        %v4615 = vunpack.c.l.b16 %v3528
        %v4616 = vunpack.c.h.b16 %v3528
        %v4617 = vunpack.c.l.b16 %v3529
        %v4618 = vunpack.c.h.b16 %v3529
        %v4619 = vunpack.c.l.b16 %v3530
        %v4620 = vunpack.c.h.b16 %v3530
        %v4621 = vunpack.c.l.b16 %v3531
        %v4622 = vunpack.c.h.b16 %v3531
        %v4623 = vunpack.c.l.b16 %v3532
        %v4624 = vunpack.c.h.b16 %v3532
        %v4625 = vunpack.c.l.b16 %v3533
        %v4626 = vunpack.c.h.b16 %v3533
        %v4627 = vunpack.c.l.b16 %v3534
        %v4628 = vunpack.c.h.b16 %v3534
        %v4629 = vunpack.c.l.b16 %v3535
        %v4630 = vunpack.c.h.b16 %v3535
        %v4631 = vunpack.c.l.b16 %v3536
        %v4632 = vunpack.c.h.b16 %v3536
        %v4633 = vunpack.c.l.b16 %v3537
        %v4634 = vunpack.c.h.b16 %v3537
        %v4635 = vunpack.c.l.b16 %v3538
        %v4636 = vunpack.c.h.b16 %v3538
        %v4637 = vunpack.c.l.b16 %v3539
        %v4638 = vunpack.c.h.b16 %v3539
        %v4639 = vunpack.c.l.b16 %v3540
        %v4640 = vunpack.c.h.b16 %v3540
        %v4641 = vunpack.c.l.b16 %v3541
        %v4642 = vunpack.c.h.b16 %v3541
        %v4643 = vunpack.c.l.b16 %v3542
        %v4644 = vunpack.c.h.b16 %v3542
        %v4645 = vunpack.c.l.b16 %v3543
        %v4646 = vunpack.c.h.b16 %v3543
        %v4647 = vunpack.c.l.b16 %v3544
        %v4648 = vunpack.c.h.b16 %v3544
        %v4649 = vunpack.c.l.b16 %v3545
        %v4650 = vunpack.c.h.b16 %v3545
        %v4651 = vunpack.c.l.b16 %v3546
        %v4652 = vunpack.c.h.b16 %v3546
        %v4653 = vunpack.c.l.b16 %v3547
        %v4654 = vunpack.c.h.b16 %v3547
        %v4655 = vunpack.c.l.b16 %v3548
        %v4656 = vunpack.c.h.b16 %v3548
        %v4657 = vunpack.c.l.b16 %v3549
        %v4658 = vunpack.c.h.b16 %v3549
        %v4659 = vunpack.c.l.b16 %v3550
        %v4660 = vunpack.c.h.b16 %v3550
        %v4661 = vunpack.c.l.b16 %v3551
        %v4662 = vunpack.c.h.b16 %v3551
        %v4663 = vunpack.c.l.b16 %v3552
        %v4664 = vunpack.c.h.b16 %v3552
        %v4665 = vunpack.c.l.b16 %v3553
        %v4666 = vunpack.c.h.b16 %v3553
        %v4667 = vunpack.c.l.b16 %v3554
        %v4668 = vunpack.c.h.b16 %v3554
        %v4669 = vunpack.c.l.b16 %v3555
        %v4670 = vunpack.c.h.b16 %v3555
        %v4671 = vunpack.c.l.b16 %v3556
        %v4672 = vunpack.c.h.b16 %v3556
        %v4673 = vunpack.c.l.b16 %v3557
        %v4674 = vunpack.c.h.b16 %v3557
        %v4675 = vunpack.c.l.b16 %v3558
        %v4676 = vunpack.c.h.b16 %v3558
        %v4677 = vunpack.c.l.b16 %v3559
        %v4678 = vunpack.c.h.b16 %v3559
        %v4679 = vunpack.c.l.b16 %v3560
        %v4680 = vunpack.c.h.b16 %v3560
        %v4681 = vunpack.c.l.b16 %v3561
        %v4682 = vunpack.c.h.b16 %v3561
        %v4683 = vunpack.c.l.b16 %v3562
        %v4684 = vunpack.c.h.b16 %v3562
        %v4685 = vunpack.c.l.b16 %v3563
        %v4686 = vunpack.c.h.b16 %v3563
        %v4687 = vunpack.c.l.b16 %v3564
        %v4688 = vunpack.c.h.b16 %v3564
        %v4689 = vunpack.c.l.b16 %v3565
        %v4690 = vunpack.c.h.b16 %v3565
        %v4691 = vunpack.c.l.b16 %v3566
        %v4692 = vunpack.c.h.b16 %v3566
        %v4693 = vunpack.c.l.b16 %v3567
        %v4694 = vunpack.c.h.b16 %v3567
        %v4695 = vunpack.c.l.b16 %v3568
        %v4696 = vunpack.c.h.b16 %v3568
        %v4697 = vunpack.c.l.b16 %v3569
        %v4698 = vunpack.c.h.b16 %v3569
        %v4699 = vunpack.c.l.b16 %v3570
        %v4700 = vunpack.c.h.b16 %v3570
        %v4701 = vunpack.c.l.b16 %v3571
        %v4702 = vunpack.c.h.b16 %v3571
        %v4703 = vunpack.c.l.b16 %v3572
        %v4704 = vunpack.c.h.b16 %v3572
        %v4705 = vunpack.c.l.b16 %v3573
        %v4706 = vunpack.c.h.b16 %v3573
        %v4707 = vunpack.c.l.b16 %v3574
        %v4708 = vunpack.c.h.b16 %v3574
        %v4709 = vunpack.c.l.b16 %v3575
        %v4710 = vunpack.c.h.b16 %v3575
        %v4711 = vunpack.c.l.b16 %v3576
        %v4712 = vunpack.c.h.b16 %v3576
        %v4713 = vunpack.c.l.b16 %v3577
        %v4714 = vunpack.c.h.b16 %v3577
        %v4715 = vunpack.c.l.b16 %v3578
        %v4716 = vunpack.c.h.b16 %v3578
        %v4717 = vunpack.c.l.b16 %v3579
        %v4718 = vunpack.c.h.b16 %v3579
        %v4719 = vunpack.c.l.b16 %v3580
        %v4720 = vunpack.c.h.b16 %v3580
        %v4721 = vunpack.c.l.b16 %v3581
        %v4722 = vunpack.c.h.b16 %v3581
        %v4723 = vunpack.c.l.b16 %v3582
        %v4724 = vunpack.c.h.b16 %v3582
        %v4725 = vunpack.c.l.b16 %v3583
        %v4726 = vunpack.c.h.b16 %v3583
        %v4727 = vunpack.c.l.b16 %v3584
        %v4728 = vunpack.c.h.b16 %v3584
        %v4729 = vunpack.c.l.b16 %v3585
        %v4730 = vunpack.c.h.b16 %v3585
        %v4731 = vunpack.c.l.b16 %v3586
        %v4732 = vunpack.c.h.b16 %v3586
        %v4733 = vunpack.c.l.b16 %v3587
        %v4734 = vunpack.c.h.b16 %v3587
        %v4735 = vunpack.c.l.b16 %v3588
        %v4736 = vunpack.c.h.b16 %v3588
        %v4737 = vunpack.c.l.b16 %v3589
        %v4738 = vunpack.c.h.b16 %v3589
        %v4739 = vunpack.c.l.b16 %v3590
        %v4740 = vunpack.c.h.b16 %v3590
        %v4741 = vunpack.c.l.b16 %v3591
        %v4742 = vunpack.c.h.b16 %v3591
        %v4743 = vunpack.c.l.b16 %v3592
        %v4744 = vunpack.c.h.b16 %v3592
        %v4745 = vunpack.c.l.b16 %v3593
        %v4746 = vunpack.c.h.b16 %v3593
        %v4747 = vunpack.c.l.b16 %v3594
        %v4748 = vunpack.c.h.b16 %v3594
        %v4749 = vunpack.c.l.b16 %v3595
        %v4750 = vunpack.c.h.b16 %v3595
        %v4751 = vunpack.c.l.b16 %v3596
        %v4752 = vunpack.c.h.b16 %v3596
        %v4753 = vunpack.c.l.b16 %v3597
        %v4754 = vunpack.c.h.b16 %v3597
        %v4755 = vunpack.c.l.b16 %v3598
        %v4756 = vunpack.c.h.b16 %v3598
        %v4757 = vunpack.c.l.b16 %v3599
        %v4758 = vunpack.c.h.b16 %v3599
        %v4759 = vunpack.c.l.b16 %v3600
        %v4760 = vunpack.c.h.b16 %v3600
        %v4761 = vunpack.c.l.b16 %v3601
        %v4762 = vunpack.c.h.b16 %v3601
        %v4763 = vunpack.c.l.b16 %v3602
        %v4764 = vunpack.c.h.b16 %v3602
        %v4765 = vunpack.c.l.b16 %v3603
        %v4766 = vunpack.c.h.b16 %v3603
        %v4767 = vunpack.c.l.b16 %v3604
        %v4768 = vunpack.c.h.b16 %v3604
        %v4769 = vunpack.c.l.b16 %v3605
        %v4770 = vunpack.c.h.b16 %v3605
        %v4771 = vunpack.c.l.b16 %v3606
        %v4772 = vunpack.c.h.b16 %v3606
        %v4773 = vunpack.c.l.b16 %v3607
        %v4774 = vunpack.c.h.b16 %v3607
        %v4775 = vunpack.c.l.b16 %v3608
        %v4776 = vunpack.c.h.b16 %v3608
        %v4777 = vunpack.c.l.b16 %v3609
        %v4778 = vunpack.c.h.b16 %v3609
        %v4779 = vunpack.c.l.b16 %v3610
        %v4780 = vunpack.c.h.b16 %v3610
        %v4781 = vunpack.c.l.b16 %v3611
        %v4782 = vunpack.c.h.b16 %v3611
        %v4783 = vunpack.c.l.b16 %v3612
        %v4784 = vunpack.c.h.b16 %v3612
        %v4785 = vunpack.c.l.b16 %v3613
        %v4786 = vunpack.c.h.b16 %v3613
        %v4787 = vunpack.c.l.b16 %v3614
        %v4788 = vunpack.c.h.b16 %v3614
        %v4789 = vunpack.c.l.b16 %v3615
        %v4790 = vunpack.c.h.b16 %v3615
        %v4791 = vunpack.c.l.b16 %v3616
        %v4792 = vunpack.c.h.b16 %v3616
        %v4793 = vunpack.c.l.b16 %v3617
        %v4794 = vunpack.c.h.b16 %v3617
        %v4795 = vunpack.c.l.b16 %v3618
        %v4796 = vunpack.c.h.b16 %v3618
        %v4797 = vunpack.c.l.b16 %v3619
        %v4798 = vunpack.c.h.b16 %v3619
        %v4799 = vunpack.c.l.b16 %v3620
        %v4800 = vunpack.c.h.b16 %v3620
        %v4801 = vunpack.c.l.b16 %v3621
        %v4802 = vunpack.c.h.b16 %v3621
        %v4803 = vunpack.c.l.b16 %v3622
        %v4804 = vunpack.c.h.b16 %v3622
        %v4805 = vunpack.c.l.b16 %v3623
        %v4806 = vunpack.c.h.b16 %v3623
        %v4807 = vunpack.c.l.b16 %v3624
        %v4808 = vunpack.c.h.b16 %v3624
        %v4809 = vunpack.c.l.b16 %v3625
        %v4810 = vunpack.c.h.b16 %v3625
        %v4811 = vunpack.c.l.b16 %v3626
        %v4812 = vunpack.c.h.b16 %v3626
        %v4813 = vunpack.c.l.b16 %v3627
        %v4814 = vunpack.c.h.b16 %v3627
        %v4815 = vunpack.c.l.b16 %v3628
        %v4816 = vunpack.c.h.b16 %v3628
        %v4817 = vunpack.c.l.b16 %v3629
        %v4818 = vunpack.c.h.b16 %v3629
        %v4819 = vunpack.c.l.b16 %v3630
        %v4820 = vunpack.c.h.b16 %v3630
        %v4821 = vunpack.c.l.b16 %v3631
        %v4822 = vunpack.c.h.b16 %v3631
        %v4823 = vunpack.c.l.b16 %v3632
        %v4824 = vunpack.c.h.b16 %v3632
        %v4825 = vunpack.c.l.b16 %v3633
        %v4826 = vunpack.c.h.b16 %v3633
        %v4827 = vunpack.c.l.b16 %v3634
        %v4828 = vunpack.c.h.b16 %v3634
        %v4829 = vunpack.c.l.b16 %v3635
        %v4830 = vunpack.c.h.b16 %v3635
        %v4831 = vunpack.c.l.b16 %v3636
        %v4832 = vunpack.c.h.b16 %v3636
        %v4833 = vunpack.c.l.b16 %v3637
        %v4834 = vunpack.c.h.b16 %v3637
        %v4835 = vunpack.c.l.b16 %v3638
        %v4836 = vunpack.c.h.b16 %v3638
        %v4837 = vunpack.c.l.b16 %v3639
        %v4838 = vunpack.c.h.b16 %v3639
        %v4839 = vunpack.c.l.b16 %v3640
        %v4840 = vunpack.c.h.b16 %v3640
        %v4841 = vunpack.c.l.b16 %v3641
        %v4842 = vunpack.c.h.b16 %v3641
        %v4843 = vunpack.c.l.b16 %v3642
        %v4844 = vunpack.c.h.b16 %v3642
        %v4845 = vunpack.c.l.b16 %v3643
        %v4846 = vunpack.c.h.b16 %v3643
        %v4847 = vunpack.c.l.b16 %v3644
        %v4848 = vunpack.c.h.b16 %v3644
        %v4849 = vunpack.c.l.b16 %v3645
        %v4850 = vunpack.c.h.b16 %v3645
        %v4851 = vunpack.c.l.b16 %v3646
        %v4852 = vunpack.c.h.b16 %v3646
        %v4853 = vunpack.c.l.b16 %v3647
        %v4854 = vunpack.c.h.b16 %v3647
        %v4855 = vunpack.c.l.b16 %v3648
        %v4856 = vunpack.c.h.b16 %v3648
        %v4857 = vunpack.c.l.b16 %v3649
        %v4858 = vunpack.c.h.b16 %v3649
        %v4859 = vunpack.c.l.b16 %v3650
        %v4860 = vunpack.c.h.b16 %v3650
        %v4861 = vunpack.c.l.b16 %v3651
        %v4862 = vunpack.c.h.b16 %v3651
        %v4863 = vunpack.c.l.b16 %v3652
        %v4864 = vunpack.c.h.b16 %v3652
        %v4865 = vunpack.c.l.b16 %v3653
        %v4866 = vunpack.c.h.b16 %v3653
        %v4867 = vunpack.c.l.b16 %v3654
        %v4868 = vunpack.c.h.b16 %v3654
        %v4869 = vunpack.c.l.b16 %v3655
        %v4870 = vunpack.c.h.b16 %v3655
        %v4871 = vunpack.c.l.b16 %v3656
        %v4872 = vunpack.c.h.b16 %v3656
        %v4873 = vunpack.c.l.b16 %v3657
        %v4874 = vunpack.c.h.b16 %v3657
        %v4875 = vunpack.c.l.b16 %v3658
        %v4876 = vunpack.c.h.b16 %v3658
        %v4877 = vunpack.c.l.b16 %v3659
        %v4878 = vunpack.c.h.b16 %v3659
        %v4879 = vunpack.c.l.b16 %v3660
        %v4880 = vunpack.c.h.b16 %v3660
        %v4881 = vunpack.c.l.b16 %v3661
        %v4882 = vunpack.c.h.b16 %v3661
        %v4883 = vunpack.c.l.b16 %v3662
        %v4884 = vunpack.c.h.b16 %v3662
        %v4885 = vunpack.c.l.b16 %v3663
        %v4886 = vunpack.c.h.b16 %v3663
        %v4887 = vunpack.c.l.b16 %v3664
        %v4888 = vunpack.c.h.b16 %v3664
        %v4889 = vunpack.c.l.b16 %v3665
        %v4890 = vunpack.c.h.b16 %v3665
        %v4891 = vunpack.c.l.b16 %v3666
        %v4892 = vunpack.c.h.b16 %v3666
        %v4893 = vunpack.c.l.b16 %v3667
        %v4894 = vunpack.c.h.b16 %v3667
        %v4895 = vunpack.c.l.b16 %v3668
        %v4896 = vunpack.c.h.b16 %v3668
        %v4897 = vunpack.c.l.b16 %v3669
        %v4898 = vunpack.c.h.b16 %v3669
        %v4899 = vunpack.c.l.b16 %v3670
        %v4900 = vunpack.c.h.b16 %v3670
        %v4901 = vunpack.c.l.b16 %v3671
        %v4902 = vunpack.c.h.b16 %v3671
        %v4903 = vunpack.c.l.b16 %v3672
        %v4904 = vunpack.c.h.b16 %v3672
        %v4905 = vunpack.c.l.b16 %v3673
        %v4906 = vunpack.c.h.b16 %v3673
        %v4907 = vunpack.c.l.b16 %v3674
        %v4908 = vunpack.c.h.b16 %v3674
        %v4909 = vunpack.c.l.b16 %v3675
        %v4910 = vunpack.c.h.b16 %v3675
        %v4911 = vunpack.c.l.b16 %v3676
        %v4912 = vunpack.c.h.b16 %v3676
        %v4913 = vunpack.c.l.b16 %v3677
        %v4914 = vunpack.c.h.b16 %v3677
        %v4915 = vunpack.c.l.b16 %v3678
        %v4916 = vunpack.c.h.b16 %v3678
        %v4917 = vunpack.c.l.b16 %v3679
        %v4918 = vunpack.c.h.b16 %v3679
        %v4919 = vunpack.c.l.b16 %v3680
        %v4920 = vunpack.c.h.b16 %v3680
        %v4921 = vunpack.c.l.b16 %v3681
        %v4922 = vunpack.c.h.b16 %v3681
        %v4923 = vunpack.c.l.b16 %v3682
        %v4924 = vunpack.c.h.b16 %v3682
        %v4925 = vunpack.c.l.b16 %v3683
        %v4926 = vunpack.c.h.b16 %v3683
        %v4927 = vunpack.c.l.b16 %v3684
        %v4928 = vunpack.c.h.b16 %v3684
        %v4929 = vunpack.c.l.b16 %v3685
        %v4930 = vunpack.c.h.b16 %v3685
        %v4931 = vunpack.c.l.b16 %v3686
        %v4932 = vunpack.c.h.b16 %v3686
        %v4933 = vunpack.c.l.b16 %v3687
        %v4934 = vunpack.c.h.b16 %v3687
        %v4935 = vunpack.c.l.b16 %v3688
        %v4936 = vunpack.c.h.b16 %v3688
        %v4937 = vunpack.c.l.b16 %v3689
        %v4938 = vunpack.c.h.b16 %v3689
        %v4939 = vunpack.c.l.b16 %v3690
        %v4940 = vunpack.c.h.b16 %v3690
        %v4941 = vunpack.c.l.b16 %v3691
        %v4942 = vunpack.c.h.b16 %v3691
        %v4943 = vunpack.c.l.b16 %v3692
        %v4944 = vunpack.c.h.b16 %v3692
        %v4945 = vunpack.c.l.b16 %v3693
        %v4946 = vunpack.c.h.b16 %v3693
        %v4947 = vunpack.c.l.b16 %v3694
        %v4948 = vunpack.c.h.b16 %v3694
        %v4949 = vunpack.c.l.b16 %v3695
        %v4950 = vunpack.c.h.b16 %v3695
        %v4951 = vunpack.c.l.b16 %v3696
        %v4952 = vunpack.c.h.b16 %v3696
        %v4953 = vunpack.c.l.b16 %v3697
        %v4954 = vunpack.c.h.b16 %v3697
        %v4955 = vunpack.c.l.b16 %v3698
        %v4956 = vunpack.c.h.b16 %v3698
        %v4957 = vunpack.c.l.b16 %v3699
        %v4958 = vunpack.c.h.b16 %v3699
        %v4959 = vunpack.c.l.b16 %v3700
        %v4960 = vunpack.c.h.b16 %v3700
        %v4961 = vunpack.c.l.b16 %v3701
        %v4962 = vunpack.c.h.b16 %v3701
        %v4963 = vunpack.c.l.b16 %v3702
        %v4964 = vunpack.c.h.b16 %v3702
        %v4965 = vunpack.c.l.b16 %v3703
        %v4966 = vunpack.c.h.b16 %v3703
        %v4967 = vunpack.c.l.b16 %v3704
        %v4968 = vunpack.c.h.b16 %v3704
        %v4969 = vunpack.c.l.b16 %v3705
        %v4970 = vunpack.c.h.b16 %v3705
        %v4971 = vunpack.c.l.b16 %v3706
        %v4972 = vunpack.c.h.b16 %v3706
        %v4973 = vunpack.c.l.b16 %v3707
        %v4974 = vunpack.c.h.b16 %v3707
        %v4975 = vunpack.c.l.b16 %v3708
        %v4976 = vunpack.c.h.b16 %v3708
        %v4977 = vunpack.c.l.b16 %v3709
        %v4978 = vunpack.c.h.b16 %v3709
        %v4979 = vunpack.c.l.b16 %v3710
        %v4980 = vunpack.c.h.b16 %v3710
        %v4981 = vunpack.c.l.b16 %v3711
        %v4982 = vunpack.c.h.b16 %v3711
        %v4983 = vunpack.c.l.b16 %v3712
        %v4984 = vunpack.c.h.b16 %v3712
        %v4985 = vunpack.c.l.b16 %v3713
        %v4986 = vunpack.c.h.b16 %v3713
        %v4987 = vunpack.c.l.b16 %v3714
        %v4988 = vunpack.c.h.b16 %v3714
        %v4989 = vunpack.c.l.b16 %v3715
        %v4990 = vunpack.c.h.b16 %v3715
        %v4991 = vunpack.c.l.b16 %v3716
        %v4992 = vunpack.c.h.b16 %v3716
        %v4993 = vunpack.c.l.b16 %v3717
        %v4994 = vunpack.c.h.b16 %v3717
        %v4995 = vunpack.c.l.b16 %v3718
        %v4996 = vunpack.c.h.b16 %v3718
        %v4997 = vunpack.c.l.b16 %v3719
        %v4998 = vunpack.c.h.b16 %v3719
        %v4999 = vunpack.c.l.b16 %v3720
        %v5000 = vunpack.c.h.b16 %v3720
        %v5001 = vunpack.c.l.b16 %v3721
        %v5002 = vunpack.c.h.b16 %v3721
        %v5003 = vunpack.c.l.b16 %v3722
        %v5004 = vunpack.c.h.b16 %v3722
        %v5005 = vunpack.c.l.b16 %v3723
        %v5006 = vunpack.c.h.b16 %v3723
        %v5007 = vunpack.c.l.b16 %v3724
        %v5008 = vunpack.c.h.b16 %v3724
        %v5009 = vunpack.c.l.b16 %v3725
        %v5010 = vunpack.c.h.b16 %v3725
        %v5011 = vunpack.c.l.b16 %v3726
        %v5012 = vunpack.c.h.b16 %v3726
        %v5013 = vunpack.c.l.b16 %v3727
        %v5014 = vunpack.c.h.b16 %v3727
        %v5015 = vunpack.c.l.b16 %v3728
        %v5016 = vunpack.c.h.b16 %v3728
        %v5017 = vunpack.c.l.b16 %v3729
        %v5018 = vunpack.c.h.b16 %v3729
        %v5019 = vunpack.c.l.b16 %v3730
        %v5020 = vunpack.c.h.b16 %v3730
        %v5021 = vunpack.c.l.b16 %v3731
        %v5022 = vunpack.c.h.b16 %v3731
        %v5023 = vunpack.c.l.b16 %v3732
        %v5024 = vunpack.c.h.b16 %v3732
        %v5025 = vunpack.c.l.b16 %v3733
        %v5026 = vunpack.c.h.b16 %v3733
        %v5027 = vunpack.c.l.b16 %v3734
        %v5028 = vunpack.c.h.b16 %v3734
        %v5029 = vunpack.c.l.b16 %v3735
        %v5030 = vunpack.c.h.b16 %v3735
        %v5031 = vunpack.c.l.b16 %v3736
        %v5032 = vunpack.c.h.b16 %v3736
        %v5033 = vpack.c.b16 %v4185, %v4169
        %v5034 = vpack.c.b16 %v4186, %v4170
        %v5035 = vpack.c.b16 %v4187, %v4171
        %v5036 = vpack.c.b16 %v4188, %v4172
        %v5037 = vpack.c.b16 %v4189, %v4173
        %v5038 = vpack.c.b16 %v4190, %v4174
        %v5039 = vpack.c.b16 %v4191, %v4175
        %v5040 = vpack.c.b16 %v4192, %v4176
        %v5041 = vpack.c.b16 %v4193, %v4177
        %v5042 = vpack.c.b16 %v4194, %v4178
        %v5043 = vpack.c.b16 %v4195, %v4179
        %v5044 = vpack.c.b16 %v4196, %v4180
        %v5045 = vpack.c.b16 %v4197, %v4181
        %v5046 = vpack.c.b16 %v4198, %v4182
        %v5047 = vpack.c.b16 %v4199, %v4183
        %v5048 = vpack.c.b16 %v4200, %v4184
        %v5049 = vpack.c.b16 %v4217, %v4201
        %v5050 = vpack.c.b16 %v4218, %v4202
        %v5051 = vpack.c.b16 %v4219, %v4203
        %v5052 = vpack.c.b16 %v4220, %v4204
        %v5053 = vpack.c.b16 %v4221, %v4205
        %v5054 = vpack.c.b16 %v4222, %v4206
        %v5055 = vpack.c.b16 %v4223, %v4207
        %v5056 = vpack.c.b16 %v4224, %v4208
        %v5057 = vpack.c.b16 %v4225, %v4209
        %v5058 = vpack.c.b16 %v4226, %v4210
        %v5059 = vpack.c.b16 %v4227, %v4211
        %v5060 = vpack.c.b16 %v4228, %v4212
        %v5061 = vpack.c.b16 %v4229, %v4213
        %v5062 = vpack.c.b16 %v4230, %v4214
        %v5063 = vpack.c.b16 %v4231, %v4215
        %v5064 = vpack.c.b16 %v4232, %v4216
        %v5065 = vpack.c.b16 %v4249, %v4233
        %v5066 = vpack.c.b16 %v4250, %v4234
        %v5067 = vpack.c.b16 %v4251, %v4235
        %v5068 = vpack.c.b16 %v4252, %v4236
        %v5069 = vpack.c.b16 %v4253, %v4237
        %v5070 = vpack.c.b16 %v4254, %v4238
        %v5071 = vpack.c.b16 %v4255, %v4239
        %v5072 = vpack.c.b16 %v4256, %v4240
        %v5073 = vpack.c.b16 %v4257, %v4241
        %v5074 = vpack.c.b16 %v4258, %v4242
        %v5075 = vpack.c.b16 %v4259, %v4243
        %v5076 = vpack.c.b16 %v4260, %v4244
        %v5077 = vpack.c.b16 %v4261, %v4245
        %v5078 = vpack.c.b16 %v4262, %v4246
        %v5079 = vpack.c.b16 %v4263, %v4247
        %v5080 = vpack.c.b16 %v4264, %v4248
        %v5081 = vpack.c.b16 %v4281, %v4265
        %v5082 = vpack.c.b16 %v4282, %v4266
        %v5083 = vpack.c.b16 %v4283, %v4267
        %v5084 = vpack.c.b16 %v4284, %v4268
        %v5085 = vpack.c.b16 %v4285, %v4269
        %v5086 = vpack.c.b16 %v4286, %v4270
        %v5087 = vpack.c.b16 %v4287, %v4271
        %v5088 = vpack.c.b16 %v4288, %v4272
        %v5089 = vpack.c.b16 %v4289, %v4273
        %v5090 = vpack.c.b16 %v4290, %v4274
        %v5091 = vpack.c.b16 %v4291, %v4275
        %v5092 = vpack.c.b16 %v4292, %v4276
        %v5093 = vpack.c.b16 %v4293, %v4277
        %v5094 = vpack.c.b16 %v4294, %v4278
        %v5095 = vpack.c.b16 %v4295, %v4279
        %v5096 = vpack.c.b16 %v4296, %v4280
        %v5097 = vpack.c.b16 %v4313, %v4297
        %v5098 = vpack.c.b16 %v4314, %v4298
        %v5099 = vpack.c.b16 %v4315, %v4299
        %v5100 = vpack.c.b16 %v4316, %v4300
        %v5101 = vpack.c.b16 %v4317, %v4301
        %v5102 = vpack.c.b16 %v4318, %v4302
        %v5103 = vpack.c.b16 %v4319, %v4303
        %v5104 = vpack.c.b16 %v4320, %v4304
        %v5105 = vpack.c.b16 %v4321, %v4305
        %v5106 = vpack.c.b16 %v4322, %v4306
        %v5107 = vpack.c.b16 %v4323, %v4307
        %v5108 = vpack.c.b16 %v4324, %v4308
        %v5109 = vpack.c.b16 %v4325, %v4309
        %v5110 = vpack.c.b16 %v4326, %v4310
        %v5111 = vpack.c.b16 %v4327, %v4311
        %v5112 = vpack.c.b16 %v4328, %v4312
        %v5113 = vpack.c.b16 %v4345, %v4329
        %v5114 = vpack.c.b16 %v4346, %v4330
        %v5115 = vpack.c.b16 %v4347, %v4331
        %v5116 = vpack.c.b16 %v4348, %v4332
        %v5117 = vpack.c.b16 %v4349, %v4333
        %v5118 = vpack.c.b16 %v4350, %v4334
        %v5119 = vpack.c.b16 %v4351, %v4335
        %v5120 = vpack.c.b16 %v4352, %v4336
        %v5121 = vpack.c.b16 %v4353, %v4337
        %v5122 = vpack.c.b16 %v4354, %v4338
        %v5123 = vpack.c.b16 %v4355, %v4339
        %v5124 = vpack.c.b16 %v4356, %v4340
        %v5125 = vpack.c.b16 %v4357, %v4341
        %v5126 = vpack.c.b16 %v4358, %v4342
        %v5127 = vpack.c.b16 %v4359, %v4343
        %v5128 = vpack.c.b16 %v4360, %v4344
        %v5129 = vpack.c.b16 %v4377, %v4361
        %v5130 = vpack.c.b16 %v4378, %v4362
        %v5131 = vpack.c.b16 %v4379, %v4363
        %v5132 = vpack.c.b16 %v4380, %v4364
        %v5133 = vpack.c.b16 %v4381, %v4365
        %v5134 = vpack.c.b16 %v4382, %v4366
        %v5135 = vpack.c.b16 %v4383, %v4367
        %v5136 = vpack.c.b16 %v4384, %v4368
        %v5137 = vpack.c.b16 %v4385, %v4369
        %v5138 = vpack.c.b16 %v4386, %v4370
        %v5139 = vpack.c.b16 %v4387, %v4371
        %v5140 = vpack.c.b16 %v4388, %v4372
        %v5141 = vpack.c.b16 %v4389, %v4373
        %v5142 = vpack.c.b16 %v4390, %v4374
        %v5143 = vpack.c.b16 %v4391, %v4375
        %v5144 = vpack.c.b16 %v4392, %v4376
        %v5145 = vpack.c.b16 %v4409, %v4393
        %v5146 = vpack.c.b16 %v4410, %v4394
        %v5147 = vpack.c.b16 %v4411, %v4395
        %v5148 = vpack.c.b16 %v4412, %v4396
        %v5149 = vpack.c.b16 %v4413, %v4397
        %v5150 = vpack.c.b16 %v4414, %v4398
        %v5151 = vpack.c.b16 %v4415, %v4399
        %v5152 = vpack.c.b16 %v4416, %v4400
        %v5153 = vpack.c.b16 %v4417, %v4401
        %v5154 = vpack.c.b16 %v4418, %v4402
        %v5155 = vpack.c.b16 %v4419, %v4403
        %v5156 = vpack.c.b16 %v4420, %v4404
        %v5157 = vpack.c.b16 %v4421, %v4405
        %v5158 = vpack.c.b16 %v4422, %v4406
        %v5159 = vpack.c.b16 %v4423, %v4407
        %v5160 = vpack.c.b16 %v4424, %v4408
        %v5161 = vpack.c.b16 %v4441, %v4425
        %v5162 = vpack.c.b16 %v4442, %v4426
        %v5163 = vpack.c.b16 %v4443, %v4427
        %v5164 = vpack.c.b16 %v4444, %v4428
        %v5165 = vpack.c.b16 %v4445, %v4429
        %v5166 = vpack.c.b16 %v4446, %v4430
        %v5167 = vpack.c.b16 %v4447, %v4431
        %v5168 = vpack.c.b16 %v4448, %v4432
        %v5169 = vpack.c.b16 %v4449, %v4433
        %v5170 = vpack.c.b16 %v4450, %v4434
        %v5171 = vpack.c.b16 %v4451, %v4435
        %v5172 = vpack.c.b16 %v4452, %v4436
        %v5173 = vpack.c.b16 %v4453, %v4437
        %v5174 = vpack.c.b16 %v4454, %v4438
        %v5175 = vpack.c.b16 %v4455, %v4439
        %v5176 = vpack.c.b16 %v4456, %v4440
        %v5177 = vpack.c.b16 %v4473, %v4457
        %v5178 = vpack.c.b16 %v4474, %v4458
        %v5179 = vpack.c.b16 %v4475, %v4459
        %v5180 = vpack.c.b16 %v4476, %v4460
        %v5181 = vpack.c.b16 %v4477, %v4461
        %v5182 = vpack.c.b16 %v4478, %v4462
        %v5183 = vpack.c.b16 %v4479, %v4463
        %v5184 = vpack.c.b16 %v4480, %v4464
        %v5185 = vpack.c.b16 %v4481, %v4465
        %v5186 = vpack.c.b16 %v4482, %v4466
        %v5187 = vpack.c.b16 %v4483, %v4467
        %v5188 = vpack.c.b16 %v4484, %v4468
        %v5189 = vpack.c.b16 %v4485, %v4469
        %v5190 = vpack.c.b16 %v4486, %v4470
        %v5191 = vpack.c.b16 %v4487, %v4471
        %v5192 = vpack.c.b16 %v4488, %v4472
        %v5193 = vpack.c.b16 %v4505, %v4489
        %v5194 = vpack.c.b16 %v4506, %v4490
        %v5195 = vpack.c.b16 %v4507, %v4491
        %v5196 = vpack.c.b16 %v4508, %v4492
        %v5197 = vpack.c.b16 %v4509, %v4493
        %v5198 = vpack.c.b16 %v4510, %v4494
        %v5199 = vpack.c.b16 %v4511, %v4495
        %v5200 = vpack.c.b16 %v4512, %v4496
        %v5201 = vpack.c.b16 %v4513, %v4497
        %v5202 = vpack.c.b16 %v4514, %v4498
        %v5203 = vpack.c.b16 %v4515, %v4499
        %v5204 = vpack.c.b16 %v4516, %v4500
        %v5205 = vpack.c.b16 %v4517, %v4501
        %v5206 = vpack.c.b16 %v4518, %v4502
        %v5207 = vpack.c.b16 %v4519, %v4503
        %v5208 = vpack.c.b16 %v4520, %v4504
        %v5209 = vpack.c.b16 %v4537, %v4521
        %v5210 = vpack.c.b16 %v4538, %v4522
        %v5211 = vpack.c.b16 %v4539, %v4523
        %v5212 = vpack.c.b16 %v4540, %v4524
        %v5213 = vpack.c.b16 %v4541, %v4525
        %v5214 = vpack.c.b16 %v4542, %v4526
        %v5215 = vpack.c.b16 %v4543, %v4527
        %v5216 = vpack.c.b16 %v4544, %v4528
        %v5217 = vpack.c.b16 %v4545, %v4529
        %v5218 = vpack.c.b16 %v4546, %v4530
        %v5219 = vpack.c.b16 %v4547, %v4531
        %v5220 = vpack.c.b16 %v4548, %v4532
        %v5221 = vpack.c.b16 %v4549, %v4533
        %v5222 = vpack.c.b16 %v4550, %v4534
        %v5223 = vpack.c.b16 %v4551, %v4535
        %v5224 = vpack.c.b16 %v4552, %v4536
        %v5225 = vpack.c.b16 %v4569, %v4553
        %v5226 = vpack.c.b16 %v4570, %v4554
        %v5227 = vpack.c.b16 %v4571, %v4555
        %v5228 = vpack.c.b16 %v4572, %v4556
        %v5229 = vpack.c.b16 %v4573, %v4557
        %v5230 = vpack.c.b16 %v4574, %v4558
        %v5231 = vpack.c.b16 %v4575, %v4559
        %v5232 = vpack.c.b16 %v4576, %v4560
        %v5233 = vpack.c.b16 %v4577, %v4561
        %v5234 = vpack.c.b16 %v4578, %v4562
        %v5235 = vpack.c.b16 %v4579, %v4563
        %v5236 = vpack.c.b16 %v4580, %v4564
        %v5237 = vpack.c.b16 %v4581, %v4565
        %v5238 = vpack.c.b16 %v4582, %v4566
        %v5239 = vpack.c.b16 %v4583, %v4567
        %v5240 = vpack.c.b16 %v4584, %v4568
        %v5241 = vpack.c.b16 %v4601, %v4585
        %v5242 = vpack.c.b16 %v4602, %v4586
        %v5243 = vpack.c.b16 %v4603, %v4587
        %v5244 = vpack.c.b16 %v4604, %v4588
        %v5245 = vpack.c.b16 %v4605, %v4589
        %v5246 = vpack.c.b16 %v4606, %v4590
        %v5247 = vpack.c.b16 %v4607, %v4591
        %v5248 = vpack.c.b16 %v4608, %v4592
        %v5249 = vpack.c.b16 %v4609, %v4593
        %v5250 = vpack.c.b16 %v4610, %v4594
        %v5251 = vpack.c.b16 %v4611, %v4595
        %v5252 = vpack.c.b16 %v4612, %v4596
        %v5253 = vpack.c.b16 %v4613, %v4597
        %v5254 = vpack.c.b16 %v4614, %v4598
        %v5255 = vpack.c.b16 %v4615, %v4599
        %v5256 = vpack.c.b16 %v4616, %v4600
        %v5257 = vpack.c.b16 %v4633, %v4617
        %v5258 = vpack.c.b16 %v4634, %v4618
        %v5259 = vpack.c.b16 %v4635, %v4619
        %v5260 = vpack.c.b16 %v4636, %v4620
        %v5261 = vpack.c.b16 %v4637, %v4621
        %v5262 = vpack.c.b16 %v4638, %v4622
        %v5263 = vpack.c.b16 %v4639, %v4623
        %v5264 = vpack.c.b16 %v4640, %v4624
        %v5265 = vpack.c.b16 %v4641, %v4625
        %v5266 = vpack.c.b16 %v4642, %v4626
        %v5267 = vpack.c.b16 %v4643, %v4627
        %v5268 = vpack.c.b16 %v4644, %v4628
        %v5269 = vpack.c.b16 %v4645, %v4629
        %v5270 = vpack.c.b16 %v4646, %v4630
        %v5271 = vpack.c.b16 %v4647, %v4631
        %v5272 = vpack.c.b16 %v4648, %v4632
        %v5273 = vpack.c.b16 %v4665, %v4649
        %v5274 = vpack.c.b16 %v4666, %v4650
        %v5275 = vpack.c.b16 %v4667, %v4651
        %v5276 = vpack.c.b16 %v4668, %v4652
        %v5277 = vpack.c.b16 %v4669, %v4653
        %v5278 = vpack.c.b16 %v4670, %v4654
        %v5279 = vpack.c.b16 %v4671, %v4655
        %v5280 = vpack.c.b16 %v4672, %v4656
        %v5281 = vpack.c.b16 %v4673, %v4657
        %v5282 = vpack.c.b16 %v4674, %v4658
        %v5283 = vpack.c.b16 %v4675, %v4659
        %v5284 = vpack.c.b16 %v4676, %v4660
        %v5285 = vpack.c.b16 %v4677, %v4661
        %v5286 = vpack.c.b16 %v4678, %v4662
        %v5287 = vpack.c.b16 %v4679, %v4663
        %v5288 = vpack.c.b16 %v4680, %v4664
        %v5289 = vpack.c.b16 %v4697, %v4681
        %v5290 = vpack.c.b16 %v4698, %v4682
        %v5291 = vpack.c.b16 %v4699, %v4683
        %v5292 = vpack.c.b16 %v4700, %v4684
        %v5293 = vpack.c.b16 %v4701, %v4685
        %v5294 = vpack.c.b16 %v4702, %v4686
        %v5295 = vpack.c.b16 %v4703, %v4687
        %v5296 = vpack.c.b16 %v4704, %v4688
        %v5297 = vpack.c.b16 %v4705, %v4689
        %v5298 = vpack.c.b16 %v4706, %v4690
        %v5299 = vpack.c.b16 %v4707, %v4691
        %v5300 = vpack.c.b16 %v4708, %v4692
        %v5301 = vpack.c.b16 %v4709, %v4693
        %v5302 = vpack.c.b16 %v4710, %v4694
        %v5303 = vpack.c.b16 %v4711, %v4695
        %v5304 = vpack.c.b16 %v4712, %v4696
        %v5305 = vpack.c.b16 %v4729, %v4713
        %v5306 = vpack.c.b16 %v4730, %v4714
        %v5307 = vpack.c.b16 %v4731, %v4715
        %v5308 = vpack.c.b16 %v4732, %v4716
        %v5309 = vpack.c.b16 %v4733, %v4717
        %v5310 = vpack.c.b16 %v4734, %v4718
        %v5311 = vpack.c.b16 %v4735, %v4719
        %v5312 = vpack.c.b16 %v4736, %v4720
        %v5313 = vpack.c.b16 %v4737, %v4721
        %v5314 = vpack.c.b16 %v4738, %v4722
        %v5315 = vpack.c.b16 %v4739, %v4723
        %v5316 = vpack.c.b16 %v4740, %v4724
        %v5317 = vpack.c.b16 %v4741, %v4725
        %v5318 = vpack.c.b16 %v4742, %v4726
        %v5319 = vpack.c.b16 %v4743, %v4727
        %v5320 = vpack.c.b16 %v4744, %v4728
        %v5321 = vpack.c.b16 %v4761, %v4745
        %v5322 = vpack.c.b16 %v4762, %v4746
        %v5323 = vpack.c.b16 %v4763, %v4747
        %v5324 = vpack.c.b16 %v4764, %v4748
        %v5325 = vpack.c.b16 %v4765, %v4749
        %v5326 = vpack.c.b16 %v4766, %v4750
        %v5327 = vpack.c.b16 %v4767, %v4751
        %v5328 = vpack.c.b16 %v4768, %v4752
        %v5329 = vpack.c.b16 %v4769, %v4753
        %v5330 = vpack.c.b16 %v4770, %v4754
        %v5331 = vpack.c.b16 %v4771, %v4755
        %v5332 = vpack.c.b16 %v4772, %v4756
        %v5333 = vpack.c.b16 %v4773, %v4757
        %v5334 = vpack.c.b16 %v4774, %v4758
        %v5335 = vpack.c.b16 %v4775, %v4759
        %v5336 = vpack.c.b16 %v4776, %v4760
        %v5337 = vpack.c.b16 %v4793, %v4777
        %v5338 = vpack.c.b16 %v4794, %v4778
        %v5339 = vpack.c.b16 %v4795, %v4779
        %v5340 = vpack.c.b16 %v4796, %v4780
        %v5341 = vpack.c.b16 %v4797, %v4781
        %v5342 = vpack.c.b16 %v4798, %v4782
        %v5343 = vpack.c.b16 %v4799, %v4783
        %v5344 = vpack.c.b16 %v4800, %v4784
        %v5345 = vpack.c.b16 %v4801, %v4785
        %v5346 = vpack.c.b16 %v4802, %v4786
        %v5347 = vpack.c.b16 %v4803, %v4787
        %v5348 = vpack.c.b16 %v4804, %v4788
        %v5349 = vpack.c.b16 %v4805, %v4789
        %v5350 = vpack.c.b16 %v4806, %v4790
        %v5351 = vpack.c.b16 %v4807, %v4791
        %v5352 = vpack.c.b16 %v4808, %v4792
        %v5353 = vpack.c.b16 %v4825, %v4809
        %v5354 = vpack.c.b16 %v4826, %v4810
        %v5355 = vpack.c.b16 %v4827, %v4811
        %v5356 = vpack.c.b16 %v4828, %v4812
        %v5357 = vpack.c.b16 %v4829, %v4813
        %v5358 = vpack.c.b16 %v4830, %v4814
        %v5359 = vpack.c.b16 %v4831, %v4815
        %v5360 = vpack.c.b16 %v4832, %v4816
        %v5361 = vpack.c.b16 %v4833, %v4817
        %v5362 = vpack.c.b16 %v4834, %v4818
        %v5363 = vpack.c.b16 %v4835, %v4819
        %v5364 = vpack.c.b16 %v4836, %v4820
        %v5365 = vpack.c.b16 %v4837, %v4821
        %v5366 = vpack.c.b16 %v4838, %v4822
        %v5367 = vpack.c.b16 %v4839, %v4823
        %v5368 = vpack.c.b16 %v4840, %v4824
        %v5369 = vpack.c.b16 %v4857, %v4841
        %v5370 = vpack.c.b16 %v4858, %v4842
        %v5371 = vpack.c.b16 %v4859, %v4843
        %v5372 = vpack.c.b16 %v4860, %v4844
        %v5373 = vpack.c.b16 %v4861, %v4845
        %v5374 = vpack.c.b16 %v4862, %v4846
        %v5375 = vpack.c.b16 %v4863, %v4847
        %v5376 = vpack.c.b16 %v4864, %v4848
        %v5377 = vpack.c.b16 %v4865, %v4849
        %v5378 = vpack.c.b16 %v4866, %v4850
        %v5379 = vpack.c.b16 %v4867, %v4851
        %v5380 = vpack.c.b16 %v4868, %v4852
        %v5381 = vpack.c.b16 %v4869, %v4853
        %v5382 = vpack.c.b16 %v4870, %v4854
        %v5383 = vpack.c.b16 %v4871, %v4855
        %v5384 = vpack.c.b16 %v4872, %v4856
        %v5385 = vpack.c.b16 %v4889, %v4873
        %v5386 = vpack.c.b16 %v4890, %v4874
        %v5387 = vpack.c.b16 %v4891, %v4875
        %v5388 = vpack.c.b16 %v4892, %v4876
        %v5389 = vpack.c.b16 %v4893, %v4877
        %v5390 = vpack.c.b16 %v4894, %v4878
        %v5391 = vpack.c.b16 %v4895, %v4879
        %v5392 = vpack.c.b16 %v4896, %v4880
        %v5393 = vpack.c.b16 %v4897, %v4881
        %v5394 = vpack.c.b16 %v4898, %v4882
        %v5395 = vpack.c.b16 %v4899, %v4883
        %v5396 = vpack.c.b16 %v4900, %v4884
        %v5397 = vpack.c.b16 %v4901, %v4885
        %v5398 = vpack.c.b16 %v4902, %v4886
        %v5399 = vpack.c.b16 %v4903, %v4887
        %v5400 = vpack.c.b16 %v4904, %v4888
        %v5401 = vpack.c.b16 %v4921, %v4905
        %v5402 = vpack.c.b16 %v4922, %v4906
        %v5403 = vpack.c.b16 %v4923, %v4907
        %v5404 = vpack.c.b16 %v4924, %v4908
        %v5405 = vpack.c.b16 %v4925, %v4909
        %v5406 = vpack.c.b16 %v4926, %v4910
        %v5407 = vpack.c.b16 %v4927, %v4911
        %v5408 = vpack.c.b16 %v4928, %v4912
        %v5409 = vpack.c.b16 %v4929, %v4913
        %v5410 = vpack.c.b16 %v4930, %v4914
        %v5411 = vpack.c.b16 %v4931, %v4915
        %v5412 = vpack.c.b16 %v4932, %v4916
        %v5413 = vpack.c.b16 %v4933, %v4917
        %v5414 = vpack.c.b16 %v4934, %v4918
        %v5415 = vpack.c.b16 %v4935, %v4919
        %v5416 = vpack.c.b16 %v4936, %v4920
        %v5417 = vpack.c.b16 %v4953, %v4937
        %v5418 = vpack.c.b16 %v4954, %v4938
        %v5419 = vpack.c.b16 %v4955, %v4939
        %v5420 = vpack.c.b16 %v4956, %v4940
        %v5421 = vpack.c.b16 %v4957, %v4941
        %v5422 = vpack.c.b16 %v4958, %v4942
        %v5423 = vpack.c.b16 %v4959, %v4943
        %v5424 = vpack.c.b16 %v4960, %v4944
        %v5425 = vpack.c.b16 %v4961, %v4945
        %v5426 = vpack.c.b16 %v4962, %v4946
        %v5427 = vpack.c.b16 %v4963, %v4947
        %v5428 = vpack.c.b16 %v4964, %v4948
        %v5429 = vpack.c.b16 %v4965, %v4949
        %v5430 = vpack.c.b16 %v4966, %v4950
        %v5431 = vpack.c.b16 %v4967, %v4951
        %v5432 = vpack.c.b16 %v4968, %v4952
        %v5433 = vpack.c.b16 %v4985, %v4969
        %v5434 = vpack.c.b16 %v4986, %v4970
        %v5435 = vpack.c.b16 %v4987, %v4971
        %v5436 = vpack.c.b16 %v4988, %v4972
        %v5437 = vpack.c.b16 %v4989, %v4973
        %v5438 = vpack.c.b16 %v4990, %v4974
        %v5439 = vpack.c.b16 %v4991, %v4975
        %v5440 = vpack.c.b16 %v4992, %v4976
        %v5441 = vpack.c.b16 %v4993, %v4977
        %v5442 = vpack.c.b16 %v4994, %v4978
        %v5443 = vpack.c.b16 %v4995, %v4979
        %v5444 = vpack.c.b16 %v4996, %v4980
        %v5445 = vpack.c.b16 %v4997, %v4981
        %v5446 = vpack.c.b16 %v4998, %v4982
        %v5447 = vpack.c.b16 %v4999, %v4983
        %v5448 = vpack.c.b16 %v5000, %v4984
        %v5449 = vpack.c.b16 %v5017, %v5001
        %v5450 = vpack.c.b16 %v5018, %v5002
        %v5451 = vpack.c.b16 %v5019, %v5003
        %v5452 = vpack.c.b16 %v5020, %v5004
        %v5453 = vpack.c.b16 %v5021, %v5005
        %v5454 = vpack.c.b16 %v5022, %v5006
        %v5455 = vpack.c.b16 %v5023, %v5007
        %v5456 = vpack.c.b16 %v5024, %v5008
        %v5457 = vpack.c.b16 %v5025, %v5009
        %v5458 = vpack.c.b16 %v5026, %v5010
        %v5459 = vpack.c.b16 %v5027, %v5011
        %v5460 = vpack.c.b16 %v5028, %v5012
        %v5461 = vpack.c.b16 %v5029, %v5013
        %v5462 = vpack.c.b16 %v5030, %v5014
        %v5463 = vpack.c.b16 %v5031, %v5015
        %v5464 = vpack.c.b16 %v5032, %v5016
        %v5898 = vsel %vm1585, %v3300, 0
        %v5901 = vsel %vm1585, %v3304, 0
        %5903 = vmatprep.subr.bf16.mxu0 %v5034
        %5904 = vmatpush1.bf16.msra.mxu0 %v5033
        %5905 = vmatprep.subr.bf16.mxu0 %v5050
        %5906 = vmatpush1.bf16.msra.mxu0 %v5049
        %5907 = vmatprep.subr.bf16.mxu0 %v5066
        %5908 = vmatpush1.bf16.msra.mxu0 %v5065
        %5909 = vmatprep.subr.bf16.mxu0 %v5082
        %5910 = vmatpush1.bf16.msra.mxu0 %v5081
        %5911 = vmatprep.subr.bf16.mxu0 %v5098
        %5912 = vmatpush1.bf16.msra.mxu0 %v5097
        %5913 = vmatprep.subr.bf16.mxu0 %v5114
        %5914 = vmatpush1.bf16.msra.mxu0 %v5113
        %5915 = vmatprep.subr.bf16.mxu0 %v5130
        %5916 = vmatpush1.bf16.msra.mxu0 %v5129
        %5917 = vmatprep.subr.bf16.mxu0 %v5146
        %5918 = vmatpush1.bf16.msra.mxu0 %v5145
        %5919 = vmatprep.subr.bf16.mxu0 %v5162
        %5920 = vmatpush1.bf16.msra.mxu0 %v5161
        %5921 = vmatprep.subr.bf16.mxu0 %v5178
        %5922 = vmatpush1.bf16.msra.mxu0 %v5177
        %5923 = vmatprep.subr.bf16.mxu0 %v5194
        %5924 = vmatpush1.bf16.msra.mxu0 %v5193
        %5925 = vmatprep.subr.bf16.mxu0 %v5210
        %5926 = vmatpush1.bf16.msra.mxu0 %v5209
        %5927 = vmatprep.subr.bf16.mxu0 %v5226
        %5928 = vmatpush1.bf16.msra.mxu0 %v5225
        %5929 = vmatprep.subr.bf16.mxu0 %v5242
        %5930 = vmatpush1.bf16.msra.mxu0 %v5241
        %5931 = vmatprep.subr.bf16.mxu0 %v5258
        %5932 = vmatpush1.bf16.msra.mxu0 %v5257
        %5933 = vmatprep.subr.bf16.mxu0 %v5274
        %5934 = vmatpush1.bf16.msra.mxu0 %v5273
        %5935 = vmatprep.mubr.bf16.mxu0 %v3298
        %5936 = vmatmul.mubr.bf16.gmra.mrb[0].mxu0 %v3297
        %v5937 = vpop.f32.mrb[0].mxu0
        %v5938 = vadd.f32 0.0, %v5937
        %v5939 = vpop.f32.mrb[0].mxu0
        %v5940 = vadd.f32 0.0, %v5939
        %v5941 = vpop.f32.mrb[0].mxu0
        %v5942 = vadd.f32 0.0, %v5941
        %v5943 = vpop.f32.mrb[0].mxu0
        %v5944 = vadd.f32 0.0, %v5943
        %5945 = vmatprep.mubr.bf16.mxu0 %v3302
        %5946 = vmatmul.mubr.bf16.gmra.mrb[0].mxu0 %v3301
        %v5947 = vpop.f32.mrb[0].mxu0
        %v5948 = vadd.f32 0.0, %v5947
        %v5949 = vpop.f32.mrb[0].mxu0
        %v5950 = vadd.f32 0.0, %v5949
        %v5951 = vpop.f32.mrb[0].mxu0
        %v5952 = vpop.f32.mrb[0].mxu0
        %5953 = vdwg.mxu0
        %5954 = vmatprep.subr.bf16.mxu0 %v5290
        %5955 = vmatpush1.bf16.msra.mxu0 %v5289
        %5956 = vmatprep.subr.bf16.mxu0 %v5306
        %5957 = vmatpush1.bf16.msra.mxu0 %v5305
        %5958 = vmatprep.subr.bf16.mxu0 %v5322
        %5959 = vmatpush1.bf16.msra.mxu0 %v5321
        %5960 = vmatprep.subr.bf16.mxu0 %v5338
        %5961 = vmatpush1.bf16.msra.mxu0 %v5337
        %5962 = vmatprep.subr.bf16.mxu0 %v5354
        %5963 = vmatpush1.bf16.msra.mxu0 %v5353
        %5964 = vmatprep.subr.bf16.mxu0 %v5370
        %5965 = vmatpush1.bf16.msra.mxu0 %v5369
        %5966 = vmatprep.subr.bf16.mxu0 %v5386
        %5967 = vmatpush1.bf16.msra.mxu0 %v5385
        %5968 = vmatprep.subr.bf16.mxu0 %v5402
        %5969 = vmatpush1.bf16.msra.mxu0 %v5401
        %5970 = vmatprep.subr.bf16.mxu0 %v5418
        %5971 = vmatpush1.bf16.msra.mxu0 %v5417
        %5972 = vmatprep.subr.bf16.mxu0 %v5434
        %5973 = vmatpush1.bf16.msra.mxu0 %v5433
        %5974 = vmatprep.subr.bf16.mxu0 %v5450
        %5975 = vmatpush1.bf16.msra.mxu0 %v5449
        %5976 = vmatprep.subr.bf16.mxu0 0
        %5977 = vmatpush1.bf16.msra.mxu0 0
        %5978 = vmatprep.subr.bf16.mxu0 0
        %5979 = vmatpush1.bf16.msra.mxu0 0
        %5980 = vmatprep.subr.bf16.mxu0 0
        %5981 = vmatpush1.bf16.msra.mxu0 0
        %5982 = vmatprep.subr.bf16.mxu0 0
        %5983 = vmatpush1.bf16.msra.mxu0 0
        %5984 = vmatprep.subr.bf16.mxu0 0
        %5985 = vmatpush1.bf16.msra.mxu0 0
        %5986 = vmatprep.mubr.bf16.mxu0 %v5898
        %5987 = vmatmul.mubr.bf16.gmra.mrb[0].mxu0 %v3299
        %v5988 = vpop.f32.mrb[0].mxu0
        %v5989 = vadd.f32 %v5938, %v5988
        %v5990 = vpop.f32.mrb[0].mxu0
        %v5991 = vadd.f32 %v5940, %v5990
        %v5992 = vpop.f32.mrb[0].mxu0
        %v5993 = vadd.f32 %v5942, %v5992
        %v5994 = vpop.f32.mrb[0].mxu0
        %v5995 = vadd.f32 %v5944, %v5994
        %5996 = vmatprep.mubr.bf16.mxu0 %v5901
        %5997 = vmatmul.mubr.bf16.gmra.mrb[0].mxu0 %v3303
        %v5998 = vpop.f32.mrb[0].mxu0
        %v5999 = vadd.f32 %v5948, %v5998
        %v6000 = vpop.f32.mrb[0].mxu0
        %v6001 = vadd.f32 %v5950, %v6000
        %v6002 = vpop.f32.mrb[0].mxu0
        %v6003 = vpop.f32.mrb[0].mxu0
        %6004 = vdwg.mxu0
        %6005 = vmatprep.subr.bf16.mxu0 %v5036
        %6006 = vmatpush1.bf16.msra.mxu0 %v5035
        %6007 = vmatprep.subr.bf16.mxu0 %v5052
        %6008 = vmatpush1.bf16.msra.mxu0 %v5051
        %6009 = vmatprep.subr.bf16.mxu0 %v5068
        %6010 = vmatpush1.bf16.msra.mxu0 %v5067
        %6011 = vmatprep.subr.bf16.mxu0 %v5084
        %6012 = vmatpush1.bf16.msra.mxu0 %v5083
        %6013 = vmatprep.subr.bf16.mxu0 %v5100
        %6014 = vmatpush1.bf16.msra.mxu0 %v5099
        %6015 = vmatprep.subr.bf16.mxu0 %v5116
        %6016 = vmatpush1.bf16.msra.mxu0 %v5115
        %6017 = vmatprep.subr.bf16.mxu0 %v5132
        %6018 = vmatpush1.bf16.msra.mxu0 %v5131
        %6019 = vmatprep.subr.bf16.mxu0 %v5148
        %6020 = vmatpush1.bf16.msra.mxu0 %v5147
        %6021 = vmatprep.subr.bf16.mxu0 %v5164
        %6022 = vmatpush1.bf16.msra.mxu0 %v5163
        %6023 = vmatprep.subr.bf16.mxu0 %v5180
        %6024 = vmatpush1.bf16.msra.mxu0 %v5179
        %6025 = vmatprep.subr.bf16.mxu0 %v5196
        %6026 = vmatpush1.bf16.msra.mxu0 %v5195
        %6027 = vmatprep.subr.bf16.mxu0 %v5212
        %6028 = vmatpush1.bf16.msra.mxu0 %v5211
        %6029 = vmatprep.subr.bf16.mxu0 %v5228
        %6030 = vmatpush1.bf16.msra.mxu0 %v5227
        %6031 = vmatprep.subr.bf16.mxu0 %v5244
        %6032 = vmatpush1.bf16.msra.mxu0 %v5243
        %6033 = vmatprep.subr.bf16.mxu0 %v5260
        %6034 = vmatpush1.bf16.msra.mxu0 %v5259
        %6035 = vmatprep.subr.bf16.mxu0 %v5276
        %6036 = vmatpush1.bf16.msra.mxu0 %v5275
        %6037 = vmatprep.mubr.bf16.mxu0 %v3298
        %6038 = vmatmul.mubr.bf16.gmra.mrb[0].mxu0 %v3297
        %v6039 = vpop.f32.mrb[0].mxu0
        %v6040 = vadd.f32 0.0, %v6039
        %v6041 = vpop.f32.mrb[0].mxu0
        %v6042 = vadd.f32 0.0, %v6041
        %v6043 = vpop.f32.mrb[0].mxu0
        %v6044 = vadd.f32 0.0, %v6043
        %v6045 = vpop.f32.mrb[0].mxu0
        %v6046 = vadd.f32 0.0, %v6045
        %6047 = vmatprep.mubr.bf16.mxu0 %v3302
        %6048 = vmatmul.mubr.bf16.gmra.mrb[0].mxu0 %v3301
        %v6049 = vpop.f32.mrb[0].mxu0
        %v6050 = vadd.f32 0.0, %v6049
        %v6051 = vpop.f32.mrb[0].mxu0
        %v6052 = vadd.f32 0.0, %v6051
        %v6053 = vpop.f32.mrb[0].mxu0
        %v6054 = vpop.f32.mrb[0].mxu0
        %6055 = vdwg.mxu0
        %6056 = vmatprep.subr.bf16.mxu0 %v5292
        %6057 = vmatpush1.bf16.msra.mxu0 %v5291
        %6058 = vmatprep.subr.bf16.mxu0 %v5308
        %6059 = vmatpush1.bf16.msra.mxu0 %v5307
        %6060 = vmatprep.subr.bf16.mxu0 %v5324
        %6061 = vmatpush1.bf16.msra.mxu0 %v5323
        %6062 = vmatprep.subr.bf16.mxu0 %v5340
        %6063 = vmatpush1.bf16.msra.mxu0 %v5339
        %6064 = vmatprep.subr.bf16.mxu0 %v5356
        %6065 = vmatpush1.bf16.msra.mxu0 %v5355
        %6066 = vmatprep.subr.bf16.mxu0 %v5372
        %6067 = vmatpush1.bf16.msra.mxu0 %v5371
        %6068 = vmatprep.subr.bf16.mxu0 %v5388
        %6069 = vmatpush1.bf16.msra.mxu0 %v5387
        %6070 = vmatprep.subr.bf16.mxu0 %v5404
        %6071 = vmatpush1.bf16.msra.mxu0 %v5403
        %6072 = vmatprep.subr.bf16.mxu0 %v5420
        %6073 = vmatpush1.bf16.msra.mxu0 %v5419
        %6074 = vmatprep.subr.bf16.mxu0 %v5436
        %6075 = vmatpush1.bf16.msra.mxu0 %v5435
        %6076 = vmatprep.subr.bf16.mxu0 %v5452
        %6077 = vmatpush1.bf16.msra.mxu0 %v5451
        %6078 = vmatprep.subr.bf16.mxu0 0
        %6079 = vmatpush1.bf16.msra.mxu0 0
        %6080 = vmatprep.subr.bf16.mxu0 0
        %6081 = vmatpush1.bf16.msra.mxu0 0
        %6082 = vmatprep.subr.bf16.mxu0 0
        %6083 = vmatpush1.bf16.msra.mxu0 0
        %6084 = vmatprep.subr.bf16.mxu0 0
        %6085 = vmatpush1.bf16.msra.mxu0 0
        %6086 = vmatprep.subr.bf16.mxu0 0
        %6087 = vmatpush1.bf16.msra.mxu0 0
        %6088 = vmatprep.mubr.bf16.mxu0 %v5898
        %6089 = vmatmul.mubr.bf16.gmra.mrb[0].mxu0 %v3299
        %v6090 = vpop.f32.mrb[0].mxu0
        %v6091 = vadd.f32 %v6040, %v6090
        %v6092 = vpop.f32.mrb[0].mxu0
        %v6093 = vadd.f32 %v6042, %v6092
        %v6094 = vpop.f32.mrb[0].mxu0
        %v6095 = vadd.f32 %v6044, %v6094
        %v6096 = vpop.f32.mrb[0].mxu0
        %v6097 = vadd.f32 %v6046, %v6096
        %6098 = vmatprep.mubr.bf16.mxu0 %v5901
        %6099 = vmatmul.mubr.bf16.gmra.mrb[0].mxu0 %v3303
        %v6100 = vpop.f32.mrb[0].mxu0
        %v6101 = vadd.f32 %v6050, %v6100
        %v6102 = vpop.f32.mrb[0].mxu0
        %v6103 = vadd.f32 %v6052, %v6102
        %v6104 = vpop.f32.mrb[0].mxu0
        %v6105 = vpop.f32.mrb[0].mxu0
        %6106 = vdwg.mxu0
        %6107 = vmatprep.subr.bf16.mxu0 %v5038
        %6108 = vmatpush1.bf16.msra.mxu0 %v5037
        %6109 = vmatprep.subr.bf16.mxu0 %v5054
        %6110 = vmatpush1.bf16.msra.mxu0 %v5053
        %6111 = vmatprep.subr.bf16.mxu0 %v5070
        %6112 = vmatpush1.bf16.msra.mxu0 %v5069
        %6113 = vmatprep.subr.bf16.mxu0 %v5086
        %6114 = vmatpush1.bf16.msra.mxu0 %v5085
        %6115 = vmatprep.subr.bf16.mxu0 %v5102
        %6116 = vmatpush1.bf16.msra.mxu0 %v5101
        %6117 = vmatprep.subr.bf16.mxu0 %v5118
        %6118 = vmatpush1.bf16.msra.mxu0 %v5117
        %6119 = vmatprep.subr.bf16.mxu0 %v5134
        %6120 = vmatpush1.bf16.msra.mxu0 %v5133
        %6121 = vmatprep.subr.bf16.mxu0 %v5150
        %6122 = vmatpush1.bf16.msra.mxu0 %v5149
        %6123 = vmatprep.subr.bf16.mxu0 %v5166
        %6124 = vmatpush1.bf16.msra.mxu0 %v5165
        %6125 = vmatprep.subr.bf16.mxu0 %v5182
        %6126 = vmatpush1.bf16.msra.mxu0 %v5181
        %6127 = vmatprep.subr.bf16.mxu0 %v5198
        %6128 = vmatpush1.bf16.msra.mxu0 %v5197
        %6129 = vmatprep.subr.bf16.mxu0 %v5214
        %6130 = vmatpush1.bf16.msra.mxu0 %v5213
        %6131 = vmatprep.subr.bf16.mxu0 %v5230
        %6132 = vmatpush1.bf16.msra.mxu0 %v5229
        %6133 = vmatprep.subr.bf16.mxu0 %v5246
        %6134 = vmatpush1.bf16.msra.mxu0 %v5245
        %6135 = vmatprep.subr.bf16.mxu0 %v5262
        %6136 = vmatpush1.bf16.msra.mxu0 %v5261
        %6137 = vmatprep.subr.bf16.mxu0 %v5278
        %6138 = vmatpush1.bf16.msra.mxu0 %v5277
        %6139 = vmatprep.mubr.bf16.mxu0 %v3298
        %6140 = vmatmul.mubr.bf16.gmra.mrb[0].mxu0 %v3297
        %v6141 = vpop.f32.mrb[0].mxu0
        %v6142 = vadd.f32 0.0, %v6141
        %v6143 = vpop.f32.mrb[0].mxu0
        %v6144 = vadd.f32 0.0, %v6143
        %v6145 = vpop.f32.mrb[0].mxu0
        %v6146 = vadd.f32 0.0, %v6145
        %v6147 = vpop.f32.mrb[0].mxu0
        %v6148 = vadd.f32 0.0, %v6147
        %6149 = vmatprep.mubr.bf16.mxu0 %v3302
        %6150 = vmatmul.mubr.bf16.gmra.mrb[0].mxu0 %v3301
        %v6151 = vpop.f32.mrb[0].mxu0
        %v6152 = vadd.f32 0.0, %v6151
        %v6153 = vpop.f32.mrb[0].mxu0
        %v6154 = vadd.f32 0.0, %v6153
        %v6155 = vpop.f32.mrb[0].mxu0
        %v6156 = vpop.f32.mrb[0].mxu0
        %6157 = vdwg.mxu0
        %6158 = vmatprep.subr.bf16.mxu0 %v5294
        %6159 = vmatpush1.bf16.msra.mxu0 %v5293
        %6160 = vmatprep.subr.bf16.mxu0 %v5310
        %6161 = vmatpush1.bf16.msra.mxu0 %v5309
        %6162 = vmatprep.subr.bf16.mxu0 %v5326
        %6163 = vmatpush1.bf16.msra.mxu0 %v5325
        %6164 = vmatprep.subr.bf16.mxu0 %v5342
        %6165 = vmatpush1.bf16.msra.mxu0 %v5341
        %6166 = vmatprep.subr.bf16.mxu0 %v5358
        %6167 = vmatpush1.bf16.msra.mxu0 %v5357
        %6168 = vmatprep.subr.bf16.mxu0 %v5374
        %6169 = vmatpush1.bf16.msra.mxu0 %v5373
        %6170 = vmatprep.subr.bf16.mxu0 %v5390
        %6171 = vmatpush1.bf16.msra.mxu0 %v5389
        %6172 = vmatprep.subr.bf16.mxu0 %v5406
        %6173 = vmatpush1.bf16.msra.mxu0 %v5405
        %6174 = vmatprep.subr.bf16.mxu0 %v5422
        %6175 = vmatpush1.bf16.msra.mxu0 %v5421
        %6176 = vmatprep.subr.bf16.mxu0 %v5438
        %6177 = vmatpush1.bf16.msra.mxu0 %v5437
        %6178 = vmatprep.subr.bf16.mxu0 %v5454
        %6179 = vmatpush1.bf16.msra.mxu0 %v5453
        %6180 = vmatprep.subr.bf16.mxu0 0
        %6181 = vmatpush1.bf16.msra.mxu0 0
        %6182 = vmatprep.subr.bf16.mxu0 0
        %6183 = vmatpush1.bf16.msra.mxu0 0
        %6184 = vmatprep.subr.bf16.mxu0 0
        %6185 = vmatpush1.bf16.msra.mxu0 0
        %6186 = vmatprep.subr.bf16.mxu0 0
        %6187 = vmatpush1.bf16.msra.mxu0 0
        %6188 = vmatprep.subr.bf16.mxu0 0
        %6189 = vmatpush1.bf16.msra.mxu0 0
        %6190 = vmatprep.mubr.bf16.mxu0 %v5898
        %6191 = vmatmul.mubr.bf16.gmra.mrb[0].mxu0 %v3299
        %v6192 = vpop.f32.mrb[0].mxu0
        %v6193 = vadd.f32 %v6142, %v6192
        %v6194 = vpop.f32.mrb[0].mxu0
        %v6195 = vadd.f32 %v6144, %v6194
        %v6196 = vpop.f32.mrb[0].mxu0
        %v6197 = vadd.f32 %v6146, %v6196
        %v6198 = vpop.f32.mrb[0].mxu0
        %v6199 = vadd.f32 %v6148, %v6198
        %6200 = vmatprep.mubr.bf16.mxu0 %v5901
        %6201 = vmatmul.mubr.bf16.gmra.mrb[0].mxu0 %v3303
        %v6202 = vpop.f32.mrb[0].mxu0
        %v6203 = vadd.f32 %v6152, %v6202
        %v6204 = vpop.f32.mrb[0].mxu0
        %v6205 = vadd.f32 %v6154, %v6204
        %v6206 = vpop.f32.mrb[0].mxu0
        %v6207 = vpop.f32.mrb[0].mxu0
        %6208 = vdwg.mxu0
        %6209 = vmatprep.subr.bf16.mxu0 %v5040
        %6210 = vmatpush1.bf16.msra.mxu0 %v5039
        %6211 = vmatprep.subr.bf16.mxu0 %v5056
        %6212 = vmatpush1.bf16.msra.mxu0 %v5055
        %6213 = vmatprep.subr.bf16.mxu0 %v5072
        %6214 = vmatpush1.bf16.msra.mxu0 %v5071
        %6215 = vmatprep.subr.bf16.mxu0 %v5088
        %6216 = vmatpush1.bf16.msra.mxu0 %v5087
        %6217 = vmatprep.subr.bf16.mxu0 %v5104
        %6218 = vmatpush1.bf16.msra.mxu0 %v5103
        %6219 = vmatprep.subr.bf16.mxu0 %v5120
        %6220 = vmatpush1.bf16.msra.mxu0 %v5119
        %6221 = vmatprep.subr.bf16.mxu0 %v5136
        %6222 = vmatpush1.bf16.msra.mxu0 %v5135
        %6223 = vmatprep.subr.bf16.mxu0 %v5152
        %6224 = vmatpush1.bf16.msra.mxu0 %v5151
        %6225 = vmatprep.subr.bf16.mxu0 %v5168
        %6226 = vmatpush1.bf16.msra.mxu0 %v5167
        %6227 = vmatprep.subr.bf16.mxu0 %v5184
        %6228 = vmatpush1.bf16.msra.mxu0 %v5183
        %6229 = vmatprep.subr.bf16.mxu0 %v5200
        %6230 = vmatpush1.bf16.msra.mxu0 %v5199
        %6231 = vmatprep.subr.bf16.mxu0 %v5216
        %6232 = vmatpush1.bf16.msra.mxu0 %v5215
        %6233 = vmatprep.subr.bf16.mxu0 %v5232
        %6234 = vmatpush1.bf16.msra.mxu0 %v5231
        %6235 = vmatprep.subr.bf16.mxu0 %v5248
        %6236 = vmatpush1.bf16.msra.mxu0 %v5247
        %6237 = vmatprep.subr.bf16.mxu0 %v5264
        %6238 = vmatpush1.bf16.msra.mxu0 %v5263
        %6239 = vmatprep.subr.bf16.mxu0 %v5280
        %6240 = vmatpush1.bf16.msra.mxu0 %v5279
        %6241 = vmatprep.mubr.bf16.mxu0 %v3298
        %6242 = vmatmul.mubr.bf16.gmra.mrb[0].mxu0 %v3297
        %v6243 = vpop.f32.mrb[0].mxu0
        %v6244 = vadd.f32 0.0, %v6243
        %v6245 = vpop.f32.mrb[0].mxu0
        %v6246 = vadd.f32 0.0, %v6245
        %v6247 = vpop.f32.mrb[0].mxu0
        %v6248 = vadd.f32 0.0, %v6247
        %v6249 = vpop.f32.mrb[0].mxu0
        %v6250 = vadd.f32 0.0, %v6249
        %6251 = vmatprep.mubr.bf16.mxu0 %v3302
        %6252 = vmatmul.mubr.bf16.gmra.mrb[0].mxu0 %v3301
        %v6253 = vpop.f32.mrb[0].mxu0
        %v6254 = vadd.f32 0.0, %v6253
        %v6255 = vpop.f32.mrb[0].mxu0
        %v6256 = vadd.f32 0.0, %v6255
        %v6257 = vpop.f32.mrb[0].mxu0
        %v6258 = vpop.f32.mrb[0].mxu0
        %6259 = vdwg.mxu0
        %6260 = vmatprep.subr.bf16.mxu0 %v5296
        %6261 = vmatpush1.bf16.msra.mxu0 %v5295
        %6262 = vmatprep.subr.bf16.mxu0 %v5312
        %6263 = vmatpush1.bf16.msra.mxu0 %v5311
        %6264 = vmatprep.subr.bf16.mxu0 %v5328
        %6265 = vmatpush1.bf16.msra.mxu0 %v5327
        %6266 = vmatprep.subr.bf16.mxu0 %v5344
        %6267 = vmatpush1.bf16.msra.mxu0 %v5343
        %6268 = vmatprep.subr.bf16.mxu0 %v5360
        %6269 = vmatpush1.bf16.msra.mxu0 %v5359
        %6270 = vmatprep.subr.bf16.mxu0 %v5376
        %6271 = vmatpush1.bf16.msra.mxu0 %v5375
        %6272 = vmatprep.subr.bf16.mxu0 %v5392
        %6273 = vmatpush1.bf16.msra.mxu0 %v5391
        %6274 = vmatprep.subr.bf16.mxu0 %v5408
        %6275 = vmatpush1.bf16.msra.mxu0 %v5407
        %6276 = vmatprep.subr.bf16.mxu0 %v5424
        %6277 = vmatpush1.bf16.msra.mxu0 %v5423
        %6278 = vmatprep.subr.bf16.mxu0 %v5440
        %6279 = vmatpush1.bf16.msra.mxu0 %v5439
        %6280 = vmatprep.subr.bf16.mxu0 %v5456
        %6281 = vmatpush1.bf16.msra.mxu0 %v5455
        %6282 = vmatprep.subr.bf16.mxu0 0
        %6283 = vmatpush1.bf16.msra.mxu0 0
        %6284 = vmatprep.subr.bf16.mxu0 0
        %6285 = vmatpush1.bf16.msra.mxu0 0
        %6286 = vmatprep.subr.bf16.mxu0 0
        %6287 = vmatpush1.bf16.msra.mxu0 0
        %6288 = vmatprep.subr.bf16.mxu0 0
        %6289 = vmatpush1.bf16.msra.mxu0 0
        %6290 = vmatprep.subr.bf16.mxu0 0
        %6291 = vmatpush1.bf16.msra.mxu0 0
        %6292 = vmatprep.mubr.bf16.mxu0 %v5898
        %6293 = vmatmul.mubr.bf16.gmra.mrb[0].mxu0 %v3299
        %v6294 = vpop.f32.mrb[0].mxu0
        %v6295 = vadd.f32 %v6244, %v6294
        %v6296 = vpop.f32.mrb[0].mxu0
        %v6297 = vadd.f32 %v6246, %v6296
        %v6298 = vpop.f32.mrb[0].mxu0
        %v6299 = vadd.f32 %v6248, %v6298
        %v6300 = vpop.f32.mrb[0].mxu0
        %v6301 = vadd.f32 %v6250, %v6300
        %6302 = vmatprep.mubr.bf16.mxu0 %v5901
        %6303 = vmatmul.mubr.bf16.gmra.mrb[0].mxu0 %v3303
        %v6304 = vpop.f32.mrb[0].mxu0
        %v6305 = vadd.f32 %v6254, %v6304
        %v6306 = vpop.f32.mrb[0].mxu0
        %v6307 = vadd.f32 %v6256, %v6306
        %v6308 = vpop.f32.mrb[0].mxu0
        %v6309 = vpop.f32.mrb[0].mxu0
        %6310 = vdwg.mxu0
        %6311 = vmatprep.subr.bf16.mxu0 %v5042
        %6312 = vmatpush1.bf16.msra.mxu0 %v5041
        %6313 = vmatprep.subr.bf16.mxu0 %v5058
        %6314 = vmatpush1.bf16.msra.mxu0 %v5057
        %6315 = vmatprep.subr.bf16.mxu0 %v5074
        %6316 = vmatpush1.bf16.msra.mxu0 %v5073
        %6317 = vmatprep.subr.bf16.mxu0 %v5090
        %6318 = vmatpush1.bf16.msra.mxu0 %v5089
        %6319 = vmatprep.subr.bf16.mxu0 %v5106
        %6320 = vmatpush1.bf16.msra.mxu0 %v5105
        %6321 = vmatprep.subr.bf16.mxu0 %v5122
        %6322 = vmatpush1.bf16.msra.mxu0 %v5121
        %6323 = vmatprep.subr.bf16.mxu0 %v5138
        %6324 = vmatpush1.bf16.msra.mxu0 %v5137
        %6325 = vmatprep.subr.bf16.mxu0 %v5154
        %6326 = vmatpush1.bf16.msra.mxu0 %v5153
        %6327 = vmatprep.subr.bf16.mxu0 %v5170
        %6328 = vmatpush1.bf16.msra.mxu0 %v5169
        %6329 = vmatprep.subr.bf16.mxu0 %v5186
        %6330 = vmatpush1.bf16.msra.mxu0 %v5185
        %6331 = vmatprep.subr.bf16.mxu0 %v5202
        %6332 = vmatpush1.bf16.msra.mxu0 %v5201
        %6333 = vmatprep.subr.bf16.mxu0 %v5218
        %6334 = vmatpush1.bf16.msra.mxu0 %v5217
        %6335 = vmatprep.subr.bf16.mxu0 %v5234
        %6336 = vmatpush1.bf16.msra.mxu0 %v5233
        %6337 = vmatprep.subr.bf16.mxu0 %v5250
        %6338 = vmatpush1.bf16.msra.mxu0 %v5249
        %6339 = vmatprep.subr.bf16.mxu0 %v5266
        %6340 = vmatpush1.bf16.msra.mxu0 %v5265
        %6341 = vmatprep.subr.bf16.mxu0 %v5282
        %6342 = vmatpush1.bf16.msra.mxu0 %v5281
        %6343 = vmatprep.mubr.bf16.mxu0 %v3298
        %6344 = vmatmul.mubr.bf16.gmra.mrb[0].mxu0 %v3297
        %v6345 = vpop.f32.mrb[0].mxu0
        %v6346 = vadd.f32 0.0, %v6345
        %v6347 = vpop.f32.mrb[0].mxu0
        %v6348 = vadd.f32 0.0, %v6347
        %v6349 = vpop.f32.mrb[0].mxu0
        %v6350 = vadd.f32 0.0, %v6349
        %v6351 = vpop.f32.mrb[0].mxu0
        %v6352 = vadd.f32 0.0, %v6351
        %6353 = vmatprep.mubr.bf16.mxu0 %v3302
        %6354 = vmatmul.mubr.bf16.gmra.mrb[0].mxu0 %v3301
        %v6355 = vpop.f32.mrb[0].mxu0
        %v6356 = vadd.f32 0.0, %v6355
        %v6357 = vpop.f32.mrb[0].mxu0
        %v6358 = vadd.f32 0.0, %v6357
        %v6359 = vpop.f32.mrb[0].mxu0
        %v6360 = vpop.f32.mrb[0].mxu0
        %6361 = vdwg.mxu0
        %6362 = vmatprep.subr.bf16.mxu0 %v5298
        %6363 = vmatpush1.bf16.msra.mxu0 %v5297
        %6364 = vmatprep.subr.bf16.mxu0 %v5314
        %6365 = vmatpush1.bf16.msra.mxu0 %v5313
        %6366 = vmatprep.subr.bf16.mxu0 %v5330
        %6367 = vmatpush1.bf16.msra.mxu0 %v5329
        %6368 = vmatprep.subr.bf16.mxu0 %v5346
        %6369 = vmatpush1.bf16.msra.mxu0 %v5345
        %6370 = vmatprep.subr.bf16.mxu0 %v5362
        %6371 = vmatpush1.bf16.msra.mxu0 %v5361
        %6372 = vmatprep.subr.bf16.mxu0 %v5378
        %6373 = vmatpush1.bf16.msra.mxu0 %v5377
        %6374 = vmatprep.subr.bf16.mxu0 %v5394
        %6375 = vmatpush1.bf16.msra.mxu0 %v5393
        %6376 = vmatprep.subr.bf16.mxu0 %v5410
        %6377 = vmatpush1.bf16.msra.mxu0 %v5409
        %6378 = vmatprep.subr.bf16.mxu0 %v5426
        %6379 = vmatpush1.bf16.msra.mxu0 %v5425
        %6380 = vmatprep.subr.bf16.mxu0 %v5442
        %6381 = vmatpush1.bf16.msra.mxu0 %v5441
        %6382 = vmatprep.subr.bf16.mxu0 %v5458
        %6383 = vmatpush1.bf16.msra.mxu0 %v5457
        %6384 = vmatprep.subr.bf16.mxu0 0
        %6385 = vmatpush1.bf16.msra.mxu0 0
        %6386 = vmatprep.subr.bf16.mxu0 0
        %6387 = vmatpush1.bf16.msra.mxu0 0
        %6388 = vmatprep.subr.bf16.mxu0 0
        %6389 = vmatpush1.bf16.msra.mxu0 0
        %6390 = vmatprep.subr.bf16.mxu0 0
        %6391 = vmatpush1.bf16.msra.mxu0 0
        %6392 = vmatprep.subr.bf16.mxu0 0
        %6393 = vmatpush1.bf16.msra.mxu0 0
        %6394 = vmatprep.mubr.bf16.mxu0 %v5898
        %6395 = vmatmul.mubr.bf16.gmra.mrb[0].mxu0 %v3299
        %v6396 = vpop.f32.mrb[0].mxu0
        %v6397 = vadd.f32 %v6346, %v6396
        %v6398 = vpop.f32.mrb[0].mxu0
        %v6399 = vadd.f32 %v6348, %v6398
        %v6400 = vpop.f32.mrb[0].mxu0
        %v6401 = vadd.f32 %v6350, %v6400
        %v6402 = vpop.f32.mrb[0].mxu0
        %v6403 = vadd.f32 %v6352, %v6402
        %6404 = vmatprep.mubr.bf16.mxu0 %v5901
        %6405 = vmatmul.mubr.bf16.gmra.mrb[0].mxu0 %v3303
        %v6406 = vpop.f32.mrb[0].mxu0
        %v6407 = vadd.f32 %v6356, %v6406
        %v6408 = vpop.f32.mrb[0].mxu0
        %v6409 = vadd.f32 %v6358, %v6408
        %v6410 = vpop.f32.mrb[0].mxu0
        %v6411 = vpop.f32.mrb[0].mxu0
        %6412 = vdwg.mxu0
        %6413 = vmatprep.subr.bf16.mxu0 %v5044
        %6414 = vmatpush1.bf16.msra.mxu0 %v5043
        %6415 = vmatprep.subr.bf16.mxu0 %v5060
        %6416 = vmatpush1.bf16.msra.mxu0 %v5059
        %6417 = vmatprep.subr.bf16.mxu0 %v5076
        %6418 = vmatpush1.bf16.msra.mxu0 %v5075
        %6419 = vmatprep.subr.bf16.mxu0 %v5092
        %6420 = vmatpush1.bf16.msra.mxu0 %v5091
        %6421 = vmatprep.subr.bf16.mxu0 %v5108
        %6422 = vmatpush1.bf16.msra.mxu0 %v5107
        %6423 = vmatprep.subr.bf16.mxu0 %v5124
        %6424 = vmatpush1.bf16.msra.mxu0 %v5123
        %6425 = vmatprep.subr.bf16.mxu0 %v5140
        %6426 = vmatpush1.bf16.msra.mxu0 %v5139
        %6427 = vmatprep.subr.bf16.mxu0 %v5156
        %6428 = vmatpush1.bf16.msra.mxu0 %v5155
        %6429 = vmatprep.subr.bf16.mxu0 %v5172
        %6430 = vmatpush1.bf16.msra.mxu0 %v5171
        %6431 = vmatprep.subr.bf16.mxu0 %v5188
        %6432 = vmatpush1.bf16.msra.mxu0 %v5187
        %6433 = vmatprep.subr.bf16.mxu0 %v5204
        %6434 = vmatpush1.bf16.msra.mxu0 %v5203
        %6435 = vmatprep.subr.bf16.mxu0 %v5220
        %6436 = vmatpush1.bf16.msra.mxu0 %v5219
        %6437 = vmatprep.subr.bf16.mxu0 %v5236
        %6438 = vmatpush1.bf16.msra.mxu0 %v5235
        %6439 = vmatprep.subr.bf16.mxu0 %v5252
        %6440 = vmatpush1.bf16.msra.mxu0 %v5251
        %6441 = vmatprep.subr.bf16.mxu0 %v5268
        %6442 = vmatpush1.bf16.msra.mxu0 %v5267
        %6443 = vmatprep.subr.bf16.mxu0 %v5284
        %6444 = vmatpush1.bf16.msra.mxu0 %v5283
        %6445 = vmatprep.mubr.bf16.mxu0 %v3298
        %6446 = vmatmul.mubr.bf16.gmra.mrb[0].mxu0 %v3297
        %v6447 = vpop.f32.mrb[0].mxu0
        %v6448 = vadd.f32 0.0, %v6447
        %v6449 = vpop.f32.mrb[0].mxu0
        %v6450 = vadd.f32 0.0, %v6449
        %v6451 = vpop.f32.mrb[0].mxu0
        %v6452 = vadd.f32 0.0, %v6451
        %v6453 = vpop.f32.mrb[0].mxu0
        %v6454 = vadd.f32 0.0, %v6453
        %6455 = vmatprep.mubr.bf16.mxu0 %v3302
        %6456 = vmatmul.mubr.bf16.gmra.mrb[0].mxu0 %v3301
        %v6457 = vpop.f32.mrb[0].mxu0
        %v6458 = vadd.f32 0.0, %v6457
        %v6459 = vpop.f32.mrb[0].mxu0
        %v6460 = vadd.f32 0.0, %v6459
        %v6461 = vpop.f32.mrb[0].mxu0
        %v6462 = vpop.f32.mrb[0].mxu0
        %6463 = vdwg.mxu0
        %6464 = vmatprep.subr.bf16.mxu0 %v5300
        %6465 = vmatpush1.bf16.msra.mxu0 %v5299
        %6466 = vmatprep.subr.bf16.mxu0 %v5316
        %6467 = vmatpush1.bf16.msra.mxu0 %v5315
        %6468 = vmatprep.subr.bf16.mxu0 %v5332
        %6469 = vmatpush1.bf16.msra.mxu0 %v5331
        %6470 = vmatprep.subr.bf16.mxu0 %v5348
        %6471 = vmatpush1.bf16.msra.mxu0 %v5347
        %6472 = vmatprep.subr.bf16.mxu0 %v5364
        %6473 = vmatpush1.bf16.msra.mxu0 %v5363
        %6474 = vmatprep.subr.bf16.mxu0 %v5380
        %6475 = vmatpush1.bf16.msra.mxu0 %v5379
        %6476 = vmatprep.subr.bf16.mxu0 %v5396
        %6477 = vmatpush1.bf16.msra.mxu0 %v5395
        %6478 = vmatprep.subr.bf16.mxu0 %v5412
        %6479 = vmatpush1.bf16.msra.mxu0 %v5411
        %6480 = vmatprep.subr.bf16.mxu0 %v5428
        %6481 = vmatpush1.bf16.msra.mxu0 %v5427
        %6482 = vmatprep.subr.bf16.mxu0 %v5444
        %6483 = vmatpush1.bf16.msra.mxu0 %v5443
        %6484 = vmatprep.subr.bf16.mxu0 %v5460
        %6485 = vmatpush1.bf16.msra.mxu0 %v5459
        %6486 = vmatprep.subr.bf16.mxu0 0
        %6487 = vmatpush1.bf16.msra.mxu0 0
        %6488 = vmatprep.subr.bf16.mxu0 0
        %6489 = vmatpush1.bf16.msra.mxu0 0
        %6490 = vmatprep.subr.bf16.mxu0 0
        %6491 = vmatpush1.bf16.msra.mxu0 0
        %6492 = vmatprep.subr.bf16.mxu0 0
        %6493 = vmatpush1.bf16.msra.mxu0 0
        %6494 = vmatprep.subr.bf16.mxu0 0
        %6495 = vmatpush1.bf16.msra.mxu0 0
        %6496 = vmatprep.mubr.bf16.mxu0 %v5898
        %6497 = vmatmul.mubr.bf16.gmra.mrb[0].mxu0 %v3299
        %v6498 = vpop.f32.mrb[0].mxu0
        %v6499 = vadd.f32 %v6448, %v6498
        %v6500 = vpop.f32.mrb[0].mxu0
        %v6501 = vadd.f32 %v6450, %v6500
        %v6502 = vpop.f32.mrb[0].mxu0
        %v6503 = vadd.f32 %v6452, %v6502
        %v6504 = vpop.f32.mrb[0].mxu0
        %v6505 = vadd.f32 %v6454, %v6504
        %6506 = vmatprep.mubr.bf16.mxu0 %v5901
        %6507 = vmatmul.mubr.bf16.gmra.mrb[0].mxu0 %v3303
        %v6508 = vpop.f32.mrb[0].mxu0
        %v6509 = vadd.f32 %v6458, %v6508
        %v6510 = vpop.f32.mrb[0].mxu0
        %v6511 = vadd.f32 %v6460, %v6510
        %v6512 = vpop.f32.mrb[0].mxu0
        %v6513 = vpop.f32.mrb[0].mxu0
        %6514 = vdwg.mxu0
        %6515 = vmatprep.subr.bf16.mxu0 %v5046
        %6516 = vmatpush1.bf16.msra.mxu0 %v5045
        %6517 = vmatprep.subr.bf16.mxu0 %v5062
        %6518 = vmatpush1.bf16.msra.mxu0 %v5061
        %6519 = vmatprep.subr.bf16.mxu0 %v5078
        %6520 = vmatpush1.bf16.msra.mxu0 %v5077
        %6521 = vmatprep.subr.bf16.mxu0 %v5094
        %6522 = vmatpush1.bf16.msra.mxu0 %v5093
        %6523 = vmatprep.subr.bf16.mxu0 %v5110
        %6524 = vmatpush1.bf16.msra.mxu0 %v5109
        %6525 = vmatprep.subr.bf16.mxu0 %v5126
        %6526 = vmatpush1.bf16.msra.mxu0 %v5125
        %6527 = vmatprep.subr.bf16.mxu0 %v5142
        %6528 = vmatpush1.bf16.msra.mxu0 %v5141
        %6529 = vmatprep.subr.bf16.mxu0 %v5158
        %6530 = vmatpush1.bf16.msra.mxu0 %v5157
        %6531 = vmatprep.subr.bf16.mxu0 %v5174
        %6532 = vmatpush1.bf16.msra.mxu0 %v5173
        %6533 = vmatprep.subr.bf16.mxu0 %v5190
        %6534 = vmatpush1.bf16.msra.mxu0 %v5189
        %6535 = vmatprep.subr.bf16.mxu0 %v5206
        %6536 = vmatpush1.bf16.msra.mxu0 %v5205
        %6537 = vmatprep.subr.bf16.mxu0 %v5222
        %6538 = vmatpush1.bf16.msra.mxu0 %v5221
        %6539 = vmatprep.subr.bf16.mxu0 %v5238
        %6540 = vmatpush1.bf16.msra.mxu0 %v5237
        %6541 = vmatprep.subr.bf16.mxu0 %v5254
        %6542 = vmatpush1.bf16.msra.mxu0 %v5253
        %6543 = vmatprep.subr.bf16.mxu0 %v5270
        %6544 = vmatpush1.bf16.msra.mxu0 %v5269
        %6545 = vmatprep.subr.bf16.mxu0 %v5286
        %6546 = vmatpush1.bf16.msra.mxu0 %v5285
        %6547 = vmatprep.mubr.bf16.mxu0 %v3298
        %6548 = vmatmul.mubr.bf16.gmra.mrb[0].mxu0 %v3297
        %v6549 = vpop.f32.mrb[0].mxu0
        %v6550 = vadd.f32 0.0, %v6549
        %v6551 = vpop.f32.mrb[0].mxu0
        %v6552 = vadd.f32 0.0, %v6551
        %v6553 = vpop.f32.mrb[0].mxu0
        %v6554 = vadd.f32 0.0, %v6553
        %v6555 = vpop.f32.mrb[0].mxu0
        %v6556 = vadd.f32 0.0, %v6555
        %6557 = vmatprep.mubr.bf16.mxu0 %v3302
        %6558 = vmatmul.mubr.bf16.gmra.mrb[0].mxu0 %v3301
        %v6559 = vpop.f32.mrb[0].mxu0
        %v6560 = vadd.f32 0.0, %v6559
        %v6561 = vpop.f32.mrb[0].mxu0
        %v6562 = vadd.f32 0.0, %v6561
        %v6563 = vpop.f32.mrb[0].mxu0
        %v6564 = vpop.f32.mrb[0].mxu0
        %6565 = vdwg.mxu0
        %6566 = vmatprep.subr.bf16.mxu0 %v5302
        %6567 = vmatpush1.bf16.msra.mxu0 %v5301
        %6568 = vmatprep.subr.bf16.mxu0 %v5318
        %6569 = vmatpush1.bf16.msra.mxu0 %v5317
        %6570 = vmatprep.subr.bf16.mxu0 %v5334
        %6571 = vmatpush1.bf16.msra.mxu0 %v5333
        %6572 = vmatprep.subr.bf16.mxu0 %v5350
        %6573 = vmatpush1.bf16.msra.mxu0 %v5349
        %6574 = vmatprep.subr.bf16.mxu0 %v5366
        %6575 = vmatpush1.bf16.msra.mxu0 %v5365
        %6576 = vmatprep.subr.bf16.mxu0 %v5382
        %6577 = vmatpush1.bf16.msra.mxu0 %v5381
        %6578 = vmatprep.subr.bf16.mxu0 %v5398
        %6579 = vmatpush1.bf16.msra.mxu0 %v5397
        %6580 = vmatprep.subr.bf16.mxu0 %v5414
        %6581 = vmatpush1.bf16.msra.mxu0 %v5413
        %6582 = vmatprep.subr.bf16.mxu0 %v5430
        %6583 = vmatpush1.bf16.msra.mxu0 %v5429
        %6584 = vmatprep.subr.bf16.mxu0 %v5446
        %6585 = vmatpush1.bf16.msra.mxu0 %v5445
        %6586 = vmatprep.subr.bf16.mxu0 %v5462
        %6587 = vmatpush1.bf16.msra.mxu0 %v5461
        %6588 = vmatprep.subr.bf16.mxu0 0
        %6589 = vmatpush1.bf16.msra.mxu0 0
        %6590 = vmatprep.subr.bf16.mxu0 0
        %6591 = vmatpush1.bf16.msra.mxu0 0
        %6592 = vmatprep.subr.bf16.mxu0 0
        %6593 = vmatpush1.bf16.msra.mxu0 0
        %6594 = vmatprep.subr.bf16.mxu0 0
        %6595 = vmatpush1.bf16.msra.mxu0 0
        %6596 = vmatprep.subr.bf16.mxu0 0
        %6597 = vmatpush1.bf16.msra.mxu0 0
        %6598 = vmatprep.mubr.bf16.mxu0 %v5898
        %6599 = vmatmul.mubr.bf16.gmra.mrb[0].mxu0 %v3299
        %v6600 = vpop.f32.mrb[0].mxu0
        %v6601 = vadd.f32 %v6550, %v6600
        %v6602 = vpop.f32.mrb[0].mxu0
        %v6603 = vadd.f32 %v6552, %v6602
        %v6604 = vpop.f32.mrb[0].mxu0
        %v6605 = vadd.f32 %v6554, %v6604
        %v6606 = vpop.f32.mrb[0].mxu0
        %v6607 = vadd.f32 %v6556, %v6606
        %6608 = vmatprep.mubr.bf16.mxu0 %v5901
        %6609 = vmatmul.mubr.bf16.gmra.mrb[0].mxu0 %v3303
        %v6610 = vpop.f32.mrb[0].mxu0
        %v6611 = vadd.f32 %v6560, %v6610
        %v6612 = vpop.f32.mrb[0].mxu0
        %v6613 = vadd.f32 %v6562, %v6612
        %v6614 = vpop.f32.mrb[0].mxu0
        %v6615 = vpop.f32.mrb[0].mxu0
        %6616 = vdwg.mxu0
        %6617 = vmatprep.subr.bf16.mxu0 %v5048
        %6618 = vmatpush1.bf16.msra.mxu0 %v5047
        %6619 = vmatprep.subr.bf16.mxu0 %v5064
        %6620 = vmatpush1.bf16.msra.mxu0 %v5063
        %6621 = vmatprep.subr.bf16.mxu0 %v5080
        %6622 = vmatpush1.bf16.msra.mxu0 %v5079
        %6623 = vmatprep.subr.bf16.mxu0 %v5096
        %6624 = vmatpush1.bf16.msra.mxu0 %v5095
        %6625 = vmatprep.subr.bf16.mxu0 %v5112
        %6626 = vmatpush1.bf16.msra.mxu0 %v5111
        %6627 = vmatprep.subr.bf16.mxu0 %v5128
        %6628 = vmatpush1.bf16.msra.mxu0 %v5127
        %6629 = vmatprep.subr.bf16.mxu0 %v5144
        %6630 = vmatpush1.bf16.msra.mxu0 %v5143
        %6631 = vmatprep.subr.bf16.mxu0 %v5160
        %6632 = vmatpush1.bf16.msra.mxu0 %v5159
        %6633 = vmatprep.subr.bf16.mxu0 %v5176
        %6634 = vmatpush1.bf16.msra.mxu0 %v5175
        %6635 = vmatprep.subr.bf16.mxu0 %v5192
        %6636 = vmatpush1.bf16.msra.mxu0 %v5191
        %6637 = vmatprep.subr.bf16.mxu0 %v5208
        %6638 = vmatpush1.bf16.msra.mxu0 %v5207
        %6639 = vmatprep.subr.bf16.mxu0 %v5224
        %6640 = vmatpush1.bf16.msra.mxu0 %v5223
        %6641 = vmatprep.subr.bf16.mxu0 %v5240
        %6642 = vmatpush1.bf16.msra.mxu0 %v5239
        %6643 = vmatprep.subr.bf16.mxu0 %v5256
        %6644 = vmatpush1.bf16.msra.mxu0 %v5255
        %6645 = vmatprep.subr.bf16.mxu0 %v5272
        %6646 = vmatpush1.bf16.msra.mxu0 %v5271
        %6647 = vmatprep.subr.bf16.mxu0 %v5288
        %6648 = vmatpush1.bf16.msra.mxu0 %v5287
        %6649 = vmatprep.mubr.bf16.mxu0 %v3298
        %6650 = vmatmul.mubr.bf16.gmra.mrb[0].mxu0 %v3297
        %v6651 = vpop.f32.mrb[0].mxu0
        %v6652 = vadd.f32 0.0, %v6651
        %v6653 = vpop.f32.mrb[0].mxu0
        %v6654 = vadd.f32 0.0, %v6653
        %v6655 = vpop.f32.mrb[0].mxu0
        %v6656 = vadd.f32 0.0, %v6655
        %v6657 = vpop.f32.mrb[0].mxu0
        %v6658 = vadd.f32 0.0, %v6657
        %6659 = vmatprep.mubr.bf16.mxu0 %v3302
        %6660 = vmatmul.mubr.bf16.gmra.mrb[0].mxu0 %v3301
        %v6661 = vpop.f32.mrb[0].mxu0
        %v6662 = vadd.f32 0.0, %v6661
        %v6663 = vpop.f32.mrb[0].mxu0
        %v6664 = vadd.f32 0.0, %v6663
        %v6665 = vpop.f32.mrb[0].mxu0
        %v6666 = vpop.f32.mrb[0].mxu0
        %6667 = vdwg.mxu0
        %6668 = vmatprep.subr.bf16.mxu0 %v5304
        %6669 = vmatpush1.bf16.msra.mxu0 %v5303
        %6670 = vmatprep.subr.bf16.mxu0 %v5320
        %6671 = vmatpush1.bf16.msra.mxu0 %v5319
        %6672 = vmatprep.subr.bf16.mxu0 %v5336
        %6673 = vmatpush1.bf16.msra.mxu0 %v5335
        %6674 = vmatprep.subr.bf16.mxu0 %v5352
        %6675 = vmatpush1.bf16.msra.mxu0 %v5351
        %6676 = vmatprep.subr.bf16.mxu0 %v5368
        %6677 = vmatpush1.bf16.msra.mxu0 %v5367
        %6678 = vmatprep.subr.bf16.mxu0 %v5384
        %6679 = vmatpush1.bf16.msra.mxu0 %v5383
        %6680 = vmatprep.subr.bf16.mxu0 %v5400
        %6681 = vmatpush1.bf16.msra.mxu0 %v5399
        %6682 = vmatprep.subr.bf16.mxu0 %v5416
        %6683 = vmatpush1.bf16.msra.mxu0 %v5415
        %6684 = vmatprep.subr.bf16.mxu0 %v5432
        %6685 = vmatpush1.bf16.msra.mxu0 %v5431
        %6686 = vmatprep.subr.bf16.mxu0 %v5448
        %6687 = vmatpush1.bf16.msra.mxu0 %v5447
        %6688 = vmatprep.subr.bf16.mxu0 %v5464
        %6689 = vmatpush1.bf16.msra.mxu0 %v5463
        %6690 = vmatprep.subr.bf16.mxu0 0
        %6691 = vmatpush1.bf16.msra.mxu0 0
        %6692 = vmatprep.subr.bf16.mxu0 0
        %6693 = vmatpush1.bf16.msra.mxu0 0
        %6694 = vmatprep.subr.bf16.mxu0 0
        %6695 = vmatpush1.bf16.msra.mxu0 0
        %6696 = vmatprep.subr.bf16.mxu0 0
        %6697 = vmatpush1.bf16.msra.mxu0 0
        %6698 = vmatprep.subr.bf16.mxu0 0
        %6699 = vmatpush1.bf16.msra.mxu0 0
        %6700 = vmatprep.mubr.bf16.mxu0 %v5898
        %6701 = vmatmul.mubr.bf16.gmra.mrb[0].mxu0 %v3299
        %v6702 = vpop.f32.mrb[0].mxu0
        %v6703 = vadd.f32 %v6652, %v6702
        %v6704 = vpop.f32.mrb[0].mxu0
        %v6705 = vadd.f32 %v6654, %v6704
        %v6706 = vpop.f32.mrb[0].mxu0
        %v6707 = vadd.f32 %v6656, %v6706
        %v6708 = vpop.f32.mrb[0].mxu0
        %v6709 = vadd.f32 %v6658, %v6708
        %6710 = vmatprep.mubr.bf16.mxu0 %v5901
        %6711 = vmatmul.mubr.bf16.gmra.mrb[0].mxu0 %v3303
        %v6712 = vpop.f32.mrb[0].mxu0
        %v6713 = vadd.f32 %v6662, %v6712
        %v6714 = vpop.f32.mrb[0].mxu0
        %v6715 = vadd.f32 %v6664, %v6714
        %v6716 = vpop.f32.mrb[0].mxu0
        %v6717 = vpop.f32.mrb[0].mxu0
        %6718 = vdwg.mxu0
        %v6719 = vmax.f32 %v5989, 0.0
        %v6720 = vmax.f32 %v5991, 0.0
        %v6721 = vmax.f32 %v6091, 0.0
        %v6722 = vmax.f32 %v6093, 0.0
        %v6723 = vmax.f32 %v6193, 0.0
        %v6724 = vmax.f32 %v6195, 0.0
        %v6725 = vmax.f32 %v6295, 0.0
        %v6726 = vmax.f32 %v6297, 0.0
        %v6727 = vmax.f32 %v6397, 0.0
        %v6728 = vmax.f32 %v6399, 0.0
        %v6729 = vmax.f32 %v6499, 0.0
        %v6730 = vmax.f32 %v6501, 0.0
        %v6731 = vmax.f32 %v6601, 0.0
        %v6732 = vmax.f32 %v6603, 0.0
        %v6733 = vmax.f32 %v6703, 0.0
        %v6734 = vmax.f32 %v6705, 0.0
        %v6735 = vmax.f32 %v5993, 0.0
        %v6736 = vmax.f32 %v5995, 0.0
        %v6737 = vmax.f32 %v6095, 0.0
        %v6738 = vmax.f32 %v6097, 0.0
        %v6739 = vmax.f32 %v6197, 0.0
        %v6740 = vmax.f32 %v6199, 0.0
        %v6741 = vmax.f32 %v6299, 0.0
        %v6742 = vmax.f32 %v6301, 0.0
        %v6743 = vmax.f32 %v6401, 0.0
        %v6744 = vmax.f32 %v6403, 0.0
        %v6745 = vmax.f32 %v6503, 0.0
        %v6746 = vmax.f32 %v6505, 0.0
        %v6747 = vmax.f32 %v6605, 0.0
        %v6748 = vmax.f32 %v6607, 0.0
        %v6749 = vmax.f32 %v6707, 0.0
        %v6750 = vmax.f32 %v6709, 0.0
        %v6751 = vmax.f32 %v5999, 0.0
        %v6752 = vmax.f32 %v6001, 0.0
        %v6753 = vmax.f32 %v6101, 0.0
        %v6754 = vmax.f32 %v6103, 0.0
        %v6755 = vmax.f32 %v6203, 0.0
        %v6756 = vmax.f32 %v6205, 0.0
        %v6757 = vmax.f32 %v6305, 0.0
        %v6758 = vmax.f32 %v6307, 0.0
        %v6759 = vmax.f32 %v6407, 0.0
        %v6760 = vmax.f32 %v6409, 0.0
        %v6761 = vmax.f32 %v6509, 0.0
        %v6762 = vmax.f32 %v6511, 0.0
        %v6763 = vmax.f32 %v6611, 0.0
        %v6764 = vmax.f32 %v6613, 0.0
        %v6765 = vmax.f32 %v6713, 0.0
        %v6766 = vmax.f32 %v6715, 0.0
        %v6767 = vld [vmem:[#allocation11] sm:$0x3]
        %v6768 = vpack.c.bf16 %v6735, %v6719
        %v6769 = vpack.c.bf16 %v6736, %v6720
        %v6770 = vpack.c.bf16 %v6737, %v6721
        %v6771 = vpack.c.bf16 %v6738, %v6722
        %v6772 = vpack.c.bf16 %v6739, %v6723
        %v6773 = vpack.c.bf16 %v6740, %v6724
        %v6774 = vpack.c.bf16 %v6741, %v6725
        %v6775 = vpack.c.bf16 %v6742, %v6726
        %v6776 = vpack.c.bf16 %v6743, %v6727
        %v6777 = vpack.c.bf16 %v6744, %v6728
        %v6778 = vpack.c.bf16 %v6745, %v6729
        %v6779 = vpack.c.bf16 %v6746, %v6730
        %v6780 = vpack.c.bf16 %v6747, %v6731
        %v6781 = vpack.c.bf16 %v6748, %v6732
        %v6782 = vpack.c.bf16 %v6749, %v6733
        %v6783 = vpack.c.bf16 %v6750, %v6734
        %v6784 = vpack.c.bf16 %v6751, %v6751
        %v6785 = vpack.c.bf16 %v6752, %v6752
        %v6786 = vpack.c.bf16 %v6753, %v6753
        %v6787 = vpack.c.bf16 %v6754, %v6754
        %v6788 = vpack.c.bf16 %v6755, %v6755
        %v6789 = vpack.c.bf16 %v6756, %v6756
        %v6790 = vpack.c.bf16 %v6757, %v6757
        %v6791 = vpack.c.bf16 %v6758, %v6758
        %v6792 = vpack.c.bf16 %v6759, %v6759
        %v6793 = vpack.c.bf16 %v6760, %v6760
        %v6794 = vpack.c.bf16 %v6761, %v6761
        %v6795 = vpack.c.bf16 %v6762, %v6762
        %v6796 = vpack.c.bf16 %v6763, %v6763
        %v6797 = vpack.c.bf16 %v6764, %v6764
        %v6798 = vpack.c.bf16 %v6765, %v6765
        %v6799 = vpack.c.bf16 %v6766, %v6766
        %vm6800 = vcmask 195584
        %v6802 = vsel %vm6800, %v6767, 0
        %vm6804 = vcmask 1043456
        %v6806 = vsel %vm6804, %v6784, 0
        %v6809 = vsel %vm6804, %v6785, 0
        %v6812 = vsel %vm6804, %v6786, 0
        %v6815 = vsel %vm6804, %v6787, 0
        %v6818 = vsel %vm6804, %v6788, 0
        %v6821 = vsel %vm6804, %v6789, 0
        %v6824 = vsel %vm6804, %v6790, 0
        %v6827 = vsel %vm6804, %v6791, 0
        %v6830 = vsel %vm6804, %v6792, 0
        %v6833 = vsel %vm6804, %v6793, 0
        %v6836 = vsel %vm6804, %v6794, 0
        %v6839 = vsel %vm6804, %v6795, 0
        %v6842 = vsel %vm6804, %v6796, 0
        %v6845 = vsel %vm6804, %v6797, 0
        %v6848 = vsel %vm6804, %v6798, 0
        %v6851 = vsel %vm6804, %v6799, 0
        %6853 = vmatprep.subr.bf16.mxu0 %v6769
        %6854 = vmatpush1.bf16.msra.mxu0 %v6768
        %6855 = vmatprep.subr.bf16.mxu0 %v6809
        %6856 = vmatpush1.bf16.msra.mxu0 %v6806
        %6857 = vmatprep.subr.bf16.mxu0 0
        %6858 = vmatpush1.bf16.msra.mxu0 0
        %6859 = vmatprep.subr.bf16.mxu0 0
        %6860 = vmatpush1.bf16.msra.mxu0 0
        %6861 = vmatprep.subr.bf16.mxu0 0
        %6862 = vmatpush1.bf16.msra.mxu0 0
        %6863 = vmatprep.subr.bf16.mxu0 0
        %6864 = vmatpush1.bf16.msra.mxu0 0
        %6865 = vmatprep.subr.bf16.mxu0 0
        %6866 = vmatpush1.bf16.msra.mxu0 0
        %6867 = vmatprep.subr.bf16.mxu0 0
        %6868 = vmatpush1.bf16.msra.mxu0 0
        %6869 = vmatprep.subr.bf16.mxu0 0
        %6870 = vmatpush1.bf16.msra.mxu0 0
        %6871 = vmatprep.subr.bf16.mxu0 0
        %6872 = vmatpush1.bf16.msra.mxu0 0
        %6873 = vmatprep.subr.bf16.mxu0 0
        %6874 = vmatpush1.bf16.msra.mxu0 0
        %6875 = vmatprep.subr.bf16.mxu0 0
        %6876 = vmatpush1.bf16.msra.mxu0 0
        %6877 = vmatprep.subr.bf16.mxu0 0
        %6878 = vmatpush1.bf16.msra.mxu0 0
        %6879 = vmatprep.subr.bf16.mxu0 0
        %6880 = vmatpush1.bf16.msra.mxu0 0
        %6881 = vmatprep.subr.bf16.mxu0 0
        %6882 = vmatpush1.bf16.msra.mxu0 0
        %6883 = vmatprep.subr.bf16.mxu0 0
        %6884 = vmatpush1.bf16.msra.mxu0 0
        %6885 = vmatprep.mubr.bf16.mxu0 0
        %6886 = vmatmul.mubr.bf16.gmra.mrb[0].mxu0 %v6802
        %v6887 = vpop.f32.mrb[0].mxu0
        %v6888 = vadd.f32 0.0, %v6887
        %v6889 = vpop.f32.mrb[0].mxu0
        %v6890 = vadd.f32 0.0, %v6889
        %v6891 = vpop.f32.mrb[0].mxu0
        %v6892 = vpop.f32.mrb[0].mxu0
        %6893 = vdwg.mxu0
        %6894 = vmatprep.subr.bf16.mxu0 %v6771
        %6895 = vmatpush1.bf16.msra.mxu0 %v6770
        %6896 = vmatprep.subr.bf16.mxu0 %v6815
        %6897 = vmatpush1.bf16.msra.mxu0 %v6812
        %6898 = vmatprep.subr.bf16.mxu0 0
        %6899 = vmatpush1.bf16.msra.mxu0 0
        %6900 = vmatprep.subr.bf16.mxu0 0
        %6901 = vmatpush1.bf16.msra.mxu0 0
        %6902 = vmatprep.subr.bf16.mxu0 0
        %6903 = vmatpush1.bf16.msra.mxu0 0
        %6904 = vmatprep.subr.bf16.mxu0 0
        %6905 = vmatpush1.bf16.msra.mxu0 0
        %6906 = vmatprep.subr.bf16.mxu0 0
        %6907 = vmatpush1.bf16.msra.mxu0 0
        %6908 = vmatprep.subr.bf16.mxu0 0
        %6909 = vmatpush1.bf16.msra.mxu0 0
        %6910 = vmatprep.subr.bf16.mxu0 0
        %6911 = vmatpush1.bf16.msra.mxu0 0
        %6912 = vmatprep.subr.bf16.mxu0 0
        %6913 = vmatpush1.bf16.msra.mxu0 0
        %6914 = vmatprep.subr.bf16.mxu0 0
        %6915 = vmatpush1.bf16.msra.mxu0 0
        %6916 = vmatprep.subr.bf16.mxu0 0
        %6917 = vmatpush1.bf16.msra.mxu0 0
        %6918 = vmatprep.subr.bf16.mxu0 0
        %6919 = vmatpush1.bf16.msra.mxu0 0
        %6920 = vmatprep.subr.bf16.mxu0 0
        %6921 = vmatpush1.bf16.msra.mxu0 0
        %6922 = vmatprep.subr.bf16.mxu0 0
        %6923 = vmatpush1.bf16.msra.mxu0 0
        %6924 = vmatprep.subr.bf16.mxu0 0
        %6925 = vmatpush1.bf16.msra.mxu0 0
        %6926 = vmatprep.mubr.bf16.mxu0 0
        %6927 = vmatmul.mubr.bf16.gmra.mrb[0].mxu0 %v6802
        %v6928 = vpop.f32.mrb[0].mxu0
        %v6929 = vadd.f32 0.0, %v6928
        %v6930 = vpop.f32.mrb[0].mxu0
        %v6931 = vadd.f32 0.0, %v6930
        %v6932 = vpop.f32.mrb[0].mxu0
        %v6933 = vpop.f32.mrb[0].mxu0
        %6934 = vdwg.mxu0
        %6935 = vmatprep.subr.bf16.mxu0 %v6773
        %6936 = vmatpush1.bf16.msra.mxu0 %v6772
        %6937 = vmatprep.subr.bf16.mxu0 %v6821
        %6938 = vmatpush1.bf16.msra.mxu0 %v6818
        %6939 = vmatprep.subr.bf16.mxu0 0
        %6940 = vmatpush1.bf16.msra.mxu0 0
        %6941 = vmatprep.subr.bf16.mxu0 0
        %6942 = vmatpush1.bf16.msra.mxu0 0
        %6943 = vmatprep.subr.bf16.mxu0 0
        %6944 = vmatpush1.bf16.msra.mxu0 0
        %6945 = vmatprep.subr.bf16.mxu0 0
        %6946 = vmatpush1.bf16.msra.mxu0 0
        %6947 = vmatprep.subr.bf16.mxu0 0
        %6948 = vmatpush1.bf16.msra.mxu0 0
        %6949 = vmatprep.subr.bf16.mxu0 0
        %6950 = vmatpush1.bf16.msra.mxu0 0
        %6951 = vmatprep.subr.bf16.mxu0 0
        %6952 = vmatpush1.bf16.msra.mxu0 0
        %6953 = vmatprep.subr.bf16.mxu0 0
        %6954 = vmatpush1.bf16.msra.mxu0 0
        %6955 = vmatprep.subr.bf16.mxu0 0
        %6956 = vmatpush1.bf16.msra.mxu0 0
        %6957 = vmatprep.subr.bf16.mxu0 0
        %6958 = vmatpush1.bf16.msra.mxu0 0
        %6959 = vmatprep.subr.bf16.mxu0 0
        %6960 = vmatpush1.bf16.msra.mxu0 0
        %6961 = vmatprep.subr.bf16.mxu0 0
        %6962 = vmatpush1.bf16.msra.mxu0 0
        %6963 = vmatprep.subr.bf16.mxu0 0
        %6964 = vmatpush1.bf16.msra.mxu0 0
        %6965 = vmatprep.subr.bf16.mxu0 0
        %6966 = vmatpush1.bf16.msra.mxu0 0
        %6967 = vmatprep.mubr.bf16.mxu0 0
        %6968 = vmatmul.mubr.bf16.gmra.mrb[0].mxu0 %v6802
        %v6969 = vpop.f32.mrb[0].mxu0
        %v6970 = vadd.f32 0.0, %v6969
        %v6971 = vpop.f32.mrb[0].mxu0
        %v6972 = vadd.f32 0.0, %v6971
        %v6973 = vpop.f32.mrb[0].mxu0
        %v6974 = vpop.f32.mrb[0].mxu0
        %6975 = vdwg.mxu0
        %6976 = vmatprep.subr.bf16.mxu0 %v6775
        %6977 = vmatpush1.bf16.msra.mxu0 %v6774
        %6978 = vmatprep.subr.bf16.mxu0 %v6827
        %6979 = vmatpush1.bf16.msra.mxu0 %v6824
        %6980 = vmatprep.subr.bf16.mxu0 0
        %6981 = vmatpush1.bf16.msra.mxu0 0
        %6982 = vmatprep.subr.bf16.mxu0 0
        %6983 = vmatpush1.bf16.msra.mxu0 0
        %6984 = vmatprep.subr.bf16.mxu0 0
        %6985 = vmatpush1.bf16.msra.mxu0 0
        %6986 = vmatprep.subr.bf16.mxu0 0
        %6987 = vmatpush1.bf16.msra.mxu0 0
        %6988 = vmatprep.subr.bf16.mxu0 0
        %6989 = vmatpush1.bf16.msra.mxu0 0
        %6990 = vmatprep.subr.bf16.mxu0 0
        %6991 = vmatpush1.bf16.msra.mxu0 0
        %6992 = vmatprep.subr.bf16.mxu0 0
        %6993 = vmatpush1.bf16.msra.mxu0 0
        %6994 = vmatprep.subr.bf16.mxu0 0
        %6995 = vmatpush1.bf16.msra.mxu0 0
        %6996 = vmatprep.subr.bf16.mxu0 0
        %6997 = vmatpush1.bf16.msra.mxu0 0
        %6998 = vmatprep.subr.bf16.mxu0 0
        %6999 = vmatpush1.bf16.msra.mxu0 0
        %7000 = vmatprep.subr.bf16.mxu0 0
        %7001 = vmatpush1.bf16.msra.mxu0 0
        %7002 = vmatprep.subr.bf16.mxu0 0
        %7003 = vmatpush1.bf16.msra.mxu0 0
        %7004 = vmatprep.subr.bf16.mxu0 0
        %7005 = vmatpush1.bf16.msra.mxu0 0
        %7006 = vmatprep.subr.bf16.mxu0 0
        %7007 = vmatpush1.bf16.msra.mxu0 0
        %7008 = vmatprep.mubr.bf16.mxu0 0
        %7009 = vmatmul.mubr.bf16.gmra.mrb[0].mxu0 %v6802
        %v7010 = vpop.f32.mrb[0].mxu0
        %v7011 = vadd.f32 0.0, %v7010
        %v7012 = vpop.f32.mrb[0].mxu0
        %v7013 = vadd.f32 0.0, %v7012
        %v7014 = vpop.f32.mrb[0].mxu0
        %v7015 = vpop.f32.mrb[0].mxu0
        %7016 = vdwg.mxu0
        %7017 = vmatprep.subr.bf16.mxu0 %v6777
        %7018 = vmatpush1.bf16.msra.mxu0 %v6776
        %7019 = vmatprep.subr.bf16.mxu0 %v6833
        %7020 = vmatpush1.bf16.msra.mxu0 %v6830
        %7021 = vmatprep.subr.bf16.mxu0 0
        %7022 = vmatpush1.bf16.msra.mxu0 0
        %7023 = vmatprep.subr.bf16.mxu0 0
        %7024 = vmatpush1.bf16.msra.mxu0 0
        %7025 = vmatprep.subr.bf16.mxu0 0
        %7026 = vmatpush1.bf16.msra.mxu0 0
        %7027 = vmatprep.subr.bf16.mxu0 0
        %7028 = vmatpush1.bf16.msra.mxu0 0
        %7029 = vmatprep.subr.bf16.mxu0 0
        %7030 = vmatpush1.bf16.msra.mxu0 0
        %7031 = vmatprep.subr.bf16.mxu0 0
        %7032 = vmatpush1.bf16.msra.mxu0 0
        %7033 = vmatprep.subr.bf16.mxu0 0
        %7034 = vmatpush1.bf16.msra.mxu0 0
        %7035 = vmatprep.subr.bf16.mxu0 0
        %7036 = vmatpush1.bf16.msra.mxu0 0
        %7037 = vmatprep.subr.bf16.mxu0 0
        %7038 = vmatpush1.bf16.msra.mxu0 0
        %7039 = vmatprep.subr.bf16.mxu0 0
        %7040 = vmatpush1.bf16.msra.mxu0 0
        %7041 = vmatprep.subr.bf16.mxu0 0
        %7042 = vmatpush1.bf16.msra.mxu0 0
        %7043 = vmatprep.subr.bf16.mxu0 0
        %7044 = vmatpush1.bf16.msra.mxu0 0
        %7045 = vmatprep.subr.bf16.mxu0 0
        %7046 = vmatpush1.bf16.msra.mxu0 0
        %7047 = vmatprep.subr.bf16.mxu0 0
        %7048 = vmatpush1.bf16.msra.mxu0 0
        %7049 = vmatprep.mubr.bf16.mxu0 0
        %7050 = vmatmul.mubr.bf16.gmra.mrb[0].mxu0 %v6802
        %v7051 = vpop.f32.mrb[0].mxu0
        %v7052 = vadd.f32 0.0, %v7051
        %v7053 = vpop.f32.mrb[0].mxu0
        %v7054 = vadd.f32 0.0, %v7053
        %v7055 = vpop.f32.mrb[0].mxu0
        %v7056 = vpop.f32.mrb[0].mxu0
        %7057 = vdwg.mxu0
        %7058 = vmatprep.subr.bf16.mxu0 %v6779
        %7059 = vmatpush1.bf16.msra.mxu0 %v6778
        %7060 = vmatprep.subr.bf16.mxu0 %v6839
        %7061 = vmatpush1.bf16.msra.mxu0 %v6836
        %7062 = vmatprep.subr.bf16.mxu0 0
        %7063 = vmatpush1.bf16.msra.mxu0 0
        %7064 = vmatprep.subr.bf16.mxu0 0
        %7065 = vmatpush1.bf16.msra.mxu0 0
        %7066 = vmatprep.subr.bf16.mxu0 0
        %7067 = vmatpush1.bf16.msra.mxu0 0
        %7068 = vmatprep.subr.bf16.mxu0 0
        %7069 = vmatpush1.bf16.msra.mxu0 0
        %7070 = vmatprep.subr.bf16.mxu0 0
        %7071 = vmatpush1.bf16.msra.mxu0 0
        %7072 = vmatprep.subr.bf16.mxu0 0
        %7073 = vmatpush1.bf16.msra.mxu0 0
        %7074 = vmatprep.subr.bf16.mxu0 0
        %7075 = vmatpush1.bf16.msra.mxu0 0
        %7076 = vmatprep.subr.bf16.mxu0 0
        %7077 = vmatpush1.bf16.msra.mxu0 0
        %7078 = vmatprep.subr.bf16.mxu0 0
        %7079 = vmatpush1.bf16.msra.mxu0 0
        %7080 = vmatprep.subr.bf16.mxu0 0
        %7081 = vmatpush1.bf16.msra.mxu0 0
        %7082 = vmatprep.subr.bf16.mxu0 0
        %7083 = vmatpush1.bf16.msra.mxu0 0
        %7084 = vmatprep.subr.bf16.mxu0 0
        %7085 = vmatpush1.bf16.msra.mxu0 0
        %7086 = vmatprep.subr.bf16.mxu0 0
        %7087 = vmatpush1.bf16.msra.mxu0 0
        %7088 = vmatprep.subr.bf16.mxu0 0
        %7089 = vmatpush1.bf16.msra.mxu0 0
        %7090 = vmatprep.mubr.bf16.mxu0 0
        %7091 = vmatmul.mubr.bf16.gmra.mrb[0].mxu0 %v6802
        %v7092 = vpop.f32.mrb[0].mxu0
        %v7093 = vadd.f32 0.0, %v7092
        %v7094 = vpop.f32.mrb[0].mxu0
        %v7095 = vadd.f32 0.0, %v7094
        %v7096 = vpop.f32.mrb[0].mxu0
        %v7097 = vpop.f32.mrb[0].mxu0
        %7098 = vdwg.mxu0
        %7099 = vmatprep.subr.bf16.mxu0 %v6781
        %7100 = vmatpush1.bf16.msra.mxu0 %v6780
        %7101 = vmatprep.subr.bf16.mxu0 %v6845
        %7102 = vmatpush1.bf16.msra.mxu0 %v6842
        %7103 = vmatprep.subr.bf16.mxu0 0
        %7104 = vmatpush1.bf16.msra.mxu0 0
        %7105 = vmatprep.subr.bf16.mxu0 0
        %7106 = vmatpush1.bf16.msra.mxu0 0
        %7107 = vmatprep.subr.bf16.mxu0 0
        %7108 = vmatpush1.bf16.msra.mxu0 0
        %7109 = vmatprep.subr.bf16.mxu0 0
        %7110 = vmatpush1.bf16.msra.mxu0 0
        %7111 = vmatprep.subr.bf16.mxu0 0
        %7112 = vmatpush1.bf16.msra.mxu0 0
        %7113 = vmatprep.subr.bf16.mxu0 0
        %7114 = vmatpush1.bf16.msra.mxu0 0
        %7115 = vmatprep.subr.bf16.mxu0 0
        %7116 = vmatpush1.bf16.msra.mxu0 0
        %7117 = vmatprep.subr.bf16.mxu0 0
        %7118 = vmatpush1.bf16.msra.mxu0 0
        %7119 = vmatprep.subr.bf16.mxu0 0
        %7120 = vmatpush1.bf16.msra.mxu0 0
        %7121 = vmatprep.subr.bf16.mxu0 0
        %7122 = vmatpush1.bf16.msra.mxu0 0
        %7123 = vmatprep.subr.bf16.mxu0 0
        %7124 = vmatpush1.bf16.msra.mxu0 0
        %7125 = vmatprep.subr.bf16.mxu0 0
        %7126 = vmatpush1.bf16.msra.mxu0 0
        %7127 = vmatprep.subr.bf16.mxu0 0
        %7128 = vmatpush1.bf16.msra.mxu0 0
        %7129 = vmatprep.subr.bf16.mxu0 0
        %7130 = vmatpush1.bf16.msra.mxu0 0
        %7131 = vmatprep.mubr.bf16.mxu0 0
        %7132 = vmatmul.mubr.bf16.gmra.mrb[0].mxu0 %v6802
        %v7133 = vpop.f32.mrb[0].mxu0
        %v7134 = vadd.f32 0.0, %v7133
        %v7135 = vpop.f32.mrb[0].mxu0
        %v7136 = vadd.f32 0.0, %v7135
        %v7137 = vpop.f32.mrb[0].mxu0
        %v7138 = vpop.f32.mrb[0].mxu0
        %7139 = vdwg.mxu0
        %7140 = vmatprep.subr.bf16.mxu0 %v6783
        %7141 = vmatpush1.bf16.msra.mxu0 %v6782
        %7142 = vmatprep.subr.bf16.mxu0 %v6851
        %7143 = vmatpush1.bf16.msra.mxu0 %v6848
        %7144 = vmatprep.subr.bf16.mxu0 0
        %7145 = vmatpush1.bf16.msra.mxu0 0
        %7146 = vmatprep.subr.bf16.mxu0 0
        %7147 = vmatpush1.bf16.msra.mxu0 0
        %7148 = vmatprep.subr.bf16.mxu0 0
        %7149 = vmatpush1.bf16.msra.mxu0 0
        %7150 = vmatprep.subr.bf16.mxu0 0
        %7151 = vmatpush1.bf16.msra.mxu0 0
        %7152 = vmatprep.subr.bf16.mxu0 0
        %7153 = vmatpush1.bf16.msra.mxu0 0
        %7154 = vmatprep.subr.bf16.mxu0 0
        %7155 = vmatpush1.bf16.msra.mxu0 0
        %7156 = vmatprep.subr.bf16.mxu0 0
        %7157 = vmatpush1.bf16.msra.mxu0 0
        %7158 = vmatprep.subr.bf16.mxu0 0
        %7159 = vmatpush1.bf16.msra.mxu0 0
        %7160 = vmatprep.subr.bf16.mxu0 0
        %7161 = vmatpush1.bf16.msra.mxu0 0
        %7162 = vmatprep.subr.bf16.mxu0 0
        %7163 = vmatpush1.bf16.msra.mxu0 0
        %7164 = vmatprep.subr.bf16.mxu0 0
        %7165 = vmatpush1.bf16.msra.mxu0 0
        %7166 = vmatprep.subr.bf16.mxu0 0
        %7167 = vmatpush1.bf16.msra.mxu0 0
        %7168 = vmatprep.subr.bf16.mxu0 0
        %7169 = vmatpush1.bf16.msra.mxu0 0
        %7170 = vmatprep.subr.bf16.mxu0 0
        %7171 = vmatpush1.bf16.msra.mxu0 0
        %7172 = vmatprep.mubr.bf16.mxu0 0
        %7173 = vmatmul.mubr.bf16.gmra.mrb[0].mxu0 %v6802
        %v7174 = vpop.f32.mrb[0].mxu0
        %v7175 = vadd.f32 0.0, %v7174
        %v7176 = vpop.f32.mrb[0].mxu0
        %v7177 = vadd.f32 0.0, %v7176
        %v7178 = vpop.f32.mrb[0].mxu0
        %v7179 = vpop.f32.mrb[0].mxu0
        %7180 = vdwg.mxu0
        %v7181 = vmul.f32 %v6888, 0.25
        %v7182 = vmul.f32 %v6890, 0.25
        %v7183 = vmul.f32 %v6929, 0.25
        %v7184 = vmul.f32 %v6931, 0.25
        %v7185 = vmul.f32 %v6970, 0.25
        %v7186 = vmul.f32 %v6972, 0.25
        %v7187 = vmul.f32 %v7011, 0.25
        %v7188 = vmul.f32 %v7013, 0.25
        %v7189 = vmul.f32 %v7052, 0.25
        %v7190 = vmul.f32 %v7054, 0.25
        %v7191 = vmul.f32 %v7093, 0.25
        %v7192 = vmul.f32 %v7095, 0.25
        %v7193 = vmul.f32 %v7134, 0.25
        %v7194 = vmul.f32 %v7136, 0.25
        %v7195 = vmul.f32 %v7175, 0.25
        %v7196 = vmul.f32 %v7177, 0.25
        %v7197 = vpack.c.bf16 %v7181, %v7181
        %v7198 = vpack.c.bf16 %v7182, %v7182
        %v7199 = vpack.c.bf16 %v7183, %v7183
        %v7200 = vpack.c.bf16 %v7184, %v7184
        %v7201 = vpack.c.bf16 %v7185, %v7185
        %v7202 = vpack.c.bf16 %v7186, %v7186
        %v7203 = vpack.c.bf16 %v7187, %v7187
        %v7204 = vpack.c.bf16 %v7188, %v7188
        %v7205 = vpack.c.bf16 %v7189, %v7189
        %v7206 = vpack.c.bf16 %v7190, %v7190
        %v7207 = vpack.c.bf16 %v7191, %v7191
        %v7208 = vpack.c.bf16 %v7192, %v7192
        %v7209 = vpack.c.bf16 %v7193, %v7193
        %v7210 = vpack.c.bf16 %v7194, %v7194
        %v7211 = vpack.c.bf16 %v7195, %v7195
        %v7212 = vpack.c.bf16 %v7196, %v7196
        %v7213 = vld [vmem:[#allocation13] sm:$0xf]
        %v7214 = vld [vmem:[#allocation13 + $0x4] sm:$0xf]
        %v7215 = vld [vmem:[#allocation13 + $0x8] sm:$0xf]
        %v7216 = vld [vmem:[#allocation13 + $0xc] sm:$0xf]
        %v7217 = vld [vmem:[#allocation13 + $0x10] sm:$0xf]
        %v7218 = vld [vmem:[#allocation13 + $0x14] sm:$0xf]
        %v7219 = vld [vmem:[#allocation13 + $0x18] sm:$0xf]
        %v7220 = vld [vmem:[#allocation13 + $0x1c] sm:$0xf]
        %v7221 = vld [vmem:[#allocation13 + $0x20] sm:$0xf]
        %v7222 = vld [vmem:[#allocation13 + $0x24] sm:$0xf]
        %v7223 = vld [vmem:[#allocation13 + $0x28] sm:$0xf]
        %v7224 = vld [vmem:[#allocation13 + $0x2c] sm:$0xf]
        %v7225 = vld [vmem:[#allocation13 + $0x30] sm:$0xf]
        %v7226 = vld [vmem:[#allocation13 + $0x34] sm:$0xf]
        %v7227 = vld [vmem:[#allocation13 + $0x38] sm:$0xf]
        %v7228 = vld [vmem:[#allocation13 + $0x3c] sm:$0xf]
        %v7229 = vld [vmem:[#allocation13 + $0x40] sm:$0xf]
        %v7230 = vld [vmem:[#allocation13 + $0x44] sm:$0xf]
        %v7231 = vld [vmem:[#allocation13 + $0x48] sm:$0xf]
        %v7232 = vld [vmem:[#allocation13 + $0x4c] sm:$0xf]
        %v7233 = vld [vmem:[#allocation13 + $0x50] sm:$0xf]
        %v7234 = vld [vmem:[#allocation13 + $0x54] sm:$0xf]
        %v7235 = vld [vmem:[#allocation13 + $0x58] sm:$0xf]
        %v7236 = vld [vmem:[#allocation13 + $0x5c] sm:$0xf]
        %v7237 = vld [vmem:[#allocation13 + $0x60] sm:$0xf]
        %v7238 = vld [vmem:[#allocation13 + $0x64] sm:$0xf]
        %v7239 = vld [vmem:[#allocation13 + $0x68] sm:$0xf]
        %v7240 = vld [vmem:[#allocation13 + $0x6c] sm:$0xf]
        %v7241 = vld [vmem:[#allocation13 + $0x70] sm:$0xf]
        %v7242 = vld [vmem:[#allocation13 + $0x74] sm:$0xf]
        %v7243 = vld [vmem:[#allocation13 + $0x78] sm:$0xf]
        %v7244 = vld [vmem:[#allocation13 + $0x7c] sm:$0xf]
        %v7245 = vld [vmem:[#allocation13 + $0x80] sm:$0xf]
        %v7246 = vld [vmem:[#allocation13 + $0x84] sm:$0xf]
        %v7247 = vld [vmem:[#allocation13 + $0x88] sm:$0xf]
        %v7248 = vld [vmem:[#allocation13 + $0x8c] sm:$0xf]
        %v7249 = vld [vmem:[#allocation13 + $0x90] sm:$0xf]
        %v7250 = vld [vmem:[#allocation13 + $0x94] sm:$0xf]
        %v7251 = vld [vmem:[#allocation13 + $0x98] sm:$0xf]
        %v7252 = vld [vmem:[#allocation13 + $0x9c] sm:$0xf]
        %v7253 = vld [vmem:[#allocation13 + $0xa0] sm:$0xf]
        %v7254 = vld [vmem:[#allocation13 + $0xa4] sm:$0xf]
        %v7255 = vld [vmem:[#allocation13 + $0xa8] sm:$0xf]
        %v7256 = vld [vmem:[#allocation13 + $0xac] sm:$0xf]
        %v7257 = vld [vmem:[#allocation13 + $0xb0] sm:$0xf]
        %v7258 = vld [vmem:[#allocation13 + $0xb4] sm:$0xf]
        %v7259 = vld [vmem:[#allocation13 + $0xb8] sm:$0xf]
        %v7260 = vld [vmem:[#allocation13 + $0xbc] sm:$0xf]
        %v7261 = vld [vmem:[#allocation13 + $0xc0] sm:$0xf]
        %v7262 = vld [vmem:[#allocation13 + $0xc4] sm:$0xf]
        %v7263 = vld [vmem:[#allocation13 + $0xc8] sm:$0xf]
        %v7264 = vld [vmem:[#allocation13 + $0xcc] sm:$0xf]
        %v7265 = vld [vmem:[#allocation13 + $0xd0] sm:$0xf]
        %v7266 = vld [vmem:[#allocation13 + $0xd4] sm:$0xf]
        %v7267 = vld [vmem:[#allocation13 + $0xd8] sm:$0xf]
        %v7268 = vld [vmem:[#allocation13 + $0xdc] sm:$0xf]
        %v7269 = vld [vmem:[#allocation13 + $0xe0] sm:$0xf]
        %v7270 = vld [vmem:[#allocation13 + $0xe4] sm:$0xf]
        %v7271 = vld [vmem:[#allocation13 + $0xe8] sm:$0xf]
        %v7272 = vld [vmem:[#allocation13 + $0xec] sm:$0xf]
        %v7273 = vld [vmem:[#allocation13 + $0xf0] sm:$0xf]
        %v7274 = vld [vmem:[#allocation13 + $0xf4] sm:$0xf]
        %v7275 = vld [vmem:[#allocation13 + $0xf8] sm:$0xf]
        %v7276 = vld [vmem:[#allocation13 + $0xfc] sm:$0xf]
        %v7277 = vld [vmem:[#allocation13 + $0x100] sm:$0xf]
        %v7278 = vld [vmem:[#allocation13 + $0x104] sm:$0xf]
        %v7279 = vld [vmem:[#allocation13 + $0x108] sm:$0xf]
        %v7280 = vld [vmem:[#allocation13 + $0x10c] sm:$0xf]
        %v7281 = vld [vmem:[#allocation13 + $0x110] sm:$0xf]
        %v7282 = vld [vmem:[#allocation13 + $0x114] sm:$0xf]
        %v7283 = vld [vmem:[#allocation13 + $0x118] sm:$0xf]
        %v7284 = vld [vmem:[#allocation13 + $0x11c] sm:$0xf]
        %v7285 = vld [vmem:[#allocation13 + $0x120] sm:$0xf]
        %v7286 = vld [vmem:[#allocation13 + $0x124] sm:$0xf]
        %v7287 = vld [vmem:[#allocation13 + $0x128] sm:$0xf]
        %v7288 = vld [vmem:[#allocation13 + $0x12c] sm:$0xf]
        %v7289 = vld [vmem:[#allocation13 + $0x130] sm:$0xf]
        %v7290 = vld [vmem:[#allocation13 + $0x134] sm:$0xf]
        %v7291 = vld [vmem:[#allocation13 + $0x138] sm:$0xf]
        %v7292 = vld [vmem:[#allocation13 + $0x13c] sm:$0xf]
        %v7293 = vld [vmem:[#allocation13 + $0x140] sm:$0xf]
        %v7294 = vld [vmem:[#allocation13 + $0x144] sm:$0xf]
        %v7295 = vld [vmem:[#allocation13 + $0x148] sm:$0xf]
        %v7296 = vld [vmem:[#allocation13 + $0x14c] sm:$0xf]
        %v7297 = vld [vmem:[#allocation13 + $0x150] sm:$0xf]
        %v7298 = vld [vmem:[#allocation13 + $0x154] sm:$0xf]
        %v7299 = vld [vmem:[#allocation13 + $0x158] sm:$0xf]
        %v7300 = vld [vmem:[#allocation13 + $0x15c] sm:$0xf]
        %v7301 = vld [vmem:[#allocation13 + $0x160] sm:$0xf]
        %v7302 = vld [vmem:[#allocation13 + $0x164] sm:$0xf]
        %v7303 = vld [vmem:[#allocation13 + $0x168] sm:$0xf]
        %v7304 = vld [vmem:[#allocation13 + $0x16c] sm:$0xf]
        %v7305 = vld [vmem:[#allocation13 + $0x170] sm:$0xf]
        %v7306 = vld [vmem:[#allocation13 + $0x174] sm:$0xf]
        %v7307 = vld [vmem:[#allocation13 + $0x178] sm:$0xf]
        %v7308 = vld [vmem:[#allocation13 + $0x17c] sm:$0xf]
        %v7309 = vld [vmem:[#allocation13 + $0x180] sm:$0xf]
        %v7310 = vld [vmem:[#allocation13 + $0x184] sm:$0xf]
        %v7311 = vld [vmem:[#allocation13 + $0x188] sm:$0xf]
        %v7312 = vld [vmem:[#allocation13 + $0x18c] sm:$0xf]
        %v7313 = vld [vmem:[#allocation13 + $0x190] sm:$0xf]
        %v7314 = vld [vmem:[#allocation13 + $0x194] sm:$0xf]
        %v7315 = vld [vmem:[#allocation13 + $0x198] sm:$0xf]
        %v7316 = vld [vmem:[#allocation13 + $0x19c] sm:$0xf]
        %v7317 = vld [vmem:[#allocation13 + $0x1a0] sm:$0xf]
        %v7318 = vld [vmem:[#allocation13 + $0x1a4] sm:$0xf]
        %v7319 = vld [vmem:[#allocation13 + $0x1a8] sm:$0xf]
        %v7320 = vld [vmem:[#allocation13 + $0x1ac] sm:$0xf]
        %v7321 = vld [vmem:[#allocation13 + $0x1b0] sm:$0xf]
        %v7322 = vld [vmem:[#allocation13 + $0x1b4] sm:$0xf]
        %v7323 = vld [vmem:[#allocation13 + $0x1b8] sm:$0xf]
        %v7324 = vld [vmem:[#allocation13 + $0x1bc] sm:$0xf]
        %v7325 = vld [vmem:[#allocation13 + $0x1c0] sm:$0xf]
        %v7326 = vld [vmem:[#allocation13 + $0x1c4] sm:$0xf]
        %v7327 = vld [vmem:[#allocation13 + $0x1c8] sm:$0xf]
        %v7328 = vld [vmem:[#allocation13 + $0x1cc] sm:$0xf]
        %v7329 = vld [vmem:[#allocation13 + $0x1d0] sm:$0xf]
        %v7330 = vld [vmem:[#allocation13 + $0x1d4] sm:$0xf]
        %v7331 = vld [vmem:[#allocation13 + $0x1d8] sm:$0xf]
        %v7332 = vld [vmem:[#allocation13 + $0x1dc] sm:$0xf]
        %v7333 = vld [vmem:[#allocation13 + $0x1e0] sm:$0xf]
        %v7334 = vld [vmem:[#allocation13 + $0x1e4] sm:$0xf]
        %v7335 = vld [vmem:[#allocation13 + $0x1e8] sm:$0xf]
        %v7336 = vld [vmem:[#allocation13 + $0x1ec] sm:$0xf]
        %v7337 = vld [vmem:[#allocation13 + $0x1f0] sm:$0xf]
        %v7338 = vld [vmem:[#allocation13 + $0x1f4] sm:$0xf]
        %v7339 = vld [vmem:[#allocation13 + $0x1f8] sm:$0xf]
        %v7340 = vld [vmem:[#allocation13 + $0x1fc] sm:$0xf]
        %v7341 = vld [vmem:[#allocation13 + $0x200] sm:$0xf]
        %v7342 = vld [vmem:[#allocation13 + $0x204] sm:$0xf]
        %v7343 = vld [vmem:[#allocation13 + $0x208] sm:$0xf]
        %v7344 = vld [vmem:[#allocation13 + $0x20c] sm:$0xf]
        %v7345 = vld [vmem:[#allocation13 + $0x210] sm:$0xf]
        %v7346 = vld [vmem:[#allocation13 + $0x214] sm:$0xf]
        %v7347 = vld [vmem:[#allocation13 + $0x218] sm:$0xf]
        %v7348 = vld [vmem:[#allocation13 + $0x21c] sm:$0xf]
        %v7349 = vld [vmem:[#allocation13 + $0x220] sm:$0xf]
        %v7350 = vld [vmem:[#allocation13 + $0x224] sm:$0xf]
        %v7351 = vld [vmem:[#allocation13 + $0x228] sm:$0xf]
        %v7352 = vld [vmem:[#allocation13 + $0x22c] sm:$0xf]
        %v7353 = vld [vmem:[#allocation13 + $0x230] sm:$0xf]
        %v7354 = vld [vmem:[#allocation13 + $0x234] sm:$0xf]
        %v7355 = vld [vmem:[#allocation13 + $0x238] sm:$0xf]
        %v7356 = vld [vmem:[#allocation13 + $0x23c] sm:$0xf]
        %v7357 = vld [vmem:[#allocation13 + $0x240] sm:$0xf]
        %v7358 = vld [vmem:[#allocation13 + $0x244] sm:$0xf]
        %v7359 = vld [vmem:[#allocation13 + $0x248] sm:$0xf]
        %v7360 = vld [vmem:[#allocation13 + $0x24c] sm:$0xf]
        %v7361 = vld [vmem:[#allocation13 + $0x250] sm:$0xf]
        %v7362 = vld [vmem:[#allocation13 + $0x254] sm:$0xf]
        %v7363 = vld [vmem:[#allocation13 + $0x258] sm:$0xf]
        %v7364 = vld [vmem:[#allocation13 + $0x25c] sm:$0xf]
        %v7365 = vld [vmem:[#allocation13 + $0x260] sm:$0xf]
        %v7366 = vld [vmem:[#allocation13 + $0x264] sm:$0xf]
        %v7367 = vld [vmem:[#allocation13 + $0x268] sm:$0xf]
        %v7368 = vld [vmem:[#allocation13 + $0x26c] sm:$0xf]
        %v7369 = vld [vmem:[#allocation13 + $0x270] sm:$0xf]
        %v7370 = vld [vmem:[#allocation13 + $0x274] sm:$0xf]
        %v7371 = vld [vmem:[#allocation13 + $0x278] sm:$0xf]
        %v7372 = vld [vmem:[#allocation13 + $0x27c] sm:$0xf]
        %v7373 = vld [vmem:[#allocation13 + $0x280] sm:$0xf]
        %v7374 = vld [vmem:[#allocation13 + $0x284] sm:$0xf]
        %v7375 = vld [vmem:[#allocation13 + $0x288] sm:$0xf]
        %v7376 = vld [vmem:[#allocation13 + $0x28c] sm:$0xf]
        %v7377 = vld [vmem:[#allocation13 + $0x290] sm:$0xf]
        %v7378 = vld [vmem:[#allocation13 + $0x294] sm:$0xf]
        %v7379 = vld [vmem:[#allocation13 + $0x298] sm:$0xf]
        %v7380 = vld [vmem:[#allocation13 + $0x29c] sm:$0xf]
        %v7381 = vld [vmem:[#allocation13 + $0x2a0] sm:$0xf]
        %v7382 = vld [vmem:[#allocation13 + $0x2a4] sm:$0xf]
        %v7383 = vld [vmem:[#allocation13 + $0x2a8] sm:$0xf]
        %v7384 = vld [vmem:[#allocation13 + $0x2ac] sm:$0xf]
        %v7385 = vld [vmem:[#allocation13 + $0x2b0] sm:$0xf]
        %v7386 = vld [vmem:[#allocation13 + $0x2b4] sm:$0xf]
        %v7387 = vld [vmem:[#allocation13 + $0x2b8] sm:$0xf]
        %v7388 = vld [vmem:[#allocation13 + $0x2bc] sm:$0xf]
        %v7389 = vld [vmem:[#allocation13 + $0x2c0] sm:$0xf]
        %v7390 = vld [vmem:[#allocation13 + $0x2c4] sm:$0xf]
        %v7391 = vld [vmem:[#allocation13 + $0x2c8] sm:$0xf]
        %v7392 = vld [vmem:[#allocation13 + $0x2cc] sm:$0xf]
        %v7393 = vld [vmem:[#allocation13 + $0x2d0] sm:$0xf]
        %v7394 = vld [vmem:[#allocation13 + $0x2d4] sm:$0xf]
        %v7395 = vld [vmem:[#allocation13 + $0x2d8] sm:$0xf]
        %v7396 = vld [vmem:[#allocation13 + $0x2dc] sm:$0xf]
        %v7397 = vld [vmem:[#allocation13 + $0x2e0] sm:$0xf]
        %v7398 = vld [vmem:[#allocation13 + $0x2e4] sm:$0xf]
        %v7399 = vld [vmem:[#allocation13 + $0x2e8] sm:$0xf]
        %v7400 = vld [vmem:[#allocation13 + $0x2ec] sm:$0xf]
        %v7401 = vld [vmem:[#allocation13 + $0x2f0] sm:$0xf]
        %v7402 = vld [vmem:[#allocation13 + $0x2f4] sm:$0xf]
        %v7403 = vld [vmem:[#allocation13 + $0x2f8] sm:$0xf]
        %v7404 = vld [vmem:[#allocation13 + $0x2fc] sm:$0xf]
        %v7405 = vld [vmem:[#allocation13 + $0x300] sm:$0xf]
        %v7406 = vld [vmem:[#allocation13 + $0x304] sm:$0xf]
        %v7407 = vld [vmem:[#allocation13 + $0x308] sm:$0xf]
        %v7408 = vld [vmem:[#allocation13 + $0x30c] sm:$0xf]
        %v7409 = vld [vmem:[#allocation13 + $0x310] sm:$0xf]
        %v7410 = vld [vmem:[#allocation13 + $0x314] sm:$0xf]
        %v7411 = vld [vmem:[#allocation13 + $0x318] sm:$0xf]
        %v7412 = vld [vmem:[#allocation13 + $0x31c] sm:$0xf]
        %v7413 = vld [vmem:[#allocation13 + $0x320] sm:$0xf]
        %v7414 = vld [vmem:[#allocation13 + $0x324] sm:$0xf]
        %v7415 = vld [vmem:[#allocation13 + $0x328] sm:$0xf]
        %v7416 = vld [vmem:[#allocation13 + $0x32c] sm:$0xf]
        %v7417 = vld [vmem:[#allocation13 + $0x330] sm:$0xf]
        %v7418 = vld [vmem:[#allocation13 + $0x334] sm:$0xf]
        %v7419 = vld [vmem:[#allocation13 + $0x338] sm:$0xf]
        %v7420 = vld [vmem:[#allocation13 + $0x33c] sm:$0xf]
        %v7421 = vld [vmem:[#allocation13 + $0x340] sm:$0xf]
        %v7422 = vld [vmem:[#allocation13 + $0x344] sm:$0xf]
        %v7423 = vld [vmem:[#allocation13 + $0x348] sm:$0xf]
        %v7424 = vld [vmem:[#allocation13 + $0x34c] sm:$0xf]
        %v7425 = vld [vmem:[#allocation13 + $0x350] sm:$0xf]
        %v7426 = vld [vmem:[#allocation13 + $0x354] sm:$0xf]
        %v7427 = vld [vmem:[#allocation13 + $0x358] sm:$0xf]
        %v7428 = vld [vmem:[#allocation13 + $0x35c] sm:$0xf]
        %v7429 = vld [vmem:[#allocation13 + $0x360] sm:$0xf]
        %v7430 = vld [vmem:[#allocation13 + $0x364] sm:$0xf]
        %v7431 = vld [vmem:[#allocation13 + $0x368] sm:$0xf]
        %v7432 = vld [vmem:[#allocation13 + $0x36c] sm:$0xf]
        %v7433 = vld [vmem:[#allocation13 + $0x370] sm:$0xf]
        %v7434 = vld [vmem:[#allocation13 + $0x374] sm:$0xf]
        %v7435 = vld [vmem:[#allocation13 + $0x378] sm:$0xf]
        %v7436 = vld [vmem:[#allocation13 + $0x37c] sm:$0xf]
        %v7437 = vld [vmem:[#allocation13 + $0x380] sm:$0xf]
        %v7438 = vld [vmem:[#allocation13 + $0x384] sm:$0xf]
        %v7439 = vld [vmem:[#allocation13 + $0x388] sm:$0xf]
        %v7440 = vld [vmem:[#allocation13 + $0x38c] sm:$0xf]
        %v7441 = vld [vmem:[#allocation13 + $0x390] sm:$0xf]
        %v7442 = vld [vmem:[#allocation13 + $0x394] sm:$0xf]
        %v7443 = vld [vmem:[#allocation13 + $0x398] sm:$0xf]
        %v7444 = vld [vmem:[#allocation13 + $0x39c] sm:$0xf]
        %v7445 = vld [vmem:[#allocation13 + $0x3a0] sm:$0xf]
        %v7446 = vld [vmem:[#allocation13 + $0x3a4] sm:$0xf]
        %v7447 = vld [vmem:[#allocation13 + $0x3a8] sm:$0xf]
        %v7448 = vld [vmem:[#allocation13 + $0x3ac] sm:$0xf]
        %v7449 = vld [vmem:[#allocation13 + $0x3b0] sm:$0xf]
        %v7450 = vld [vmem:[#allocation13 + $0x3b4] sm:$0xf]
        %v7451 = vld [vmem:[#allocation13 + $0x3b8] sm:$0xf]
        %v7452 = vld [vmem:[#allocation13 + $0x3bc] sm:$0xf]
        %v7453 = vld [vmem:[#allocation13 + $0x3c0] sm:$0xf]
        %v7454 = vld [vmem:[#allocation13 + $0x3c4] sm:$0xf]
        %v7455 = vld [vmem:[#allocation13 + $0x3c8] sm:$0xf]
        %v7456 = vld [vmem:[#allocation13 + $0x3cc] sm:$0xf]
        %v7457 = vld [vmem:[#allocation13 + $0x3d0] sm:$0xf]
        %v7458 = vld [vmem:[#allocation13 + $0x3d4] sm:$0xf]
        %v7459 = vld [vmem:[#allocation13 + $0x3d8] sm:$0xf]
        %v7460 = vld [vmem:[#allocation13 + $0x3dc] sm:$0xf]
        %v7461 = vld [vmem:[#allocation13 + $0x3e0] sm:$0xf]
        %v7462 = vld [vmem:[#allocation13 + $0x3e4] sm:$0xf]
        %v7463 = vld [vmem:[#allocation13 + $0x3e8] sm:$0xf]
        %v7464 = vld [vmem:[#allocation13 + $0x3ec] sm:$0xf]
        %v7465 = vld [vmem:[#allocation13 + $0x3f0] sm:$0xf]
        %v7466 = vld [vmem:[#allocation13 + $0x3f4] sm:$0xf]
        %v7467 = vld [vmem:[#allocation13 + $0x3f8] sm:$0xf]
        %v7468 = vld [vmem:[#allocation13 + $0x3fc] sm:$0xf]
        %v7469 = vld [vmem:[#allocation14] sm:$0x1]
        %v7471 = vlaneseq
        %v7472 = vshrl.u32 %v7471, 7
        %v7473 = vsub.s32 0, %v7472
        %v7474 = vrot.slane %v7469, %v7473
        %v7732 = vunpack.c.l.b16 %v7213
        %v7733 = vunpack.c.l.b16 %v7214
        %v7734 = vunpack.c.l.b16 %v7215
        %v7735 = vunpack.c.l.b16 %v7216
        %v7736 = vunpack.c.l.b16 %v7217
        %v7737 = vunpack.c.l.b16 %v7218
        %v7738 = vunpack.c.l.b16 %v7219
        %v7739 = vunpack.c.l.b16 %v7220
        %v7740 = vunpack.c.l.b16 %v7221
        %v7741 = vunpack.c.l.b16 %v7222
        %v7742 = vunpack.c.l.b16 %v7223
        %v7743 = vunpack.c.l.b16 %v7224
        %v7744 = vunpack.c.l.b16 %v7225
        %v7745 = vunpack.c.l.b16 %v7226
        %v7746 = vunpack.c.l.b16 %v7227
        %v7747 = vunpack.c.l.b16 %v7228
        %v7748 = vunpack.c.l.b16 %v7229
        %v7749 = vunpack.c.l.b16 %v7230
        %v7750 = vunpack.c.l.b16 %v7231
        %v7751 = vunpack.c.l.b16 %v7232
        %v7752 = vunpack.c.l.b16 %v7233
        %v7753 = vunpack.c.l.b16 %v7234
        %v7754 = vunpack.c.l.b16 %v7235
        %v7755 = vunpack.c.l.b16 %v7236
        %v7756 = vunpack.c.l.b16 %v7237
        %v7757 = vunpack.c.l.b16 %v7238
        %v7758 = vunpack.c.l.b16 %v7239
        %v7759 = vunpack.c.l.b16 %v7240
        %v7760 = vunpack.c.l.b16 %v7241
        %v7761 = vunpack.c.l.b16 %v7242
        %v7762 = vunpack.c.l.b16 %v7243
        %v7763 = vunpack.c.l.b16 %v7244
        %v7764 = vunpack.c.l.b16 %v7245
        %v7765 = vunpack.c.l.b16 %v7246
        %v7766 = vunpack.c.l.b16 %v7247
        %v7767 = vunpack.c.l.b16 %v7248
        %v7768 = vunpack.c.l.b16 %v7249
        %v7769 = vunpack.c.l.b16 %v7250
        %v7770 = vunpack.c.l.b16 %v7251
        %v7771 = vunpack.c.l.b16 %v7252
        %v7772 = vunpack.c.l.b16 %v7253
        %v7773 = vunpack.c.l.b16 %v7254
        %v7774 = vunpack.c.l.b16 %v7255
        %v7775 = vunpack.c.l.b16 %v7256
        %v7776 = vunpack.c.l.b16 %v7257
        %v7777 = vunpack.c.l.b16 %v7258
        %v7778 = vunpack.c.l.b16 %v7259
        %v7779 = vunpack.c.l.b16 %v7260
        %v7780 = vunpack.c.l.b16 %v7261
        %v7781 = vunpack.c.l.b16 %v7262
        %v7782 = vunpack.c.l.b16 %v7263
        %v7783 = vunpack.c.l.b16 %v7264
        %v7784 = vunpack.c.l.b16 %v7265
        %v7785 = vunpack.c.l.b16 %v7266
        %v7786 = vunpack.c.l.b16 %v7267
        %v7787 = vunpack.c.l.b16 %v7268
        %v7788 = vunpack.c.l.b16 %v7269
        %v7789 = vunpack.c.l.b16 %v7270
        %v7790 = vunpack.c.l.b16 %v7271
        %v7791 = vunpack.c.l.b16 %v7272
        %v7792 = vunpack.c.l.b16 %v7273
        %v7793 = vunpack.c.l.b16 %v7274
        %v7794 = vunpack.c.l.b16 %v7275
        %v7795 = vunpack.c.l.b16 %v7276
        %v7796 = vunpack.c.l.b16 %v7277
        %v7797 = vunpack.c.l.b16 %v7278
        %v7798 = vunpack.c.l.b16 %v7279
        %v7799 = vunpack.c.l.b16 %v7280
        %v7800 = vunpack.c.l.b16 %v7281
        %v7801 = vunpack.c.l.b16 %v7282
        %v7802 = vunpack.c.l.b16 %v7283
        %v7803 = vunpack.c.l.b16 %v7284
        %v7804 = vunpack.c.l.b16 %v7285
        %v7805 = vunpack.c.l.b16 %v7286
        %v7806 = vunpack.c.l.b16 %v7287
        %v7807 = vunpack.c.l.b16 %v7288
        %v7808 = vunpack.c.l.b16 %v7289
        %v7809 = vunpack.c.l.b16 %v7290
        %v7810 = vunpack.c.l.b16 %v7291
        %v7811 = vunpack.c.l.b16 %v7292
        %v7812 = vunpack.c.l.b16 %v7293
        %v7813 = vunpack.c.l.b16 %v7294
        %v7814 = vunpack.c.l.b16 %v7295
        %v7815 = vunpack.c.l.b16 %v7296
        %v7816 = vunpack.c.l.b16 %v7297
        %v7817 = vunpack.c.l.b16 %v7298
        %v7818 = vunpack.c.l.b16 %v7299
        %v7819 = vunpack.c.l.b16 %v7300
        %v7820 = vunpack.c.l.b16 %v7301
        %v7821 = vunpack.c.l.b16 %v7302
        %v7822 = vunpack.c.l.b16 %v7303
        %v7823 = vunpack.c.l.b16 %v7304
        %v7824 = vunpack.c.l.b16 %v7305
        %v7825 = vunpack.c.l.b16 %v7306
        %v7826 = vunpack.c.l.b16 %v7307
        %v7827 = vunpack.c.l.b16 %v7308
        %v7828 = vunpack.c.l.b16 %v7309
        %v7829 = vunpack.c.l.b16 %v7310
        %v7830 = vunpack.c.l.b16 %v7311
        %v7831 = vunpack.c.l.b16 %v7312
        %v7832 = vunpack.c.l.b16 %v7313
        %v7833 = vunpack.c.l.b16 %v7314
        %v7834 = vunpack.c.l.b16 %v7315
        %v7835 = vunpack.c.l.b16 %v7316
        %v7836 = vunpack.c.l.b16 %v7317
        %v7837 = vunpack.c.l.b16 %v7318
        %v7838 = vunpack.c.l.b16 %v7319
        %v7839 = vunpack.c.l.b16 %v7320
        %v7840 = vunpack.c.l.b16 %v7321
        %v7841 = vunpack.c.l.b16 %v7322
        %v7842 = vunpack.c.l.b16 %v7323
        %v7843 = vunpack.c.l.b16 %v7324
        %v7844 = vunpack.c.l.b16 %v7325
        %v7845 = vunpack.c.l.b16 %v7326
        %v7846 = vunpack.c.l.b16 %v7327
        %v7847 = vunpack.c.l.b16 %v7328
        %v7848 = vunpack.c.l.b16 %v7329
        %v7849 = vunpack.c.l.b16 %v7330
        %v7850 = vunpack.c.l.b16 %v7331
        %v7851 = vunpack.c.l.b16 %v7332
        %v7852 = vunpack.c.l.b16 %v7333
        %v7853 = vunpack.c.l.b16 %v7334
        %v7854 = vunpack.c.l.b16 %v7335
        %v7855 = vunpack.c.l.b16 %v7336
        %v7856 = vunpack.c.l.b16 %v7337
        %v7857 = vunpack.c.l.b16 %v7338
        %v7858 = vunpack.c.l.b16 %v7339
        %v7859 = vunpack.c.l.b16 %v7340
        %v7860 = vunpack.c.l.b16 %v7341
        %v7861 = vunpack.c.l.b16 %v7342
        %v7862 = vunpack.c.l.b16 %v7343
        %v7863 = vunpack.c.l.b16 %v7344
        %v7864 = vunpack.c.l.b16 %v7345
        %v7865 = vunpack.c.l.b16 %v7346
        %v7866 = vunpack.c.l.b16 %v7347
        %v7867 = vunpack.c.l.b16 %v7348
        %v7868 = vunpack.c.l.b16 %v7349
        %v7869 = vunpack.c.l.b16 %v7350
        %v7870 = vunpack.c.l.b16 %v7351
        %v7871 = vunpack.c.l.b16 %v7352
        %v7872 = vunpack.c.l.b16 %v7353
        %v7873 = vunpack.c.l.b16 %v7354
        %v7874 = vunpack.c.l.b16 %v7355
        %v7875 = vunpack.c.l.b16 %v7356
        %v7876 = vunpack.c.l.b16 %v7357
        %v7877 = vunpack.c.l.b16 %v7358
        %v7878 = vunpack.c.l.b16 %v7359
        %v7879 = vunpack.c.l.b16 %v7360
        %v7880 = vunpack.c.l.b16 %v7361
        %v7881 = vunpack.c.l.b16 %v7362
        %v7882 = vunpack.c.l.b16 %v7363
        %v7883 = vunpack.c.l.b16 %v7364
        %v7884 = vunpack.c.l.b16 %v7365
        %v7885 = vunpack.c.l.b16 %v7366
        %v7886 = vunpack.c.l.b16 %v7367
        %v7887 = vunpack.c.l.b16 %v7368
        %v7888 = vunpack.c.l.b16 %v7369
        %v7889 = vunpack.c.l.b16 %v7370
        %v7890 = vunpack.c.l.b16 %v7371
        %v7891 = vunpack.c.l.b16 %v7372
        %v7892 = vunpack.c.l.b16 %v7373
        %v7893 = vunpack.c.l.b16 %v7374
        %v7894 = vunpack.c.l.b16 %v7375
        %v7895 = vunpack.c.l.b16 %v7376
        %v7896 = vunpack.c.l.b16 %v7377
        %v7897 = vunpack.c.l.b16 %v7378
        %v7898 = vunpack.c.l.b16 %v7379
        %v7899 = vunpack.c.l.b16 %v7380
        %v7900 = vunpack.c.l.b16 %v7381
        %v7901 = vunpack.c.l.b16 %v7382
        %v7902 = vunpack.c.l.b16 %v7383
        %v7903 = vunpack.c.l.b16 %v7384
        %v7904 = vunpack.c.l.b16 %v7385
        %v7905 = vunpack.c.l.b16 %v7386
        %v7906 = vunpack.c.l.b16 %v7387
        %v7907 = vunpack.c.l.b16 %v7388
        %v7908 = vunpack.c.l.b16 %v7389
        %v7909 = vunpack.c.l.b16 %v7390
        %v7910 = vunpack.c.l.b16 %v7391
        %v7911 = vunpack.c.l.b16 %v7392
        %v7912 = vunpack.c.l.b16 %v7393
        %v7913 = vunpack.c.l.b16 %v7394
        %v7914 = vunpack.c.l.b16 %v7395
        %v7915 = vunpack.c.l.b16 %v7396
        %v7916 = vunpack.c.l.b16 %v7397
        %v7917 = vunpack.c.l.b16 %v7398
        %v7918 = vunpack.c.l.b16 %v7399
        %v7919 = vunpack.c.l.b16 %v7400
        %v7920 = vunpack.c.l.b16 %v7401
        %v7921 = vunpack.c.l.b16 %v7402
        %v7922 = vunpack.c.l.b16 %v7403
        %v7923 = vunpack.c.l.b16 %v7404
        %v7924 = vunpack.c.l.b16 %v7405
        %v7925 = vunpack.c.l.b16 %v7406
        %v7926 = vunpack.c.l.b16 %v7407
        %v7927 = vunpack.c.l.b16 %v7408
        %v7928 = vunpack.c.l.b16 %v7409
        %v7929 = vunpack.c.l.b16 %v7410
        %v7930 = vunpack.c.l.b16 %v7411
        %v7931 = vunpack.c.l.b16 %v7412
        %v7932 = vunpack.c.l.b16 %v7413
        %v7933 = vunpack.c.l.b16 %v7414
        %v7934 = vunpack.c.l.b16 %v7415
        %v7935 = vunpack.c.l.b16 %v7416
        %v7936 = vunpack.c.l.b16 %v7417
        %v7937 = vunpack.c.l.b16 %v7418
        %v7938 = vunpack.c.l.b16 %v7419
        %v7939 = vunpack.c.l.b16 %v7420
        %v7940 = vunpack.c.l.b16 %v7421
        %v7941 = vunpack.c.l.b16 %v7422
        %v7942 = vunpack.c.l.b16 %v7423
        %v7943 = vunpack.c.l.b16 %v7424
        %v7944 = vunpack.c.l.b16 %v7425
        %v7945 = vunpack.c.l.b16 %v7426
        %v7946 = vunpack.c.l.b16 %v7427
        %v7947 = vunpack.c.l.b16 %v7428
        %v7948 = vunpack.c.l.b16 %v7429
        %v7949 = vunpack.c.l.b16 %v7430
        %v7950 = vunpack.c.l.b16 %v7431
        %v7951 = vunpack.c.l.b16 %v7432
        %v7952 = vunpack.c.l.b16 %v7433
        %v7953 = vunpack.c.l.b16 %v7434
        %v7954 = vunpack.c.l.b16 %v7435
        %v7955 = vunpack.c.l.b16 %v7436
        %v7956 = vunpack.c.l.b16 %v7437
        %v7957 = vunpack.c.l.b16 %v7438
        %v7958 = vunpack.c.l.b16 %v7439
        %v7959 = vunpack.c.l.b16 %v7440
        %v7960 = vunpack.c.l.b16 %v7441
        %v7961 = vunpack.c.l.b16 %v7442
        %v7962 = vunpack.c.l.b16 %v7443
        %v7963 = vunpack.c.l.b16 %v7444
        %v7964 = vunpack.c.l.b16 %v7445
        %v7965 = vunpack.c.l.b16 %v7446
        %v7966 = vunpack.c.l.b16 %v7447
        %v7967 = vunpack.c.l.b16 %v7448
        %v7968 = vunpack.c.l.b16 %v7449
        %v7969 = vunpack.c.l.b16 %v7450
        %v7970 = vunpack.c.l.b16 %v7451
        %v7971 = vunpack.c.l.b16 %v7452
        %v7972 = vunpack.c.l.b16 %v7453
        %v7973 = vunpack.c.l.b16 %v7454
        %v7974 = vunpack.c.l.b16 %v7455
        %v7975 = vunpack.c.l.b16 %v7456
        %v7976 = vunpack.c.l.b16 %v7457
        %v7977 = vunpack.c.l.b16 %v7458
        %v7978 = vunpack.c.l.b16 %v7459
        %v7979 = vunpack.c.l.b16 %v7460
        %v7980 = vunpack.c.l.b16 %v7461
        %v7981 = vunpack.c.l.b16 %v7462
        %v7982 = vunpack.c.l.b16 %v7463
        %v7983 = vunpack.c.l.b16 %v7464
        %v7984 = vunpack.c.l.b16 %v7465
        %v7985 = vunpack.c.l.b16 %v7466
        %v7986 = vunpack.c.l.b16 %v7467
        %v7987 = vunpack.c.l.b16 %v7468
        %v7988 = vpack.c.b16 %v7733, %v7732
        %v7989 = vpack.c.b16 %v7735, %v7734
        %v7990 = vpack.c.b16 %v7737, %v7736
        %v7991 = vpack.c.b16 %v7739, %v7738
        %v7992 = vpack.c.b16 %v7741, %v7740
        %v7993 = vpack.c.b16 %v7743, %v7742
        %v7994 = vpack.c.b16 %v7745, %v7744
        %v7995 = vpack.c.b16 %v7747, %v7746
        %v7996 = vpack.c.b16 %v7749, %v7748
        %v7997 = vpack.c.b16 %v7751, %v7750
        %v7998 = vpack.c.b16 %v7753, %v7752
        %v7999 = vpack.c.b16 %v7755, %v7754
        %v8000 = vpack.c.b16 %v7757, %v7756
        %v8001 = vpack.c.b16 %v7759, %v7758
        %v8002 = vpack.c.b16 %v7761, %v7760
        %v8003 = vpack.c.b16 %v7763, %v7762
        %v8004 = vpack.c.b16 %v7765, %v7764
        %v8005 = vpack.c.b16 %v7767, %v7766
        %v8006 = vpack.c.b16 %v7769, %v7768
        %v8007 = vpack.c.b16 %v7771, %v7770
        %v8008 = vpack.c.b16 %v7773, %v7772
        %v8009 = vpack.c.b16 %v7775, %v7774
        %v8010 = vpack.c.b16 %v7777, %v7776
        %v8011 = vpack.c.b16 %v7779, %v7778
        %v8012 = vpack.c.b16 %v7781, %v7780
        %v8013 = vpack.c.b16 %v7783, %v7782
        %v8014 = vpack.c.b16 %v7785, %v7784
        %v8015 = vpack.c.b16 %v7787, %v7786
        %v8016 = vpack.c.b16 %v7789, %v7788
        %v8017 = vpack.c.b16 %v7791, %v7790
        %v8018 = vpack.c.b16 %v7793, %v7792
        %v8019 = vpack.c.b16 %v7795, %v7794
        %v8020 = vpack.c.b16 %v7797, %v7796
        %v8021 = vpack.c.b16 %v7799, %v7798
        %v8022 = vpack.c.b16 %v7801, %v7800
        %v8023 = vpack.c.b16 %v7803, %v7802
        %v8024 = vpack.c.b16 %v7805, %v7804
        %v8025 = vpack.c.b16 %v7807, %v7806
        %v8026 = vpack.c.b16 %v7809, %v7808
        %v8027 = vpack.c.b16 %v7811, %v7810
        %v8028 = vpack.c.b16 %v7813, %v7812
        %v8029 = vpack.c.b16 %v7815, %v7814
        %v8030 = vpack.c.b16 %v7817, %v7816
        %v8031 = vpack.c.b16 %v7819, %v7818
        %v8032 = vpack.c.b16 %v7821, %v7820
        %v8033 = vpack.c.b16 %v7823, %v7822
        %v8034 = vpack.c.b16 %v7825, %v7824
        %v8035 = vpack.c.b16 %v7827, %v7826
        %v8036 = vpack.c.b16 %v7829, %v7828
        %v8037 = vpack.c.b16 %v7831, %v7830
        %v8038 = vpack.c.b16 %v7833, %v7832
        %v8039 = vpack.c.b16 %v7835, %v7834
        %v8040 = vpack.c.b16 %v7837, %v7836
        %v8041 = vpack.c.b16 %v7839, %v7838
        %v8042 = vpack.c.b16 %v7841, %v7840
        %v8043 = vpack.c.b16 %v7843, %v7842
        %v8044 = vpack.c.b16 %v7845, %v7844
        %v8045 = vpack.c.b16 %v7847, %v7846
        %v8046 = vpack.c.b16 %v7849, %v7848
        %v8047 = vpack.c.b16 %v7851, %v7850
        %v8048 = vpack.c.b16 %v7853, %v7852
        %v8049 = vpack.c.b16 %v7855, %v7854
        %v8050 = vpack.c.b16 %v7857, %v7856
        %v8051 = vpack.c.b16 %v7859, %v7858
        %v8052 = vpack.c.b16 %v7861, %v7860
        %v8053 = vpack.c.b16 %v7863, %v7862
        %v8054 = vpack.c.b16 %v7865, %v7864
        %v8055 = vpack.c.b16 %v7867, %v7866
        %v8056 = vpack.c.b16 %v7869, %v7868
        %v8057 = vpack.c.b16 %v7871, %v7870
        %v8058 = vpack.c.b16 %v7873, %v7872
        %v8059 = vpack.c.b16 %v7875, %v7874
        %v8060 = vpack.c.b16 %v7877, %v7876
        %v8061 = vpack.c.b16 %v7879, %v7878
        %v8062 = vpack.c.b16 %v7881, %v7880
        %v8063 = vpack.c.b16 %v7883, %v7882
        %v8064 = vpack.c.b16 %v7885, %v7884
        %v8065 = vpack.c.b16 %v7887, %v7886
        %v8066 = vpack.c.b16 %v7889, %v7888
        %v8067 = vpack.c.b16 %v7891, %v7890
        %v8068 = vpack.c.b16 %v7893, %v7892
        %v8069 = vpack.c.b16 %v7895, %v7894
        %v8070 = vpack.c.b16 %v7897, %v7896
        %v8071 = vpack.c.b16 %v7899, %v7898
        %v8072 = vpack.c.b16 %v7901, %v7900
        %v8073 = vpack.c.b16 %v7903, %v7902
        %v8074 = vpack.c.b16 %v7905, %v7904
        %v8075 = vpack.c.b16 %v7907, %v7906
        %v8076 = vpack.c.b16 %v7909, %v7908
        %v8077 = vpack.c.b16 %v7911, %v7910
        %v8078 = vpack.c.b16 %v7913, %v7912
        %v8079 = vpack.c.b16 %v7915, %v7914
        %v8080 = vpack.c.b16 %v7917, %v7916
        %v8081 = vpack.c.b16 %v7919, %v7918
        %v8082 = vpack.c.b16 %v7921, %v7920
        %v8083 = vpack.c.b16 %v7923, %v7922
        %v8084 = vpack.c.b16 %v7925, %v7924
        %v8085 = vpack.c.b16 %v7927, %v7926
        %v8086 = vpack.c.b16 %v7929, %v7928
        %v8087 = vpack.c.b16 %v7931, %v7930
        %v8088 = vpack.c.b16 %v7933, %v7932
        %v8089 = vpack.c.b16 %v7935, %v7934
        %v8090 = vpack.c.b16 %v7937, %v7936
        %v8091 = vpack.c.b16 %v7939, %v7938
        %v8092 = vpack.c.b16 %v7941, %v7940
        %v8093 = vpack.c.b16 %v7943, %v7942
        %v8094 = vpack.c.b16 %v7945, %v7944
        %v8095 = vpack.c.b16 %v7947, %v7946
        %v8096 = vpack.c.b16 %v7949, %v7948
        %v8097 = vpack.c.b16 %v7951, %v7950
        %v8098 = vpack.c.b16 %v7953, %v7952
        %v8099 = vpack.c.b16 %v7955, %v7954
        %v8100 = vpack.c.b16 %v7957, %v7956
        %v8101 = vpack.c.b16 %v7959, %v7958
        %v8102 = vpack.c.b16 %v7961, %v7960
        %v8103 = vpack.c.b16 %v7963, %v7962
        %v8104 = vpack.c.b16 %v7965, %v7964
        %v8105 = vpack.c.b16 %v7967, %v7966
        %v8106 = vpack.c.b16 %v7969, %v7968
        %v8107 = vpack.c.b16 %v7971, %v7970
        %v8108 = vpack.c.b16 %v7973, %v7972
        %v8109 = vpack.c.b16 %v7975, %v7974
        %v8110 = vpack.c.b16 %v7977, %v7976
        %v8111 = vpack.c.b16 %v7979, %v7978
        %v8112 = vpack.c.b16 %v7981, %v7980
        %v8113 = vpack.c.b16 %v7983, %v7982
        %v8114 = vpack.c.b16 %v7985, %v7984
        %v8115 = vpack.c.b16 %v7987, %v7986
        %8244 = vmatprep.subr.bf16.mxu0 0
        %8245 = vmatpush1.bf16.msra.mxu0 %v7988
        %8246 = vmatprep.subr.bf16.mxu0 0
        %8247 = vmatpush1.bf16.msra.mxu0 %v7989
        %8248 = vmatprep.subr.bf16.mxu0 0
        %8249 = vmatpush1.bf16.msra.mxu0 %v7990
        %8250 = vmatprep.subr.bf16.mxu0 0
        %8251 = vmatpush1.bf16.msra.mxu0 %v7991
        %8252 = vmatprep.subr.bf16.mxu0 0
        %8253 = vmatpush1.bf16.msra.mxu0 %v7992
        %8254 = vmatprep.subr.bf16.mxu0 0
        %8255 = vmatpush1.bf16.msra.mxu0 %v7993
        %8256 = vmatprep.subr.bf16.mxu0 0
        %8257 = vmatpush1.bf16.msra.mxu0 %v7994
        %8258 = vmatprep.subr.bf16.mxu0 0
        %8259 = vmatpush1.bf16.msra.mxu0 %v7995
        %8260 = vmatprep.subr.bf16.mxu0 0
        %8261 = vmatpush1.bf16.msra.mxu0 %v7996
        %8262 = vmatprep.subr.bf16.mxu0 0
        %8263 = vmatpush1.bf16.msra.mxu0 %v7997
        %8264 = vmatprep.subr.bf16.mxu0 0
        %8265 = vmatpush1.bf16.msra.mxu0 %v7998
        %8266 = vmatprep.subr.bf16.mxu0 0
        %8267 = vmatpush1.bf16.msra.mxu0 %v7999
        %8268 = vmatprep.subr.bf16.mxu0 0
        %8269 = vmatpush1.bf16.msra.mxu0 %v8000
        %8270 = vmatprep.subr.bf16.mxu0 0
        %8271 = vmatpush1.bf16.msra.mxu0 %v8001
        %8272 = vmatprep.subr.bf16.mxu0 0
        %8273 = vmatpush1.bf16.msra.mxu0 %v8002
        %8274 = vmatprep.subr.bf16.mxu0 0
        %8275 = vmatpush1.bf16.msra.mxu0 %v8003
        %8276 = vmatprep.mubr.bf16.mxu0 %v7198
        %8277 = vmatmul.mubr.bf16.gmra.mrb[0].mxu0 %v7197
        %v8278 = vpop.f32.mrb[0].mxu0
        %v8279 = vadd.f32 %v7474, %v8278
        %v8280 = vpop.f32.mrb[0].mxu0
        %v8281 = vpop.f32.mrb[0].mxu0
        %v8282 = vpop.f32.mrb[0].mxu0
        %8283 = vdwg.mxu0
        %8284 = vmatprep.subr.bf16.mxu0 0
        %8285 = vmatpush1.bf16.msra.mxu0 %v8004
        %8286 = vmatprep.subr.bf16.mxu0 0
        %8287 = vmatpush1.bf16.msra.mxu0 %v8005
        %8288 = vmatprep.subr.bf16.mxu0 0
        %8289 = vmatpush1.bf16.msra.mxu0 %v8006
        %8290 = vmatprep.subr.bf16.mxu0 0
        %8291 = vmatpush1.bf16.msra.mxu0 %v8007
        %8292 = vmatprep.subr.bf16.mxu0 0
        %8293 = vmatpush1.bf16.msra.mxu0 %v8008
        %8294 = vmatprep.subr.bf16.mxu0 0
        %8295 = vmatpush1.bf16.msra.mxu0 %v8009
        %8296 = vmatprep.subr.bf16.mxu0 0
        %8297 = vmatpush1.bf16.msra.mxu0 %v8010
        %8298 = vmatprep.subr.bf16.mxu0 0
        %8299 = vmatpush1.bf16.msra.mxu0 %v8011
        %8300 = vmatprep.subr.bf16.mxu0 0
        %8301 = vmatpush1.bf16.msra.mxu0 %v8012
        %8302 = vmatprep.subr.bf16.mxu0 0
        %8303 = vmatpush1.bf16.msra.mxu0 %v8013
        %8304 = vmatprep.subr.bf16.mxu0 0
        %8305 = vmatpush1.bf16.msra.mxu0 %v8014
        %8306 = vmatprep.subr.bf16.mxu0 0
        %8307 = vmatpush1.bf16.msra.mxu0 %v8015
        %8308 = vmatprep.subr.bf16.mxu0 0
        %8309 = vmatpush1.bf16.msra.mxu0 %v8016
        %8310 = vmatprep.subr.bf16.mxu0 0
        %8311 = vmatpush1.bf16.msra.mxu0 %v8017
        %8312 = vmatprep.subr.bf16.mxu0 0
        %8313 = vmatpush1.bf16.msra.mxu0 %v8018
        %8314 = vmatprep.subr.bf16.mxu0 0
        %8315 = vmatpush1.bf16.msra.mxu0 %v8019
        %8316 = vmatprep.mubr.bf16.mxu0 %v7200
        %8317 = vmatmul.mubr.bf16.gmra.mrb[0].mxu0 %v7199
        %v8318 = vpop.f32.mrb[0].mxu0
        %v8319 = vadd.f32 %v8279, %v8318
        %v8320 = vpop.f32.mrb[0].mxu0
        %v8321 = vpop.f32.mrb[0].mxu0
        %v8322 = vpop.f32.mrb[0].mxu0
        %8323 = vdwg.mxu0
        %8324 = vmatprep.subr.bf16.mxu0 0
        %8325 = vmatpush1.bf16.msra.mxu0 %v8020
        %8326 = vmatprep.subr.bf16.mxu0 0
        %8327 = vmatpush1.bf16.msra.mxu0 %v8021
        %8328 = vmatprep.subr.bf16.mxu0 0
        %8329 = vmatpush1.bf16.msra.mxu0 %v8022
        %8330 = vmatprep.subr.bf16.mxu0 0
        %8331 = vmatpush1.bf16.msra.mxu0 %v8023
        %8332 = vmatprep.subr.bf16.mxu0 0
        %8333 = vmatpush1.bf16.msra.mxu0 %v8024
        %8334 = vmatprep.subr.bf16.mxu0 0
        %8335 = vmatpush1.bf16.msra.mxu0 %v8025
        %8336 = vmatprep.subr.bf16.mxu0 0
        %8337 = vmatpush1.bf16.msra.mxu0 %v8026
        %8338 = vmatprep.subr.bf16.mxu0 0
        %8339 = vmatpush1.bf16.msra.mxu0 %v8027
        %8340 = vmatprep.subr.bf16.mxu0 0
        %8341 = vmatpush1.bf16.msra.mxu0 %v8028
        %8342 = vmatprep.subr.bf16.mxu0 0
        %8343 = vmatpush1.bf16.msra.mxu0 %v8029
        %8344 = vmatprep.subr.bf16.mxu0 0
        %8345 = vmatpush1.bf16.msra.mxu0 %v8030
        %8346 = vmatprep.subr.bf16.mxu0 0
        %8347 = vmatpush1.bf16.msra.mxu0 %v8031
        %8348 = vmatprep.subr.bf16.mxu0 0
        %8349 = vmatpush1.bf16.msra.mxu0 %v8032
        %8350 = vmatprep.subr.bf16.mxu0 0
        %8351 = vmatpush1.bf16.msra.mxu0 %v8033
        %8352 = vmatprep.subr.bf16.mxu0 0
        %8353 = vmatpush1.bf16.msra.mxu0 %v8034
        %8354 = vmatprep.subr.bf16.mxu0 0
        %8355 = vmatpush1.bf16.msra.mxu0 %v8035
        %8356 = vmatprep.mubr.bf16.mxu0 %v7202
        %8357 = vmatmul.mubr.bf16.gmra.mrb[0].mxu0 %v7201
        %v8358 = vpop.f32.mrb[0].mxu0
        %v8359 = vadd.f32 %v8319, %v8358
        %v8360 = vpop.f32.mrb[0].mxu0
        %v8361 = vpop.f32.mrb[0].mxu0
        %v8362 = vpop.f32.mrb[0].mxu0
        %8363 = vdwg.mxu0
        %8364 = vmatprep.subr.bf16.mxu0 0
        %8365 = vmatpush1.bf16.msra.mxu0 %v8036
        %8366 = vmatprep.subr.bf16.mxu0 0
        %8367 = vmatpush1.bf16.msra.mxu0 %v8037
        %8368 = vmatprep.subr.bf16.mxu0 0
        %8369 = vmatpush1.bf16.msra.mxu0 %v8038
        %8370 = vmatprep.subr.bf16.mxu0 0
        %8371 = vmatpush1.bf16.msra.mxu0 %v8039
        %8372 = vmatprep.subr.bf16.mxu0 0
        %8373 = vmatpush1.bf16.msra.mxu0 %v8040
        %8374 = vmatprep.subr.bf16.mxu0 0
        %8375 = vmatpush1.bf16.msra.mxu0 %v8041
        %8376 = vmatprep.subr.bf16.mxu0 0
        %8377 = vmatpush1.bf16.msra.mxu0 %v8042
        %8378 = vmatprep.subr.bf16.mxu0 0
        %8379 = vmatpush1.bf16.msra.mxu0 %v8043
        %8380 = vmatprep.subr.bf16.mxu0 0
        %8381 = vmatpush1.bf16.msra.mxu0 %v8044
        %8382 = vmatprep.subr.bf16.mxu0 0
        %8383 = vmatpush1.bf16.msra.mxu0 %v8045
        %8384 = vmatprep.subr.bf16.mxu0 0
        %8385 = vmatpush1.bf16.msra.mxu0 %v8046
        %8386 = vmatprep.subr.bf16.mxu0 0
        %8387 = vmatpush1.bf16.msra.mxu0 %v8047
        %8388 = vmatprep.subr.bf16.mxu0 0
        %8389 = vmatpush1.bf16.msra.mxu0 %v8048
        %8390 = vmatprep.subr.bf16.mxu0 0
        %8391 = vmatpush1.bf16.msra.mxu0 %v8049
        %8392 = vmatprep.subr.bf16.mxu0 0
        %8393 = vmatpush1.bf16.msra.mxu0 %v8050
        %8394 = vmatprep.subr.bf16.mxu0 0
        %8395 = vmatpush1.bf16.msra.mxu0 %v8051
        %8396 = vmatprep.mubr.bf16.mxu0 %v7204
        %8397 = vmatmul.mubr.bf16.gmra.mrb[0].mxu0 %v7203
        %v8398 = vpop.f32.mrb[0].mxu0
        %v8399 = vadd.f32 %v8359, %v8398
        %v8400 = vpop.f32.mrb[0].mxu0
        %v8401 = vpop.f32.mrb[0].mxu0
        %v8402 = vpop.f32.mrb[0].mxu0
        %8403 = vdwg.mxu0
        %8404 = vmatprep.subr.bf16.mxu0 0
        %8405 = vmatpush1.bf16.msra.mxu0 %v8052
        %8406 = vmatprep.subr.bf16.mxu0 0
        %8407 = vmatpush1.bf16.msra.mxu0 %v8053
        %8408 = vmatprep.subr.bf16.mxu0 0
        %8409 = vmatpush1.bf16.msra.mxu0 %v8054
        %8410 = vmatprep.subr.bf16.mxu0 0
        %8411 = vmatpush1.bf16.msra.mxu0 %v8055
        %8412 = vmatprep.subr.bf16.mxu0 0
        %8413 = vmatpush1.bf16.msra.mxu0 %v8056
        %8414 = vmatprep.subr.bf16.mxu0 0
        %8415 = vmatpush1.bf16.msra.mxu0 %v8057
        %8416 = vmatprep.subr.bf16.mxu0 0
        %8417 = vmatpush1.bf16.msra.mxu0 %v8058
        %8418 = vmatprep.subr.bf16.mxu0 0
        %8419 = vmatpush1.bf16.msra.mxu0 %v8059
        %8420 = vmatprep.subr.bf16.mxu0 0
        %8421 = vmatpush1.bf16.msra.mxu0 %v8060
        %8422 = vmatprep.subr.bf16.mxu0 0
        %8423 = vmatpush1.bf16.msra.mxu0 %v8061
        %8424 = vmatprep.subr.bf16.mxu0 0
        %8425 = vmatpush1.bf16.msra.mxu0 %v8062
        %8426 = vmatprep.subr.bf16.mxu0 0
        %8427 = vmatpush1.bf16.msra.mxu0 %v8063
        %8428 = vmatprep.subr.bf16.mxu0 0
        %8429 = vmatpush1.bf16.msra.mxu0 %v8064
        %8430 = vmatprep.subr.bf16.mxu0 0
        %8431 = vmatpush1.bf16.msra.mxu0 %v8065
        %8432 = vmatprep.subr.bf16.mxu0 0
        %8433 = vmatpush1.bf16.msra.mxu0 %v8066
        %8434 = vmatprep.subr.bf16.mxu0 0
        %8435 = vmatpush1.bf16.msra.mxu0 %v8067
        %8436 = vmatprep.mubr.bf16.mxu0 %v7206
        %8437 = vmatmul.mubr.bf16.gmra.mrb[0].mxu0 %v7205
        %v8438 = vpop.f32.mrb[0].mxu0
        %v8439 = vadd.f32 %v8399, %v8438
        %v8440 = vpop.f32.mrb[0].mxu0
        %v8441 = vpop.f32.mrb[0].mxu0
        %v8442 = vpop.f32.mrb[0].mxu0
        %8443 = vdwg.mxu0
        %8444 = vmatprep.subr.bf16.mxu0 0
        %8445 = vmatpush1.bf16.msra.mxu0 %v8068
        %8446 = vmatprep.subr.bf16.mxu0 0
        %8447 = vmatpush1.bf16.msra.mxu0 %v8069
        %8448 = vmatprep.subr.bf16.mxu0 0
        %8449 = vmatpush1.bf16.msra.mxu0 %v8070
        %8450 = vmatprep.subr.bf16.mxu0 0
        %8451 = vmatpush1.bf16.msra.mxu0 %v8071
        %8452 = vmatprep.subr.bf16.mxu0 0
        %8453 = vmatpush1.bf16.msra.mxu0 %v8072
        %8454 = vmatprep.subr.bf16.mxu0 0
        %8455 = vmatpush1.bf16.msra.mxu0 %v8073
        %8456 = vmatprep.subr.bf16.mxu0 0
        %8457 = vmatpush1.bf16.msra.mxu0 %v8074
        %8458 = vmatprep.subr.bf16.mxu0 0
        %8459 = vmatpush1.bf16.msra.mxu0 %v8075
        %8460 = vmatprep.subr.bf16.mxu0 0
        %8461 = vmatpush1.bf16.msra.mxu0 %v8076
        %8462 = vmatprep.subr.bf16.mxu0 0
        %8463 = vmatpush1.bf16.msra.mxu0 %v8077
        %8464 = vmatprep.subr.bf16.mxu0 0
        %8465 = vmatpush1.bf16.msra.mxu0 %v8078
        %8466 = vmatprep.subr.bf16.mxu0 0
        %8467 = vmatpush1.bf16.msra.mxu0 %v8079
        %8468 = vmatprep.subr.bf16.mxu0 0
        %8469 = vmatpush1.bf16.msra.mxu0 %v8080
        %8470 = vmatprep.subr.bf16.mxu0 0
        %8471 = vmatpush1.bf16.msra.mxu0 %v8081
        %8472 = vmatprep.subr.bf16.mxu0 0
        %8473 = vmatpush1.bf16.msra.mxu0 %v8082
        %8474 = vmatprep.subr.bf16.mxu0 0
        %8475 = vmatpush1.bf16.msra.mxu0 %v8083
        %8476 = vmatprep.mubr.bf16.mxu0 %v7208
        %8477 = vmatmul.mubr.bf16.gmra.mrb[0].mxu0 %v7207
        %v8478 = vpop.f32.mrb[0].mxu0
        %v8479 = vadd.f32 %v8439, %v8478
        %v8480 = vpop.f32.mrb[0].mxu0
        %v8481 = vpop.f32.mrb[0].mxu0
        %v8482 = vpop.f32.mrb[0].mxu0
        %8483 = vdwg.mxu0
        %8484 = vmatprep.subr.bf16.mxu0 0
        %8485 = vmatpush1.bf16.msra.mxu0 %v8084
        %8486 = vmatprep.subr.bf16.mxu0 0
        %8487 = vmatpush1.bf16.msra.mxu0 %v8085
        %8488 = vmatprep.subr.bf16.mxu0 0
        %8489 = vmatpush1.bf16.msra.mxu0 %v8086
        %8490 = vmatprep.subr.bf16.mxu0 0
        %8491 = vmatpush1.bf16.msra.mxu0 %v8087
        %8492 = vmatprep.subr.bf16.mxu0 0
        %8493 = vmatpush1.bf16.msra.mxu0 %v8088
        %8494 = vmatprep.subr.bf16.mxu0 0
        %8495 = vmatpush1.bf16.msra.mxu0 %v8089
        %8496 = vmatprep.subr.bf16.mxu0 0
        %8497 = vmatpush1.bf16.msra.mxu0 %v8090
        %8498 = vmatprep.subr.bf16.mxu0 0
        %8499 = vmatpush1.bf16.msra.mxu0 %v8091
        %8500 = vmatprep.subr.bf16.mxu0 0
        %8501 = vmatpush1.bf16.msra.mxu0 %v8092
        %8502 = vmatprep.subr.bf16.mxu0 0
        %8503 = vmatpush1.bf16.msra.mxu0 %v8093
        %8504 = vmatprep.subr.bf16.mxu0 0
        %8505 = vmatpush1.bf16.msra.mxu0 %v8094
        %8506 = vmatprep.subr.bf16.mxu0 0
        %8507 = vmatpush1.bf16.msra.mxu0 %v8095
        %8508 = vmatprep.subr.bf16.mxu0 0
        %8509 = vmatpush1.bf16.msra.mxu0 %v8096
        %8510 = vmatprep.subr.bf16.mxu0 0
        %8511 = vmatpush1.bf16.msra.mxu0 %v8097
        %8512 = vmatprep.subr.bf16.mxu0 0
        %8513 = vmatpush1.bf16.msra.mxu0 %v8098
        %8514 = vmatprep.subr.bf16.mxu0 0
        %8515 = vmatpush1.bf16.msra.mxu0 %v8099
        %8516 = vmatprep.mubr.bf16.mxu0 %v7210
        %8517 = vmatmul.mubr.bf16.gmra.mrb[0].mxu0 %v7209
        %v8518 = vpop.f32.mrb[0].mxu0
        %v8519 = vadd.f32 %v8479, %v8518
        %v8520 = vpop.f32.mrb[0].mxu0
        %v8521 = vpop.f32.mrb[0].mxu0
        %v8522 = vpop.f32.mrb[0].mxu0
        %8523 = vdwg.mxu0
        %8524 = vmatprep.subr.bf16.mxu0 0
        %8525 = vmatpush1.bf16.msra.mxu0 %v8100
        %8526 = vmatprep.subr.bf16.mxu0 0
        %8527 = vmatpush1.bf16.msra.mxu0 %v8101
        %8528 = vmatprep.subr.bf16.mxu0 0
        %8529 = vmatpush1.bf16.msra.mxu0 %v8102
        %8530 = vmatprep.subr.bf16.mxu0 0
        %8531 = vmatpush1.bf16.msra.mxu0 %v8103
        %8532 = vmatprep.subr.bf16.mxu0 0
        %8533 = vmatpush1.bf16.msra.mxu0 %v8104
        %8534 = vmatprep.subr.bf16.mxu0 0
        %8535 = vmatpush1.bf16.msra.mxu0 %v8105
        %8536 = vmatprep.subr.bf16.mxu0 0
        %8537 = vmatpush1.bf16.msra.mxu0 %v8106
        %8538 = vmatprep.subr.bf16.mxu0 0
        %8539 = vmatpush1.bf16.msra.mxu0 %v8107
        %8540 = vmatprep.subr.bf16.mxu0 0
        %8541 = vmatpush1.bf16.msra.mxu0 %v8108
        %8542 = vmatprep.subr.bf16.mxu0 0
        %8543 = vmatpush1.bf16.msra.mxu0 %v8109
        %8544 = vmatprep.subr.bf16.mxu0 0
        %8545 = vmatpush1.bf16.msra.mxu0 %v8110
        %8546 = vmatprep.subr.bf16.mxu0 0
        %8547 = vmatpush1.bf16.msra.mxu0 %v8111
        %8548 = vmatprep.subr.bf16.mxu0 0
        %8549 = vmatpush1.bf16.msra.mxu0 %v8112
        %8550 = vmatprep.subr.bf16.mxu0 0
        %8551 = vmatpush1.bf16.msra.mxu0 %v8113
        %8552 = vmatprep.subr.bf16.mxu0 0
        %8553 = vmatpush1.bf16.msra.mxu0 %v8114
        %8554 = vmatprep.subr.bf16.mxu0 0
        %8555 = vmatpush1.bf16.msra.mxu0 %v8115
        %8556 = vmatprep.mubr.bf16.mxu0 %v7212
        %8557 = vmatmul.mubr.bf16.gmra.mrb[0].mxu0 %v7211
        %v8558 = vpop.f32.mrb[0].mxu0
        %v8559 = vadd.f32 %v8519, %v8558
        %v8560 = vpop.f32.mrb[0].mxu0
        %v8561 = vpop.f32.mrb[0].mxu0
        %v8562 = vpop.f32.mrb[0].mxu0
        %8563 = vdwg.mxu0
        %8564 = vst [vmem:[%s417] sm:$0x7] %v8559
        %p8565 = scmp.lt.s32.totalorder %s26, 1
        %s8566 = scalar_select %p8565, %s26, 1
        %s8567 = smul.addr %s8566, 4
        %s8568 = scalar_lea.vmem %s8, %s8567
        // Predicated region
        $region85: #{tpu_custom_call.1} parent=51 // pred_check
          %p8569 = pneg %p217
        $region86: #{tpu_custom_call.1} parent=51 // pred_check_branch
          %8571 = sbr.rel (%p8569) target = $region88
        $region87: #{tpu_custom_call.1} parent=51 // pred_region
          _
        $region88: #{tpu_custom_call.1} parent=51 // pred_fallthru
          _
      $region52: #{tpu_custom_call.1} parent=5 // pred_fallthru
        _
      %p8572 = scmp.le.s32.totalorder 2, %s21
      // Predicated region
      $region89: #{tpu_custom_call.1} parent=5 // pred_check
        %p8573 = pneg %p8572
      $region90: #{tpu_custom_call.1} parent=5 // pred_check_branch
        %8575 = sbr.rel (%p8573) target = $region92
      $region91: #{tpu_custom_call.1} parent=5 // pred_region
        %s8576 = ssub.s32 %s21, 2
        // Predicated region
        $region93: #{tpu_custom_call.1} parent=91 // pred_check
          %p8577 = pneg %p223
        $region94: #{tpu_custom_call.1} parent=91 // pred_check_branch
          %8579 = sbr.rel (%p8577) target = $region96
        $region95: #{tpu_custom_call.1} parent=91 // pred_region
          %p8580 = scmp.lt.s32.totalorder %s27, 1
          %s8581 = scalar_select %p8580, %s27, 1
          %s8582 = smul.addr %s8581, 4
          %s8583 = scalar_lea.vmem %s8, %s8582
        $region96: #{tpu_custom_call.1} parent=91 // pred_fallthru
          _
      $region92: #{tpu_custom_call.1} parent=5 // pred_fallthru
        _
    $region6: #{tpu_custom_call.1} parent=1 // loop_footer
      %s25 = sadd.s32 1, %s21
    $region7: #{tpu_custom_call.1} parent=1 // loop_footer_branch
      %20 = sbr.rel target = $region3
    $region8: #{tpu_custom_call.1} parent=1 // loop_exit
      _
    %8584 = vsyncpa [#allocation4], 1
    %s8585 = scalar_lea.sflag [#allocation4], 1
    %8586 = vsyncpa %s8585, 1
    %8587 = vsyncpa [#allocation6], 1
    %8588 = vsyncpa [#allocation9], 1
    %8589 = vsyncpa [#allocation12], 1
    %8590 = vsyncpa [#allocation15], 1

</llo_original>
